<compile_context>
chip_gen: v7x
topology: tpu7x:2x2x1
jax: 0.10.0
libtpu: 0.0.40
codegen_flags: <defaults>
</compile_context>

<pallas_src>
import jax
import jax.numpy as jnp
from jax import lax
from jax.experimental import pallas as pl
from jax.experimental.pallas import tpu as pltpu

# ----------------------------- layout constants -----------------------------
N = 16                      # batch (hard-coded by the PyTorch module); also the
                            # row-block per spatial position (== bf16 sublane tile)
G1, G2 = 29, 15             # zero-padded grids for the 28x28 / 14x14 conv stages
NP1, NP2 = G1 * G1, G2 * G2           # 841 / 225 positions per image
R1, R2 = NP1 * N, NP2 * N             # 13456 / 3600 activation rows
SH1 = [(dy - 1) * G1 + (dx - 1) for dy in range(3) for dx in range(3)]  # conv2 taps
SH2 = [(dy - 1) * G2 + (dx - 1) for dy in range(3) for dx in range(3)]  # conv3 taps
GUARD1 = 30 * N             # 480 zero guard rows  (= max |conv2 tap shift| * N)
GUARD2 = 16 * N             # 256 zero guard rows  (= max |conv3 tap shift| * N)
CH1 = G1 * N                # 464-row chunk == one grid row of the 29-grid
CH2 = G2 * N                # 240-row chunk == one grid row of the 15-grid


# ------------------------------ the fused kernel -----------------------------

def _cnn_kernel(p1_ref, w1_ref, b1_ref, w2_ref, b2_ref, w3_ref, b3_ref,
                wf1_ref, bf1_ref, wf2_ref, bf2_ref,
                o_ref,
                y1g, p2c, y2, p3g, p3c, y3, flat):
    """Whole CNN forward for one batch of 16 images, all in VMEM.

    p1_ref : (R1, 16)  bf16  conv1 im2col patches (9 taps + 7 zero cols), p-major
    w1     : (16, 16)  bf16 (9 real rows)        b1  : (1, 16)  f32
    w2     : (144, 32) bf16 tap-major            b2  : (1, 32)  f32
    w3     : (288, 64) bf16 tap-major            b3  : (1, 64)  f32
    wf1    : (3136,100)bf16 (rows = pos*64+ch)   bf1 : (1, 100) f32
    wf2    : (100, 10) bf16                      bf2 : (1, 10)  f32
    o_ref  : (16, 10)  f32
    scratch: y1g (guarded conv1 out), p2c/p3c (per-chunk tap concat),
             y2/y3 (conv2/conv3 out), p3g (guarded pool1 out), flat (fc input)
    """
    f32, bf = jnp.float32, jnp.bfloat16

    w1 = w1_ref[...]
    b1 = b1_ref[...]
    w2 = w2_ref[...]
    b2 = b2_ref[...]
    w3 = w3_ref[...]
    b3 = b3_ref[...]

    # ---------------- conv1 (1->16) + ReLU -----------------------------------
    # Guard rows, the y==28 pad row and the bottom guard must read as zeros for
    # conv2's shifted taps.
    y1g[0:GUARD1, :] = jnp.zeros((GUARD1, 16), bf)
    y1g[GUARD1 + (G1 - 1) * CH1:, :] = jnp.zeros((CH1 + GUARD1, 16), bf)
    # Within a chunk (= one row of the 29-grid) the last 16 rows are the x==28
    # pad position: mask them to zero after bias+ReLU.
    pad_x = lax.broadcasted_iota(jnp.int32, (CH1, 1), 0) < (G1 - 1) * N

    def conv1_chunk(c, carry):
        src = pl.multiple_of(c * CH1, N)
        y = jnp.dot(p1_ref[pl.ds(src, CH1), :], w1, preferred_element_type=f32)
        y = jnp.maximum(y + b1, 0.0)
        y = jnp.where(pad_x, y, 0.0)
        dst = pl.multiple_of(GUARD1 + c * CH1, N)
        y1g[pl.ds(dst, CH1), :] = y.astype(bf)
        return carry

    lax.fori_loop(0, G1 - 1, conv1_chunk, 0)          # real grid rows y = 0..27

    # ---------------- conv2 (16->32) + ReLU: K=144 implicit GEMM -------------
    def conv2_chunk(c, carry):
        base = GUARD1 + c * CH1
        for t, s in enumerate(SH1):                   # 9 row-shifted taps -> lanes
            src = pl.multiple_of(base + s * N, N)
            p2c[:, 16 * t:16 * (t + 1)] = y1g[pl.ds(src, CH1), :]
        y = jnp.dot(p2c[...], w2, preferred_element_type=f32)
        y = jnp.maximum(y + b2, 0.0)
        y2[pl.ds(pl.multiple_of(c * CH1, N), CH1), :] = y.astype(bf)
        return carry

    lax.fori_loop(0, G1 - 1, conv2_chunk, 0)          # pool1 never reads y==28

    # ---------------- maxpool1 2x2 -> 15-grid layout (conv3 input) -----------
    p3g[...] = jnp.zeros((GUARD2 + R2 + GUARD2, 32), bf)   # guards + pad positions

    def pool1_row(yy, carry):
        def pool1_col(xx, carry2):
            r0 = pl.multiple_of(yy * (2 * G1 * N) + xx * (2 * N), N)
            m = jnp.maximum(
                jnp.maximum(y2[pl.ds(r0, N), :], y2[pl.ds(r0 + N, N), :]),
                jnp.maximum(y2[pl.ds(r0 + G1 * N, N), :],
                            y2[pl.ds(r0 + (G1 + 1) * N, N), :]))
            dst = pl.multiple_of(GUARD2 + (yy * G2 + xx) * N, N)
            p3g[pl.ds(dst, N), :] = m
            return carry2
        return lax.fori_loop(0, 14, pool1_col, carry)

    lax.fori_loop(0, 14, pool1_row, 0)

    # ---------------- conv3 (32->64) + ReLU: K=288 implicit GEMM -------------
    def conv3_chunk(c, carry):
        base = GUARD2 + c * CH2
        for t, s in enumerate(SH2):
            src = pl.multiple_of(base + s * N, N)
            p3c[:, 32 * t:32 * (t + 1)] = p3g[pl.ds(src, CH2), :]
        y = jnp.dot(p3c[...], w3, preferred_element_type=f32)
        y = jnp.maximum(y + b3, 0.0)
        y3[pl.ds(pl.multiple_of(c * CH2, N), CH2), :] = y.astype(bf)
        return carry

    lax.fori_loop(0, G2 - 1, conv3_chunk, 0)          # pool2 never reads y==14

    # ---------------- maxpool2 2x2 + flatten into (16, 3136) -----------------
    for P in range(49):                               # static starts, unrolled
        yy, xx = divmod(P, 7)
        r0 = (2 * yy * G2 + 2 * xx) * N
        m = jnp.maximum(
            jnp.maximum(y3[r0:r0 + N, :], y3[r0 + N:r0 + 2 * N, :]),
            jnp.maximum(y3[r0 + G2 * N:r0 + (G2 + 1) * N, :],
                        y3[r0 + (G2 + 1) * N:r0 + (G2 + 2) * N, :]))
        flat[:, 64 * P:64 * (P + 1)] = m

    # ---------------- fc1 (3136->100) + ReLU and fc2 (100->10) ---------------
    acc = jnp.zeros((N, 100), f32)
    for k in range(7):                                # chunk K to keep operands small
        acc = acc + jnp.dot(flat[:, 448 * k:448 * (k + 1)],
                            wf1_ref[448 * k:448 * (k + 1), :],
                            preferred_element_type=f32)
    h = jnp.maximum(acc + bf1_ref[...], 0.0).astype(bf)
    out = jnp.dot(h, wf2_ref[...], preferred_element_type=f32) + bf2_ref[...]
    o_ref[...] = out


def _cnn_pallas(p1, w1, b1, w2, b2, w3, b3, wf1, bf1, wf2, bf2):
    bf = jnp.bfloat16
    vmem = pl.BlockSpec(memory_space=pltpu.MemorySpace.VMEM)
    return pl.pallas_call(
        _cnn_kernel,
        out_shape=jax.ShapeDtypeStruct((N, 10), jnp.float32),
        in_specs=[vmem] * 11,
        out_specs=vmem,
        scratch_shapes=[
            pltpu.VMEM((GUARD1 + R1 + GUARD1, 16), bf),   # y1g  conv1 out (guarded)
            pltpu.VMEM((CH1, 144), bf),                   # p2c  conv2 tap concat
            pltpu.VMEM((R1, 32), bf),                     # y2   conv2 out
            pltpu.VMEM((GUARD2 + R2 + GUARD2, 32), bf),   # p3g  pool1 out (guarded)
            pltpu.VMEM((CH2, 288), bf),                   # p3c  conv3 tap concat
            pltpu.VMEM((R2, 64), bf),                     # y3   conv3 out
            pltpu.VMEM((N, 3136), bf),                    # flat fc input
        ],
        compiler_params=pltpu.CompilerParams(vmem_limit_bytes=40 * 1024 * 1024),
    )(p1, w1, b1, w2, b2, w3, b3, wf1, bf1, wf2, bf2)


# -------------------------------- the model ---------------------------------

def cnn_forward(x_nchw, p):
    """Forward pass of the PyTorch CNN. x_nchw: (16, 1, 28, 28) f32 -> (16, 10)."""
    n = x_nchw.shape[0]
    assert n == N, "the PyTorch module hard-codes out.view(batch_size=16, -1)"
    bf = jnp.bfloat16

    # conv1 im2col (Cin=1, tiny) + packing into the position-major layout
    # row = (y*29 + x)*16 + image.  Kept as cheap XLA prep: it is a pure
    # relayout of a 50 KB image; all heavy math happens in the single kernel.
    x = x_nchw.reshape(n, 28, 28)
    xp = jnp.pad(x, ((0, 0), (1, 2), (1, 2)))                          # (N,31,31)
    taps = jnp.stack([xp[:, dy:dy + G1, dx:dx + G1]
                      for dy in range(3) for dx in range(3)], axis=-1)  # (N,29,29,9)
    p1 = jnp.transpose(taps, (1, 2, 0, 3)).reshape(R1, 9)
    p1 = jnp.pad(p1, ((0, 0), (0, 7))).astype(bf)                       # pad K 9->16

    w1 = jnp.pad(p["w1"].reshape(9, 16), ((0, 7), (0, 0))).astype(bf)
    w2 = p["w2"].reshape(9 * 16, 32).astype(bf)          # tap-major rows
    w3 = p["w3"].reshape(9 * 32, 64).astype(bf)
    # PyTorch's .view(batch,-1) flattens NCHW; the in-kernel flatten is
    # (position-major, channel-minor) -> permute the constant fc1 weight rows.
    wf1 = (p["wf1"].reshape(64, 7, 7, 100).transpose(1, 2, 0, 3)
           .reshape(49 * 64, 100).astype(bf))
    wf2 = p["wf2"].astype(bf)

    return _cnn_pallas(p1, w1, p["b1"].reshape(1, 16),
                       w2, p["b2"].reshape(1, 32),
                       w3, p["b3"].reshape(1, 64),
                       wf1, p["bf1"].reshape(1, 100),
                       wf2, p["bf2"].reshape(1, 10))


def init_params(key):
    ks = jax.random.split(key, 10)

    def uinit(k, shape, fan_in):
        bound = 1.0 / jnp.sqrt(jnp.float32(fan_in))
        return jax.random.uniform(k, shape, jnp.float32, -bound, bound)

    return {
        "w1": uinit(ks[0], (3, 3, 1, 16), 9 * 1),
        "b1": uinit(ks[1], (16,), 9 * 1),
        "w2": uinit(ks[2], (3, 3, 16, 32), 9 * 16),
        "b2": uinit(ks[3], (32,), 9 * 16),
        "w3": uinit(ks[4], (3, 3, 32, 64), 9 * 32),
        "b3": uinit(ks[5], (64,), 9 * 32),
        "wf1": uinit(ks[6], (64 * 7 * 7, 100), 64 * 7 * 7),
        "bf1": uinit(ks[7], (100,), 64 * 7 * 7),
        "wf2": uinit(ks[8], (100, 10), 100),
        "bf2": uinit(ks[9], (10,), 100),
    }


# --------------------------- pure-JAX reference -----------------------------

def ref_forward(x_nchw, p):
    def conv(x, w, b):
        w_oihw = jnp.transpose(w, (3, 2, 0, 1))
        y = jax.lax.conv_general_dilated(
            x, w_oihw, window_strides=(1, 1), padding=((1, 1), (1, 1)),
            dimension_numbers=("NCHW", "OIHW", "NCHW"))
        return jax.nn.relu(y + b[None, :, None, None])

    def pool(x):
        return jax.lax.reduce_window(x, -jnp.inf, jax.lax.max,
                                     (1, 1, 2, 2), (1, 1, 2, 2), "VALID")

    y = conv(x_nchw, p["w1"], p["b1"])
    y = conv(y, p["w2"], p["b2"])
    y = pool(y)
    y = conv(y, p["w3"], p["b3"])
    y = pool(y)
    y = y.reshape(y.shape[0], -1)
    y = jax.nn.relu(y @ p["wf1"] + p["bf1"])
    return y @ p["wf2"] + p["bf2"]


# ----------------------------------- main ------------------------------------

if __name__ == "__main__":
    key = jax.random.PRNGKey(0)
    params = init_params(key)

    batch_size = 16  # the module hard-codes out.view(batch_size, -1)
    x = jax.random.normal(jax.random.fold_in(key, 123),
                          (batch_size, 1, 28, 28), jnp.float32)

    out = jax.jit(cnn_forward)(x, params)
    out = jax.block_until_ready(out)
    assert out.shape == (batch_size, 10), out.shape

    ref = ref_forward(x, params)
    if not bool(jnp.allclose(out, ref, rtol=5e-2, atol=5e-2)):
        raise AssertionError(
            f"mismatch vs reference, max abs diff={float(jnp.max(jnp.abs(out - ref)))}")

    print("KERNEL_OK")
</pallas_src>

<mosaic_0001>
module attributes {stable_mosaic.version = 11 : i64} {
  func.func @_cnn_kernel(%arg0: memref<13456x16xbf16, #tpu.memory_space<vmem>>, %arg1: memref<16x16xbf16, #tpu.memory_space<vmem>>, %arg2: memref<1x16xf32, #tpu.memory_space<vmem>>, %arg3: memref<144x32xbf16, #tpu.memory_space<vmem>>, %arg4: memref<1x32xf32, #tpu.memory_space<vmem>>, %arg5: memref<288x64xbf16, #tpu.memory_space<vmem>>, %arg6: memref<1x64xf32, #tpu.memory_space<vmem>>, %arg7: memref<3136x100xbf16, #tpu.memory_space<vmem>>, %arg8: memref<1x100xf32, #tpu.memory_space<vmem>>, %arg9: memref<100x10xbf16, #tpu.memory_space<vmem>>, %arg10: memref<1x10xf32, #tpu.memory_space<vmem>>, %arg11: memref<16x10xf32, #tpu.memory_space<vmem>>, %arg12: memref<14416x16xbf16, #tpu.memory_space<vmem>>, %arg13: memref<464x144xbf16, #tpu.memory_space<vmem>>, %arg14: memref<13456x32xbf16, #tpu.memory_space<vmem>>, %arg15: memref<4112x32xbf16, #tpu.memory_space<vmem>>, %arg16: memref<240x288xbf16, #tpu.memory_space<vmem>>, %arg17: memref<3600x64xbf16, #tpu.memory_space<vmem>>, %arg18: memref<16x3136xbf16, #tpu.memory_space<vmem>>) attributes {dimension_semantics = [], scalar_prefetch = 0 : i64, scratch_operands = 7 : i64, tpu.core_type = #tpu.core_type<tc>} {
    %c0 = arith.constant 0 : index
    %c0_0 = arith.constant 0 : index
    %0 = vector.load %arg1[%c0, %c0_0] : memref<16x16xbf16, #tpu.memory_space<vmem>>, vector<16x16xbf16>
    %c0_1 = arith.constant 0 : index
    %c0_2 = arith.constant 0 : index
    %1 = vector.load %arg2[%c0_1, %c0_2] : memref<1x16xf32, #tpu.memory_space<vmem>>, vector<1x16xf32>
    %c0_3 = arith.constant 0 : index
    %c0_4 = arith.constant 0 : index
    %2 = vector.load %arg3[%c0_3, %c0_4] : memref<144x32xbf16, #tpu.memory_space<vmem>>, vector<144x32xbf16>
    %c0_5 = arith.constant 0 : index
    %c0_6 = arith.constant 0 : index
    %3 = vector.load %arg4[%c0_5, %c0_6] : memref<1x32xf32, #tpu.memory_space<vmem>>, vector<1x32xf32>
    %c0_7 = arith.constant 0 : index
    %c0_8 = arith.constant 0 : index
    %4 = vector.load %arg5[%c0_7, %c0_8] : memref<288x64xbf16, #tpu.memory_space<vmem>>, vector<288x64xbf16>
    %c0_9 = arith.constant 0 : index
    %c0_10 = arith.constant 0 : index
    %5 = vector.load %arg6[%c0_9, %c0_10] : memref<1x64xf32, #tpu.memory_space<vmem>>, vector<1x64xf32>
    %cst = arith.constant 0.000000e+00 : bf16
    %6 = vector.broadcast %cst : bf16 to vector<480x16xbf16>
    %c0_11 = arith.constant 0 : index
    %c0_12 = arith.constant 0 : index
    %7 = vector.load %arg12[%c0_11, %c0_12] : memref<14416x16xbf16, #tpu.memory_space<vmem>>, vector<480x16xbf16>
    tpu.vector_store %arg12[%c0_11, %c0_12], %6 {strides = array<i32>} : memref<14416x16xbf16, #tpu.memory_space<vmem>>, vector<480x16xbf16>,
    %cst_13 = arith.constant 0.000000e+00 : bf16
    %8 = vector.broadcast %cst_13 : bf16 to vector<944x16xbf16>
    %c13472 = arith.constant 13472 : index
    %c0_14 = arith.constant 0 : index
    %9 = vector.load %arg12[%c13472, %c0_14] : memref<14416x16xbf16, #tpu.memory_space<vmem>>, vector<944x16xbf16>
    tpu.vector_store %arg12[%c13472, %c0_14], %8 {strides = array<i32>} : memref<14416x16xbf16, #tpu.memory_space<vmem>>, vector<944x16xbf16>,
    %10 = tpu.iota {dimensions = array<i32: 0>} : vector<464x1xi32>
    %c448_i32 = arith.constant 448 : i32
    %11 = vector.broadcast %c448_i32 : i32 to vector<464x1xi32>
    %12 = arith.cmpi slt, %10, %11 : vector<464x1xi32>
    %c0_i32 = arith.constant 0 : i32
    %c28_i32 = arith.constant 28 : i32
    %13 = arith.addi %c0_i32, %c28_i32 : i32
    %c1_i32 = arith.constant 1 : i32
    scf.for %arg19 = %c0_i32 to %13 step %c1_i32  : i32 {
      %c464_i32 = arith.constant 464 : i32
      %452 = arith.muli %arg19, %c464_i32 : i32
      %453 = tpu.assume_multiple %452, 16 : i32
      %454 = arith.index_cast %453 : i32 to index
      %c0_368 = arith.constant 0 : index
      %455 = vector.load %arg0[%454, %c0_368] : memref<13456x16xbf16, #tpu.memory_space<vmem>>, vector<464x16xbf16>
      %cst_369 = arith.constant dense<0.000000e+00> : vector<464x16xf32>
      %456 = tpu.matmul %455, %0, %cst_369 {dimension_numbers = #tpu.dot_dimension_numbers<[1], [0], [0], [1], [0, 0, 1, 1], [], []>} : vector<464x16xbf16>, vector<16x16xbf16>, vector<464x16xf32> -> vector<464x16xf32>
      %457 = vector.broadcast %1 : vector<1x16xf32> to vector<464x16xf32>
      %458 = arith.addf %456, %457 : vector<464x16xf32>
      %cst_370 = arith.constant 0.000000e+00 : f32
      %459 = vector.broadcast %cst_370 : f32 to vector<464x16xf32>
      %460 = arith.maximumf %458, %459 : vector<464x16xf32>
      %cst_371 = arith.constant 0.000000e+00 : f32
      %461 = vector.shape_cast %12 : vector<464x1xi1> to vector<464x1xi1>
      %462 = vector.broadcast %461 : vector<464x1xi1> to vector<464x16xi1>
      %463 = vector.broadcast %cst_371 : f32 to vector<464x16xf32>
      %464 = arith.select %462, %460, %463 : vector<464x16xi1>, vector<464x16xf32>
      %c464_i32_372 = arith.constant 464 : i32
      %465 = arith.muli %arg19, %c464_i32_372 : i32
      %c480_i32 = arith.constant 480 : i32
      %466 = arith.addi %c480_i32, %465 : i32
      %467 = tpu.assume_multiple %466, 16 : i32
      %468 = arith.truncf %464 : vector<464x16xf32> to vector<464x16xbf16>
      %469 = arith.index_cast %467 : i32 to index
      %c0_373 = arith.constant 0 : index
      %470 = vector.load %arg12[%469, %c0_373] : memref<14416x16xbf16, #tpu.memory_space<vmem>>, vector<464x16xbf16>
      tpu.vector_store %arg12[%469, %c0_373], %468 {strides = array<i32>} : memref<14416x16xbf16, #tpu.memory_space<vmem>>, vector<464x16xbf16>,
    }
    %c28_i32_15 = arith.constant 28 : i32
    %c0_i32_16 = arith.constant 0 : i32
    %c28_i32_17 = arith.constant 28 : i32
    %14 = arith.addi %c0_i32_16, %c28_i32_17 : i32
    %c1_i32_18 = arith.constant 1 : i32
    scf.for %arg19 = %c0_i32_16 to %14 step %c1_i32_18  : i32 {
      %c464_i32 = arith.constant 464 : i32
      %452 = arith.muli %arg19, %c464_i32 : i32
      %c480_i32 = arith.constant 480 : i32
      %453 = arith.addi %c480_i32, %452 : i32
      %c-480_i32 = arith.constant -480 : i32
      %454 = arith.addi %453, %c-480_i32 : i32
      %455 = tpu.assume_multiple %454, 16 : i32
      %456 = arith.index_cast %455 : i32 to index
      %c0_368 = arith.constant 0 : index
      %457 = vector.load %arg12[%456, %c0_368] : memref<14416x16xbf16, #tpu.memory_space<vmem>>, vector<464x16xbf16>
      %c0_369 = arith.constant 0 : index
      %c0_370 = arith.constant 0 : index
      %458 = vector.load %arg13[%c0_369, %c0_370] : memref<464x144xbf16, #tpu.memory_space<vmem>>, vector<464x16xbf16>
      tpu.vector_store %arg13[%c0_369, %c0_370], %457 {strides = array<i32>} : memref<464x144xbf16, #tpu.memory_space<vmem>>, vector<464x16xbf16>,
      %c-464_i32 = arith.constant -464 : i32
      %459 = arith.addi %453, %c-464_i32 : i32
      %460 = tpu.assume_multiple %459, 16 : i32
      %461 = arith.index_cast %460 : i32 to index
      %c0_371 = arith.constant 0 : index
      %462 = vector.load %arg12[%461, %c0_371] : memref<14416x16xbf16, #tpu.memory_space<vmem>>, vector<464x16xbf16>
      %c0_372 = arith.constant 0 : index
      %c16_373 = arith.constant 16 : index
      %463 = vector.load %arg13[%c0_372, %c16_373] : memref<464x144xbf16, #tpu.memory_space<vmem>>, vector<464x16xbf16>
      tpu.vector_store %arg13[%c0_372, %c16_373], %462 {strides = array<i32>} : memref<464x144xbf16, #tpu.memory_space<vmem>>, vector<464x16xbf16>,
      %c-448_i32 = arith.constant -448 : i32
      %464 = arith.addi %453, %c-448_i32 : i32
      %465 = tpu.assume_multiple %464, 16 : i32
      %466 = arith.index_cast %465 : i32 to index
      %c0_374 = arith.constant 0 : index
      %467 = vector.load %arg12[%466, %c0_374] : memref<14416x16xbf16, #tpu.memory_space<vmem>>, vector<464x16xbf16>
      %c0_375 = arith.constant 0 : index
      %c32_376 = arith.constant 32 : index
      %468 = vector.load %arg13[%c0_375, %c32_376] : memref<464x144xbf16, #tpu.memory_space<vmem>>, vector<464x16xbf16>
      tpu.vector_store %arg13[%c0_375, %c32_376], %467 {strides = array<i32>} : memref<464x144xbf16, #tpu.memory_space<vmem>>, vector<464x16xbf16>,
      %c-16_i32 = arith.constant -16 : i32
      %469 = arith.addi %453, %c-16_i32 : i32
      %470 = tpu.assume_multiple %469, 16 : i32
      %471 = arith.index_cast %470 : i32 to index
      %c0_377 = arith.constant 0 : index
      %472 = vector.load %arg12[%471, %c0_377] : memref<14416x16xbf16, #tpu.memory_space<vmem>>, vector<464x16xbf16>
      %c0_378 = arith.constant 0 : index
      %c48_379 = arith.constant 48 : index
      %473 = vector.load %arg13[%c0_378, %c48_379] : memref<464x144xbf16, #tpu.memory_space<vmem>>, vector<464x16xbf16>
      tpu.vector_store %arg13[%c0_378, %c48_379], %472 {strides = array<i32>} : memref<464x144xbf16, #tpu.memory_space<vmem>>, vector<464x16xbf16>,
      %c0_i32_380 = arith.constant 0 : i32
      %474 = arith.addi %453, %c0_i32_380 : i32
      %475 = tpu.assume_multiple %474, 16 : i32
      %476 = arith.index_cast %475 : i32 to index
      %c0_381 = arith.constant 0 : index
      %477 = vector.load %arg12[%476, %c0_381] : memref<14416x16xbf16, #tpu.memory_space<vmem>>, vector<464x16xbf16>
      %c0_382 = arith.constant 0 : index
      %c64_383 = arith.constant 64 : index
      %478 = vector.load %arg13[%c0_382, %c64_383] : memref<464x144xbf16, #tpu.memory_space<vmem>>, vector<464x16xbf16>
      tpu.vector_store %arg13[%c0_382, %c64_383], %477 {strides = array<i32>} : memref<464x144xbf16, #tpu.memory_space<vmem>>, vector<464x16xbf16>,
      %c16_i32 = arith.constant 16 : i32
      %479 = arith.addi %453, %c16_i32 : i32
      %480 = tpu.assume_multiple %479, 16 : i32
      %481 = arith.index_cast %480 : i32 to index
      %c0_384 = arith.constant 0 : index
      %482 = vector.load %arg12[%481, %c0_384] : memref<14416x16xbf16, #tpu.memory_space<vmem>>, vector<464x16xbf16>
      %c0_385 = arith.constant 0 : index
      %c80_386 = arith.constant 80 : index
      %483 = vector.load %arg13[%c0_385, %c80_386] : memref<464x144xbf16, #tpu.memory_space<vmem>>, vector<464x16xbf16>
      tpu.vector_store %arg13[%c0_385, %c80_386], %482 {strides = array<i32>} : memref<464x144xbf16, #tpu.memory_space<vmem>>, vector<464x16xbf16>,
      %c448_i32_387 = arith.constant 448 : i32
      %484 = arith.addi %453, %c448_i32_387 : i32
      %485 = tpu.assume_multiple %484, 16 : i32
      %486 = arith.index_cast %485 : i32 to index
      %c0_388 = arith.constant 0 : index
      %487 = vector.load %arg12[%486, %c0_388] : memref<14416x16xbf16, #tpu.memory_space<vmem>>, vector<464x16xbf16>
      %c0_389 = arith.constant 0 : index
      %c96_390 = arith.constant 96 : index
      %488 = vector.load %arg13[%c0_389, %c96_390] : memref<464x144xbf16, #tpu.memory_space<vmem>>, vector<464x16xbf16>
      tpu.vector_store %arg13[%c0_389, %c96_390], %487 {strides = array<i32>} : memref<464x144xbf16, #tpu.memory_space<vmem>>, vector<464x16xbf16>,
      %c464_i32_391 = arith.constant 464 : i32
      %489 = arith.addi %453, %c464_i32_391 : i32
      %490 = tpu.assume_multiple %489, 16 : i32
      %491 = arith.index_cast %490 : i32 to index
      %c0_392 = arith.constant 0 : index
      %492 = vector.load %arg12[%491, %c0_392] : memref<14416x16xbf16, #tpu.memory_space<vmem>>, vector<464x16xbf16>
      %c0_393 = arith.constant 0 : index
      %c112_394 = arith.constant 112 : index
      %493 = vector.load %arg13[%c0_393, %c112_394] : memref<464x144xbf16, #tpu.memory_space<vmem>>, vector<464x16xbf16>
      tpu.vector_store %arg13[%c0_393, %c112_394], %492 {strides = array<i32>} : memref<464x144xbf16, #tpu.memory_space<vmem>>, vector<464x16xbf16>,
      %c480_i32_395 = arith.constant 480 : i32
      %494 = arith.addi %453, %c480_i32_395 : i32
      %495 = tpu.assume_multiple %494, 16 : i32
      %496 = arith.index_cast %495 : i32 to index
      %c0_396 = arith.constant 0 : index
      %497 = vector.load %arg12[%496, %c0_396] : memref<14416x16xbf16, #tpu.memory_space<vmem>>, vector<464x16xbf16>
      %c0_397 = arith.constant 0 : index
      %c128_398 = arith.constant 128 : index
      %498 = vector.load %arg13[%c0_397, %c128_398] : memref<464x144xbf16, #tpu.memory_space<vmem>>, vector<464x16xbf16>
      tpu.vector_store %arg13[%c0_397, %c128_398], %497 {strides = array<i32>} : memref<464x144xbf16, #tpu.memory_space<vmem>>, vector<464x16xbf16>,
      %c0_399 = arith.constant 0 : index
      %c0_400 = arith.constant 0 : index
      %499 = vector.load %arg13[%c0_399, %c0_400] : memref<464x144xbf16, #tpu.memory_space<vmem>>, vector<464x144xbf16>
      %cst_401 = arith.constant dense<0.000000e+00> : vector<464x32xf32>
      %500 = tpu.matmul %499, %2, %cst_401 {dimension_numbers = #tpu.dot_dimension_numbers<[1], [0], [0], [1], [0, 0, 1, 1], [], []>} : vector<464x144xbf16>, vector<144x32xbf16>, vector<464x32xf32> -> vector<464x32xf32>
      %501 = vector.broadcast %3 : vector<1x32xf32> to vector<464x32xf32>
      %502 = arith.addf %500, %501 : vector<464x32xf32>
      %cst_402 = arith.constant 0.000000e+00 : f32
      %503 = vector.broadcast %cst_402 : f32 to vector<464x32xf32>
      %504 = arith.maximumf %502, %503 : vector<464x32xf32>
      %505 = arith.truncf %504 : vector<464x32xf32> to vector<464x32xbf16>
      %c464_i32_403 = arith.constant 464 : i32
      %506 = arith.muli %arg19, %c464_i32_403 : i32
      %507 = tpu.assume_multiple %506, 16 : i32
      %508 = arith.index_cast %507 : i32 to index
      %c0_404 = arith.constant 0 : index
      %509 = vector.load %arg14[%508, %c0_404] : memref<13456x32xbf16, #tpu.memory_space<vmem>>, vector<464x32xbf16>
      tpu.vector_store %arg14[%508, %c0_404], %505 {strides = array<i32>} : memref<13456x32xbf16, #tpu.memory_space<vmem>>, vector<464x32xbf16>,
    }
    %c28_i32_19 = arith.constant 28 : i32
    %cst_20 = arith.constant 0.000000e+00 : bf16
    %15 = vector.broadcast %cst_20 : bf16 to vector<4112x32xbf16>
    %c0_21 = arith.constant 0 : index
    %c0_22 = arith.constant 0 : index
    %16 = vector.load %arg15[%c0_21, %c0_22] : memref<4112x32xbf16, #tpu.memory_space<vmem>>, vector<4112x32xbf16>
    tpu.vector_store %arg15[%c0_21, %c0_22], %15 {strides = array<i32>} : memref<4112x32xbf16, #tpu.memory_space<vmem>>, vector<4112x32xbf16>,
    %c0_i32_23 = arith.constant 0 : i32
    %c14_i32 = arith.constant 14 : i32
    %17 = arith.addi %c0_i32_23, %c14_i32 : i32
    %c1_i32_24 = arith.constant 1 : i32
    scf.for %arg19 = %c0_i32_23 to %17 step %c1_i32_24  : i32 {
      %c0_i32_368 = arith.constant 0 : i32
      %c14_i32_369 = arith.constant 14 : i32
      %452 = arith.addi %c0_i32_368, %c14_i32_369 : i32
      %c1_i32_370 = arith.constant 1 : i32
      scf.for %arg20 = %c0_i32_368 to %452 step %c1_i32_370  : i32 {
        %c928_i32 = arith.constant 928 : i32
        %453 = arith.muli %arg19, %c928_i32 : i32
        %c32_i32 = arith.constant 32 : i32
        %454 = arith.muli %arg20, %c32_i32 : i32
        %455 = arith.addi %453, %454 : i32
        %456 = tpu.assume_multiple %455, 16 : i32
        %457 = arith.index_cast %456 : i32 to index
        %c0_372 = arith.constant 0 : index
        %458 = vector.load %arg14[%457, %c0_372] : memref<13456x32xbf16, #tpu.memory_space<vmem>>, vector<16x32xbf16>
        %c16_i32 = arith.constant 16 : i32
        %459 = arith.addi %456, %c16_i32 : i32
        %460 = arith.index_cast %459 : i32 to index
        %c0_373 = arith.constant 0 : index
        %461 = vector.load %arg14[%460, %c0_373] : memref<13456x32xbf16, #tpu.memory_space<vmem>>, vector<16x32xbf16>
        %462 = arith.maximumf %458, %461 : vector<16x32xbf16>
        %c464_i32 = arith.constant 464 : i32
        %463 = arith.addi %456, %c464_i32 : i32
        %464 = arith.index_cast %463 : i32 to index
        %c0_374 = arith.constant 0 : index
        %465 = vector.load %arg14[%464, %c0_374] : memref<13456x32xbf16, #tpu.memory_space<vmem>>, vector<16x32xbf16>
        %c480_i32 = arith.constant 480 : i32
        %466 = arith.addi %456, %c480_i32 : i32
        %467 = arith.index_cast %466 : i32 to index
        %c0_375 = arith.constant 0 : index
        %468 = vector.load %arg14[%467, %c0_375] : memref<13456x32xbf16, #tpu.memory_space<vmem>>, vector<16x32xbf16>
        %469 = arith.maximumf %465, %468 : vector<16x32xbf16>
        %470 = arith.maximumf %462, %469 : vector<16x32xbf16>
        %c15_i32 = arith.constant 15 : i32
        %471 = arith.muli %arg19, %c15_i32 : i32
        %472 = arith.addi %471, %arg20 : i32
        %c16_i32_376 = arith.constant 16 : i32
        %473 = arith.muli %472, %c16_i32_376 : i32
        %c256_i32 = arith.constant 256 : i32
        %474 = arith.addi %c256_i32, %473 : i32
        %475 = tpu.assume_multiple %474, 16 : i32
        %476 = arith.index_cast %475 : i32 to index
        %c0_377 = arith.constant 0 : index
        %477 = vector.load %arg15[%476, %c0_377] : memref<4112x32xbf16, #tpu.memory_space<vmem>>, vector<16x32xbf16>
        tpu.vector_store %arg15[%476, %c0_377], %470 {strides = array<i32>} : memref<4112x32xbf16, #tpu.memory_space<vmem>>, vector<16x32xbf16>,
      }
      %c14_i32_371 = arith.constant 14 : i32
    }
    %c14_i32_25 = arith.constant 14 : i32
    %c0_i32_26 = arith.constant 0 : i32
    %c14_i32_27 = arith.constant 14 : i32
    %18 = arith.addi %c0_i32_26, %c14_i32_27 : i32
    %c1_i32_28 = arith.constant 1 : i32
    scf.for %arg19 = %c0_i32_26 to %18 step %c1_i32_28  : i32 {
      %c240_i32 = arith.constant 240 : i32
      %452 = arith.muli %arg19, %c240_i32 : i32
      %c256_i32 = arith.constant 256 : i32
      %453 = arith.addi %c256_i32, %452 : i32
      %c-256_i32 = arith.constant -256 : i32
      %454 = arith.addi %453, %c-256_i32 : i32
      %455 = tpu.assume_multiple %454, 16 : i32
      %456 = arith.index_cast %455 : i32 to index
      %c0_368 = arith.constant 0 : index
      %457 = vector.load %arg15[%456, %c0_368] : memref<4112x32xbf16, #tpu.memory_space<vmem>>, vector<240x32xbf16>
      %c0_369 = arith.constant 0 : index
      %c0_370 = arith.constant 0 : index
      %458 = vector.load %arg16[%c0_369, %c0_370] : memref<240x288xbf16, #tpu.memory_space<vmem>>, vector<240x32xbf16>
      tpu.vector_store %arg16[%c0_369, %c0_370], %457 {strides = array<i32>} : memref<240x288xbf16, #tpu.memory_space<vmem>>, vector<240x32xbf16>,
      %c-240_i32 = arith.constant -240 : i32
      %459 = arith.addi %453, %c-240_i32 : i32
      %460 = tpu.assume_multiple %459, 16 : i32
      %461 = arith.index_cast %460 : i32 to index
      %c0_371 = arith.constant 0 : index
      %462 = vector.load %arg15[%461, %c0_371] : memref<4112x32xbf16, #tpu.memory_space<vmem>>, vector<240x32xbf16>
      %c0_372 = arith.constant 0 : index
      %c32_373 = arith.constant 32 : index
      %463 = vector.load %arg16[%c0_372, %c32_373] : memref<240x288xbf16, #tpu.memory_space<vmem>>, vector<240x32xbf16>
      tpu.vector_store %arg16[%c0_372, %c32_373], %462 {strides = array<i32>} : memref<240x288xbf16, #tpu.memory_space<vmem>>, vector<240x32xbf16>,
      %c-224_i32 = arith.constant -224 : i32
      %464 = arith.addi %453, %c-224_i32 : i32
      %465 = tpu.assume_multiple %464, 16 : i32
      %466 = arith.index_cast %465 : i32 to index
      %c0_374 = arith.constant 0 : index
      %467 = vector.load %arg15[%466, %c0_374] : memref<4112x32xbf16, #tpu.memory_space<vmem>>, vector<240x32xbf16>
      %c0_375 = arith.constant 0 : index
      %c64_376 = arith.constant 64 : index
      %468 = vector.load %arg16[%c0_375, %c64_376] : memref<240x288xbf16, #tpu.memory_space<vmem>>, vector<240x32xbf16>
      tpu.vector_store %arg16[%c0_375, %c64_376], %467 {strides = array<i32>} : memref<240x288xbf16, #tpu.memory_space<vmem>>, vector<240x32xbf16>,
      %c-16_i32 = arith.constant -16 : i32
      %469 = arith.addi %453, %c-16_i32 : i32
      %470 = tpu.assume_multiple %469, 16 : i32
      %471 = arith.index_cast %470 : i32 to index
      %c0_377 = arith.constant 0 : index
      %472 = vector.load %arg15[%471, %c0_377] : memref<4112x32xbf16, #tpu.memory_space<vmem>>, vector<240x32xbf16>
      %c0_378 = arith.constant 0 : index
      %c96_379 = arith.constant 96 : index
      %473 = vector.load %arg16[%c0_378, %c96_379] : memref<240x288xbf16, #tpu.memory_space<vmem>>, vector<240x32xbf16>
      tpu.vector_store %arg16[%c0_378, %c96_379], %472 {strides = array<i32>} : memref<240x288xbf16, #tpu.memory_space<vmem>>, vector<240x32xbf16>,
      %c0_i32_380 = arith.constant 0 : i32
      %474 = arith.addi %453, %c0_i32_380 : i32
      %475 = tpu.assume_multiple %474, 16 : i32
      %476 = arith.index_cast %475 : i32 to index
      %c0_381 = arith.constant 0 : index
      %477 = vector.load %arg15[%476, %c0_381] : memref<4112x32xbf16, #tpu.memory_space<vmem>>, vector<240x32xbf16>
      %c0_382 = arith.constant 0 : index
      %c128_383 = arith.constant 128 : index
      %478 = vector.load %arg16[%c0_382, %c128_383] : memref<240x288xbf16, #tpu.memory_space<vmem>>, vector<240x32xbf16>
      tpu.vector_store %arg16[%c0_382, %c128_383], %477 {strides = array<i32>} : memref<240x288xbf16, #tpu.memory_space<vmem>>, vector<240x32xbf16>,
      %c16_i32 = arith.constant 16 : i32
      %479 = arith.addi %453, %c16_i32 : i32
      %480 = tpu.assume_multiple %479, 16 : i32
      %481 = arith.index_cast %480 : i32 to index
      %c0_384 = arith.constant 0 : index
      %482 = vector.load %arg15[%481, %c0_384] : memref<4112x32xbf16, #tpu.memory_space<vmem>>, vector<240x32xbf16>
      %c0_385 = arith.constant 0 : index
      %c160_386 = arith.constant 160 : index
      %483 = vector.load %arg16[%c0_385, %c160_386] : memref<240x288xbf16, #tpu.memory_space<vmem>>, vector<240x32xbf16>
      tpu.vector_store %arg16[%c0_385, %c160_386], %482 {strides = array<i32>} : memref<240x288xbf16, #tpu.memory_space<vmem>>, vector<240x32xbf16>,
      %c224_i32 = arith.constant 224 : i32
      %484 = arith.addi %453, %c224_i32 : i32
      %485 = tpu.assume_multiple %484, 16 : i32
      %486 = arith.index_cast %485 : i32 to index
      %c0_387 = arith.constant 0 : index
      %487 = vector.load %arg15[%486, %c0_387] : memref<4112x32xbf16, #tpu.memory_space<vmem>>, vector<240x32xbf16>
      %c0_388 = arith.constant 0 : index
      %c192_389 = arith.constant 192 : index
      %488 = vector.load %arg16[%c0_388, %c192_389] : memref<240x288xbf16, #tpu.memory_space<vmem>>, vector<240x32xbf16>
      tpu.vector_store %arg16[%c0_388, %c192_389], %487 {strides = array<i32>} : memref<240x288xbf16, #tpu.memory_space<vmem>>, vector<240x32xbf16>,
      %c240_i32_390 = arith.constant 240 : i32
      %489 = arith.addi %453, %c240_i32_390 : i32
      %490 = tpu.assume_multiple %489, 16 : i32
      %491 = arith.index_cast %490 : i32 to index
      %c0_391 = arith.constant 0 : index
      %492 = vector.load %arg15[%491, %c0_391] : memref<4112x32xbf16, #tpu.memory_space<vmem>>, vector<240x32xbf16>
      %c0_392 = arith.constant 0 : index
      %c224 = arith.constant 224 : index
      %493 = vector.load %arg16[%c0_392, %c224] : memref<240x288xbf16, #tpu.memory_space<vmem>>, vector<240x32xbf16>
      tpu.vector_store %arg16[%c0_392, %c224], %492 {strides = array<i32>} : memref<240x288xbf16, #tpu.memory_space<vmem>>, vector<240x32xbf16>,
      %c256_i32_393 = arith.constant 256 : i32
      %494 = arith.addi %453, %c256_i32_393 : i32
      %495 = tpu.assume_multiple %494, 16 : i32
      %496 = arith.index_cast %495 : i32 to index
      %c0_394 = arith.constant 0 : index
      %497 = vector.load %arg15[%496, %c0_394] : memref<4112x32xbf16, #tpu.memory_space<vmem>>, vector<240x32xbf16>
      %c0_395 = arith.constant 0 : index
      %c256_396 = arith.constant 256 : index
      %498 = vector.load %arg16[%c0_395, %c256_396] : memref<240x288xbf16, #tpu.memory_space<vmem>>, vector<240x32xbf16>
      tpu.vector_store %arg16[%c0_395, %c256_396], %497 {strides = array<i32>} : memref<240x288xbf16, #tpu.memory_space<vmem>>, vector<240x32xbf16>,
      %c0_397 = arith.constant 0 : index
      %c0_398 = arith.constant 0 : index
      %499 = vector.load %arg16[%c0_397, %c0_398] : memref<240x288xbf16, #tpu.memory_space<vmem>>, vector<240x288xbf16>
      %cst_399 = arith.constant dense<0.000000e+00> : vector<240x64xf32>
      %500 = tpu.matmul %499, %4, %cst_399 {dimension_numbers = #tpu.dot_dimension_numbers<[1], [0], [0], [1], [0, 0, 1, 1], [], []>} : vector<240x288xbf16>, vector<288x64xbf16>, vector<240x64xf32> -> vector<240x64xf32>
      %501 = vector.broadcast %5 : vector<1x64xf32> to vector<240x64xf32>
      %502 = arith.addf %500, %501 : vector<240x64xf32>
      %cst_400 = arith.constant 0.000000e+00 : f32
      %503 = vector.broadcast %cst_400 : f32 to vector<240x64xf32>
      %504 = arith.maximumf %502, %503 : vector<240x64xf32>
      %505 = arith.truncf %504 : vector<240x64xf32> to vector<240x64xbf16>
      %c240_i32_401 = arith.constant 240 : i32
      %506 = arith.muli %arg19, %c240_i32_401 : i32
      %507 = tpu.assume_multiple %506, 16 : i32
      %508 = arith.index_cast %507 : i32 to index
      %c0_402 = arith.constant 0 : index
      %509 = vector.load %arg17[%508, %c0_402] : memref<3600x64xbf16, #tpu.memory_space<vmem>>, vector<240x64xbf16>
      tpu.vector_store %arg17[%508, %c0_402], %505 {strides = array<i32>} : memref<3600x64xbf16, #tpu.memory_space<vmem>>, vector<240x64xbf16>,
    }
    %c14_i32_29 = arith.constant 14 : i32
    %c0_30 = arith.constant 0 : index
    %c0_31 = arith.constant 0 : index
    %19 = vector.load %arg17[%c0_30, %c0_31] : memref<3600x64xbf16, #tpu.memory_space<vmem>>, vector<16x64xbf16>
    %c16 = arith.constant 16 : index
    %c0_32 = arith.constant 0 : index
    %20 = vector.load %arg17[%c16, %c0_32] : memref<3600x64xbf16, #tpu.memory_space<vmem>>, vector<16x64xbf16>
    %21 = arith.maximumf %19, %20 : vector<16x64xbf16>
    %c240 = arith.constant 240 : index
    %c0_33 = arith.constant 0 : index
    %22 = vector.load %arg17[%c240, %c0_33] : memref<3600x64xbf16, #tpu.memory_space<vmem>>, vector<16x64xbf16>
    %c256 = arith.constant 256 : index
    %c0_34 = arith.constant 0 : index
    %23 = vector.load %arg17[%c256, %c0_34] : memref<3600x64xbf16, #tpu.memory_space<vmem>>, vector<16x64xbf16>
    %24 = arith.maximumf %22, %23 : vector<16x64xbf16>
    %25 = arith.maximumf %21, %24 : vector<16x64xbf16>
    %c0_35 = arith.constant 0 : index
    %c0_36 = arith.constant 0 : index
    %26 = vector.load %arg18[%c0_35, %c0_36] : memref<16x3136xbf16, #tpu.memory_space<vmem>>, vector<16x64xbf16>
    tpu.vector_store %arg18[%c0_35, %c0_36], %25 {strides = array<i32>} : memref<16x3136xbf16, #tpu.memory_space<vmem>>, vector<16x64xbf16>,
    %c32 = arith.constant 32 : index
    %c0_37 = arith.constant 0 : index
    %27 = vector.load %arg17[%c32, %c0_37] : memref<3600x64xbf16, #tpu.memory_space<vmem>>, vector<16x64xbf16>
    %c48 = arith.constant 48 : index
    %c0_38 = arith.constant 0 : index
    %28 = vector.load %arg17[%c48, %c0_38] : memref<3600x64xbf16, #tpu.memory_space<vmem>>, vector<16x64xbf16>
    %29 = arith.maximumf %27, %28 : vector<16x64xbf16>
    %c272 = arith.constant 272 : index
    %c0_39 = arith.constant 0 : index
    %30 = vector.load %arg17[%c272, %c0_39] : memref<3600x64xbf16, #tpu.memory_space<vmem>>, vector<16x64xbf16>
    %c288 = arith.constant 288 : index
    %c0_40 = arith.constant 0 : index
    %31 = vector.load %arg17[%c288, %c0_40] : memref<3600x64xbf16, #tpu.memory_space<vmem>>, vector<16x64xbf16>
    %32 = arith.maximumf %30, %31 : vector<16x64xbf16>
    %33 = arith.maximumf %29, %32 : vector<16x64xbf16>
    %c0_41 = arith.constant 0 : index
    %c64 = arith.constant 64 : index
    %34 = vector.load %arg18[%c0_41, %c64] : memref<16x3136xbf16, #tpu.memory_space<vmem>>, vector<16x64xbf16>
    tpu.vector_store %arg18[%c0_41, %c64], %33 {strides = array<i32>} : memref<16x3136xbf16, #tpu.memory_space<vmem>>, vector<16x64xbf16>,
    %c64_42 = arith.constant 64 : index
    %c0_43 = arith.constant 0 : index
    %35 = vector.load %arg17[%c64_42, %c0_43] : memref<3600x64xbf16, #tpu.memory_space<vmem>>, vector<16x64xbf16>
    %c80 = arith.constant 80 : index
    %c0_44 = arith.constant 0 : index
    %36 = vector.load %arg17[%c80, %c0_44] : memref<3600x64xbf16, #tpu.memory_space<vmem>>, vector<16x64xbf16>
    %37 = arith.maximumf %35, %36 : vector<16x64xbf16>
    %c304 = arith.constant 304 : index
    %c0_45 = arith.constant 0 : index
    %38 = vector.load %arg17[%c304, %c0_45] : memref<3600x64xbf16, #tpu.memory_space<vmem>>, vector<16x64xbf16>
    %c320 = arith.constant 320 : index
    %c0_46 = arith.constant 0 : index
    %39 = vector.load %arg17[%c320, %c0_46] : memref<3600x64xbf16, #tpu.memory_space<vmem>>, vector<16x64xbf16>
    %40 = arith.maximumf %38, %39 : vector<16x64xbf16>
    %41 = arith.maximumf %37, %40 : vector<16x64xbf16>
    %c0_47 = arith.constant 0 : index
    %c128 = arith.constant 128 : index
    %42 = vector.load %arg18[%c0_47, %c128] : memref<16x3136xbf16, #tpu.memory_space<vmem>>, vector<16x64xbf16>
    tpu.vector_store %arg18[%c0_47, %c128], %41 {strides = array<i32>} : memref<16x3136xbf16, #tpu.memory_space<vmem>>, vector<16x64xbf16>,
    %c96 = arith.constant 96 : index
    %c0_48 = arith.constant 0 : index
    %43 = vector.load %arg17[%c96, %c0_48] : memref<3600x64xbf16, #tpu.memory_space<vmem>>, vector<16x64xbf16>
    %c112 = arith.constant 112 : index
    %c0_49 = arith.constant 0 : index
    %44 = vector.load %arg17[%c112, %c0_49] : memref<3600x64xbf16, #tpu.memory_space<vmem>>, vector<16x64xbf16>
    %45 = arith.maximumf %43, %44 : vector<16x64xbf16>
    %c336 = arith.constant 336 : index
    %c0_50 = arith.constant 0 : index
    %46 = vector.load %arg17[%c336, %c0_50] : memref<3600x64xbf16, #tpu.memory_space<vmem>>, vector<16x64xbf16>
    %c352 = arith.constant 352 : index
    %c0_51 = arith.constant 0 : index
    %47 = vector.load %arg17[%c352, %c0_51] : memref<3600x64xbf16, #tpu.memory_space<vmem>>, vector<16x64xbf16>
    %48 = arith.maximumf %46, %47 : vector<16x64xbf16>
    %49 = arith.maximumf %45, %48 : vector<16x64xbf16>
    %c0_52 = arith.constant 0 : index
    %c192 = arith.constant 192 : index
    %50 = vector.load %arg18[%c0_52, %c192] : memref<16x3136xbf16, #tpu.memory_space<vmem>>, vector<16x64xbf16>
    tpu.vector_store %arg18[%c0_52, %c192], %49 {strides = array<i32>} : memref<16x3136xbf16, #tpu.memory_space<vmem>>, vector<16x64xbf16>,
    %c128_53 = arith.constant 128 : index
    %c0_54 = arith.constant 0 : index
    %51 = vector.load %arg17[%c128_53, %c0_54] : memref<3600x64xbf16, #tpu.memory_space<vmem>>, vector<16x64xbf16>
    %c144 = arith.constant 144 : index
    %c0_55 = arith.constant 0 : index
    %52 = vector.load %arg17[%c144, %c0_55] : memref<3600x64xbf16, #tpu.memory_space<vmem>>, vector<16x64xbf16>
    %53 = arith.maximumf %51, %52 : vector<16x64xbf16>
    %c368 = arith.constant 368 : index
    %c0_56 = arith.constant 0 : index
    %54 = vector.load %arg17[%c368, %c0_56] : memref<3600x64xbf16, #tpu.memory_space<vmem>>, vector<16x64xbf16>
    %c384 = arith.constant 384 : index
    %c0_57 = arith.constant 0 : index
    %55 = vector.load %arg17[%c384, %c0_57] : memref<3600x64xbf16, #tpu.memory_space<vmem>>, vector<16x64xbf16>
    %56 = arith.maximumf %54, %55 : vector<16x64xbf16>
    %57 = arith.maximumf %53, %56 : vector<16x64xbf16>
    %c0_58 = arith.constant 0 : index
    %c256_59 = arith.constant 256 : index
    %58 = vector.load %arg18[%c0_58, %c256_59] : memref<16x3136xbf16, #tpu.memory_space<vmem>>, vector<16x64xbf16>
    tpu.vector_store %arg18[%c0_58, %c256_59], %57 {strides = array<i32>} : memref<16x3136xbf16, #tpu.memory_space<vmem>>, vector<16x64xbf16>,
    %c160 = arith.constant 160 : index
    %c0_60 = arith.constant 0 : index
    %59 = vector.load %arg17[%c160, %c0_60] : memref<3600x64xbf16, #tpu.memory_space<vmem>>, vector<16x64xbf16>
    %c176 = arith.constant 176 : index
    %c0_61 = arith.constant 0 : index
    %60 = vector.load %arg17[%c176, %c0_61] : memref<3600x64xbf16, #tpu.memory_space<vmem>>, vector<16x64xbf16>
    %61 = arith.maximumf %59, %60 : vector<16x64xbf16>
    %c400 = arith.constant 400 : index
    %c0_62 = arith.constant 0 : index
    %62 = vector.load %arg17[%c400, %c0_62] : memref<3600x64xbf16, #tpu.memory_space<vmem>>, vector<16x64xbf16>
    %c416 = arith.constant 416 : index
    %c0_63 = arith.constant 0 : index
    %63 = vector.load %arg17[%c416, %c0_63] : memref<3600x64xbf16, #tpu.memory_space<vmem>>, vector<16x64xbf16>
    %64 = arith.maximumf %62, %63 : vector<16x64xbf16>
    %65 = arith.maximumf %61, %64 : vector<16x64xbf16>
    %c0_64 = arith.constant 0 : index
    %c320_65 = arith.constant 320 : index
    %66 = vector.load %arg18[%c0_64, %c320_65] : memref<16x3136xbf16, #tpu.memory_space<vmem>>, vector<16x64xbf16>
    tpu.vector_store %arg18[%c0_64, %c320_65], %65 {strides = array<i32>} : memref<16x3136xbf16, #tpu.memory_space<vmem>>, vector<16x64xbf16>,
    %c192_66 = arith.constant 192 : index
    %c0_67 = arith.constant 0 : index
    %67 = vector.load %arg17[%c192_66, %c0_67] : memref<3600x64xbf16, #tpu.memory_space<vmem>>, vector<16x64xbf16>
    %c208 = arith.constant 208 : index
    %c0_68 = arith.constant 0 : index
    %68 = vector.load %arg17[%c208, %c0_68] : memref<3600x64xbf16, #tpu.memory_space<vmem>>, vector<16x64xbf16>
    %69 = arith.maximumf %67, %68 : vector<16x64xbf16>
    %c432 = arith.constant 432 : index
    %c0_69 = arith.constant 0 : index
    %70 = vector.load %arg17[%c432, %c0_69] : memref<3600x64xbf16, #tpu.memory_space<vmem>>, vector<16x64xbf16>
    %c448 = arith.constant 448 : index
    %c0_70 = arith.constant 0 : index
    %71 = vector.load %arg17[%c448, %c0_70] : memref<3600x64xbf16, #tpu.memory_space<vmem>>, vector<16x64xbf16>
    %72 = arith.maximumf %70, %71 : vector<16x64xbf16>
    %73 = arith.maximumf %69, %72 : vector<16x64xbf16>
    %c0_71 = arith.constant 0 : index
    %c384_72 = arith.constant 384 : index
    %74 = vector.load %arg18[%c0_71, %c384_72] : memref<16x3136xbf16, #tpu.memory_space<vmem>>, vector<16x64xbf16>
    tpu.vector_store %arg18[%c0_71, %c384_72], %73 {strides = array<i32>} : memref<16x3136xbf16, #tpu.memory_space<vmem>>, vector<16x64xbf16>,
    %c480 = arith.constant 480 : index
    %c0_73 = arith.constant 0 : index
    %75 = vector.load %arg17[%c480, %c0_73] : memref<3600x64xbf16, #tpu.memory_space<vmem>>, vector<16x64xbf16>
    %c496 = arith.constant 496 : index
    %c0_74 = arith.constant 0 : index
    %76 = vector.load %arg17[%c496, %c0_74] : memref<3600x64xbf16, #tpu.memory_space<vmem>>, vector<16x64xbf16>
    %77 = arith.maximumf %75, %76 : vector<16x64xbf16>
    %c720 = arith.constant 720 : index
    %c0_75 = arith.constant 0 : index
    %78 = vector.load %arg17[%c720, %c0_75] : memref<3600x64xbf16, #tpu.memory_space<vmem>>, vector<16x64xbf16>
    %c736 = arith.constant 736 : index
    %c0_76 = arith.constant 0 : index
    %79 = vector.load %arg17[%c736, %c0_76] : memref<3600x64xbf16, #tpu.memory_space<vmem>>, vector<16x64xbf16>
    %80 = arith.maximumf %78, %79 : vector<16x64xbf16>
    %81 = arith.maximumf %77, %80 : vector<16x64xbf16>
    %c0_77 = arith.constant 0 : index
    %c448_78 = arith.constant 448 : index
    %82 = vector.load %arg18[%c0_77, %c448_78] : memref<16x3136xbf16, #tpu.memory_space<vmem>>, vector<16x64xbf16>
    tpu.vector_store %arg18[%c0_77, %c448_78], %81 {strides = array<i32>} : memref<16x3136xbf16, #tpu.memory_space<vmem>>, vector<16x64xbf16>,
    %c512 = arith.constant 512 : index
    %c0_79 = arith.constant 0 : index
    %83 = vector.load %arg17[%c512, %c0_79] : memref<3600x64xbf16, #tpu.memory_space<vmem>>, vector<16x64xbf16>
    %c528 = arith.constant 528 : index
    %c0_80 = arith.constant 0 : index
    %84 = vector.load %arg17[%c528, %c0_80] : memref<3600x64xbf16, #tpu.memory_space<vmem>>, vector<16x64xbf16>
    %85 = arith.maximumf %83, %84 : vector<16x64xbf16>
    %c752 = arith.constant 752 : index
    %c0_81 = arith.constant 0 : index
    %86 = vector.load %arg17[%c752, %c0_81] : memref<3600x64xbf16, #tpu.memory_space<vmem>>, vector<16x64xbf16>
    %c768 = arith.constant 768 : index
    %c0_82 = arith.constant 0 : index
    %87 = vector.load %arg17[%c768, %c0_82] : memref<3600x64xbf16, #tpu.memory_space<vmem>>, vector<16x64xbf16>
    %88 = arith.maximumf %86, %87 : vector<16x64xbf16>
    %89 = arith.maximumf %85, %88 : vector<16x64xbf16>
    %c0_83 = arith.constant 0 : index
    %c512_84 = arith.constant 512 : index
    %90 = vector.load %arg18[%c0_83, %c512_84] : memref<16x3136xbf16, #tpu.memory_space<vmem>>, vector<16x64xbf16>
    tpu.vector_store %arg18[%c0_83, %c512_84], %89 {strides = array<i32>} : memref<16x3136xbf16, #tpu.memory_space<vmem>>, vector<16x64xbf16>,
    %c544 = arith.constant 544 : index
    %c0_85 = arith.constant 0 : index
    %91 = vector.load %arg17[%c544, %c0_85] : memref<3600x64xbf16, #tpu.memory_space<vmem>>, vector<16x64xbf16>
    %c560 = arith.constant 560 : index
    %c0_86 = arith.constant 0 : index
    %92 = vector.load %arg17[%c560, %c0_86] : memref<3600x64xbf16, #tpu.memory_space<vmem>>, vector<16x64xbf16>
    %93 = arith.maximumf %91, %92 : vector<16x64xbf16>
    %c784 = arith.constant 784 : index
    %c0_87 = arith.constant 0 : index
    %94 = vector.load %arg17[%c784, %c0_87] : memref<3600x64xbf16, #tpu.memory_space<vmem>>, vector<16x64xbf16>
    %c800 = arith.constant 800 : index
    %c0_88 = arith.constant 0 : index
    %95 = vector.load %arg17[%c800, %c0_88] : memref<3600x64xbf16, #tpu.memory_space<vmem>>, vector<16x64xbf16>
    %96 = arith.maximumf %94, %95 : vector<16x64xbf16>
    %97 = arith.maximumf %93, %96 : vector<16x64xbf16>
    %c0_89 = arith.constant 0 : index
    %c576 = arith.constant 576 : index
    %98 = vector.load %arg18[%c0_89, %c576] : memref<16x3136xbf16, #tpu.memory_space<vmem>>, vector<16x64xbf16>
    tpu.vector_store %arg18[%c0_89, %c576], %97 {strides = array<i32>} : memref<16x3136xbf16, #tpu.memory_space<vmem>>, vector<16x64xbf16>,
    %c576_90 = arith.constant 576 : index
    %c0_91 = arith.constant 0 : index
    %99 = vector.load %arg17[%c576_90, %c0_91] : memref<3600x64xbf16, #tpu.memory_space<vmem>>, vector<16x64xbf16>
    %c592 = arith.constant 592 : index
    %c0_92 = arith.constant 0 : index
    %100 = vector.load %arg17[%c592, %c0_92] : memref<3600x64xbf16, #tpu.memory_space<vmem>>, vector<16x64xbf16>
    %101 = arith.maximumf %99, %100 : vector<16x64xbf16>
    %c816 = arith.constant 816 : index
    %c0_93 = arith.constant 0 : index
    %102 = vector.load %arg17[%c816, %c0_93] : memref<3600x64xbf16, #tpu.memory_space<vmem>>, vector<16x64xbf16>
    %c832 = arith.constant 832 : index
    %c0_94 = arith.constant 0 : index
    %103 = vector.load %arg17[%c832, %c0_94] : memref<3600x64xbf16, #tpu.memory_space<vmem>>, vector<16x64xbf16>
    %104 = arith.maximumf %102, %103 : vector<16x64xbf16>
    %105 = arith.maximumf %101, %104 : vector<16x64xbf16>
    %c0_95 = arith.constant 0 : index
    %c640 = arith.constant 640 : index
    %106 = vector.load %arg18[%c0_95, %c640] : memref<16x3136xbf16, #tpu.memory_space<vmem>>, vector<16x64xbf16>
    tpu.vector_store %arg18[%c0_95, %c640], %105 {strides = array<i32>} : memref<16x3136xbf16, #tpu.memory_space<vmem>>, vector<16x64xbf16>,
    %c608 = arith.constant 608 : index
    %c0_96 = arith.constant 0 : index
    %107 = vector.load %arg17[%c608, %c0_96] : memref<3600x64xbf16, #tpu.memory_space<vmem>>, vector<16x64xbf16>
    %c624 = arith.constant 624 : index
    %c0_97 = arith.constant 0 : index
    %108 = vector.load %arg17[%c624, %c0_97] : memref<3600x64xbf16, #tpu.memory_space<vmem>>, vector<16x64xbf16>
    %109 = arith.maximumf %107, %108 : vector<16x64xbf16>
    %c848 = arith.constant 848 : index
    %c0_98 = arith.constant 0 : index
    %110 = vector.load %arg17[%c848, %c0_98] : memref<3600x64xbf16, #tpu.memory_space<vmem>>, vector<16x64xbf16>
    %c864 = arith.constant 864 : index
    %c0_99 = arith.constant 0 : index
    %111 = vector.load %arg17[%c864, %c0_99] : memref<3600x64xbf16, #tpu.memory_space<vmem>>, vector<16x64xbf16>
    %112 = arith.maximumf %110, %111 : vector<16x64xbf16>
    %113 = arith.maximumf %109, %112 : vector<16x64xbf16>
    %c0_100 = arith.constant 0 : index
    %c704 = arith.constant 704 : index
    %114 = vector.load %arg18[%c0_100, %c704] : memref<16x3136xbf16, #tpu.memory_space<vmem>>, vector<16x64xbf16>
    tpu.vector_store %arg18[%c0_100, %c704], %113 {strides = array<i32>} : memref<16x3136xbf16, #tpu.memory_space<vmem>>, vector<16x64xbf16>,
    %c640_101 = arith.constant 640 : index
    %c0_102 = arith.constant 0 : index
    %115 = vector.load %arg17[%c640_101, %c0_102] : memref<3600x64xbf16, #tpu.memory_space<vmem>>, vector<16x64xbf16>
    %c656 = arith.constant 656 : index
    %c0_103 = arith.constant 0 : index
    %116 = vector.load %arg17[%c656, %c0_103] : memref<3600x64xbf16, #tpu.memory_space<vmem>>, vector<16x64xbf16>
    %117 = arith.maximumf %115, %116 : vector<16x64xbf16>
    %c880 = arith.constant 880 : index
    %c0_104 = arith.constant 0 : index
    %118 = vector.load %arg17[%c880, %c0_104] : memref<3600x64xbf16, #tpu.memory_space<vmem>>, vector<16x64xbf16>
    %c896 = arith.constant 896 : index
    %c0_105 = arith.constant 0 : index
    %119 = vector.load %arg17[%c896, %c0_105] : memref<3600x64xbf16, #tpu.memory_space<vmem>>, vector<16x64xbf16>
    %120 = arith.maximumf %118, %119 : vector<16x64xbf16>
    %121 = arith.maximumf %117, %120 : vector<16x64xbf16>
    %c0_106 = arith.constant 0 : index
    %c768_107 = arith.constant 768 : index
    %122 = vector.load %arg18[%c0_106, %c768_107] : memref<16x3136xbf16, #tpu.memory_space<vmem>>, vector<16x64xbf16>
    tpu.vector_store %arg18[%c0_106, %c768_107], %121 {strides = array<i32>} : memref<16x3136xbf16, #tpu.memory_space<vmem>>, vector<16x64xbf16>,
    %c672 = arith.constant 672 : index
    %c0_108 = arith.constant 0 : index
    %123 = vector.load %arg17[%c672, %c0_108] : memref<3600x64xbf16, #tpu.memory_space<vmem>>, vector<16x64xbf16>
    %c688 = arith.constant 688 : index
    %c0_109 = arith.constant 0 : index
    %124 = vector.load %arg17[%c688, %c0_109] : memref<3600x64xbf16, #tpu.memory_space<vmem>>, vector<16x64xbf16>
    %125 = arith.maximumf %123, %124 : vector<16x64xbf16>
    %c912 = arith.constant 912 : index
    %c0_110 = arith.constant 0 : index
    %126 = vector.load %arg17[%c912, %c0_110] : memref<3600x64xbf16, #tpu.memory_space<vmem>>, vector<16x64xbf16>
    %c928 = arith.constant 928 : index
    %c0_111 = arith.constant 0 : index
    %127 = vector.load %arg17[%c928, %c0_111] : memref<3600x64xbf16, #tpu.memory_space<vmem>>, vector<16x64xbf16>
    %128 = arith.maximumf %126, %127 : vector<16x64xbf16>
    %129 = arith.maximumf %125, %128 : vector<16x64xbf16>
    %c0_112 = arith.constant 0 : index
    %c832_113 = arith.constant 832 : index
    %130 = vector.load %arg18[%c0_112, %c832_113] : memref<16x3136xbf16, #tpu.memory_space<vmem>>, vector<16x64xbf16>
    tpu.vector_store %arg18[%c0_112, %c832_113], %129 {strides = array<i32>} : memref<16x3136xbf16, #tpu.memory_space<vmem>>, vector<16x64xbf16>,
    %c960 = arith.constant 960 : index
    %c0_114 = arith.constant 0 : index
    %131 = vector.load %arg17[%c960, %c0_114] : memref<3600x64xbf16, #tpu.memory_space<vmem>>, vector<16x64xbf16>
    %c976 = arith.constant 976 : index
    %c0_115 = arith.constant 0 : index
    %132 = vector.load %arg17[%c976, %c0_115] : memref<3600x64xbf16, #tpu.memory_space<vmem>>, vector<16x64xbf16>
    %133 = arith.maximumf %131, %132 : vector<16x64xbf16>
    %c1200 = arith.constant 1200 : index
    %c0_116 = arith.constant 0 : index
    %134 = vector.load %arg17[%c1200, %c0_116] : memref<3600x64xbf16, #tpu.memory_space<vmem>>, vector<16x64xbf16>
    %c1216 = arith.constant 1216 : index
    %c0_117 = arith.constant 0 : index
    %135 = vector.load %arg17[%c1216, %c0_117] : memref<3600x64xbf16, #tpu.memory_space<vmem>>, vector<16x64xbf16>
    %136 = arith.maximumf %134, %135 : vector<16x64xbf16>
    %137 = arith.maximumf %133, %136 : vector<16x64xbf16>
    %c0_118 = arith.constant 0 : index
    %c896_119 = arith.constant 896 : index
    %138 = vector.load %arg18[%c0_118, %c896_119] : memref<16x3136xbf16, #tpu.memory_space<vmem>>, vector<16x64xbf16>
    tpu.vector_store %arg18[%c0_118, %c896_119], %137 {strides = array<i32>} : memref<16x3136xbf16, #tpu.memory_space<vmem>>, vector<16x64xbf16>,
    %c992 = arith.constant 992 : index
    %c0_120 = arith.constant 0 : index
    %139 = vector.load %arg17[%c992, %c0_120] : memref<3600x64xbf16, #tpu.memory_space<vmem>>, vector<16x64xbf16>
    %c1008 = arith.constant 1008 : index
    %c0_121 = arith.constant 0 : index
    %140 = vector.load %arg17[%c1008, %c0_121] : memref<3600x64xbf16, #tpu.memory_space<vmem>>, vector<16x64xbf16>
    %141 = arith.maximumf %139, %140 : vector<16x64xbf16>
    %c1232 = arith.constant 1232 : index
    %c0_122 = arith.constant 0 : index
    %142 = vector.load %arg17[%c1232, %c0_122] : memref<3600x64xbf16, #tpu.memory_space<vmem>>, vector<16x64xbf16>
    %c1248 = arith.constant 1248 : index
    %c0_123 = arith.constant 0 : index
    %143 = vector.load %arg17[%c1248, %c0_123] : memref<3600x64xbf16, #tpu.memory_space<vmem>>, vector<16x64xbf16>
    %144 = arith.maximumf %142, %143 : vector<16x64xbf16>
    %145 = arith.maximumf %141, %144 : vector<16x64xbf16>
    %c0_124 = arith.constant 0 : index
    %c960_125 = arith.constant 960 : index
    %146 = vector.load %arg18[%c0_124, %c960_125] : memref<16x3136xbf16, #tpu.memory_space<vmem>>, vector<16x64xbf16>
    tpu.vector_store %arg18[%c0_124, %c960_125], %145 {strides = array<i32>} : memref<16x3136xbf16, #tpu.memory_space<vmem>>, vector<16x64xbf16>,
    %c1024 = arith.constant 1024 : index
    %c0_126 = arith.constant 0 : index
    %147 = vector.load %arg17[%c1024, %c0_126] : memref<3600x64xbf16, #tpu.memory_space<vmem>>, vector<16x64xbf16>
    %c1040 = arith.constant 1040 : index
    %c0_127 = arith.constant 0 : index
    %148 = vector.load %arg17[%c1040, %c0_127] : memref<3600x64xbf16, #tpu.memory_space<vmem>>, vector<16x64xbf16>
    %149 = arith.maximumf %147, %148 : vector<16x64xbf16>
    %c1264 = arith.constant 1264 : index
    %c0_128 = arith.constant 0 : index
    %150 = vector.load %arg17[%c1264, %c0_128] : memref<3600x64xbf16, #tpu.memory_space<vmem>>, vector<16x64xbf16>
    %c1280 = arith.constant 1280 : index
    %c0_129 = arith.constant 0 : index
    %151 = vector.load %arg17[%c1280, %c0_129] : memref<3600x64xbf16, #tpu.memory_space<vmem>>, vector<16x64xbf16>
    %152 = arith.maximumf %150, %151 : vector<16x64xbf16>
    %153 = arith.maximumf %149, %152 : vector<16x64xbf16>
    %c0_130 = arith.constant 0 : index
    %c1024_131 = arith.constant 1024 : index
    %154 = vector.load %arg18[%c0_130, %c1024_131] : memref<16x3136xbf16, #tpu.memory_space<vmem>>, vector<16x64xbf16>
    tpu.vector_store %arg18[%c0_130, %c1024_131], %153 {strides = array<i32>} : memref<16x3136xbf16, #tpu.memory_space<vmem>>, vector<16x64xbf16>,
    %c1056 = arith.constant 1056 : index
    %c0_132 = arith.constant 0 : index
    %155 = vector.load %arg17[%c1056, %c0_132] : memref<3600x64xbf16, #tpu.memory_space<vmem>>, vector<16x64xbf16>
    %c1072 = arith.constant 1072 : index
    %c0_133 = arith.constant 0 : index
    %156 = vector.load %arg17[%c1072, %c0_133] : memref<3600x64xbf16, #tpu.memory_space<vmem>>, vector<16x64xbf16>
    %157 = arith.maximumf %155, %156 : vector<16x64xbf16>
    %c1296 = arith.constant 1296 : index
    %c0_134 = arith.constant 0 : index
    %158 = vector.load %arg17[%c1296, %c0_134] : memref<3600x64xbf16, #tpu.memory_space<vmem>>, vector<16x64xbf16>
    %c1312 = arith.constant 1312 : index
    %c0_135 = arith.constant 0 : index
    %159 = vector.load %arg17[%c1312, %c0_135] : memref<3600x64xbf16, #tpu.memory_space<vmem>>, vector<16x64xbf16>
    %160 = arith.maximumf %158, %159 : vector<16x64xbf16>
    %161 = arith.maximumf %157, %160 : vector<16x64xbf16>
    %c0_136 = arith.constant 0 : index
    %c1088 = arith.constant 1088 : index
    %162 = vector.load %arg18[%c0_136, %c1088] : memref<16x3136xbf16, #tpu.memory_space<vmem>>, vector<16x64xbf16>
    tpu.vector_store %arg18[%c0_136, %c1088], %161 {strides = array<i32>} : memref<16x3136xbf16, #tpu.memory_space<vmem>>, vector<16x64xbf16>,
    %c1088_137 = arith.constant 1088 : index
    %c0_138 = arith.constant 0 : index
    %163 = vector.load %arg17[%c1088_137, %c0_138] : memref<3600x64xbf16, #tpu.memory_space<vmem>>, vector<16x64xbf16>
    %c1104 = arith.constant 1104 : index
    %c0_139 = arith.constant 0 : index
    %164 = vector.load %arg17[%c1104, %c0_139] : memref<3600x64xbf16, #tpu.memory_space<vmem>>, vector<16x64xbf16>
    %165 = arith.maximumf %163, %164 : vector<16x64xbf16>
    %c1328 = arith.constant 1328 : index
    %c0_140 = arith.constant 0 : index
    %166 = vector.load %arg17[%c1328, %c0_140] : memref<3600x64xbf16, #tpu.memory_space<vmem>>, vector<16x64xbf16>
    %c1344 = arith.constant 1344 : index
    %c0_141 = arith.constant 0 : index
    %167 = vector.load %arg17[%c1344, %c0_141] : memref<3600x64xbf16, #tpu.memory_space<vmem>>, vector<16x64xbf16>
    %168 = arith.maximumf %166, %167 : vector<16x64xbf16>
    %169 = arith.maximumf %165, %168 : vector<16x64xbf16>
    %c0_142 = arith.constant 0 : index
    %c1152 = arith.constant 1152 : index
    %170 = vector.load %arg18[%c0_142, %c1152] : memref<16x3136xbf16, #tpu.memory_space<vmem>>, vector<16x64xbf16>
    tpu.vector_store %arg18[%c0_142, %c1152], %169 {strides = array<i32>} : memref<16x3136xbf16, #tpu.memory_space<vmem>>, vector<16x64xbf16>,
    %c1120 = arith.constant 1120 : index
    %c0_143 = arith.constant 0 : index
    %171 = vector.load %arg17[%c1120, %c0_143] : memref<3600x64xbf16, #tpu.memory_space<vmem>>, vector<16x64xbf16>
    %c1136 = arith.constant 1136 : index
    %c0_144 = arith.constant 0 : index
    %172 = vector.load %arg17[%c1136, %c0_144] : memref<3600x64xbf16, #tpu.memory_space<vmem>>, vector<16x64xbf16>
    %173 = arith.maximumf %171, %172 : vector<16x64xbf16>
    %c1360 = arith.constant 1360 : index
    %c0_145 = arith.constant 0 : index
    %174 = vector.load %arg17[%c1360, %c0_145] : memref<3600x64xbf16, #tpu.memory_space<vmem>>, vector<16x64xbf16>
    %c1376 = arith.constant 1376 : index
    %c0_146 = arith.constant 0 : index
    %175 = vector.load %arg17[%c1376, %c0_146] : memref<3600x64xbf16, #tpu.memory_space<vmem>>, vector<16x64xbf16>
    %176 = arith.maximumf %174, %175 : vector<16x64xbf16>
    %177 = arith.maximumf %173, %176 : vector<16x64xbf16>
    %c0_147 = arith.constant 0 : index
    %c1216_148 = arith.constant 1216 : index
    %178 = vector.load %arg18[%c0_147, %c1216_148] : memref<16x3136xbf16, #tpu.memory_space<vmem>>, vector<16x64xbf16>
    tpu.vector_store %arg18[%c0_147, %c1216_148], %177 {strides = array<i32>} : memref<16x3136xbf16, #tpu.memory_space<vmem>>, vector<16x64xbf16>,
    %c1152_149 = arith.constant 1152 : index
    %c0_150 = arith.constant 0 : index
    %179 = vector.load %arg17[%c1152_149, %c0_150] : memref<3600x64xbf16, #tpu.memory_space<vmem>>, vector<16x64xbf16>
    %c1168 = arith.constant 1168 : index
    %c0_151 = arith.constant 0 : index
    %180 = vector.load %arg17[%c1168, %c0_151] : memref<3600x64xbf16, #tpu.memory_space<vmem>>, vector<16x64xbf16>
    %181 = arith.maximumf %179, %180 : vector<16x64xbf16>
    %c1392 = arith.constant 1392 : index
    %c0_152 = arith.constant 0 : index
    %182 = vector.load %arg17[%c1392, %c0_152] : memref<3600x64xbf16, #tpu.memory_space<vmem>>, vector<16x64xbf16>
    %c1408 = arith.constant 1408 : index
    %c0_153 = arith.constant 0 : index
    %183 = vector.load %arg17[%c1408, %c0_153] : memref<3600x64xbf16, #tpu.memory_space<vmem>>, vector<16x64xbf16>
    %184 = arith.maximumf %182, %183 : vector<16x64xbf16>
    %185 = arith.maximumf %181, %184 : vector<16x64xbf16>
    %c0_154 = arith.constant 0 : index
    %c1280_155 = arith.constant 1280 : index
    %186 = vector.load %arg18[%c0_154, %c1280_155] : memref<16x3136xbf16, #tpu.memory_space<vmem>>, vector<16x64xbf16>
    tpu.vector_store %arg18[%c0_154, %c1280_155], %185 {strides = array<i32>} : memref<16x3136xbf16, #tpu.memory_space<vmem>>, vector<16x64xbf16>,
    %c1440 = arith.constant 1440 : index
    %c0_156 = arith.constant 0 : index
    %187 = vector.load %arg17[%c1440, %c0_156] : memref<3600x64xbf16, #tpu.memory_space<vmem>>, vector<16x64xbf16>
    %c1456 = arith.constant 1456 : index
    %c0_157 = arith.constant 0 : index
    %188 = vector.load %arg17[%c1456, %c0_157] : memref<3600x64xbf16, #tpu.memory_space<vmem>>, vector<16x64xbf16>
    %189 = arith.maximumf %187, %188 : vector<16x64xbf16>
    %c1680 = arith.constant 1680 : index
    %c0_158 = arith.constant 0 : index
    %190 = vector.load %arg17[%c1680, %c0_158] : memref<3600x64xbf16, #tpu.memory_space<vmem>>, vector<16x64xbf16>
    %c1696 = arith.constant 1696 : index
    %c0_159 = arith.constant 0 : index
    %191 = vector.load %arg17[%c1696, %c0_159] : memref<3600x64xbf16, #tpu.memory_space<vmem>>, vector<16x64xbf16>
    %192 = arith.maximumf %190, %191 : vector<16x64xbf16>
    %193 = arith.maximumf %189, %192 : vector<16x64xbf16>
    %c0_160 = arith.constant 0 : index
    %c1344_161 = arith.constant 1344 : index
    %194 = vector.load %arg18[%c0_160, %c1344_161] : memref<16x3136xbf16, #tpu.memory_space<vmem>>, vector<16x64xbf16>
    tpu.vector_store %arg18[%c0_160, %c1344_161], %193 {strides = array<i32>} : memref<16x3136xbf16, #tpu.memory_space<vmem>>, vector<16x64xbf16>,
    %c1472 = arith.constant 1472 : index
    %c0_162 = arith.constant 0 : index
    %195 = vector.load %arg17[%c1472, %c0_162] : memref<3600x64xbf16, #tpu.memory_space<vmem>>, vector<16x64xbf16>
    %c1488 = arith.constant 1488 : index
    %c0_163 = arith.constant 0 : index
    %196 = vector.load %arg17[%c1488, %c0_163] : memref<3600x64xbf16, #tpu.memory_space<vmem>>, vector<16x64xbf16>
    %197 = arith.maximumf %195, %196 : vector<16x64xbf16>
    %c1712 = arith.constant 1712 : index
    %c0_164 = arith.constant 0 : index
    %198 = vector.load %arg17[%c1712, %c0_164] : memref<3600x64xbf16, #tpu.memory_space<vmem>>, vector<16x64xbf16>
    %c1728 = arith.constant 1728 : index
    %c0_165 = arith.constant 0 : index
    %199 = vector.load %arg17[%c1728, %c0_165] : memref<3600x64xbf16, #tpu.memory_space<vmem>>, vector<16x64xbf16>
    %200 = arith.maximumf %198, %199 : vector<16x64xbf16>
    %201 = arith.maximumf %197, %200 : vector<16x64xbf16>
    %c0_166 = arith.constant 0 : index
    %c1408_167 = arith.constant 1408 : index
    %202 = vector.load %arg18[%c0_166, %c1408_167] : memref<16x3136xbf16, #tpu.memory_space<vmem>>, vector<16x64xbf16>
    tpu.vector_store %arg18[%c0_166, %c1408_167], %201 {strides = array<i32>} : memref<16x3136xbf16, #tpu.memory_space<vmem>>, vector<16x64xbf16>,
    %c1504 = arith.constant 1504 : index
    %c0_168 = arith.constant 0 : index
    %203 = vector.load %arg17[%c1504, %c0_168] : memref<3600x64xbf16, #tpu.memory_space<vmem>>, vector<16x64xbf16>
    %c1520 = arith.constant 1520 : index
    %c0_169 = arith.constant 0 : index
    %204 = vector.load %arg17[%c1520, %c0_169] : memref<3600x64xbf16, #tpu.memory_space<vmem>>, vector<16x64xbf16>
    %205 = arith.maximumf %203, %204 : vector<16x64xbf16>
    %c1744 = arith.constant 1744 : index
    %c0_170 = arith.constant 0 : index
    %206 = vector.load %arg17[%c1744, %c0_170] : memref<3600x64xbf16, #tpu.memory_space<vmem>>, vector<16x64xbf16>
    %c1760 = arith.constant 1760 : index
    %c0_171 = arith.constant 0 : index
    %207 = vector.load %arg17[%c1760, %c0_171] : memref<3600x64xbf16, #tpu.memory_space<vmem>>, vector<16x64xbf16>
    %208 = arith.maximumf %206, %207 : vector<16x64xbf16>
    %209 = arith.maximumf %205, %208 : vector<16x64xbf16>
    %c0_172 = arith.constant 0 : index
    %c1472_173 = arith.constant 1472 : index
    %210 = vector.load %arg18[%c0_172, %c1472_173] : memref<16x3136xbf16, #tpu.memory_space<vmem>>, vector<16x64xbf16>
    tpu.vector_store %arg18[%c0_172, %c1472_173], %209 {strides = array<i32>} : memref<16x3136xbf16, #tpu.memory_space<vmem>>, vector<16x64xbf16>,
    %c1536 = arith.constant 1536 : index
    %c0_174 = arith.constant 0 : index
    %211 = vector.load %arg17[%c1536, %c0_174] : memref<3600x64xbf16, #tpu.memory_space<vmem>>, vector<16x64xbf16>
    %c1552 = arith.constant 1552 : index
    %c0_175 = arith.constant 0 : index
    %212 = vector.load %arg17[%c1552, %c0_175] : memref<3600x64xbf16, #tpu.memory_space<vmem>>, vector<16x64xbf16>
    %213 = arith.maximumf %211, %212 : vector<16x64xbf16>
    %c1776 = arith.constant 1776 : index
    %c0_176 = arith.constant 0 : index
    %214 = vector.load %arg17[%c1776, %c0_176] : memref<3600x64xbf16, #tpu.memory_space<vmem>>, vector<16x64xbf16>
    %c1792 = arith.constant 1792 : index
    %c0_177 = arith.constant 0 : index
    %215 = vector.load %arg17[%c1792, %c0_177] : memref<3600x64xbf16, #tpu.memory_space<vmem>>, vector<16x64xbf16>
    %216 = arith.maximumf %214, %215 : vector<16x64xbf16>
    %217 = arith.maximumf %213, %216 : vector<16x64xbf16>
    %c0_178 = arith.constant 0 : index
    %c1536_179 = arith.constant 1536 : index
    %218 = vector.load %arg18[%c0_178, %c1536_179] : memref<16x3136xbf16, #tpu.memory_space<vmem>>, vector<16x64xbf16>
    tpu.vector_store %arg18[%c0_178, %c1536_179], %217 {strides = array<i32>} : memref<16x3136xbf16, #tpu.memory_space<vmem>>, vector<16x64xbf16>,
    %c1568 = arith.constant 1568 : index
    %c0_180 = arith.constant 0 : index
    %219 = vector.load %arg17[%c1568, %c0_180] : memref<3600x64xbf16, #tpu.memory_space<vmem>>, vector<16x64xbf16>
    %c1584 = arith.constant 1584 : index
    %c0_181 = arith.constant 0 : index
    %220 = vector.load %arg17[%c1584, %c0_181] : memref<3600x64xbf16, #tpu.memory_space<vmem>>, vector<16x64xbf16>
    %221 = arith.maximumf %219, %220 : vector<16x64xbf16>
    %c1808 = arith.constant 1808 : index
    %c0_182 = arith.constant 0 : index
    %222 = vector.load %arg17[%c1808, %c0_182] : memref<3600x64xbf16, #tpu.memory_space<vmem>>, vector<16x64xbf16>
    %c1824 = arith.constant 1824 : index
    %c0_183 = arith.constant 0 : index
    %223 = vector.load %arg17[%c1824, %c0_183] : memref<3600x64xbf16, #tpu.memory_space<vmem>>, vector<16x64xbf16>
    %224 = arith.maximumf %222, %223 : vector<16x64xbf16>
    %225 = arith.maximumf %221, %224 : vector<16x64xbf16>
    %c0_184 = arith.constant 0 : index
    %c1600 = arith.constant 1600 : index
    %226 = vector.load %arg18[%c0_184, %c1600] : memref<16x3136xbf16, #tpu.memory_space<vmem>>, vector<16x64xbf16>
    tpu.vector_store %arg18[%c0_184, %c1600], %225 {strides = array<i32>} : memref<16x3136xbf16, #tpu.memory_space<vmem>>, vector<16x64xbf16>,
    %c1600_185 = arith.constant 1600 : index
    %c0_186 = arith.constant 0 : index
    %227 = vector.load %arg17[%c1600_185, %c0_186] : memref<3600x64xbf16, #tpu.memory_space<vmem>>, vector<16x64xbf16>
    %c1616 = arith.constant 1616 : index
    %c0_187 = arith.constant 0 : index
    %228 = vector.load %arg17[%c1616, %c0_187] : memref<3600x64xbf16, #tpu.memory_space<vmem>>, vector<16x64xbf16>
    %229 = arith.maximumf %227, %228 : vector<16x64xbf16>
    %c1840 = arith.constant 1840 : index
    %c0_188 = arith.constant 0 : index
    %230 = vector.load %arg17[%c1840, %c0_188] : memref<3600x64xbf16, #tpu.memory_space<vmem>>, vector<16x64xbf16>
    %c1856 = arith.constant 1856 : index
    %c0_189 = arith.constant 0 : index
    %231 = vector.load %arg17[%c1856, %c0_189] : memref<3600x64xbf16, #tpu.memory_space<vmem>>, vector<16x64xbf16>
    %232 = arith.maximumf %230, %231 : vector<16x64xbf16>
    %233 = arith.maximumf %229, %232 : vector<16x64xbf16>
    %c0_190 = arith.constant 0 : index
    %c1664 = arith.constant 1664 : index
    %234 = vector.load %arg18[%c0_190, %c1664] : memref<16x3136xbf16, #tpu.memory_space<vmem>>, vector<16x64xbf16>
    tpu.vector_store %arg18[%c0_190, %c1664], %233 {strides = array<i32>} : memref<16x3136xbf16, #tpu.memory_space<vmem>>, vector<16x64xbf16>,
    %c1632 = arith.constant 1632 : index
    %c0_191 = arith.constant 0 : index
    %235 = vector.load %arg17[%c1632, %c0_191] : memref<3600x64xbf16, #tpu.memory_space<vmem>>, vector<16x64xbf16>
    %c1648 = arith.constant 1648 : index
    %c0_192 = arith.constant 0 : index
    %236 = vector.load %arg17[%c1648, %c0_192] : memref<3600x64xbf16, #tpu.memory_space<vmem>>, vector<16x64xbf16>
    %237 = arith.maximumf %235, %236 : vector<16x64xbf16>
    %c1872 = arith.constant 1872 : index
    %c0_193 = arith.constant 0 : index
    %238 = vector.load %arg17[%c1872, %c0_193] : memref<3600x64xbf16, #tpu.memory_space<vmem>>, vector<16x64xbf16>
    %c1888 = arith.constant 1888 : index
    %c0_194 = arith.constant 0 : index
    %239 = vector.load %arg17[%c1888, %c0_194] : memref<3600x64xbf16, #tpu.memory_space<vmem>>, vector<16x64xbf16>
    %240 = arith.maximumf %238, %239 : vector<16x64xbf16>
    %241 = arith.maximumf %237, %240 : vector<16x64xbf16>
    %c0_195 = arith.constant 0 : index
    %c1728_196 = arith.constant 1728 : index
    %242 = vector.load %arg18[%c0_195, %c1728_196] : memref<16x3136xbf16, #tpu.memory_space<vmem>>, vector<16x64xbf16>
    tpu.vector_store %arg18[%c0_195, %c1728_196], %241 {strides = array<i32>} : memref<16x3136xbf16, #tpu.memory_space<vmem>>, vector<16x64xbf16>,
    %c1920 = arith.constant 1920 : index
    %c0_197 = arith.constant 0 : index
    %243 = vector.load %arg17[%c1920, %c0_197] : memref<3600x64xbf16, #tpu.memory_space<vmem>>, vector<16x64xbf16>
    %c1936 = arith.constant 1936 : index
    %c0_198 = arith.constant 0 : index
    %244 = vector.load %arg17[%c1936, %c0_198] : memref<3600x64xbf16, #tpu.memory_space<vmem>>, vector<16x64xbf16>
    %245 = arith.maximumf %243, %244 : vector<16x64xbf16>
    %c2160 = arith.constant 2160 : index
    %c0_199 = arith.constant 0 : index
    %246 = vector.load %arg17[%c2160, %c0_199] : memref<3600x64xbf16, #tpu.memory_space<vmem>>, vector<16x64xbf16>
    %c2176 = arith.constant 2176 : index
    %c0_200 = arith.constant 0 : index
    %247 = vector.load %arg17[%c2176, %c0_200] : memref<3600x64xbf16, #tpu.memory_space<vmem>>, vector<16x64xbf16>
    %248 = arith.maximumf %246, %247 : vector<16x64xbf16>
    %249 = arith.maximumf %245, %248 : vector<16x64xbf16>
    %c0_201 = arith.constant 0 : index
    %c1792_202 = arith.constant 1792 : index
    %250 = vector.load %arg18[%c0_201, %c1792_202] : memref<16x3136xbf16, #tpu.memory_space<vmem>>, vector<16x64xbf16>
    tpu.vector_store %arg18[%c0_201, %c1792_202], %249 {strides = array<i32>} : memref<16x3136xbf16, #tpu.memory_space<vmem>>, vector<16x64xbf16>,
    %c1952 = arith.constant 1952 : index
    %c0_203 = arith.constant 0 : index
    %251 = vector.load %arg17[%c1952, %c0_203] : memref<3600x64xbf16, #tpu.memory_space<vmem>>, vector<16x64xbf16>
    %c1968 = arith.constant 1968 : index
    %c0_204 = arith.constant 0 : index
    %252 = vector.load %arg17[%c1968, %c0_204] : memref<3600x64xbf16, #tpu.memory_space<vmem>>, vector<16x64xbf16>
    %253 = arith.maximumf %251, %252 : vector<16x64xbf16>
    %c2192 = arith.constant 2192 : index
    %c0_205 = arith.constant 0 : index
    %254 = vector.load %arg17[%c2192, %c0_205] : memref<3600x64xbf16, #tpu.memory_space<vmem>>, vector<16x64xbf16>
    %c2208 = arith.constant 2208 : index
    %c0_206 = arith.constant 0 : index
    %255 = vector.load %arg17[%c2208, %c0_206] : memref<3600x64xbf16, #tpu.memory_space<vmem>>, vector<16x64xbf16>
    %256 = arith.maximumf %254, %255 : vector<16x64xbf16>
    %257 = arith.maximumf %253, %256 : vector<16x64xbf16>
    %c0_207 = arith.constant 0 : index
    %c1856_208 = arith.constant 1856 : index
    %258 = vector.load %arg18[%c0_207, %c1856_208] : memref<16x3136xbf16, #tpu.memory_space<vmem>>, vector<16x64xbf16>
    tpu.vector_store %arg18[%c0_207, %c1856_208], %257 {strides = array<i32>} : memref<16x3136xbf16, #tpu.memory_space<vmem>>, vector<16x64xbf16>,
    %c1984 = arith.constant 1984 : index
    %c0_209 = arith.constant 0 : index
    %259 = vector.load %arg17[%c1984, %c0_209] : memref<3600x64xbf16, #tpu.memory_space<vmem>>, vector<16x64xbf16>
    %c2000 = arith.constant 2000 : index
    %c0_210 = arith.constant 0 : index
    %260 = vector.load %arg17[%c2000, %c0_210] : memref<3600x64xbf16, #tpu.memory_space<vmem>>, vector<16x64xbf16>
    %261 = arith.maximumf %259, %260 : vector<16x64xbf16>
    %c2224 = arith.constant 2224 : index
    %c0_211 = arith.constant 0 : index
    %262 = vector.load %arg17[%c2224, %c0_211] : memref<3600x64xbf16, #tpu.memory_space<vmem>>, vector<16x64xbf16>
    %c2240 = arith.constant 2240 : index
    %c0_212 = arith.constant 0 : index
    %263 = vector.load %arg17[%c2240, %c0_212] : memref<3600x64xbf16, #tpu.memory_space<vmem>>, vector<16x64xbf16>
    %264 = arith.maximumf %262, %263 : vector<16x64xbf16>
    %265 = arith.maximumf %261, %264 : vector<16x64xbf16>
    %c0_213 = arith.constant 0 : index
    %c1920_214 = arith.constant 1920 : index
    %266 = vector.load %arg18[%c0_213, %c1920_214] : memref<16x3136xbf16, #tpu.memory_space<vmem>>, vector<16x64xbf16>
    tpu.vector_store %arg18[%c0_213, %c1920_214], %265 {strides = array<i32>} : memref<16x3136xbf16, #tpu.memory_space<vmem>>, vector<16x64xbf16>,
    %c2016 = arith.constant 2016 : index
    %c0_215 = arith.constant 0 : index
    %267 = vector.load %arg17[%c2016, %c0_215] : memref<3600x64xbf16, #tpu.memory_space<vmem>>, vector<16x64xbf16>
    %c2032 = arith.constant 2032 : index
    %c0_216 = arith.constant 0 : index
    %268 = vector.load %arg17[%c2032, %c0_216] : memref<3600x64xbf16, #tpu.memory_space<vmem>>, vector<16x64xbf16>
    %269 = arith.maximumf %267, %268 : vector<16x64xbf16>
    %c2256 = arith.constant 2256 : index
    %c0_217 = arith.constant 0 : index
    %270 = vector.load %arg17[%c2256, %c0_217] : memref<3600x64xbf16, #tpu.memory_space<vmem>>, vector<16x64xbf16>
    %c2272 = arith.constant 2272 : index
    %c0_218 = arith.constant 0 : index
    %271 = vector.load %arg17[%c2272, %c0_218] : memref<3600x64xbf16, #tpu.memory_space<vmem>>, vector<16x64xbf16>
    %272 = arith.maximumf %270, %271 : vector<16x64xbf16>
    %273 = arith.maximumf %269, %272 : vector<16x64xbf16>
    %c0_219 = arith.constant 0 : index
    %c1984_220 = arith.constant 1984 : index
    %274 = vector.load %arg18[%c0_219, %c1984_220] : memref<16x3136xbf16, #tpu.memory_space<vmem>>, vector<16x64xbf16>
    tpu.vector_store %arg18[%c0_219, %c1984_220], %273 {strides = array<i32>} : memref<16x3136xbf16, #tpu.memory_space<vmem>>, vector<16x64xbf16>,
    %c2048 = arith.constant 2048 : index
    %c0_221 = arith.constant 0 : index
    %275 = vector.load %arg17[%c2048, %c0_221] : memref<3600x64xbf16, #tpu.memory_space<vmem>>, vector<16x64xbf16>
    %c2064 = arith.constant 2064 : index
    %c0_222 = arith.constant 0 : index
    %276 = vector.load %arg17[%c2064, %c0_222] : memref<3600x64xbf16, #tpu.memory_space<vmem>>, vector<16x64xbf16>
    %277 = arith.maximumf %275, %276 : vector<16x64xbf16>
    %c2288 = arith.constant 2288 : index
    %c0_223 = arith.constant 0 : index
    %278 = vector.load %arg17[%c2288, %c0_223] : memref<3600x64xbf16, #tpu.memory_space<vmem>>, vector<16x64xbf16>
    %c2304 = arith.constant 2304 : index
    %c0_224 = arith.constant 0 : index
    %279 = vector.load %arg17[%c2304, %c0_224] : memref<3600x64xbf16, #tpu.memory_space<vmem>>, vector<16x64xbf16>
    %280 = arith.maximumf %278, %279 : vector<16x64xbf16>
    %281 = arith.maximumf %277, %280 : vector<16x64xbf16>
    %c0_225 = arith.constant 0 : index
    %c2048_226 = arith.constant 2048 : index
    %282 = vector.load %arg18[%c0_225, %c2048_226] : memref<16x3136xbf16, #tpu.memory_space<vmem>>, vector<16x64xbf16>
    tpu.vector_store %arg18[%c0_225, %c2048_226], %281 {strides = array<i32>} : memref<16x3136xbf16, #tpu.memory_space<vmem>>, vector<16x64xbf16>,
    %c2080 = arith.constant 2080 : index
    %c0_227 = arith.constant 0 : index
    %283 = vector.load %arg17[%c2080, %c0_227] : memref<3600x64xbf16, #tpu.memory_space<vmem>>, vector<16x64xbf16>
    %c2096 = arith.constant 2096 : index
    %c0_228 = arith.constant 0 : index
    %284 = vector.load %arg17[%c2096, %c0_228] : memref<3600x64xbf16, #tpu.memory_space<vmem>>, vector<16x64xbf16>
    %285 = arith.maximumf %283, %284 : vector<16x64xbf16>
    %c2320 = arith.constant 2320 : index
    %c0_229 = arith.constant 0 : index
    %286 = vector.load %arg17[%c2320, %c0_229] : memref<3600x64xbf16, #tpu.memory_space<vmem>>, vector<16x64xbf16>
    %c2336 = arith.constant 2336 : index
    %c0_230 = arith.constant 0 : index
    %287 = vector.load %arg17[%c2336, %c0_230] : memref<3600x64xbf16, #tpu.memory_space<vmem>>, vector<16x64xbf16>
    %288 = arith.maximumf %286, %287 : vector<16x64xbf16>
    %289 = arith.maximumf %285, %288 : vector<16x64xbf16>
    %c0_231 = arith.constant 0 : index
    %c2112 = arith.constant 2112 : index
    %290 = vector.load %arg18[%c0_231, %c2112] : memref<16x3136xbf16, #tpu.memory_space<vmem>>, vector<16x64xbf16>
    tpu.vector_store %arg18[%c0_231, %c2112], %289 {strides = array<i32>} : memref<16x3136xbf16, #tpu.memory_space<vmem>>, vector<16x64xbf16>,
    %c2112_232 = arith.constant 2112 : index
    %c0_233 = arith.constant 0 : index
    %291 = vector.load %arg17[%c2112_232, %c0_233] : memref<3600x64xbf16, #tpu.memory_space<vmem>>, vector<16x64xbf16>
    %c2128 = arith.constant 2128 : index
    %c0_234 = arith.constant 0 : index
    %292 = vector.load %arg17[%c2128, %c0_234] : memref<3600x64xbf16, #tpu.memory_space<vmem>>, vector<16x64xbf16>
    %293 = arith.maximumf %291, %292 : vector<16x64xbf16>
    %c2352 = arith.constant 2352 : index
    %c0_235 = arith.constant 0 : index
    %294 = vector.load %arg17[%c2352, %c0_235] : memref<3600x64xbf16, #tpu.memory_space<vmem>>, vector<16x64xbf16>
    %c2368 = arith.constant 2368 : index
    %c0_236 = arith.constant 0 : index
    %295 = vector.load %arg17[%c2368, %c0_236] : memref<3600x64xbf16, #tpu.memory_space<vmem>>, vector<16x64xbf16>
    %296 = arith.maximumf %294, %295 : vector<16x64xbf16>
    %297 = arith.maximumf %293, %296 : vector<16x64xbf16>
    %c0_237 = arith.constant 0 : index
    %c2176_238 = arith.constant 2176 : index
    %298 = vector.load %arg18[%c0_237, %c2176_238] : memref<16x3136xbf16, #tpu.memory_space<vmem>>, vector<16x64xbf16>
    tpu.vector_store %arg18[%c0_237, %c2176_238], %297 {strides = array<i32>} : memref<16x3136xbf16, #tpu.memory_space<vmem>>, vector<16x64xbf16>,
    %c2400 = arith.constant 2400 : index
    %c0_239 = arith.constant 0 : index
    %299 = vector.load %arg17[%c2400, %c0_239] : memref<3600x64xbf16, #tpu.memory_space<vmem>>, vector<16x64xbf16>
    %c2416 = arith.constant 2416 : index
    %c0_240 = arith.constant 0 : index
    %300 = vector.load %arg17[%c2416, %c0_240] : memref<3600x64xbf16, #tpu.memory_space<vmem>>, vector<16x64xbf16>
    %301 = arith.maximumf %299, %300 : vector<16x64xbf16>
    %c2640 = arith.constant 2640 : index
    %c0_241 = arith.constant 0 : index
    %302 = vector.load %arg17[%c2640, %c0_241] : memref<3600x64xbf16, #tpu.memory_space<vmem>>, vector<16x64xbf16>
    %c2656 = arith.constant 2656 : index
    %c0_242 = arith.constant 0 : index
    %303 = vector.load %arg17[%c2656, %c0_242] : memref<3600x64xbf16, #tpu.memory_space<vmem>>, vector<16x64xbf16>
    %304 = arith.maximumf %302, %303 : vector<16x64xbf16>
    %305 = arith.maximumf %301, %304 : vector<16x64xbf16>
    %c0_243 = arith.constant 0 : index
    %c2240_244 = arith.constant 2240 : index
    %306 = vector.load %arg18[%c0_243, %c2240_244] : memref<16x3136xbf16, #tpu.memory_space<vmem>>, vector<16x64xbf16>
    tpu.vector_store %arg18[%c0_243, %c2240_244], %305 {strides = array<i32>} : memref<16x3136xbf16, #tpu.memory_space<vmem>>, vector<16x64xbf16>,
    %c2432 = arith.constant 2432 : index
    %c0_245 = arith.constant 0 : index
    %307 = vector.load %arg17[%c2432, %c0_245] : memref<3600x64xbf16, #tpu.memory_space<vmem>>, vector<16x64xbf16>
    %c2448 = arith.constant 2448 : index
    %c0_246 = arith.constant 0 : index
    %308 = vector.load %arg17[%c2448, %c0_246] : memref<3600x64xbf16, #tpu.memory_space<vmem>>, vector<16x64xbf16>
    %309 = arith.maximumf %307, %308 : vector<16x64xbf16>
    %c2672 = arith.constant 2672 : index
    %c0_247 = arith.constant 0 : index
    %310 = vector.load %arg17[%c2672, %c0_247] : memref<3600x64xbf16, #tpu.memory_space<vmem>>, vector<16x64xbf16>
    %c2688 = arith.constant 2688 : index
    %c0_248 = arith.constant 0 : index
    %311 = vector.load %arg17[%c2688, %c0_248] : memref<3600x64xbf16, #tpu.memory_space<vmem>>, vector<16x64xbf16>
    %312 = arith.maximumf %310, %311 : vector<16x64xbf16>
    %313 = arith.maximumf %309, %312 : vector<16x64xbf16>
    %c0_249 = arith.constant 0 : index
    %c2304_250 = arith.constant 2304 : index
    %314 = vector.load %arg18[%c0_249, %c2304_250] : memref<16x3136xbf16, #tpu.memory_space<vmem>>, vector<16x64xbf16>
    tpu.vector_store %arg18[%c0_249, %c2304_250], %313 {strides = array<i32>} : memref<16x3136xbf16, #tpu.memory_space<vmem>>, vector<16x64xbf16>,
    %c2464 = arith.constant 2464 : index
    %c0_251 = arith.constant 0 : index
    %315 = vector.load %arg17[%c2464, %c0_251] : memref<3600x64xbf16, #tpu.memory_space<vmem>>, vector<16x64xbf16>
    %c2480 = arith.constant 2480 : index
    %c0_252 = arith.constant 0 : index
    %316 = vector.load %arg17[%c2480, %c0_252] : memref<3600x64xbf16, #tpu.memory_space<vmem>>, vector<16x64xbf16>
    %317 = arith.maximumf %315, %316 : vector<16x64xbf16>
    %c2704 = arith.constant 2704 : index
    %c0_253 = arith.constant 0 : index
    %318 = vector.load %arg17[%c2704, %c0_253] : memref<3600x64xbf16, #tpu.memory_space<vmem>>, vector<16x64xbf16>
    %c2720 = arith.constant 2720 : index
    %c0_254 = arith.constant 0 : index
    %319 = vector.load %arg17[%c2720, %c0_254] : memref<3600x64xbf16, #tpu.memory_space<vmem>>, vector<16x64xbf16>
    %320 = arith.maximumf %318, %319 : vector<16x64xbf16>
    %321 = arith.maximumf %317, %320 : vector<16x64xbf16>
    %c0_255 = arith.constant 0 : index
    %c2368_256 = arith.constant 2368 : index
    %322 = vector.load %arg18[%c0_255, %c2368_256] : memref<16x3136xbf16, #tpu.memory_space<vmem>>, vector<16x64xbf16>
    tpu.vector_store %arg18[%c0_255, %c2368_256], %321 {strides = array<i32>} : memref<16x3136xbf16, #tpu.memory_space<vmem>>, vector<16x64xbf16>,
    %c2496 = arith.constant 2496 : index
    %c0_257 = arith.constant 0 : index
    %323 = vector.load %arg17[%c2496, %c0_257] : memref<3600x64xbf16, #tpu.memory_space<vmem>>, vector<16x64xbf16>
    %c2512 = arith.constant 2512 : index
    %c0_258 = arith.constant 0 : index
    %324 = vector.load %arg17[%c2512, %c0_258] : memref<3600x64xbf16, #tpu.memory_space<vmem>>, vector<16x64xbf16>
    %325 = arith.maximumf %323, %324 : vector<16x64xbf16>
    %c2736 = arith.constant 2736 : index
    %c0_259 = arith.constant 0 : index
    %326 = vector.load %arg17[%c2736, %c0_259] : memref<3600x64xbf16, #tpu.memory_space<vmem>>, vector<16x64xbf16>
    %c2752 = arith.constant 2752 : index
    %c0_260 = arith.constant 0 : index
    %327 = vector.load %arg17[%c2752, %c0_260] : memref<3600x64xbf16, #tpu.memory_space<vmem>>, vector<16x64xbf16>
    %328 = arith.maximumf %326, %327 : vector<16x64xbf16>
    %329 = arith.maximumf %325, %328 : vector<16x64xbf16>
    %c0_261 = arith.constant 0 : index
    %c2432_262 = arith.constant 2432 : index
    %330 = vector.load %arg18[%c0_261, %c2432_262] : memref<16x3136xbf16, #tpu.memory_space<vmem>>, vector<16x64xbf16>
    tpu.vector_store %arg18[%c0_261, %c2432_262], %329 {strides = array<i32>} : memref<16x3136xbf16, #tpu.memory_space<vmem>>, vector<16x64xbf16>,
    %c2528 = arith.constant 2528 : index
    %c0_263 = arith.constant 0 : index
    %331 = vector.load %arg17[%c2528, %c0_263] : memref<3600x64xbf16, #tpu.memory_space<vmem>>, vector<16x64xbf16>
    %c2544 = arith.constant 2544 : index
    %c0_264 = arith.constant 0 : index
    %332 = vector.load %arg17[%c2544, %c0_264] : memref<3600x64xbf16, #tpu.memory_space<vmem>>, vector<16x64xbf16>
    %333 = arith.maximumf %331, %332 : vector<16x64xbf16>
    %c2768 = arith.constant 2768 : index
    %c0_265 = arith.constant 0 : index
    %334 = vector.load %arg17[%c2768, %c0_265] : memref<3600x64xbf16, #tpu.memory_space<vmem>>, vector<16x64xbf16>
    %c2784 = arith.constant 2784 : index
    %c0_266 = arith.constant 0 : index
    %335 = vector.load %arg17[%c2784, %c0_266] : memref<3600x64xbf16, #tpu.memory_space<vmem>>, vector<16x64xbf16>
    %336 = arith.maximumf %334, %335 : vector<16x64xbf16>
    %337 = arith.maximumf %333, %336 : vector<16x64xbf16>
    %c0_267 = arith.constant 0 : index
    %c2496_268 = arith.constant 2496 : index
    %338 = vector.load %arg18[%c0_267, %c2496_268] : memref<16x3136xbf16, #tpu.memory_space<vmem>>, vector<16x64xbf16>
    tpu.vector_store %arg18[%c0_267, %c2496_268], %337 {strides = array<i32>} : memref<16x3136xbf16, #tpu.memory_space<vmem>>, vector<16x64xbf16>,
    %c2560 = arith.constant 2560 : index
    %c0_269 = arith.constant 0 : index
    %339 = vector.load %arg17[%c2560, %c0_269] : memref<3600x64xbf16, #tpu.memory_space<vmem>>, vector<16x64xbf16>
    %c2576 = arith.constant 2576 : index
    %c0_270 = arith.constant 0 : index
    %340 = vector.load %arg17[%c2576, %c0_270] : memref<3600x64xbf16, #tpu.memory_space<vmem>>, vector<16x64xbf16>
    %341 = arith.maximumf %339, %340 : vector<16x64xbf16>
    %c2800 = arith.constant 2800 : index
    %c0_271 = arith.constant 0 : index
    %342 = vector.load %arg17[%c2800, %c0_271] : memref<3600x64xbf16, #tpu.memory_space<vmem>>, vector<16x64xbf16>
    %c2816 = arith.constant 2816 : index
    %c0_272 = arith.constant 0 : index
    %343 = vector.load %arg17[%c2816, %c0_272] : memref<3600x64xbf16, #tpu.memory_space<vmem>>, vector<16x64xbf16>
    %344 = arith.maximumf %342, %343 : vector<16x64xbf16>
    %345 = arith.maximumf %341, %344 : vector<16x64xbf16>
    %c0_273 = arith.constant 0 : index
    %c2560_274 = arith.constant 2560 : index
    %346 = vector.load %arg18[%c0_273, %c2560_274] : memref<16x3136xbf16, #tpu.memory_space<vmem>>, vector<16x64xbf16>
    tpu.vector_store %arg18[%c0_273, %c2560_274], %345 {strides = array<i32>} : memref<16x3136xbf16, #tpu.memory_space<vmem>>, vector<16x64xbf16>,
    %c2592 = arith.constant 2592 : index
    %c0_275 = arith.constant 0 : index
    %347 = vector.load %arg17[%c2592, %c0_275] : memref<3600x64xbf16, #tpu.memory_space<vmem>>, vector<16x64xbf16>
    %c2608 = arith.constant 2608 : index
    %c0_276 = arith.constant 0 : index
    %348 = vector.load %arg17[%c2608, %c0_276] : memref<3600x64xbf16, #tpu.memory_space<vmem>>, vector<16x64xbf16>
    %349 = arith.maximumf %347, %348 : vector<16x64xbf16>
    %c2832 = arith.constant 2832 : index
    %c0_277 = arith.constant 0 : index
    %350 = vector.load %arg17[%c2832, %c0_277] : memref<3600x64xbf16, #tpu.memory_space<vmem>>, vector<16x64xbf16>
    %c2848 = arith.constant 2848 : index
    %c0_278 = arith.constant 0 : index
    %351 = vector.load %arg17[%c2848, %c0_278] : memref<3600x64xbf16, #tpu.memory_space<vmem>>, vector<16x64xbf16>
    %352 = arith.maximumf %350, %351 : vector<16x64xbf16>
    %353 = arith.maximumf %349, %352 : vector<16x64xbf16>
    %c0_279 = arith.constant 0 : index
    %c2624 = arith.constant 2624 : index
    %354 = vector.load %arg18[%c0_279, %c2624] : memref<16x3136xbf16, #tpu.memory_space<vmem>>, vector<16x64xbf16>
    tpu.vector_store %arg18[%c0_279, %c2624], %353 {strides = array<i32>} : memref<16x3136xbf16, #tpu.memory_space<vmem>>, vector<16x64xbf16>,
    %c2880 = arith.constant 2880 : index
    %c0_280 = arith.constant 0 : index
    %355 = vector.load %arg17[%c2880, %c0_280] : memref<3600x64xbf16, #tpu.memory_space<vmem>>, vector<16x64xbf16>
    %c2896 = arith.constant 2896 : index
    %c0_281 = arith.constant 0 : index
    %356 = vector.load %arg17[%c2896, %c0_281] : memref<3600x64xbf16, #tpu.memory_space<vmem>>, vector<16x64xbf16>
    %357 = arith.maximumf %355, %356 : vector<16x64xbf16>
    %c3120 = arith.constant 3120 : index
    %c0_282 = arith.constant 0 : index
    %358 = vector.load %arg17[%c3120, %c0_282] : memref<3600x64xbf16, #tpu.memory_space<vmem>>, vector<16x64xbf16>
    %c3136 = arith.constant 3136 : index
    %c0_283 = arith.constant 0 : index
    %359 = vector.load %arg17[%c3136, %c0_283] : memref<3600x64xbf16, #tpu.memory_space<vmem>>, vector<16x64xbf16>
    %360 = arith.maximumf %358, %359 : vector<16x64xbf16>
    %361 = arith.maximumf %357, %360 : vector<16x64xbf16>
    %c0_284 = arith.constant 0 : index
    %c2688_285 = arith.constant 2688 : index
    %362 = vector.load %arg18[%c0_284, %c2688_285] : memref<16x3136xbf16, #tpu.memory_space<vmem>>, vector<16x64xbf16>
    tpu.vector_store %arg18[%c0_284, %c2688_285], %361 {strides = array<i32>} : memref<16x3136xbf16, #tpu.memory_space<vmem>>, vector<16x64xbf16>,
    %c2912 = arith.constant 2912 : index
    %c0_286 = arith.constant 0 : index
    %363 = vector.load %arg17[%c2912, %c0_286] : memref<3600x64xbf16, #tpu.memory_space<vmem>>, vector<16x64xbf16>
    %c2928 = arith.constant 2928 : index
    %c0_287 = arith.constant 0 : index
    %364 = vector.load %arg17[%c2928, %c0_287] : memref<3600x64xbf16, #tpu.memory_space<vmem>>, vector<16x64xbf16>
    %365 = arith.maximumf %363, %364 : vector<16x64xbf16>
    %c3152 = arith.constant 3152 : index
    %c0_288 = arith.constant 0 : index
    %366 = vector.load %arg17[%c3152, %c0_288] : memref<3600x64xbf16, #tpu.memory_space<vmem>>, vector<16x64xbf16>
    %c3168 = arith.constant 3168 : index
    %c0_289 = arith.constant 0 : index
    %367 = vector.load %arg17[%c3168, %c0_289] : memref<3600x64xbf16, #tpu.memory_space<vmem>>, vector<16x64xbf16>
    %368 = arith.maximumf %366, %367 : vector<16x64xbf16>
    %369 = arith.maximumf %365, %368 : vector<16x64xbf16>
    %c0_290 = arith.constant 0 : index
    %c2752_291 = arith.constant 2752 : index
    %370 = vector.load %arg18[%c0_290, %c2752_291] : memref<16x3136xbf16, #tpu.memory_space<vmem>>, vector<16x64xbf16>
    tpu.vector_store %arg18[%c0_290, %c2752_291], %369 {strides = array<i32>} : memref<16x3136xbf16, #tpu.memory_space<vmem>>, vector<16x64xbf16>,
    %c2944 = arith.constant 2944 : index
    %c0_292 = arith.constant 0 : index
    %371 = vector.load %arg17[%c2944, %c0_292] : memref<3600x64xbf16, #tpu.memory_space<vmem>>, vector<16x64xbf16>
    %c2960 = arith.constant 2960 : index
    %c0_293 = arith.constant 0 : index
    %372 = vector.load %arg17[%c2960, %c0_293] : memref<3600x64xbf16, #tpu.memory_space<vmem>>, vector<16x64xbf16>
    %373 = arith.maximumf %371, %372 : vector<16x64xbf16>
    %c3184 = arith.constant 3184 : index
    %c0_294 = arith.constant 0 : index
    %374 = vector.load %arg17[%c3184, %c0_294] : memref<3600x64xbf16, #tpu.memory_space<vmem>>, vector<16x64xbf16>
    %c3200 = arith.constant 3200 : index
    %c0_295 = arith.constant 0 : index
    %375 = vector.load %arg17[%c3200, %c0_295] : memref<3600x64xbf16, #tpu.memory_space<vmem>>, vector<16x64xbf16>
    %376 = arith.maximumf %374, %375 : vector<16x64xbf16>
    %377 = arith.maximumf %373, %376 : vector<16x64xbf16>
    %c0_296 = arith.constant 0 : index
    %c2816_297 = arith.constant 2816 : index
    %378 = vector.load %arg18[%c0_296, %c2816_297] : memref<16x3136xbf16, #tpu.memory_space<vmem>>, vector<16x64xbf16>
    tpu.vector_store %arg18[%c0_296, %c2816_297], %377 {strides = array<i32>} : memref<16x3136xbf16, #tpu.memory_space<vmem>>, vector<16x64xbf16>,
    %c2976 = arith.constant 2976 : index
    %c0_298 = arith.constant 0 : index
    %379 = vector.load %arg17[%c2976, %c0_298] : memref<3600x64xbf16, #tpu.memory_space<vmem>>, vector<16x64xbf16>
    %c2992 = arith.constant 2992 : index
    %c0_299 = arith.constant 0 : index
    %380 = vector.load %arg17[%c2992, %c0_299] : memref<3600x64xbf16, #tpu.memory_space<vmem>>, vector<16x64xbf16>
    %381 = arith.maximumf %379, %380 : vector<16x64xbf16>
    %c3216 = arith.constant 3216 : index
    %c0_300 = arith.constant 0 : index
    %382 = vector.load %arg17[%c3216, %c0_300] : memref<3600x64xbf16, #tpu.memory_space<vmem>>, vector<16x64xbf16>
    %c3232 = arith.constant 3232 : index
    %c0_301 = arith.constant 0 : index
    %383 = vector.load %arg17[%c3232, %c0_301] : memref<3600x64xbf16, #tpu.memory_space<vmem>>, vector<16x64xbf16>
    %384 = arith.maximumf %382, %383 : vector<16x64xbf16>
    %385 = arith.maximumf %381, %384 : vector<16x64xbf16>
    %c0_302 = arith.constant 0 : index
    %c2880_303 = arith.constant 2880 : index
    %386 = vector.load %arg18[%c0_302, %c2880_303] : memref<16x3136xbf16, #tpu.memory_space<vmem>>, vector<16x64xbf16>
    tpu.vector_store %arg18[%c0_302, %c2880_303], %385 {strides = array<i32>} : memref<16x3136xbf16, #tpu.memory_space<vmem>>, vector<16x64xbf16>,
    %c3008 = arith.constant 3008 : index
    %c0_304 = arith.constant 0 : index
    %387 = vector.load %arg17[%c3008, %c0_304] : memref<3600x64xbf16, #tpu.memory_space<vmem>>, vector<16x64xbf16>
    %c3024 = arith.constant 3024 : index
    %c0_305 = arith.constant 0 : index
    %388 = vector.load %arg17[%c3024, %c0_305] : memref<3600x64xbf16, #tpu.memory_space<vmem>>, vector<16x64xbf16>
    %389 = arith.maximumf %387, %388 : vector<16x64xbf16>
    %c3248 = arith.constant 3248 : index
    %c0_306 = arith.constant 0 : index
    %390 = vector.load %arg17[%c3248, %c0_306] : memref<3600x64xbf16, #tpu.memory_space<vmem>>, vector<16x64xbf16>
    %c3264 = arith.constant 3264 : index
    %c0_307 = arith.constant 0 : index
    %391 = vector.load %arg17[%c3264, %c0_307] : memref<3600x64xbf16, #tpu.memory_space<vmem>>, vector<16x64xbf16>
    %392 = arith.maximumf %390, %391 : vector<16x64xbf16>
    %393 = arith.maximumf %389, %392 : vector<16x64xbf16>
    %c0_308 = arith.constant 0 : index
    %c2944_309 = arith.constant 2944 : index
    %394 = vector.load %arg18[%c0_308, %c2944_309] : memref<16x3136xbf16, #tpu.memory_space<vmem>>, vector<16x64xbf16>
    tpu.vector_store %arg18[%c0_308, %c2944_309], %393 {strides = array<i32>} : memref<16x3136xbf16, #tpu.memory_space<vmem>>, vector<16x64xbf16>,
    %c3040 = arith.constant 3040 : index
    %c0_310 = arith.constant 0 : index
    %395 = vector.load %arg17[%c3040, %c0_310] : memref<3600x64xbf16, #tpu.memory_space<vmem>>, vector<16x64xbf16>
    %c3056 = arith.constant 3056 : index
    %c0_311 = arith.constant 0 : index
    %396 = vector.load %arg17[%c3056, %c0_311] : memref<3600x64xbf16, #tpu.memory_space<vmem>>, vector<16x64xbf16>
    %397 = arith.maximumf %395, %396 : vector<16x64xbf16>
    %c3280 = arith.constant 3280 : index
    %c0_312 = arith.constant 0 : index
    %398 = vector.load %arg17[%c3280, %c0_312] : memref<3600x64xbf16, #tpu.memory_space<vmem>>, vector<16x64xbf16>
    %c3296 = arith.constant 3296 : index
    %c0_313 = arith.constant 0 : index
    %399 = vector.load %arg17[%c3296, %c0_313] : memref<3600x64xbf16, #tpu.memory_space<vmem>>, vector<16x64xbf16>
    %400 = arith.maximumf %398, %399 : vector<16x64xbf16>
    %401 = arith.maximumf %397, %400 : vector<16x64xbf16>
    %c0_314 = arith.constant 0 : index
    %c3008_315 = arith.constant 3008 : index
    %402 = vector.load %arg18[%c0_314, %c3008_315] : memref<16x3136xbf16, #tpu.memory_space<vmem>>, vector<16x64xbf16>
    tpu.vector_store %arg18[%c0_314, %c3008_315], %401 {strides = array<i32>} : memref<16x3136xbf16, #tpu.memory_space<vmem>>, vector<16x64xbf16>,
    %c3072 = arith.constant 3072 : index
    %c0_316 = arith.constant 0 : index
    %403 = vector.load %arg17[%c3072, %c0_316] : memref<3600x64xbf16, #tpu.memory_space<vmem>>, vector<16x64xbf16>
    %c3088 = arith.constant 3088 : index
    %c0_317 = arith.constant 0 : index
    %404 = vector.load %arg17[%c3088, %c0_317] : memref<3600x64xbf16, #tpu.memory_space<vmem>>, vector<16x64xbf16>
    %405 = arith.maximumf %403, %404 : vector<16x64xbf16>
    %c3312 = arith.constant 3312 : index
    %c0_318 = arith.constant 0 : index
    %406 = vector.load %arg17[%c3312, %c0_318] : memref<3600x64xbf16, #tpu.memory_space<vmem>>, vector<16x64xbf16>
    %c3328 = arith.constant 3328 : index
    %c0_319 = arith.constant 0 : index
    %407 = vector.load %arg17[%c3328, %c0_319] : memref<3600x64xbf16, #tpu.memory_space<vmem>>, vector<16x64xbf16>
    %408 = arith.maximumf %406, %407 : vector<16x64xbf16>
    %409 = arith.maximumf %405, %408 : vector<16x64xbf16>
    %c0_320 = arith.constant 0 : index
    %c3072_321 = arith.constant 3072 : index
    %410 = vector.load %arg18[%c0_320, %c3072_321] : memref<16x3136xbf16, #tpu.memory_space<vmem>>, vector<16x64xbf16>
    tpu.vector_store %arg18[%c0_320, %c3072_321], %409 {strides = array<i32>} : memref<16x3136xbf16, #tpu.memory_space<vmem>>, vector<16x64xbf16>,
    %cst_322 = arith.constant 0.000000e+00 : f32
    %411 = vector.broadcast %cst_322 : f32 to vector<16x100xf32>
    %c0_323 = arith.constant 0 : index
    %c0_324 = arith.constant 0 : index
    %412 = vector.load %arg18[%c0_323, %c0_324] : memref<16x3136xbf16, #tpu.memory_space<vmem>>, vector<16x448xbf16>
    %c0_325 = arith.constant 0 : index
    %c0_326 = arith.constant 0 : index
    %413 = vector.load %arg7[%c0_325, %c0_326] : memref<3136x100xbf16, #tpu.memory_space<vmem>>, vector<448x100xbf16>
    %cst_327 = arith.constant dense<0.000000e+00> : vector<16x100xf32>
    %414 = tpu.matmul %412, %413, %cst_327 {dimension_numbers = #tpu.dot_dimension_numbers<[1], [0], [0], [1], [0, 0, 1, 1], [], []>} : vector<16x448xbf16>, vector<448x100xbf16>, vector<16x100xf32> -> vector<16x100xf32>
    %415 = arith.addf %411, %414 : vector<16x100xf32>
    %c0_328 = arith.constant 0 : index
    %c448_329 = arith.constant 448 : index
    %416 = vector.load %arg18[%c0_328, %c448_329] : memref<16x3136xbf16, #tpu.memory_space<vmem>>, vector<16x448xbf16>
    %c448_330 = arith.constant 448 : index
    %c0_331 = arith.constant 0 : index
    %417 = vector.load %arg7[%c448_330, %c0_331] : memref<3136x100xbf16, #tpu.memory_space<vmem>>, vector<448x100xbf16>
    %cst_332 = arith.constant dense<0.000000e+00> : vector<16x100xf32>
    %418 = tpu.matmul %416, %417, %cst_332 {dimension_numbers = #tpu.dot_dimension_numbers<[1], [0], [0], [1], [0, 0, 1, 1], [], []>} : vector<16x448xbf16>, vector<448x100xbf16>, vector<16x100xf32> -> vector<16x100xf32>
    %419 = arith.addf %415, %418 : vector<16x100xf32>
    %c0_333 = arith.constant 0 : index
    %c896_334 = arith.constant 896 : index
    %420 = vector.load %arg18[%c0_333, %c896_334] : memref<16x3136xbf16, #tpu.memory_space<vmem>>, vector<16x448xbf16>
    %c896_335 = arith.constant 896 : index
    %c0_336 = arith.constant 0 : index
    %421 = vector.load %arg7[%c896_335, %c0_336] : memref<3136x100xbf16, #tpu.memory_space<vmem>>, vector<448x100xbf16>
    %cst_337 = arith.constant dense<0.000000e+00> : vector<16x100xf32>
    %422 = tpu.matmul %420, %421, %cst_337 {dimension_numbers = #tpu.dot_dimension_numbers<[1], [0], [0], [1], [0, 0, 1, 1], [], []>} : vector<16x448xbf16>, vector<448x100xbf16>, vector<16x100xf32> -> vector<16x100xf32>
    %423 = arith.addf %419, %422 : vector<16x100xf32>
    %c0_338 = arith.constant 0 : index
    %c1344_339 = arith.constant 1344 : index
    %424 = vector.load %arg18[%c0_338, %c1344_339] : memref<16x3136xbf16, #tpu.memory_space<vmem>>, vector<16x448xbf16>
    %c1344_340 = arith.constant 1344 : index
    %c0_341 = arith.constant 0 : index
    %425 = vector.load %arg7[%c1344_340, %c0_341] : memref<3136x100xbf16, #tpu.memory_space<vmem>>, vector<448x100xbf16>
    %cst_342 = arith.constant dense<0.000000e+00> : vector<16x100xf32>
    %426 = tpu.matmul %424, %425, %cst_342 {dimension_numbers = #tpu.dot_dimension_numbers<[1], [0], [0], [1], [0, 0, 1, 1], [], []>} : vector<16x448xbf16>, vector<448x100xbf16>, vector<16x100xf32> -> vector<16x100xf32>
    %427 = arith.addf %423, %426 : vector<16x100xf32>
    %c0_343 = arith.constant 0 : index
    %c1792_344 = arith.constant 1792 : index
    %428 = vector.load %arg18[%c0_343, %c1792_344] : memref<16x3136xbf16, #tpu.memory_space<vmem>>, vector<16x448xbf16>
    %c1792_345 = arith.constant 1792 : index
    %c0_346 = arith.constant 0 : index
    %429 = vector.load %arg7[%c1792_345, %c0_346] : memref<3136x100xbf16, #tpu.memory_space<vmem>>, vector<448x100xbf16>
    %cst_347 = arith.constant dense<0.000000e+00> : vector<16x100xf32>
    %430 = tpu.matmul %428, %429, %cst_347 {dimension_numbers = #tpu.dot_dimension_numbers<[1], [0], [0], [1], [0, 0, 1, 1], [], []>} : vector<16x448xbf16>, vector<448x100xbf16>, vector<16x100xf32> -> vector<16x100xf32>
    %431 = arith.addf %427, %430 : vector<16x100xf32>
    %c0_348 = arith.constant 0 : index
    %c2240_349 = arith.constant 2240 : index
    %432 = vector.load %arg18[%c0_348, %c2240_349] : memref<16x3136xbf16, #tpu.memory_space<vmem>>, vector<16x448xbf16>
    %c2240_350 = arith.constant 2240 : index
    %c0_351 = arith.constant 0 : index
    %433 = vector.load %arg7[%c2240_350, %c0_351] : memref<3136x100xbf16, #tpu.memory_space<vmem>>, vector<448x100xbf16>
    %cst_352 = arith.constant dense<0.000000e+00> : vector<16x100xf32>
    %434 = tpu.matmul %432, %433, %cst_352 {dimension_numbers = #tpu.dot_dimension_numbers<[1], [0], [0], [1], [0, 0, 1, 1], [], []>} : vector<16x448xbf16>, vector<448x100xbf16>, vector<16x100xf32> -> vector<16x100xf32>
    %435 = arith.addf %431, %434 : vector<16x100xf32>
    %c0_353 = arith.constant 0 : index
    %c2688_354 = arith.constant 2688 : index
    %436 = vector.load %arg18[%c0_353, %c2688_354] : memref<16x3136xbf16, #tpu.memory_space<vmem>>, vector<16x448xbf16>
    %c2688_355 = arith.constant 2688 : index
    %c0_356 = arith.constant 0 : index
    %437 = vector.load %arg7[%c2688_355, %c0_356] : memref<3136x100xbf16, #tpu.memory_space<vmem>>, vector<448x100xbf16>
    %cst_357 = arith.constant dense<0.000000e+00> : vector<16x100xf32>
    %438 = tpu.matmul %436, %437, %cst_357 {dimension_numbers = #tpu.dot_dimension_numbers<[1], [0], [0], [1], [0, 0, 1, 1], [], []>} : vector<16x448xbf16>, vector<448x100xbf16>, vector<16x100xf32> -> vector<16x100xf32>
    %439 = arith.addf %435, %438 : vector<16x100xf32>
    %c0_358 = arith.constant 0 : index
    %c0_359 = arith.constant 0 : index
    %440 = vector.load %arg8[%c0_358, %c0_359] : memref<1x100xf32, #tpu.memory_space<vmem>>, vector<1x100xf32>
    %441 = vector.broadcast %440 : vector<1x100xf32> to vector<16x100xf32>
    %442 = arith.addf %439, %441 : vector<16x100xf32>
    %cst_360 = arith.constant 0.000000e+00 : f32
    %443 = vector.broadcast %cst_360 : f32 to vector<16x100xf32>
    %444 = arith.maximumf %442, %443 : vector<16x100xf32>
    %445 = arith.truncf %444 : vector<16x100xf32> to vector<16x100xbf16>
    %c0_361 = arith.constant 0 : index
    %c0_362 = arith.constant 0 : index
    %446 = vector.load %arg9[%c0_361, %c0_362] : memref<100x10xbf16, #tpu.memory_space<vmem>>, vector<100x10xbf16>
    %cst_363 = arith.constant dense<0.000000e+00> : vector<16x10xf32>
    %447 = tpu.matmul %445, %446, %cst_363 {dimension_numbers = #tpu.dot_dimension_numbers<[1], [0], [0], [1], [0, 0, 1, 1], [], []>} : vector<16x100xbf16>, vector<100x10xbf16>, vector<16x10xf32> -> vector<16x10xf32>
    %c0_364 = arith.constant 0 : index
    %c0_365 = arith.constant 0 : index
    %448 = vector.load %arg10[%c0_364, %c0_365] : memref<1x10xf32, #tpu.memory_space<vmem>>, vector<1x10xf32>
    %449 = vector.broadcast %448 : vector<1x10xf32> to vector<16x10xf32>
    %450 = arith.addf %447, %449 : vector<16x10xf32>
    %c0_366 = arith.constant 0 : index
    %c0_367 = arith.constant 0 : index
    %451 = vector.load %arg11[%c0_366, %c0_367] : memref<16x10xf32, #tpu.memory_space<vmem>>, vector<16x10xf32>
    tpu.vector_store %arg11[%c0_366, %c0_367], %450 {strides = array<i32>} : memref<16x10xf32, #tpu.memory_space<vmem>>, vector<16x10xf32>,
    return
  }
}

</mosaic_0001>

<llo_original>
// kernel: cnn_forward.1
$region0: #{cnn_forward.1}
  #allocation0 [shape = 'u32[]', space=smem, size = 0x4, offset = 0x4, fixed_abs, tag = 'smem constant byte address 0x4 - core index']
  #allocation1 [shape = 'u32[144,128]{1,0:T(1,128)}', space=vmem, size = 0x12000, scoped, tag = 'internal scratch']
  #allocation2 [shape = 'bf16[14416,16]{1,0:T(16,128)(2,1)}', space=vmem, size = 0x385000, scoped, tag = 'scratch operand']
  #allocation3 [shape = 'bf16[464,144]{1,0:T(16,128)(2,1)}', space=vmem, size = 0x3a000, scoped, tag = 'scratch operand']
  #allocation4 [shape = 'bf16[13456,32]{1,0:T(16,128)(2,1)}', space=vmem, size = 0x349000, scoped, tag = 'scratch operand']
  #allocation5 [shape = 'bf16[4112,32]{1,0:T(16,128)(2,1)}', space=vmem, size = 0x101000, scoped, tag = 'scratch operand']
  #allocation6 [shape = 'bf16[240,288]{1,0:T(16,128)(2,1)}', space=vmem, size = 0x2d000, scoped, tag = 'scratch operand']
  #allocation7 [shape = 'bf16[3600,64]{1,0:T(16,128)(2,1)}', space=vmem, size = 0xe1000, scoped, tag = 'scratch operand']
  #allocation8 [shape = 'bf16[16,3136]{1,0:T(16,128)(2,1)}', space=vmem, size = 0x19000, scoped, tag = 'scratch operand']
  %s0 = inlined_call_operand.vmem [shape: bf16[13456,16], index: 0, kind: input, shape index: {}]
  %s1 = inlined_call_operand.vmem [shape: bf16[16,16], index: 1, kind: input, shape index: {}]
  %s2 = inlined_call_operand.vmem [shape: f32[1,16], index: 2, kind: input, shape index: {}]
  %s3 = inlined_call_operand.vmem [shape: bf16[144,32], index: 3, kind: input, shape index: {}]
  %s4 = inlined_call_operand.vmem [shape: f32[1,32], index: 4, kind: input, shape index: {}]
  %s5 = inlined_call_operand.vmem [shape: bf16[288,64], index: 5, kind: input, shape index: {}]
  %s6 = inlined_call_operand.vmem [shape: f32[1,64], index: 6, kind: input, shape index: {}]
  %s7 = inlined_call_operand.vmem [shape: bf16[3136,100], index: 7, kind: input, shape index: {}]
  %s8 = inlined_call_operand.vmem [shape: f32[1,100], index: 8, kind: input, shape index: {}]
  %s9 = inlined_call_operand.vmem [shape: bf16[100,10], index: 9, kind: input, shape index: {}]
  %s10 = inlined_call_operand.vmem [shape: f32[1,10], index: 10, kind: input, shape index: {}]
  %s11 = inlined_call_operand.hbm [shape: f32[16,10], index: 11, kind: output, shape index: {}]
  %s12 = sld [smem:[#allocation0]]
  $region89: #{cnn_forward.1} parent=0
    _
  %s14 = ssub.s32 1, %s12
  %s15 = scalar_select 0, %s14, %s12
  $region1: #{cnn_forward.1} parent=0
    #allocation9 [shape = 'u8[8192]{0}', space=vmem, size = 0x2000, scoped, tag = 'output window, operand 0, single buffered']
    #allocation10 [shape = 's32[1]{0}', space=sflag, size = 0x4, scoped, tag = 'scoped memory for cnn_forward.1']
    %16 = vsyncpa [#allocation10], 0
    // Predicated region
    $region2: #{cnn_forward.1} parent=1 // pred_check
      _
    $region3: #{cnn_forward.1} parent=1 // pred_check_branch
      %18 = sbr.rel (0) target = $region5
    $region4: #{cnn_forward.1} parent=1 // pred_region
      _
    $region5: #{cnn_forward.1} parent=1 // pred_fallthru
      _
    // Predicated region
    $region6: #{cnn_forward.1} parent=1 // pred_check
      _
    $region7: #{cnn_forward.1} parent=1 // pred_check_branch
      %20 = sbr.rel (0) target = $region9
    $region8: #{cnn_forward.1} parent=1 // pred_region
      _
    $region9: #{cnn_forward.1} parent=1 // pred_fallthru
      _
    // Predicated region
    $region10: #{cnn_forward.1} parent=1 // pred_check
      _
    $region11: #{cnn_forward.1} parent=1 // pred_check_branch
      %22 = sbr.rel (0) target = $region13
    $region12: #{cnn_forward.1} parent=1 // pred_region
      _
    $region13: #{cnn_forward.1} parent=1 // pred_fallthru
      _
    // Predicated region
    $region14: #{cnn_forward.1} parent=1 // pred_check
      _
    $region15: #{cnn_forward.1} parent=1 // pred_check_branch
      %24 = sbr.rel (0) target = $region17
    $region16: #{cnn_forward.1} parent=1 // pred_region
      _
    $region17: #{cnn_forward.1} parent=1 // pred_fallthru
      _
    // Predicated region
    $region18: #{cnn_forward.1} parent=1 // pred_check
      _
    $region19: #{cnn_forward.1} parent=1 // pred_check_branch
      %26 = sbr.rel (0) target = $region21
    $region20: #{cnn_forward.1} parent=1 // pred_region
      _
    $region21: #{cnn_forward.1} parent=1 // pred_fallthru
      _
    // Predicated region
    $region22: #{cnn_forward.1} parent=1 // pred_check
      _
    $region23: #{cnn_forward.1} parent=1 // pred_check_branch
      %28 = sbr.rel (0) target = $region25
    $region24: #{cnn_forward.1} parent=1 // pred_region
      _
    $region25: #{cnn_forward.1} parent=1 // pred_fallthru
      _
    // Predicated region
    $region26: #{cnn_forward.1} parent=1 // pred_check
      _
    $region27: #{cnn_forward.1} parent=1 // pred_check_branch
      %30 = sbr.rel (0) target = $region29
    $region28: #{cnn_forward.1} parent=1 // pred_region
      _
    $region29: #{cnn_forward.1} parent=1 // pred_fallthru
      _
    // Predicated region
    $region30: #{cnn_forward.1} parent=1 // pred_check
      _
    $region31: #{cnn_forward.1} parent=1 // pred_check_branch
      %32 = sbr.rel (0) target = $region33
    $region32: #{cnn_forward.1} parent=1 // pred_region
      _
    $region33: #{cnn_forward.1} parent=1 // pred_fallthru
      _
    // Predicated region
    $region34: #{cnn_forward.1} parent=1 // pred_check
      _
    $region35: #{cnn_forward.1} parent=1 // pred_check_branch
      %34 = sbr.rel (0) target = $region37
    $region36: #{cnn_forward.1} parent=1 // pred_region
      _
    $region37: #{cnn_forward.1} parent=1 // pred_fallthru
      _
    // Predicated region
    $region38: #{cnn_forward.1} parent=1 // pred_check
      _
    $region39: #{cnn_forward.1} parent=1 // pred_check_branch
      %36 = sbr.rel (0) target = $region41
    $region40: #{cnn_forward.1} parent=1 // pred_region
      _
    $region41: #{cnn_forward.1} parent=1 // pred_fallthru
      _
    // Predicated region
    $region42: #{cnn_forward.1} parent=1 // pred_check
      _
    $region43: #{cnn_forward.1} parent=1 // pred_check_branch
      %38 = sbr.rel (0) target = $region45
    $region44: #{cnn_forward.1} parent=1 // pred_region
      _
    $region45: #{cnn_forward.1} parent=1 // pred_fallthru
      _
    %v40 = vld [vmem:[%s1] sm:$0xf]
    %v41 = vld [vmem:[%s1 + $0x4] sm:$0xf]
    %v42 = vld [vmem:[%s2] sm:$0x1]
    %v43 = vld [vmem:[%s3] sm:$0xf]
    %v44 = vld [vmem:[%s3 + $0x4] sm:$0xf]
    %v45 = vld [vmem:[%s3 + $0x8] sm:$0xf]
    %v46 = vld [vmem:[%s3 + $0xc] sm:$0xf]
    %v47 = vld [vmem:[%s3 + $0x10] sm:$0xf]
    %v48 = vld [vmem:[%s3 + $0x14] sm:$0xf]
    %v49 = vld [vmem:[%s3 + $0x18] sm:$0xf]
    %v50 = vld [vmem:[%s3 + $0x1c] sm:$0xf]
    %v51 = vld [vmem:[%s3 + $0x20] sm:$0xf]
    %v52 = vld [vmem:[%s3 + $0x24] sm:$0xf]
    %v53 = vld [vmem:[%s3 + $0x28] sm:$0xf]
    %v54 = vld [vmem:[%s3 + $0x2c] sm:$0xf]
    %v55 = vld [vmem:[%s3 + $0x30] sm:$0xf]
    %v56 = vld [vmem:[%s3 + $0x34] sm:$0xf]
    %v57 = vld [vmem:[%s3 + $0x38] sm:$0xf]
    %v58 = vld [vmem:[%s3 + $0x3c] sm:$0xf]
    %v59 = vld [vmem:[%s3 + $0x40] sm:$0xf]
    %v60 = vld [vmem:[%s3 + $0x44] sm:$0xf]
    %v61 = vld [vmem:[%s4] sm:$0x1]
    %v62 = vld [vmem:[%s5] sm:$0xf]
    %v63 = vld [vmem:[%s5 + $0x4] sm:$0xf]
    %v64 = vld [vmem:[%s5 + $0x8] sm:$0xf]
    %v65 = vld [vmem:[%s5 + $0xc] sm:$0xf]
    %v66 = vld [vmem:[%s5 + $0x10] sm:$0xf]
    %v67 = vld [vmem:[%s5 + $0x14] sm:$0xf]
    %v68 = vld [vmem:[%s5 + $0x18] sm:$0xf]
    %v69 = vld [vmem:[%s5 + $0x1c] sm:$0xf]
    %v70 = vld [vmem:[%s5 + $0x20] sm:$0xf]
    %v71 = vld [vmem:[%s5 + $0x24] sm:$0xf]
    %v72 = vld [vmem:[%s5 + $0x28] sm:$0xf]
    %v73 = vld [vmem:[%s5 + $0x2c] sm:$0xf]
    %v74 = vld [vmem:[%s5 + $0x30] sm:$0xf]
    %v75 = vld [vmem:[%s5 + $0x34] sm:$0xf]
    %v76 = vld [vmem:[%s5 + $0x38] sm:$0xf]
    %v77 = vld [vmem:[%s5 + $0x3c] sm:$0xf]
    %v78 = vld [vmem:[%s5 + $0x40] sm:$0xf]
    %v79 = vld [vmem:[%s5 + $0x44] sm:$0xf]
    %v80 = vld [vmem:[%s5 + $0x48] sm:$0xf]
    %v81 = vld [vmem:[%s5 + $0x4c] sm:$0xf]
    %v82 = vld [vmem:[%s5 + $0x50] sm:$0xf]
    %v83 = vld [vmem:[%s5 + $0x54] sm:$0xf]
    %v84 = vld [vmem:[%s5 + $0x58] sm:$0xf]
    %v85 = vld [vmem:[%s5 + $0x5c] sm:$0xf]
    %v86 = vld [vmem:[%s5 + $0x60] sm:$0xf]
    %v87 = vld [vmem:[%s5 + $0x64] sm:$0xf]
    %v88 = vld [vmem:[%s5 + $0x68] sm:$0xf]
    %v89 = vld [vmem:[%s5 + $0x6c] sm:$0xf]
    %v90 = vld [vmem:[%s5 + $0x70] sm:$0xf]
    %v91 = vld [vmem:[%s5 + $0x74] sm:$0xf]
    %v92 = vld [vmem:[%s5 + $0x78] sm:$0xf]
    %v93 = vld [vmem:[%s5 + $0x7c] sm:$0xf]
    %v94 = vld [vmem:[%s5 + $0x80] sm:$0xf]
    %v95 = vld [vmem:[%s5 + $0x84] sm:$0xf]
    %v96 = vld [vmem:[%s5 + $0x88] sm:$0xf]
    %v97 = vld [vmem:[%s5 + $0x8c] sm:$0xf]
    %v98 = vld [vmem:[%s6] sm:$0x1]
    %vm99 = vcmask 130048
    %100 = vst.msk [vmem:[#allocation2] sm:$0xff] %vm99, 0
    %101 = vst.msk [vmem:[#allocation2 + $0x8] sm:$0xff] %vm99, 0
    %102 = vst.msk [vmem:[#allocation2 + $0x10] sm:$0xff] %vm99, 0
    %103 = vst.msk [vmem:[#allocation2 + $0x18] sm:$0xff] %vm99, 0
    %104 = vst.msk [vmem:[#allocation2 + $0x20] sm:$0xff] %vm99, 0
    %105 = vst.msk [vmem:[#allocation2 + $0x28] sm:$0xff] %vm99, 0
    %106 = vst.msk [vmem:[#allocation2 + $0x30] sm:$0xff] %vm99, 0
    %107 = vst.msk [vmem:[#allocation2 + $0x38] sm:$0xff] %vm99, 0
    %108 = vst.msk [vmem:[#allocation2 + $0x40] sm:$0xff] %vm99, 0
    %109 = vst.msk [vmem:[#allocation2 + $0x48] sm:$0xff] %vm99, 0
    %110 = vst.msk [vmem:[#allocation2 + $0x50] sm:$0xff] %vm99, 0
    %111 = vst.msk [vmem:[#allocation2 + $0x58] sm:$0xff] %vm99, 0
    %112 = vst.msk [vmem:[#allocation2 + $0x60] sm:$0xff] %vm99, 0
    %113 = vst.msk [vmem:[#allocation2 + $0x68] sm:$0xff] %vm99, 0
    %114 = vst.msk [vmem:[#allocation2 + $0x70] sm:$0xff] %vm99, 0
    %115 = vst.msk [vmem:[#allocation2 + $0x78] sm:$0xff] %vm99, 0
    %116 = vst.msk [vmem:[#allocation2 + $0x80] sm:$0xff] %vm99, 0
    %117 = vst.msk [vmem:[#allocation2 + $0x88] sm:$0xff] %vm99, 0
    %118 = vst.msk [vmem:[#allocation2 + $0x90] sm:$0xff] %vm99, 0
    %119 = vst.msk [vmem:[#allocation2 + $0x98] sm:$0xff] %vm99, 0
    %120 = vst.msk [vmem:[#allocation2 + $0xa0] sm:$0xff] %vm99, 0
    %121 = vst.msk [vmem:[#allocation2 + $0xa8] sm:$0xff] %vm99, 0
    %122 = vst.msk [vmem:[#allocation2 + $0xb0] sm:$0xff] %vm99, 0
    %123 = vst.msk [vmem:[#allocation2 + $0xb8] sm:$0xff] %vm99, 0
    %124 = vst.msk [vmem:[#allocation2 + $0xc0] sm:$0xff] %vm99, 0
    %125 = vst.msk [vmem:[#allocation2 + $0xc8] sm:$0xff] %vm99, 0
    %126 = vst.msk [vmem:[#allocation2 + $0xd0] sm:$0xff] %vm99, 0
    %127 = vst.msk [vmem:[#allocation2 + $0xd8] sm:$0xff] %vm99, 0
    %128 = vst.msk [vmem:[#allocation2 + $0xe0] sm:$0xff] %vm99, 0
    %129 = vst.msk [vmem:[#allocation2 + $0xe8] sm:$0xff] %vm99, 0
    %130 = vst.msk [vmem:[#allocation2 + $0x1a50] sm:$0xff] %vm99, 0
    %131 = vst.msk [vmem:[#allocation2 + $0x1a58] sm:$0xff] %vm99, 0
    %132 = vst.msk [vmem:[#allocation2 + $0x1a60] sm:$0xff] %vm99, 0
    %133 = vst.msk [vmem:[#allocation2 + $0x1a68] sm:$0xff] %vm99, 0
    %134 = vst.msk [vmem:[#allocation2 + $0x1a70] sm:$0xff] %vm99, 0
    %135 = vst.msk [vmem:[#allocation2 + $0x1a78] sm:$0xff] %vm99, 0
    %136 = vst.msk [vmem:[#allocation2 + $0x1a80] sm:$0xff] %vm99, 0
    %137 = vst.msk [vmem:[#allocation2 + $0x1a88] sm:$0xff] %vm99, 0
    %138 = vst.msk [vmem:[#allocation2 + $0x1a90] sm:$0xff] %vm99, 0
    %139 = vst.msk [vmem:[#allocation2 + $0x1a98] sm:$0xff] %vm99, 0
    %140 = vst.msk [vmem:[#allocation2 + $0x1aa0] sm:$0xff] %vm99, 0
    %141 = vst.msk [vmem:[#allocation2 + $0x1aa8] sm:$0xff] %vm99, 0
    %142 = vst.msk [vmem:[#allocation2 + $0x1ab0] sm:$0xff] %vm99, 0
    %143 = vst.msk [vmem:[#allocation2 + $0x1ab8] sm:$0xff] %vm99, 0
    %144 = vst.msk [vmem:[#allocation2 + $0x1ac0] sm:$0xff] %vm99, 0
    %145 = vst.msk [vmem:[#allocation2 + $0x1ac8] sm:$0xff] %vm99, 0
    %146 = vst.msk [vmem:[#allocation2 + $0x1ad0] sm:$0xff] %vm99, 0
    %147 = vst.msk [vmem:[#allocation2 + $0x1ad8] sm:$0xff] %vm99, 0
    %148 = vst.msk [vmem:[#allocation2 + $0x1ae0] sm:$0xff] %vm99, 0
    %149 = vst.msk [vmem:[#allocation2 + $0x1ae8] sm:$0xff] %vm99, 0
    %150 = vst.msk [vmem:[#allocation2 + $0x1af0] sm:$0xff] %vm99, 0
    %151 = vst.msk [vmem:[#allocation2 + $0x1af8] sm:$0xff] %vm99, 0
    %152 = vst.msk [vmem:[#allocation2 + $0x1b00] sm:$0xff] %vm99, 0
    %153 = vst.msk [vmem:[#allocation2 + $0x1b08] sm:$0xff] %vm99, 0
    %154 = vst.msk [vmem:[#allocation2 + $0x1b10] sm:$0xff] %vm99, 0
    %155 = vst.msk [vmem:[#allocation2 + $0x1b18] sm:$0xff] %vm99, 0
    %156 = vst.msk [vmem:[#allocation2 + $0x1b20] sm:$0xff] %vm99, 0
    %157 = vst.msk [vmem:[#allocation2 + $0x1b28] sm:$0xff] %vm99, 0
    %158 = vst.msk [vmem:[#allocation2 + $0x1b30] sm:$0xff] %vm99, 0
    %159 = vst.msk [vmem:[#allocation2 + $0x1b38] sm:$0xff] %vm99, 0
    %160 = vst.msk [vmem:[#allocation2 + $0x1b40] sm:$0xff] %vm99, 0
    %161 = vst.msk [vmem:[#allocation2 + $0x1b48] sm:$0xff] %vm99, 0
    %162 = vst.msk [vmem:[#allocation2 + $0x1b50] sm:$0xff] %vm99, 0
    %163 = vst.msk [vmem:[#allocation2 + $0x1b58] sm:$0xff] %vm99, 0
    %164 = vst.msk [vmem:[#allocation2 + $0x1b60] sm:$0xff] %vm99, 0
    %165 = vst.msk [vmem:[#allocation2 + $0x1b68] sm:$0xff] %vm99, 0
    %166 = vst.msk [vmem:[#allocation2 + $0x1b70] sm:$0xff] %vm99, 0
    %167 = vst.msk [vmem:[#allocation2 + $0x1b78] sm:$0xff] %vm99, 0
    %168 = vst.msk [vmem:[#allocation2 + $0x1b80] sm:$0xff] %vm99, 0
    %169 = vst.msk [vmem:[#allocation2 + $0x1b88] sm:$0xff] %vm99, 0
    %170 = vst.msk [vmem:[#allocation2 + $0x1b90] sm:$0xff] %vm99, 0
    %171 = vst.msk [vmem:[#allocation2 + $0x1b98] sm:$0xff] %vm99, 0
    %172 = vst.msk [vmem:[#allocation2 + $0x1ba0] sm:$0xff] %vm99, 0
    %173 = vst.msk [vmem:[#allocation2 + $0x1ba8] sm:$0xff] %vm99, 0
    %174 = vst.msk [vmem:[#allocation2 + $0x1bb0] sm:$0xff] %vm99, 0
    %175 = vst.msk [vmem:[#allocation2 + $0x1bb8] sm:$0xff] %vm99, 0
    %176 = vst.msk [vmem:[#allocation2 + $0x1bc0] sm:$0xff] %vm99, 0
    %177 = vst.msk [vmem:[#allocation2 + $0x1bc8] sm:$0xff] %vm99, 0
    %178 = vst.msk [vmem:[#allocation2 + $0x1bd0] sm:$0xff] %vm99, 0
    %179 = vst.msk [vmem:[#allocation2 + $0x1bd8] sm:$0xff] %vm99, 0
    %180 = vst.msk [vmem:[#allocation2 + $0x1be0] sm:$0xff] %vm99, 0
    %181 = vst.msk [vmem:[#allocation2 + $0x1be8] sm:$0xff] %vm99, 0
    %182 = vst.msk [vmem:[#allocation2 + $0x1bf0] sm:$0xff] %vm99, 0
    %183 = vst.msk [vmem:[#allocation2 + $0x1bf8] sm:$0xff] %vm99, 0
    %184 = vst.msk [vmem:[#allocation2 + $0x1c00] sm:$0xff] %vm99, 0
    %185 = vst.msk [vmem:[#allocation2 + $0x1c08] sm:$0xff] %vm99, 0
    %186 = vst.msk [vmem:[#allocation2 + $0x1c10] sm:$0xff] %vm99, 0
    %187 = vst.msk [vmem:[#allocation2 + $0x1c18] sm:$0xff] %vm99, 0
    %188 = vst.msk [vmem:[#allocation2 + $0x1c20] sm:$0xff] %vm99, 0
    %v189 = vlaneseq
    %v190 = vshrl.u32 %v189, 7
    %v191 = vadd.s32 %v190, 8
    %v192 = vadd.s32 %v190, 16
    %v193 = vadd.s32 %v190, 24
    %v194 = vadd.s32 %v190, 32
    %v195 = vadd.s32 %v190, 40
    %v196 = vadd.s32 %v190, 48
    %v197 = vadd.s32 %v190, 56
    %v198 = vadd.s32 %v190, 64
    %v199 = vadd.s32 %v190, 72
    %v200 = vadd.s32 %v190, 80
    %v201 = vadd.s32 %v190, 88
    %v202 = vadd.s32 %v190, 96
    %v203 = vadd.s32 %v190, 104
    %v204 = vadd.s32 %v190, 112
    %v205 = vadd.s32 %v190, 120
    %v206 = vadd.s32 %v190, 128
    %v207 = vadd.s32 %v190, 136
    %v208 = vadd.s32 %v190, 144
    %v209 = vadd.s32 %v190, 152
    %v210 = vadd.s32 %v190, 160
    %v211 = vadd.s32 %v190, 168
    %v212 = vadd.s32 %v190, 176
    %v213 = vadd.s32 %v190, 184
    %v214 = vadd.s32 %v190, 192
    %v215 = vadd.s32 %v190, 200
    %v216 = vadd.s32 %v190, 208
    %v217 = vadd.s32 %v190, 216
    %v218 = vadd.s32 %v190, 224
    %v219 = vadd.s32 %v190, 232
    %v220 = vadd.s32 %v190, 240
    %v221 = vadd.s32 %v190, 248
    %v222 = vadd.s32 %v190, 256
    %v223 = vadd.s32 %v190, 264
    %v224 = vadd.s32 %v190, 272
    %v225 = vadd.s32 %v190, 280
    %v226 = vadd.s32 %v190, 288
    %v227 = vadd.s32 %v190, 296
    %v228 = vadd.s32 %v190, 304
    %v229 = vadd.s32 %v190, 312
    %v230 = vadd.s32 %v190, 320
    %v231 = vadd.s32 %v190, 328
    %v232 = vadd.s32 %v190, 336
    %v233 = vadd.s32 %v190, 344
    %v234 = vadd.s32 %v190, 352
    %v235 = vadd.s32 %v190, 360
    %v236 = vadd.s32 %v190, 368
    %v237 = vadd.s32 %v190, 376
    %v238 = vadd.s32 %v190, 384
    %v239 = vadd.s32 %v190, 392
    %v240 = vadd.s32 %v190, 400
    %v241 = vadd.s32 %v190, 408
    %v242 = vadd.s32 %v190, 416
    %v243 = vadd.s32 %v190, 424
    %v244 = vadd.s32 %v190, 432
    %v245 = vadd.s32 %v190, 440
    %v246 = vadd.s32 %v190, 448
    %v247 = vadd.s32 %v190, 456
    %vm248 = vcmp.lt.s32.totalorder %v190, 448
    %vm249 = vcmp.lt.s32.totalorder %v191, 448
    %vm250 = vcmp.lt.s32.totalorder %v192, 448
    %vm251 = vcmp.lt.s32.totalorder %v193, 448
    %vm252 = vcmp.lt.s32.totalorder %v194, 448
    %vm253 = vcmp.lt.s32.totalorder %v195, 448
    %vm254 = vcmp.lt.s32.totalorder %v196, 448
    %vm255 = vcmp.lt.s32.totalorder %v197, 448
    %vm256 = vcmp.lt.s32.totalorder %v198, 448
    %vm257 = vcmp.lt.s32.totalorder %v199, 448
    %vm258 = vcmp.lt.s32.totalorder %v200, 448
    %vm259 = vcmp.lt.s32.totalorder %v201, 448
    %vm260 = vcmp.lt.s32.totalorder %v202, 448
    %vm261 = vcmp.lt.s32.totalorder %v203, 448
    %vm262 = vcmp.lt.s32.totalorder %v204, 448
    %vm263 = vcmp.lt.s32.totalorder %v205, 448
    %vm264 = vcmp.lt.s32.totalorder %v206, 448
    %vm265 = vcmp.lt.s32.totalorder %v207, 448
    %vm266 = vcmp.lt.s32.totalorder %v208, 448
    %vm267 = vcmp.lt.s32.totalorder %v209, 448
    %vm268 = vcmp.lt.s32.totalorder %v210, 448
    %vm269 = vcmp.lt.s32.totalorder %v211, 448
    %vm270 = vcmp.lt.s32.totalorder %v212, 448
    %vm271 = vcmp.lt.s32.totalorder %v213, 448
    %vm272 = vcmp.lt.s32.totalorder %v214, 448
    %vm273 = vcmp.lt.s32.totalorder %v215, 448
    %vm274 = vcmp.lt.s32.totalorder %v216, 448
    %vm275 = vcmp.lt.s32.totalorder %v217, 448
    %vm276 = vcmp.lt.s32.totalorder %v218, 448
    %vm277 = vcmp.lt.s32.totalorder %v219, 448
    %vm278 = vcmp.lt.s32.totalorder %v220, 448
    %vm279 = vcmp.lt.s32.totalorder %v221, 448
    %vm280 = vcmp.lt.s32.totalorder %v222, 448
    %vm281 = vcmp.lt.s32.totalorder %v223, 448
    %vm282 = vcmp.lt.s32.totalorder %v224, 448
    %vm283 = vcmp.lt.s32.totalorder %v225, 448
    %vm284 = vcmp.lt.s32.totalorder %v226, 448
    %vm285 = vcmp.lt.s32.totalorder %v227, 448
    %vm286 = vcmp.lt.s32.totalorder %v228, 448
    %vm287 = vcmp.lt.s32.totalorder %v229, 448
    %vm288 = vcmp.lt.s32.totalorder %v230, 448
    %vm289 = vcmp.lt.s32.totalorder %v231, 448
    %vm290 = vcmp.lt.s32.totalorder %v232, 448
    %vm291 = vcmp.lt.s32.totalorder %v233, 448
    %vm292 = vcmp.lt.s32.totalorder %v234, 448
    %vm293 = vcmp.lt.s32.totalorder %v235, 448
    %vm294 = vcmp.lt.s32.totalorder %v236, 448
    %vm295 = vcmp.lt.s32.totalorder %v237, 448
    %vm296 = vcmp.lt.s32.totalorder %v238, 448
    %vm297 = vcmp.lt.s32.totalorder %v239, 448
    %vm298 = vcmp.lt.s32.totalorder %v240, 448
    %vm299 = vcmp.lt.s32.totalorder %v241, 448
    %vm300 = vcmp.lt.s32.totalorder %v242, 448
    %vm301 = vcmp.lt.s32.totalorder %v243, 448
    %vm302 = vcmp.lt.s32.totalorder %v244, 448
    %vm303 = vcmp.lt.s32.totalorder %v245, 448
    %vm304 = vcmp.lt.s32.totalorder %v246, 448
    %vm305 = vcmp.lt.s32.totalorder %v247, 448
    loop: start=0, step=1, limit=28
    $region46: #{cnn_forward.1} parent=1 // loop_pre_header
      _
    $region47: #{cnn_forward.1} parent=1 // loop_header
      %s307 = sphi 0, %s311
      %p308 = scmp.ge.s32.totalorder %s307, 28
    $region48: #{cnn_forward.1} parent=1 // loop_header_branch
      %310 = sbr.rel (%p308) target = $region52
    $region49: #{cnn_forward.1} parent=1 // loop_body
      %s312 = smul.u32 %s307, 464
      %s313 = sshra.s32 %s312, 3
      %s314 = sand.u32 %s312, 7
      %s315 = smul.addr %s313, 4
      %s316 = scalar_lea.vmem %s0, %s315
      %v317 = vld [vmem:[%s316] sm:$0xf]
      %v318 = vld [vmem:[%s316 + $0x4] sm:$0xf]
      %v319 = vld [vmem:[%s316 + $0x8] sm:$0xf]
      %v320 = vld [vmem:[%s316 + $0xc] sm:$0xf]
      %v321 = vld [vmem:[%s316 + $0x10] sm:$0xf]
      %v322 = vld [vmem:[%s316 + $0x14] sm:$0xf]
      %v323 = vld [vmem:[%s316 + $0x18] sm:$0xf]
      %v324 = vld [vmem:[%s316 + $0x1c] sm:$0xf]
      %v325 = vld [vmem:[%s316 + $0x20] sm:$0xf]
      %v326 = vld [vmem:[%s316 + $0x24] sm:$0xf]
      %v327 = vld [vmem:[%s316 + $0x28] sm:$0xf]
      %v328 = vld [vmem:[%s316 + $0x2c] sm:$0xf]
      %v329 = vld [vmem:[%s316 + $0x30] sm:$0xf]
      %v330 = vld [vmem:[%s316 + $0x34] sm:$0xf]
      %v331 = vld [vmem:[%s316 + $0x38] sm:$0xf]
      %v332 = vld [vmem:[%s316 + $0x3c] sm:$0xf]
      %v333 = vld [vmem:[%s316 + $0x40] sm:$0xf]
      %v334 = vld [vmem:[%s316 + $0x44] sm:$0xf]
      %v335 = vld [vmem:[%s316 + $0x48] sm:$0xf]
      %v336 = vld [vmem:[%s316 + $0x4c] sm:$0xf]
      %v337 = vld [vmem:[%s316 + $0x50] sm:$0xf]
      %v338 = vld [vmem:[%s316 + $0x54] sm:$0xf]
      %v339 = vld [vmem:[%s316 + $0x58] sm:$0xf]
      %v340 = vld [vmem:[%s316 + $0x5c] sm:$0xf]
      %v341 = vld [vmem:[%s316 + $0x60] sm:$0xf]
      %v342 = vld [vmem:[%s316 + $0x64] sm:$0xf]
      %v343 = vld [vmem:[%s316 + $0x68] sm:$0xf]
      %v344 = vld [vmem:[%s316 + $0x6c] sm:$0xf]
      %v345 = vld [vmem:[%s316 + $0x70] sm:$0xf]
      %v346 = vld [vmem:[%s316 + $0x74] sm:$0xf]
      %v347 = vld [vmem:[%s316 + $0x78] sm:$0xf]
      %v348 = vld [vmem:[%s316 + $0x7c] sm:$0xf]
      %v349 = vld [vmem:[%s316 + $0x80] sm:$0xf]
      %v350 = vld [vmem:[%s316 + $0x84] sm:$0xf]
      %v351 = vld [vmem:[%s316 + $0x88] sm:$0xf]
      %v352 = vld [vmem:[%s316 + $0x8c] sm:$0xf]
      %v353 = vld [vmem:[%s316 + $0x90] sm:$0xf]
      %v354 = vld [vmem:[%s316 + $0x94] sm:$0xf]
      %v355 = vld [vmem:[%s316 + $0x98] sm:$0xf]
      %v356 = vld [vmem:[%s316 + $0x9c] sm:$0xf]
      %v357 = vld [vmem:[%s316 + $0xa0] sm:$0xf]
      %v358 = vld [vmem:[%s316 + $0xa4] sm:$0xf]
      %v359 = vld [vmem:[%s316 + $0xa8] sm:$0xf]
      %v360 = vld [vmem:[%s316 + $0xac] sm:$0xf]
      %v361 = vld [vmem:[%s316 + $0xb0] sm:$0xf]
      %v362 = vld [vmem:[%s316 + $0xb4] sm:$0xf]
      %v363 = vld [vmem:[%s316 + $0xb8] sm:$0xf]
      %v364 = vld [vmem:[%s316 + $0xbc] sm:$0xf]
      %v365 = vld [vmem:[%s316 + $0xc0] sm:$0xf]
      %v366 = vld [vmem:[%s316 + $0xc4] sm:$0xf]
      %v367 = vld [vmem:[%s316 + $0xc8] sm:$0xf]
      %v368 = vld [vmem:[%s316 + $0xcc] sm:$0xf]
      %v369 = vld [vmem:[%s316 + $0xd0] sm:$0xf]
      %v370 = vld [vmem:[%s316 + $0xd4] sm:$0xf]
      %v371 = vld [vmem:[%s316 + $0xd8] sm:$0xf]
      %v372 = vld [vmem:[%s316 + $0xdc] sm:$0xf]
      %v373 = vld [vmem:[%s316 + $0xe0] sm:$0xf]
      %v374 = vld [vmem:[%s316 + $0xe4] sm:$0xf]
      %v376 = vlaneseq
      %v377 = vshrl.u32 %v376, 7
      %v378 = vsub.s32 0, %v377
      %v379 = vrot.slane %v42, %v378
      %v439 = vunpack.c.l.b16 %v317
      %v440 = vunpack.c.l.b16 %v318
      %v441 = vunpack.c.l.b16 %v319
      %v442 = vunpack.c.l.b16 %v320
      %v443 = vunpack.c.l.b16 %v321
      %v444 = vunpack.c.l.b16 %v322
      %v445 = vunpack.c.l.b16 %v323
      %v446 = vunpack.c.l.b16 %v324
      %v447 = vunpack.c.l.b16 %v325
      %v448 = vunpack.c.l.b16 %v326
      %v449 = vunpack.c.l.b16 %v327
      %v450 = vunpack.c.l.b16 %v328
      %v451 = vunpack.c.l.b16 %v329
      %v452 = vunpack.c.l.b16 %v330
      %v453 = vunpack.c.l.b16 %v331
      %v454 = vunpack.c.l.b16 %v332
      %v455 = vunpack.c.l.b16 %v333
      %v456 = vunpack.c.l.b16 %v334
      %v457 = vunpack.c.l.b16 %v335
      %v458 = vunpack.c.l.b16 %v336
      %v459 = vunpack.c.l.b16 %v337
      %v460 = vunpack.c.l.b16 %v338
      %v461 = vunpack.c.l.b16 %v339
      %v462 = vunpack.c.l.b16 %v340
      %v463 = vunpack.c.l.b16 %v341
      %v464 = vunpack.c.l.b16 %v342
      %v465 = vunpack.c.l.b16 %v343
      %v466 = vunpack.c.l.b16 %v344
      %v467 = vunpack.c.l.b16 %v345
      %v468 = vunpack.c.l.b16 %v346
      %v469 = vunpack.c.l.b16 %v347
      %v470 = vunpack.c.l.b16 %v348
      %v471 = vunpack.c.l.b16 %v349
      %v472 = vunpack.c.l.b16 %v350
      %v473 = vunpack.c.l.b16 %v351
      %v474 = vunpack.c.l.b16 %v352
      %v475 = vunpack.c.l.b16 %v353
      %v476 = vunpack.c.l.b16 %v354
      %v477 = vunpack.c.l.b16 %v355
      %v478 = vunpack.c.l.b16 %v356
      %v479 = vunpack.c.l.b16 %v357
      %v480 = vunpack.c.l.b16 %v358
      %v481 = vunpack.c.l.b16 %v359
      %v482 = vunpack.c.l.b16 %v360
      %v483 = vunpack.c.l.b16 %v361
      %v484 = vunpack.c.l.b16 %v362
      %v485 = vunpack.c.l.b16 %v363
      %v486 = vunpack.c.l.b16 %v364
      %v487 = vunpack.c.l.b16 %v365
      %v488 = vunpack.c.l.b16 %v366
      %v489 = vunpack.c.l.b16 %v367
      %v490 = vunpack.c.l.b16 %v368
      %v491 = vunpack.c.l.b16 %v369
      %v492 = vunpack.c.l.b16 %v370
      %v493 = vunpack.c.l.b16 %v371
      %v494 = vunpack.c.l.b16 %v372
      %v495 = vunpack.c.l.b16 %v373
      %v496 = vunpack.c.l.b16 %v374
      %v497 = vpack.c.b16 %v440, %v439
      %v498 = vpack.c.b16 %v442, %v441
      %v499 = vpack.c.b16 %v444, %v443
      %v500 = vpack.c.b16 %v446, %v445
      %v501 = vpack.c.b16 %v448, %v447
      %v502 = vpack.c.b16 %v450, %v449
      %v503 = vpack.c.b16 %v452, %v451
      %v504 = vpack.c.b16 %v454, %v453
      %v505 = vpack.c.b16 %v456, %v455
      %v506 = vpack.c.b16 %v458, %v457
      %v507 = vpack.c.b16 %v460, %v459
      %v508 = vpack.c.b16 %v462, %v461
      %v509 = vpack.c.b16 %v464, %v463
      %v510 = vpack.c.b16 %v466, %v465
      %v511 = vpack.c.b16 %v468, %v467
      %v512 = vpack.c.b16 %v470, %v469
      %v513 = vpack.c.b16 %v472, %v471
      %v514 = vpack.c.b16 %v474, %v473
      %v515 = vpack.c.b16 %v476, %v475
      %v516 = vpack.c.b16 %v478, %v477
      %v517 = vpack.c.b16 %v480, %v479
      %v518 = vpack.c.b16 %v482, %v481
      %v519 = vpack.c.b16 %v484, %v483
      %v520 = vpack.c.b16 %v486, %v485
      %v521 = vpack.c.b16 %v488, %v487
      %v522 = vpack.c.b16 %v490, %v489
      %v523 = vpack.c.b16 %v492, %v491
      %v524 = vpack.c.b16 %v494, %v493
      %v525 = vpack.c.b16 %v496, %v495
      %v528 = vunpack.c.l.b16 %v40
      %v529 = vunpack.c.l.b16 %v41
      %v530 = vpack.c.b16 %v529, %v528
      %v533 = vsel %vm99, %v497, 0
      %v536 = vsel %vm99, %v498, 0
      %v539 = vsel %vm99, %v499, 0
      %v542 = vsel %vm99, %v500, 0
      %v545 = vsel %vm99, %v501, 0
      %v548 = vsel %vm99, %v502, 0
      %v551 = vsel %vm99, %v503, 0
      %v554 = vsel %vm99, %v504, 0
      %v557 = vsel %vm99, %v505, 0
      %v560 = vsel %vm99, %v506, 0
      %v563 = vsel %vm99, %v507, 0
      %v566 = vsel %vm99, %v508, 0
      %v569 = vsel %vm99, %v509, 0
      %v572 = vsel %vm99, %v510, 0
      %v575 = vsel %vm99, %v511, 0
      %v578 = vsel %vm99, %v512, 0
      %v581 = vsel %vm99, %v513, 0
      %v584 = vsel %vm99, %v514, 0
      %v587 = vsel %vm99, %v515, 0
      %v590 = vsel %vm99, %v516, 0
      %v593 = vsel %vm99, %v517, 0
      %v596 = vsel %vm99, %v518, 0
      %v599 = vsel %vm99, %v519, 0
      %v602 = vsel %vm99, %v520, 0
      %v605 = vsel %vm99, %v521, 0
      %v608 = vsel %vm99, %v522, 0
      %v611 = vsel %vm99, %v523, 0
      %v614 = vsel %vm99, %v524, 0
      %v617 = vsel %vm99, %v525, 0
      %619 = vmatprep.subr.bf16.mxu0 0
      %620 = vmatpush1.bf16.msra.mxu0 %v530
      %621 = vmatprep.subr.bf16.mxu0 0
      %622 = vmatpush1.bf16.msra.mxu0 0
      %623 = vmatprep.subr.bf16.mxu0 0
      %624 = vmatpush1.bf16.msra.mxu0 0
      %625 = vmatprep.subr.bf16.mxu0 0
      %626 = vmatpush1.bf16.msra.mxu0 0
      %627 = vmatprep.subr.bf16.mxu0 0
      %628 = vmatpush1.bf16.msra.mxu0 0
      %629 = vmatprep.subr.bf16.mxu0 0
      %630 = vmatpush1.bf16.msra.mxu0 0
      %631 = vmatprep.subr.bf16.mxu0 0
      %632 = vmatpush1.bf16.msra.mxu0 0
      %633 = vmatprep.subr.bf16.mxu0 0
      %634 = vmatpush1.bf16.msra.mxu0 0
      %635 = vmatprep.subr.bf16.mxu0 0
      %636 = vmatpush1.bf16.msra.mxu0 0
      %637 = vmatprep.subr.bf16.mxu0 0
      %638 = vmatpush1.bf16.msra.mxu0 0
      %639 = vmatprep.subr.bf16.mxu0 0
      %640 = vmatpush1.bf16.msra.mxu0 0
      %641 = vmatprep.subr.bf16.mxu0 0
      %642 = vmatpush1.bf16.msra.mxu0 0
      %643 = vmatprep.subr.bf16.mxu0 0
      %644 = vmatpush1.bf16.msra.mxu0 0
      %645 = vmatprep.subr.bf16.mxu0 0
      %646 = vmatpush1.bf16.msra.mxu0 0
      %647 = vmatprep.subr.bf16.mxu0 0
      %648 = vmatpush1.bf16.msra.mxu0 0
      %649 = vmatprep.subr.bf16.mxu0 0
      %650 = vmatpush1.bf16.msra.mxu0 0
      %651 = vmatprep.mubr.bf16.mxu0 0
      %652 = vmatmul.mubr.bf16.gmra.mrb[0].mxu0 %v533
      %v653 = vpop.f32.mrb[0].mxu0
      %v654 = vadd.f32 %v379, %v653
      %v655 = vpop.f32.mrb[0].mxu0
      %v656 = vpop.f32.mrb[0].mxu0
      %v657 = vadd.f32 %v379, %v656
      %v658 = vpop.f32.mrb[0].mxu0
      %659 = vmatprep.mubr.bf16.mxu0 0
      %660 = vmatmul.mubr.bf16.gmra.mrb[0].mxu0 %v536
      %v661 = vpop.f32.mrb[0].mxu0
      %v662 = vadd.f32 %v379, %v661
      %v663 = vpop.f32.mrb[0].mxu0
      %v664 = vpop.f32.mrb[0].mxu0
      %v665 = vadd.f32 %v379, %v664
      %v666 = vpop.f32.mrb[0].mxu0
      %667 = vmatprep.mubr.bf16.mxu0 0
      %668 = vmatmul.mubr.bf16.gmra.mrb[0].mxu0 %v539
      %v669 = vpop.f32.mrb[0].mxu0
      %v670 = vadd.f32 %v379, %v669
      %v671 = vpop.f32.mrb[0].mxu0
      %v672 = vpop.f32.mrb[0].mxu0
      %v673 = vadd.f32 %v379, %v672
      %v674 = vpop.f32.mrb[0].mxu0
      %675 = vmatprep.mubr.bf16.mxu0 0
      %676 = vmatmul.mubr.bf16.gmra.mrb[0].mxu0 %v542
      %v677 = vpop.f32.mrb[0].mxu0
      %v678 = vadd.f32 %v379, %v677
      %v679 = vpop.f32.mrb[0].mxu0
      %v680 = vpop.f32.mrb[0].mxu0
      %v681 = vadd.f32 %v379, %v680
      %v682 = vpop.f32.mrb[0].mxu0
      %683 = vmatprep.mubr.bf16.mxu0 0
      %684 = vmatmul.mubr.bf16.gmra.mrb[0].mxu0 %v545
      %v685 = vpop.f32.mrb[0].mxu0
      %v686 = vadd.f32 %v379, %v685
      %v687 = vpop.f32.mrb[0].mxu0
      %v688 = vpop.f32.mrb[0].mxu0
      %v689 = vadd.f32 %v379, %v688
      %v690 = vpop.f32.mrb[0].mxu0
      %691 = vmatprep.mubr.bf16.mxu0 0
      %692 = vmatmul.mubr.bf16.gmra.mrb[0].mxu0 %v548
      %v693 = vpop.f32.mrb[0].mxu0
      %v694 = vadd.f32 %v379, %v693
      %v695 = vpop.f32.mrb[0].mxu0
      %v696 = vpop.f32.mrb[0].mxu0
      %v697 = vadd.f32 %v379, %v696
      %v698 = vpop.f32.mrb[0].mxu0
      %699 = vmatprep.mubr.bf16.mxu0 0
      %700 = vmatmul.mubr.bf16.gmra.mrb[0].mxu0 %v551
      %v701 = vpop.f32.mrb[0].mxu0
      %v702 = vadd.f32 %v379, %v701
      %v703 = vpop.f32.mrb[0].mxu0
      %v704 = vpop.f32.mrb[0].mxu0
      %v705 = vadd.f32 %v379, %v704
      %v706 = vpop.f32.mrb[0].mxu0
      %707 = vmatprep.mubr.bf16.mxu0 0
      %708 = vmatmul.mubr.bf16.gmra.mrb[0].mxu0 %v554
      %v709 = vpop.f32.mrb[0].mxu0
      %v710 = vadd.f32 %v379, %v709
      %v711 = vpop.f32.mrb[0].mxu0
      %v712 = vpop.f32.mrb[0].mxu0
      %v713 = vadd.f32 %v379, %v712
      %v714 = vpop.f32.mrb[0].mxu0
      %715 = vmatprep.mubr.bf16.mxu0 0
      %716 = vmatmul.mubr.bf16.gmra.mrb[0].mxu0 %v557
      %v717 = vpop.f32.mrb[0].mxu0
      %v718 = vadd.f32 %v379, %v717
      %v719 = vpop.f32.mrb[0].mxu0
      %v720 = vpop.f32.mrb[0].mxu0
      %v721 = vadd.f32 %v379, %v720
      %v722 = vpop.f32.mrb[0].mxu0
      %723 = vmatprep.mubr.bf16.mxu0 0
      %724 = vmatmul.mubr.bf16.gmra.mrb[0].mxu0 %v560
      %v725 = vpop.f32.mrb[0].mxu0
      %v726 = vadd.f32 %v379, %v725
      %v727 = vpop.f32.mrb[0].mxu0
      %v728 = vpop.f32.mrb[0].mxu0
      %v729 = vadd.f32 %v379, %v728
      %v730 = vpop.f32.mrb[0].mxu0
      %731 = vmatprep.mubr.bf16.mxu0 0
      %732 = vmatmul.mubr.bf16.gmra.mrb[0].mxu0 %v563
      %v733 = vpop.f32.mrb[0].mxu0
      %v734 = vadd.f32 %v379, %v733
      %v735 = vpop.f32.mrb[0].mxu0
      %v736 = vpop.f32.mrb[0].mxu0
      %v737 = vadd.f32 %v379, %v736
      %v738 = vpop.f32.mrb[0].mxu0
      %739 = vmatprep.mubr.bf16.mxu0 0
      %740 = vmatmul.mubr.bf16.gmra.mrb[0].mxu0 %v566
      %v741 = vpop.f32.mrb[0].mxu0
      %v742 = vadd.f32 %v379, %v741
      %v743 = vpop.f32.mrb[0].mxu0
      %v744 = vpop.f32.mrb[0].mxu0
      %v745 = vadd.f32 %v379, %v744
      %v746 = vpop.f32.mrb[0].mxu0
      %747 = vmatprep.mubr.bf16.mxu0 0
      %748 = vmatmul.mubr.bf16.gmra.mrb[0].mxu0 %v569
      %v749 = vpop.f32.mrb[0].mxu0
      %v750 = vadd.f32 %v379, %v749
      %v751 = vpop.f32.mrb[0].mxu0
      %v752 = vpop.f32.mrb[0].mxu0
      %v753 = vadd.f32 %v379, %v752
      %v754 = vpop.f32.mrb[0].mxu0
      %755 = vmatprep.mubr.bf16.mxu0 0
      %756 = vmatmul.mubr.bf16.gmra.mrb[0].mxu0 %v572
      %v757 = vpop.f32.mrb[0].mxu0
      %v758 = vadd.f32 %v379, %v757
      %v759 = vpop.f32.mrb[0].mxu0
      %v760 = vpop.f32.mrb[0].mxu0
      %v761 = vadd.f32 %v379, %v760
      %v762 = vpop.f32.mrb[0].mxu0
      %763 = vmatprep.mubr.bf16.mxu0 0
      %764 = vmatmul.mubr.bf16.gmra.mrb[0].mxu0 %v575
      %v765 = vpop.f32.mrb[0].mxu0
      %v766 = vadd.f32 %v379, %v765
      %v767 = vpop.f32.mrb[0].mxu0
      %v768 = vpop.f32.mrb[0].mxu0
      %v769 = vadd.f32 %v379, %v768
      %v770 = vpop.f32.mrb[0].mxu0
      %771 = vmatprep.mubr.bf16.mxu0 0
      %772 = vmatmul.mubr.bf16.gmra.mrb[0].mxu0 %v578
      %v773 = vpop.f32.mrb[0].mxu0
      %v774 = vadd.f32 %v379, %v773
      %v775 = vpop.f32.mrb[0].mxu0
      %v776 = vpop.f32.mrb[0].mxu0
      %v777 = vadd.f32 %v379, %v776
      %v778 = vpop.f32.mrb[0].mxu0
      %779 = vmatprep.mubr.bf16.mxu0 0
      %780 = vmatmul.mubr.bf16.gmra.mrb[0].mxu0 %v581
      %v781 = vpop.f32.mrb[0].mxu0
      %v782 = vadd.f32 %v379, %v781
      %v783 = vpop.f32.mrb[0].mxu0
      %v784 = vpop.f32.mrb[0].mxu0
      %v785 = vadd.f32 %v379, %v784
      %v786 = vpop.f32.mrb[0].mxu0
      %787 = vmatprep.mubr.bf16.mxu0 0
      %788 = vmatmul.mubr.bf16.gmra.mrb[0].mxu0 %v584
      %v789 = vpop.f32.mrb[0].mxu0
      %v790 = vadd.f32 %v379, %v789
      %v791 = vpop.f32.mrb[0].mxu0
      %v792 = vpop.f32.mrb[0].mxu0
      %v793 = vadd.f32 %v379, %v792
      %v794 = vpop.f32.mrb[0].mxu0
      %795 = vmatprep.mubr.bf16.mxu0 0
      %796 = vmatmul.mubr.bf16.gmra.mrb[0].mxu0 %v587
      %v797 = vpop.f32.mrb[0].mxu0
      %v798 = vadd.f32 %v379, %v797
      %v799 = vpop.f32.mrb[0].mxu0
      %v800 = vpop.f32.mrb[0].mxu0
      %v801 = vadd.f32 %v379, %v800
      %v802 = vpop.f32.mrb[0].mxu0
      %803 = vmatprep.mubr.bf16.mxu0 0
      %804 = vmatmul.mubr.bf16.gmra.mrb[0].mxu0 %v590
      %v805 = vpop.f32.mrb[0].mxu0
      %v806 = vadd.f32 %v379, %v805
      %v807 = vpop.f32.mrb[0].mxu0
      %v808 = vpop.f32.mrb[0].mxu0
      %v809 = vadd.f32 %v379, %v808
      %v810 = vpop.f32.mrb[0].mxu0
      %811 = vmatprep.mubr.bf16.mxu0 0
      %812 = vmatmul.mubr.bf16.gmra.mrb[0].mxu0 %v593
      %v813 = vpop.f32.mrb[0].mxu0
      %v814 = vadd.f32 %v379, %v813
      %v815 = vpop.f32.mrb[0].mxu0
      %v816 = vpop.f32.mrb[0].mxu0
      %v817 = vadd.f32 %v379, %v816
      %v818 = vpop.f32.mrb[0].mxu0
      %819 = vmatprep.mubr.bf16.mxu0 0
      %820 = vmatmul.mubr.bf16.gmra.mrb[0].mxu0 %v596
      %v821 = vpop.f32.mrb[0].mxu0
      %v822 = vadd.f32 %v379, %v821
      %v823 = vpop.f32.mrb[0].mxu0
      %v824 = vpop.f32.mrb[0].mxu0
      %v825 = vadd.f32 %v379, %v824
      %v826 = vpop.f32.mrb[0].mxu0
      %827 = vmatprep.mubr.bf16.mxu0 0
      %828 = vmatmul.mubr.bf16.gmra.mrb[0].mxu0 %v599
      %v829 = vpop.f32.mrb[0].mxu0
      %v830 = vadd.f32 %v379, %v829
      %v831 = vpop.f32.mrb[0].mxu0
      %v832 = vpop.f32.mrb[0].mxu0
      %v833 = vadd.f32 %v379, %v832
      %v834 = vpop.f32.mrb[0].mxu0
      %835 = vmatprep.mubr.bf16.mxu0 0
      %836 = vmatmul.mubr.bf16.gmra.mrb[0].mxu0 %v602
      %v837 = vpop.f32.mrb[0].mxu0
      %v838 = vadd.f32 %v379, %v837
      %v839 = vpop.f32.mrb[0].mxu0
      %v840 = vpop.f32.mrb[0].mxu0
      %v841 = vadd.f32 %v379, %v840
      %v842 = vpop.f32.mrb[0].mxu0
      %843 = vmatprep.mubr.bf16.mxu0 0
      %844 = vmatmul.mubr.bf16.gmra.mrb[0].mxu0 %v605
      %v845 = vpop.f32.mrb[0].mxu0
      %v846 = vadd.f32 %v379, %v845
      %v847 = vpop.f32.mrb[0].mxu0
      %v848 = vpop.f32.mrb[0].mxu0
      %v849 = vadd.f32 %v379, %v848
      %v850 = vpop.f32.mrb[0].mxu0
      %851 = vmatprep.mubr.bf16.mxu0 0
      %852 = vmatmul.mubr.bf16.gmra.mrb[0].mxu0 %v608
      %v853 = vpop.f32.mrb[0].mxu0
      %v854 = vadd.f32 %v379, %v853
      %v855 = vpop.f32.mrb[0].mxu0
      %v856 = vpop.f32.mrb[0].mxu0
      %v857 = vadd.f32 %v379, %v856
      %v858 = vpop.f32.mrb[0].mxu0
      %859 = vmatprep.mubr.bf16.mxu0 0
      %860 = vmatmul.mubr.bf16.gmra.mrb[0].mxu0 %v611
      %v861 = vpop.f32.mrb[0].mxu0
      %v862 = vadd.f32 %v379, %v861
      %v863 = vpop.f32.mrb[0].mxu0
      %v864 = vpop.f32.mrb[0].mxu0
      %v865 = vadd.f32 %v379, %v864
      %v866 = vpop.f32.mrb[0].mxu0
      %867 = vmatprep.mubr.bf16.mxu0 0
      %868 = vmatmul.mubr.bf16.gmra.mrb[0].mxu0 %v614
      %v869 = vpop.f32.mrb[0].mxu0
      %v870 = vadd.f32 %v379, %v869
      %v871 = vpop.f32.mrb[0].mxu0
      %v872 = vpop.f32.mrb[0].mxu0
      %v873 = vadd.f32 %v379, %v872
      %v874 = vpop.f32.mrb[0].mxu0
      %875 = vmatprep.mubr.bf16.mxu0 0
      %876 = vmatmul.mubr.bf16.gmra.mrb[0].mxu0 %v617
      %v877 = vpop.f32.mrb[0].mxu0
      %v878 = vadd.f32 %v379, %v877
      %v879 = vpop.f32.mrb[0].mxu0
      %v880 = vpop.f32.mrb[0].mxu0
      %v881 = vadd.f32 %v379, %v880
      %v882 = vpop.f32.mrb[0].mxu0
      %883 = vdwg.mxu0
      %v884 = vmax.f32 %v654, 0.0
      %v885 = vmax.f32 %v657, 0.0
      %v886 = vmax.f32 %v662, 0.0
      %v887 = vmax.f32 %v665, 0.0
      %v888 = vmax.f32 %v670, 0.0
      %v889 = vmax.f32 %v673, 0.0
      %v890 = vmax.f32 %v678, 0.0
      %v891 = vmax.f32 %v681, 0.0
      %v892 = vmax.f32 %v686, 0.0
      %v893 = vmax.f32 %v689, 0.0
      %v894 = vmax.f32 %v694, 0.0
      %v895 = vmax.f32 %v697, 0.0
      %v896 = vmax.f32 %v702, 0.0
      %v897 = vmax.f32 %v705, 0.0
      %v898 = vmax.f32 %v710, 0.0
      %v899 = vmax.f32 %v713, 0.0
      %v900 = vmax.f32 %v718, 0.0
      %v901 = vmax.f32 %v721, 0.0
      %v902 = vmax.f32 %v726, 0.0
      %v903 = vmax.f32 %v729, 0.0
      %v904 = vmax.f32 %v734, 0.0
      %v905 = vmax.f32 %v737, 0.0
      %v906 = vmax.f32 %v742, 0.0
      %v907 = vmax.f32 %v745, 0.0
      %v908 = vmax.f32 %v750, 0.0
      %v909 = vmax.f32 %v753, 0.0
      %v910 = vmax.f32 %v758, 0.0
      %v911 = vmax.f32 %v761, 0.0
      %v912 = vmax.f32 %v766, 0.0
      %v913 = vmax.f32 %v769, 0.0
      %v914 = vmax.f32 %v774, 0.0
      %v915 = vmax.f32 %v777, 0.0
      %v916 = vmax.f32 %v782, 0.0
      %v917 = vmax.f32 %v785, 0.0
      %v918 = vmax.f32 %v790, 0.0
      %v919 = vmax.f32 %v793, 0.0
      %v920 = vmax.f32 %v798, 0.0
      %v921 = vmax.f32 %v801, 0.0
      %v922 = vmax.f32 %v806, 0.0
      %v923 = vmax.f32 %v809, 0.0
      %v924 = vmax.f32 %v814, 0.0
      %v925 = vmax.f32 %v817, 0.0
      %v926 = vmax.f32 %v822, 0.0
      %v927 = vmax.f32 %v825, 0.0
      %v928 = vmax.f32 %v830, 0.0
      %v929 = vmax.f32 %v833, 0.0
      %v930 = vmax.f32 %v838, 0.0
      %v931 = vmax.f32 %v841, 0.0
      %v932 = vmax.f32 %v846, 0.0
      %v933 = vmax.f32 %v849, 0.0
      %v934 = vmax.f32 %v854, 0.0
      %v935 = vmax.f32 %v857, 0.0
      %v936 = vmax.f32 %v862, 0.0
      %v937 = vmax.f32 %v865, 0.0
      %v938 = vmax.f32 %v870, 0.0
      %v939 = vmax.f32 %v873, 0.0
      %v940 = vmax.f32 %v878, 0.0
      %v941 = vmax.f32 %v881, 0.0
      %v942 = vsel %vm248, 1, 0
      %v943 = vsel %vm249, 1, 0
      %v944 = vsel %vm250, 1, 0
      %v945 = vsel %vm251, 1, 0
      %v946 = vsel %vm252, 1, 0
      %v947 = vsel %vm253, 1, 0
      %v948 = vsel %vm254, 1, 0
      %v949 = vsel %vm255, 1, 0
      %v950 = vsel %vm256, 1, 0
      %v951 = vsel %vm257, 1, 0
      %v952 = vsel %vm258, 1, 0
      %v953 = vsel %vm259, 1, 0
      %v954 = vsel %vm260, 1, 0
      %v955 = vsel %vm261, 1, 0
      %v956 = vsel %vm262, 1, 0
      %v957 = vsel %vm263, 1, 0
      %v958 = vsel %vm264, 1, 0
      %v959 = vsel %vm265, 1, 0
      %v960 = vsel %vm266, 1, 0
      %v961 = vsel %vm267, 1, 0
      %v962 = vsel %vm268, 1, 0
      %v963 = vsel %vm269, 1, 0
      %v964 = vsel %vm270, 1, 0
      %v965 = vsel %vm271, 1, 0
      %v966 = vsel %vm272, 1, 0
      %v967 = vsel %vm273, 1, 0
      %v968 = vsel %vm274, 1, 0
      %v969 = vsel %vm275, 1, 0
      %v970 = vsel %vm276, 1, 0
      %v971 = vsel %vm277, 1, 0
      %v972 = vsel %vm278, 1, 0
      %v973 = vsel %vm279, 1, 0
      %v974 = vsel %vm280, 1, 0
      %v975 = vsel %vm281, 1, 0
      %v976 = vsel %vm282, 1, 0
      %v977 = vsel %vm283, 1, 0
      %v978 = vsel %vm284, 1, 0
      %v979 = vsel %vm285, 1, 0
      %v980 = vsel %vm286, 1, 0
      %v981 = vsel %vm287, 1, 0
      %v982 = vsel %vm288, 1, 0
      %v983 = vsel %vm289, 1, 0
      %v984 = vsel %vm290, 1, 0
      %v985 = vsel %vm291, 1, 0
      %v986 = vsel %vm292, 1, 0
      %v987 = vsel %vm293, 1, 0
      %v988 = vsel %vm294, 1, 0
      %v989 = vsel %vm295, 1, 0
      %v990 = vsel %vm296, 1, 0
      %v991 = vsel %vm297, 1, 0
      %v992 = vsel %vm298, 1, 0
      %v993 = vsel %vm299, 1, 0
      %v994 = vsel %vm300, 1, 0
      %v995 = vsel %vm301, 1, 0
      %v996 = vsel %vm302, 1, 0
      %v997 = vsel %vm303, 1, 0
      %v998 = vsel %vm304, 1, 0
      %v999 = vsel %vm305, 1, 0
      %vm1000 = vcmp.eq.s32.totalorder %v942, 1
      %vm1001 = vcmp.eq.s32.totalorder %v943, 1
      %vm1002 = vcmp.eq.s32.totalorder %v944, 1
      %vm1003 = vcmp.eq.s32.totalorder %v945, 1
      %vm1004 = vcmp.eq.s32.totalorder %v946, 1
      %vm1005 = vcmp.eq.s32.totalorder %v947, 1
      %vm1006 = vcmp.eq.s32.totalorder %v948, 1
      %vm1007 = vcmp.eq.s32.totalorder %v949, 1
      %vm1008 = vcmp.eq.s32.totalorder %v950, 1
      %vm1009 = vcmp.eq.s32.totalorder %v951, 1
      %vm1010 = vcmp.eq.s32.totalorder %v952, 1
      %vm1011 = vcmp.eq.s32.totalorder %v953, 1
      %vm1012 = vcmp.eq.s32.totalorder %v954, 1
      %vm1013 = vcmp.eq.s32.totalorder %v955, 1
      %vm1014 = vcmp.eq.s32.totalorder %v956, 1
      %vm1015 = vcmp.eq.s32.totalorder %v957, 1
      %vm1016 = vcmp.eq.s32.totalorder %v958, 1
      %vm1017 = vcmp.eq.s32.totalorder %v959, 1
      %vm1018 = vcmp.eq.s32.totalorder %v960, 1
      %vm1019 = vcmp.eq.s32.totalorder %v961, 1
      %vm1020 = vcmp.eq.s32.totalorder %v962, 1
      %vm1021 = vcmp.eq.s32.totalorder %v963, 1
      %vm1022 = vcmp.eq.s32.totalorder %v964, 1
      %vm1023 = vcmp.eq.s32.totalorder %v965, 1
      %vm1024 = vcmp.eq.s32.totalorder %v966, 1
      %vm1025 = vcmp.eq.s32.totalorder %v967, 1
      %vm1026 = vcmp.eq.s32.totalorder %v968, 1
      %vm1027 = vcmp.eq.s32.totalorder %v969, 1
      %vm1028 = vcmp.eq.s32.totalorder %v970, 1
      %vm1029 = vcmp.eq.s32.totalorder %v971, 1
      %vm1030 = vcmp.eq.s32.totalorder %v972, 1
      %vm1031 = vcmp.eq.s32.totalorder %v973, 1
      %vm1032 = vcmp.eq.s32.totalorder %v974, 1
      %vm1033 = vcmp.eq.s32.totalorder %v975, 1
      %vm1034 = vcmp.eq.s32.totalorder %v976, 1
      %vm1035 = vcmp.eq.s32.totalorder %v977, 1
      %vm1036 = vcmp.eq.s32.totalorder %v978, 1
      %vm1037 = vcmp.eq.s32.totalorder %v979, 1
      %vm1038 = vcmp.eq.s32.totalorder %v980, 1
      %vm1039 = vcmp.eq.s32.totalorder %v981, 1
      %vm1040 = vcmp.eq.s32.totalorder %v982, 1
      %vm1041 = vcmp.eq.s32.totalorder %v983, 1
      %vm1042 = vcmp.eq.s32.totalorder %v984, 1
      %vm1043 = vcmp.eq.s32.totalorder %v985, 1
      %vm1044 = vcmp.eq.s32.totalorder %v986, 1
      %vm1045 = vcmp.eq.s32.totalorder %v987, 1
      %vm1046 = vcmp.eq.s32.totalorder %v988, 1
      %vm1047 = vcmp.eq.s32.totalorder %v989, 1
      %vm1048 = vcmp.eq.s32.totalorder %v990, 1
      %vm1049 = vcmp.eq.s32.totalorder %v991, 1
      %vm1050 = vcmp.eq.s32.totalorder %v992, 1
      %vm1051 = vcmp.eq.s32.totalorder %v993, 1
      %vm1052 = vcmp.eq.s32.totalorder %v994, 1
      %vm1053 = vcmp.eq.s32.totalorder %v995, 1
      %vm1054 = vcmp.eq.s32.totalorder %v996, 1
      %vm1055 = vcmp.eq.s32.totalorder %v997, 1
      %vm1056 = vcmp.eq.s32.totalorder %v998, 1
      %vm1057 = vcmp.eq.s32.totalorder %v999, 1
      %v1058 = vsel %vm1000, %v884, 0.0
      %v1059 = vsel %vm1001, %v885, 0.0
      %v1060 = vsel %vm1002, %v886, 0.0
      %v1061 = vsel %vm1003, %v887, 0.0
      %v1062 = vsel %vm1004, %v888, 0.0
      %v1063 = vsel %vm1005, %v889, 0.0
      %v1064 = vsel %vm1006, %v890, 0.0
      %v1065 = vsel %vm1007, %v891, 0.0
      %v1066 = vsel %vm1008, %v892, 0.0
      %v1067 = vsel %vm1009, %v893, 0.0
      %v1068 = vsel %vm1010, %v894, 0.0
      %v1069 = vsel %vm1011, %v895, 0.0
      %v1070 = vsel %vm1012, %v896, 0.0
      %v1071 = vsel %vm1013, %v897, 0.0
      %v1072 = vsel %vm1014, %v898, 0.0
      %v1073 = vsel %vm1015, %v899, 0.0
      %v1074 = vsel %vm1016, %v900, 0.0
      %v1075 = vsel %vm1017, %v901, 0.0
      %v1076 = vsel %vm1018, %v902, 0.0
      %v1077 = vsel %vm1019, %v903, 0.0
      %v1078 = vsel %vm1020, %v904, 0.0
      %v1079 = vsel %vm1021, %v905, 0.0
      %v1080 = vsel %vm1022, %v906, 0.0
      %v1081 = vsel %vm1023, %v907, 0.0
      %v1082 = vsel %vm1024, %v908, 0.0
      %v1083 = vsel %vm1025, %v909, 0.0
      %v1084 = vsel %vm1026, %v910, 0.0
      %v1085 = vsel %vm1027, %v911, 0.0
      %v1086 = vsel %vm1028, %v912, 0.0
      %v1087 = vsel %vm1029, %v913, 0.0
      %v1088 = vsel %vm1030, %v914, 0.0
      %v1089 = vsel %vm1031, %v915, 0.0
      %v1090 = vsel %vm1032, %v916, 0.0
      %v1091 = vsel %vm1033, %v917, 0.0
      %v1092 = vsel %vm1034, %v918, 0.0
      %v1093 = vsel %vm1035, %v919, 0.0
      %v1094 = vsel %vm1036, %v920, 0.0
      %v1095 = vsel %vm1037, %v921, 0.0
      %v1096 = vsel %vm1038, %v922, 0.0
      %v1097 = vsel %vm1039, %v923, 0.0
      %v1098 = vsel %vm1040, %v924, 0.0
      %v1099 = vsel %vm1041, %v925, 0.0
      %v1100 = vsel %vm1042, %v926, 0.0
      %v1101 = vsel %vm1043, %v927, 0.0
      %v1102 = vsel %vm1044, %v928, 0.0
      %v1103 = vsel %vm1045, %v929, 0.0
      %v1104 = vsel %vm1046, %v930, 0.0
      %v1105 = vsel %vm1047, %v931, 0.0
      %v1106 = vsel %vm1048, %v932, 0.0
      %v1107 = vsel %vm1049, %v933, 0.0
      %v1108 = vsel %vm1050, %v934, 0.0
      %v1109 = vsel %vm1051, %v935, 0.0
      %v1110 = vsel %vm1052, %v936, 0.0
      %v1111 = vsel %vm1053, %v937, 0.0
      %v1112 = vsel %vm1054, %v938, 0.0
      %v1113 = vsel %vm1055, %v939, 0.0
      %v1114 = vsel %vm1056, %v940, 0.0
      %v1115 = vsel %vm1057, %v941, 0.0
      %s1116 = sadd.s32 %s312, 480
      %v1117 = vpack.c.bf16 %v1059, %v1058
      %v1118 = vpack.c.bf16 %v1061, %v1060
      %v1119 = vpack.c.bf16 %v1063, %v1062
      %v1120 = vpack.c.bf16 %v1065, %v1064
      %v1121 = vpack.c.bf16 %v1067, %v1066
      %v1122 = vpack.c.bf16 %v1069, %v1068
      %v1123 = vpack.c.bf16 %v1071, %v1070
      %v1124 = vpack.c.bf16 %v1073, %v1072
      %v1125 = vpack.c.bf16 %v1075, %v1074
      %v1126 = vpack.c.bf16 %v1077, %v1076
      %v1127 = vpack.c.bf16 %v1079, %v1078
      %v1128 = vpack.c.bf16 %v1081, %v1080
      %v1129 = vpack.c.bf16 %v1083, %v1082
      %v1130 = vpack.c.bf16 %v1085, %v1084
      %v1131 = vpack.c.bf16 %v1087, %v1086
      %v1132 = vpack.c.bf16 %v1089, %v1088
      %v1133 = vpack.c.bf16 %v1091, %v1090
      %v1134 = vpack.c.bf16 %v1093, %v1092
      %v1135 = vpack.c.bf16 %v1095, %v1094
      %v1136 = vpack.c.bf16 %v1097, %v1096
      %v1137 = vpack.c.bf16 %v1099, %v1098
      %v1138 = vpack.c.bf16 %v1101, %v1100
      %v1139 = vpack.c.bf16 %v1103, %v1102
      %v1140 = vpack.c.bf16 %v1105, %v1104
      %v1141 = vpack.c.bf16 %v1107, %v1106
      %v1142 = vpack.c.bf16 %v1109, %v1108
      %v1143 = vpack.c.bf16 %v1111, %v1110
      %v1144 = vpack.c.bf16 %v1113, %v1112
      %v1145 = vpack.c.bf16 %v1115, %v1114
      %s1146 = sshra.s32 %s1116, 4
      %s1147 = sand.u32 %s1116, 15
      %s1148 = smul.addr %s1146, 8
      %s1149 = scalar_lea.vmem [#allocation2], %s1148
      %1150 = vst.msk [vmem:[%s1149] sm:$0xff] %vm99, %v1117
      %1151 = vst.msk [vmem:[%s1149 + $0x8] sm:$0xff] %vm99, %v1118
      %1152 = vst.msk [vmem:[%s1149 + $0x10] sm:$0xff] %vm99, %v1119
      %1153 = vst.msk [vmem:[%s1149 + $0x18] sm:$0xff] %vm99, %v1120
      %1154 = vst.msk [vmem:[%s1149 + $0x20] sm:$0xff] %vm99, %v1121
      %1155 = vst.msk [vmem:[%s1149 + $0x28] sm:$0xff] %vm99, %v1122
      %1156 = vst.msk [vmem:[%s1149 + $0x30] sm:$0xff] %vm99, %v1123
      %1157 = vst.msk [vmem:[%s1149 + $0x38] sm:$0xff] %vm99, %v1124
      %1158 = vst.msk [vmem:[%s1149 + $0x40] sm:$0xff] %vm99, %v1125
      %1159 = vst.msk [vmem:[%s1149 + $0x48] sm:$0xff] %vm99, %v1126
      %1160 = vst.msk [vmem:[%s1149 + $0x50] sm:$0xff] %vm99, %v1127
      %1161 = vst.msk [vmem:[%s1149 + $0x58] sm:$0xff] %vm99, %v1128
      %1162 = vst.msk [vmem:[%s1149 + $0x60] sm:$0xff] %vm99, %v1129
      %1163 = vst.msk [vmem:[%s1149 + $0x68] sm:$0xff] %vm99, %v1130
      %1164 = vst.msk [vmem:[%s1149 + $0x70] sm:$0xff] %vm99, %v1131
      %1165 = vst.msk [vmem:[%s1149 + $0x78] sm:$0xff] %vm99, %v1132
      %1166 = vst.msk [vmem:[%s1149 + $0x80] sm:$0xff] %vm99, %v1133
      %1167 = vst.msk [vmem:[%s1149 + $0x88] sm:$0xff] %vm99, %v1134
      %1168 = vst.msk [vmem:[%s1149 + $0x90] sm:$0xff] %vm99, %v1135
      %1169 = vst.msk [vmem:[%s1149 + $0x98] sm:$0xff] %vm99, %v1136
      %1170 = vst.msk [vmem:[%s1149 + $0xa0] sm:$0xff] %vm99, %v1137
      %1171 = vst.msk [vmem:[%s1149 + $0xa8] sm:$0xff] %vm99, %v1138
      %1172 = vst.msk [vmem:[%s1149 + $0xb0] sm:$0xff] %vm99, %v1139
      %1173 = vst.msk [vmem:[%s1149 + $0xb8] sm:$0xff] %vm99, %v1140
      %1174 = vst.msk [vmem:[%s1149 + $0xc0] sm:$0xff] %vm99, %v1141
      %1175 = vst.msk [vmem:[%s1149 + $0xc8] sm:$0xff] %vm99, %v1142
      %1176 = vst.msk [vmem:[%s1149 + $0xd0] sm:$0xff] %vm99, %v1143
      %1177 = vst.msk [vmem:[%s1149 + $0xd8] sm:$0xff] %vm99, %v1144
      %1178 = vst.msk [vmem:[%s1149 + $0xe0] sm:$0xff] %vm99, %v1145
    $region50: #{cnn_forward.1} parent=1 // loop_footer
      %s311 = sadd.s32 1, %s307
    $region51: #{cnn_forward.1} parent=1 // loop_footer_branch
      %306 = sbr.rel target = $region47
    $region52: #{cnn_forward.1} parent=1 // loop_exit
      _
    loop: start=0, step=1, limit=28
    $region53: #{cnn_forward.1} parent=1 // loop_pre_header
      _
    $region54: #{cnn_forward.1} parent=1 // loop_header
      %s1180 = sphi 0, %s1184
      %p1181 = scmp.ge.s32.totalorder %s1180, 28
    $region55: #{cnn_forward.1} parent=1 // loop_header_branch
      %1183 = sbr.rel (%p1181) target = $region59
    $region56: #{cnn_forward.1} parent=1 // loop_body
      %s1185 = smul.u32 %s1180, 464
      %s1186 = sadd.s32 %s1185, 480
      %s1187 = sshra.s32 %s1185, 4
      %s1188 = sand.u32 %s1185, 15
      %s1189 = smul.addr %s1187, 8
      %s1190 = scalar_lea.vmem [#allocation2], %s1189
      %v1191 = vld [vmem:[%s1190] sm:$0xff]
      %v1192 = vld [vmem:[%s1190 + $0x8] sm:$0xff]
      %v1193 = vld [vmem:[%s1190 + $0x10] sm:$0xff]
      %v1194 = vld [vmem:[%s1190 + $0x18] sm:$0xff]
      %v1195 = vld [vmem:[%s1190 + $0x20] sm:$0xff]
      %v1196 = vld [vmem:[%s1190 + $0x28] sm:$0xff]
      %v1197 = vld [vmem:[%s1190 + $0x30] sm:$0xff]
      %v1198 = vld [vmem:[%s1190 + $0x38] sm:$0xff]
      %v1199 = vld [vmem:[%s1190 + $0x40] sm:$0xff]
      %v1200 = vld [vmem:[%s1190 + $0x48] sm:$0xff]
      %v1201 = vld [vmem:[%s1190 + $0x50] sm:$0xff]
      %v1202 = vld [vmem:[%s1190 + $0x58] sm:$0xff]
      %v1203 = vld [vmem:[%s1190 + $0x60] sm:$0xff]
      %v1204 = vld [vmem:[%s1190 + $0x68] sm:$0xff]
      %v1205 = vld [vmem:[%s1190 + $0x70] sm:$0xff]
      %v1206 = vld [vmem:[%s1190 + $0x78] sm:$0xff]
      %v1207 = vld [vmem:[%s1190 + $0x80] sm:$0xff]
      %v1208 = vld [vmem:[%s1190 + $0x88] sm:$0xff]
      %v1209 = vld [vmem:[%s1190 + $0x90] sm:$0xff]
      %v1210 = vld [vmem:[%s1190 + $0x98] sm:$0xff]
      %v1211 = vld [vmem:[%s1190 + $0xa0] sm:$0xff]
      %v1212 = vld [vmem:[%s1190 + $0xa8] sm:$0xff]
      %v1213 = vld [vmem:[%s1190 + $0xb0] sm:$0xff]
      %v1214 = vld [vmem:[%s1190 + $0xb8] sm:$0xff]
      %v1215 = vld [vmem:[%s1190 + $0xc0] sm:$0xff]
      %v1216 = vld [vmem:[%s1190 + $0xc8] sm:$0xff]
      %v1217 = vld [vmem:[%s1190 + $0xd0] sm:$0xff]
      %v1218 = vld [vmem:[%s1190 + $0xd8] sm:$0xff]
      %v1219 = vld [vmem:[%s1190 + $0xe0] sm:$0xff]
      %1220 = vst.msk [vmem:[#allocation3] sm:$0xff] %vm99, %v1191
      %1221 = vst.msk [vmem:[#allocation3 + $0x10] sm:$0xff] %vm99, %v1192
      %1222 = vst.msk [vmem:[#allocation3 + $0x20] sm:$0xff] %vm99, %v1193
      %1223 = vst.msk [vmem:[#allocation3 + $0x30] sm:$0xff] %vm99, %v1194
      %1224 = vst.msk [vmem:[#allocation3 + $0x40] sm:$0xff] %vm99, %v1195
      %1225 = vst.msk [vmem:[#allocation3 + $0x50] sm:$0xff] %vm99, %v1196
      %1226 = vst.msk [vmem:[#allocation3 + $0x60] sm:$0xff] %vm99, %v1197
      %1227 = vst.msk [vmem:[#allocation3 + $0x70] sm:$0xff] %vm99, %v1198
      %1228 = vst.msk [vmem:[#allocation3 + $0x80] sm:$0xff] %vm99, %v1199
      %1229 = vst.msk [vmem:[#allocation3 + $0x90] sm:$0xff] %vm99, %v1200
      %1230 = vst.msk [vmem:[#allocation3 + $0xa0] sm:$0xff] %vm99, %v1201
      %1231 = vst.msk [vmem:[#allocation3 + $0xb0] sm:$0xff] %vm99, %v1202
      %1232 = vst.msk [vmem:[#allocation3 + $0xc0] sm:$0xff] %vm99, %v1203
      %1233 = vst.msk [vmem:[#allocation3 + $0xd0] sm:$0xff] %vm99, %v1204
      %1234 = vst.msk [vmem:[#allocation3 + $0xe0] sm:$0xff] %vm99, %v1205
      %1235 = vst.msk [vmem:[#allocation3 + $0xf0] sm:$0xff] %vm99, %v1206
      %1236 = vst.msk [vmem:[#allocation3 + $0x100] sm:$0xff] %vm99, %v1207
      %1237 = vst.msk [vmem:[#allocation3 + $0x110] sm:$0xff] %vm99, %v1208
      %1238 = vst.msk [vmem:[#allocation3 + $0x120] sm:$0xff] %vm99, %v1209
      %1239 = vst.msk [vmem:[#allocation3 + $0x130] sm:$0xff] %vm99, %v1210
      %1240 = vst.msk [vmem:[#allocation3 + $0x140] sm:$0xff] %vm99, %v1211
      %1241 = vst.msk [vmem:[#allocation3 + $0x150] sm:$0xff] %vm99, %v1212
      %1242 = vst.msk [vmem:[#allocation3 + $0x160] sm:$0xff] %vm99, %v1213
      %1243 = vst.msk [vmem:[#allocation3 + $0x170] sm:$0xff] %vm99, %v1214
      %1244 = vst.msk [vmem:[#allocation3 + $0x180] sm:$0xff] %vm99, %v1215
      %1245 = vst.msk [vmem:[#allocation3 + $0x190] sm:$0xff] %vm99, %v1216
      %1246 = vst.msk [vmem:[#allocation3 + $0x1a0] sm:$0xff] %vm99, %v1217
      %1247 = vst.msk [vmem:[#allocation3 + $0x1b0] sm:$0xff] %vm99, %v1218
      %1248 = vst.msk [vmem:[#allocation3 + $0x1c0] sm:$0xff] %vm99, %v1219
      %s1249 = sadd.s32 %s1185, 16
      %s1250 = sshra.s32 %s1249, 4
      %s1251 = sand.u32 %s1249, 15
      %s1252 = smul.addr %s1250, 8
      %s1253 = scalar_lea.vmem [#allocation2], %s1252
      %v1254 = vld [vmem:[%s1253] sm:$0xff]
      %v1255 = vld [vmem:[%s1253 + $0x8] sm:$0xff]
      %v1256 = vld [vmem:[%s1253 + $0x10] sm:$0xff]
      %v1257 = vld [vmem:[%s1253 + $0x18] sm:$0xff]
      %v1258 = vld [vmem:[%s1253 + $0x20] sm:$0xff]
      %v1259 = vld [vmem:[%s1253 + $0x28] sm:$0xff]
      %v1260 = vld [vmem:[%s1253 + $0x30] sm:$0xff]
      %v1261 = vld [vmem:[%s1253 + $0x38] sm:$0xff]
      %v1262 = vld [vmem:[%s1253 + $0x40] sm:$0xff]
      %v1263 = vld [vmem:[%s1253 + $0x48] sm:$0xff]
      %v1264 = vld [vmem:[%s1253 + $0x50] sm:$0xff]
      %v1265 = vld [vmem:[%s1253 + $0x58] sm:$0xff]
      %v1266 = vld [vmem:[%s1253 + $0x60] sm:$0xff]
      %v1267 = vld [vmem:[%s1253 + $0x68] sm:$0xff]
      %v1268 = vld [vmem:[%s1253 + $0x70] sm:$0xff]
      %v1269 = vld [vmem:[%s1253 + $0x78] sm:$0xff]
      %v1270 = vld [vmem:[%s1253 + $0x80] sm:$0xff]
      %v1271 = vld [vmem:[%s1253 + $0x88] sm:$0xff]
      %v1272 = vld [vmem:[%s1253 + $0x90] sm:$0xff]
      %v1273 = vld [vmem:[%s1253 + $0x98] sm:$0xff]
      %v1274 = vld [vmem:[%s1253 + $0xa0] sm:$0xff]
      %v1275 = vld [vmem:[%s1253 + $0xa8] sm:$0xff]
      %v1276 = vld [vmem:[%s1253 + $0xb0] sm:$0xff]
      %v1277 = vld [vmem:[%s1253 + $0xb8] sm:$0xff]
      %v1278 = vld [vmem:[%s1253 + $0xc0] sm:$0xff]
      %v1279 = vld [vmem:[%s1253 + $0xc8] sm:$0xff]
      %v1280 = vld [vmem:[%s1253 + $0xd0] sm:$0xff]
      %v1281 = vld [vmem:[%s1253 + $0xd8] sm:$0xff]
      %v1282 = vld [vmem:[%s1253 + $0xe0] sm:$0xff]
      %1312 = vrot.lane.b32.xlu0 %v1254, 16
      %v1313 = vpop.permute.xlu0 %1312
      %1314 = vrot.lane.b32.xlu0 %v1255, 16
      %v1315 = vpop.permute.xlu0 %1314
      %1316 = vrot.lane.b32.xlu0 %v1256, 16
      %v1317 = vpop.permute.xlu0 %1316
      %1318 = vrot.lane.b32.xlu0 %v1257, 16
      %v1319 = vpop.permute.xlu0 %1318
      %1320 = vrot.lane.b32.xlu0 %v1258, 16
      %v1321 = vpop.permute.xlu0 %1320
      %1322 = vrot.lane.b32.xlu0 %v1259, 16
      %v1323 = vpop.permute.xlu0 %1322
      %1324 = vrot.lane.b32.xlu0 %v1260, 16
      %v1325 = vpop.permute.xlu0 %1324
      %1326 = vrot.lane.b32.xlu0 %v1261, 16
      %v1327 = vpop.permute.xlu0 %1326
      %1328 = vrot.lane.b32.xlu0 %v1262, 16
      %v1329 = vpop.permute.xlu0 %1328
      %1330 = vrot.lane.b32.xlu0 %v1263, 16
      %v1331 = vpop.permute.xlu0 %1330
      %1332 = vrot.lane.b32.xlu0 %v1264, 16
      %v1333 = vpop.permute.xlu0 %1332
      %1334 = vrot.lane.b32.xlu0 %v1265, 16
      %v1335 = vpop.permute.xlu0 %1334
      %1336 = vrot.lane.b32.xlu0 %v1266, 16
      %v1337 = vpop.permute.xlu0 %1336
      %1338 = vrot.lane.b32.xlu0 %v1267, 16
      %v1339 = vpop.permute.xlu0 %1338
      %1340 = vrot.lane.b32.xlu0 %v1268, 16
      %v1341 = vpop.permute.xlu0 %1340
      %1342 = vrot.lane.b32.xlu0 %v1269, 16
      %v1343 = vpop.permute.xlu0 %1342
      %1344 = vrot.lane.b32.xlu0 %v1270, 16
      %v1345 = vpop.permute.xlu0 %1344
      %1346 = vrot.lane.b32.xlu0 %v1271, 16
      %v1347 = vpop.permute.xlu0 %1346
      %1348 = vrot.lane.b32.xlu0 %v1272, 16
      %v1349 = vpop.permute.xlu0 %1348
      %1350 = vrot.lane.b32.xlu0 %v1273, 16
      %v1351 = vpop.permute.xlu0 %1350
      %1352 = vrot.lane.b32.xlu0 %v1274, 16
      %v1353 = vpop.permute.xlu0 %1352
      %1354 = vrot.lane.b32.xlu0 %v1275, 16
      %v1355 = vpop.permute.xlu0 %1354
      %1356 = vrot.lane.b32.xlu0 %v1276, 16
      %v1357 = vpop.permute.xlu0 %1356
      %1358 = vrot.lane.b32.xlu0 %v1277, 16
      %v1359 = vpop.permute.xlu0 %1358
      %1360 = vrot.lane.b32.xlu0 %v1278, 16
      %v1361 = vpop.permute.xlu0 %1360
      %1362 = vrot.lane.b32.xlu0 %v1279, 16
      %v1363 = vpop.permute.xlu0 %1362
      %1364 = vrot.lane.b32.xlu0 %v1280, 16
      %v1365 = vpop.permute.xlu0 %1364
      %1366 = vrot.lane.b32.xlu0 %v1281, 16
      %v1367 = vpop.permute.xlu0 %1366
      %1368 = vrot.lane.b32.xlu0 %v1282, 16
      %v1369 = vpop.permute.xlu0 %1368
      %vm1399 = vcmask 261248
      %1400 = vst.msk [vmem:[#allocation3] sm:$0xff] %vm1399, %v1313
      %1401 = vst.msk [vmem:[#allocation3 + $0x10] sm:$0xff] %vm1399, %v1315
      %1402 = vst.msk [vmem:[#allocation3 + $0x20] sm:$0xff] %vm1399, %v1317
      %1403 = vst.msk [vmem:[#allocation3 + $0x30] sm:$0xff] %vm1399, %v1319
      %1404 = vst.msk [vmem:[#allocation3 + $0x40] sm:$0xff] %vm1399, %v1321
      %1405 = vst.msk [vmem:[#allocation3 + $0x50] sm:$0xff] %vm1399, %v1323
      %1406 = vst.msk [vmem:[#allocation3 + $0x60] sm:$0xff] %vm1399, %v1325
      %1407 = vst.msk [vmem:[#allocation3 + $0x70] sm:$0xff] %vm1399, %v1327
      %1408 = vst.msk [vmem:[#allocation3 + $0x80] sm:$0xff] %vm1399, %v1329
      %1409 = vst.msk [vmem:[#allocation3 + $0x90] sm:$0xff] %vm1399, %v1331
      %1410 = vst.msk [vmem:[#allocation3 + $0xa0] sm:$0xff] %vm1399, %v1333
      %1411 = vst.msk [vmem:[#allocation3 + $0xb0] sm:$0xff] %vm1399, %v1335
      %1412 = vst.msk [vmem:[#allocation3 + $0xc0] sm:$0xff] %vm1399, %v1337
      %1413 = vst.msk [vmem:[#allocation3 + $0xd0] sm:$0xff] %vm1399, %v1339
      %1414 = vst.msk [vmem:[#allocation3 + $0xe0] sm:$0xff] %vm1399, %v1341
      %1415 = vst.msk [vmem:[#allocation3 + $0xf0] sm:$0xff] %vm1399, %v1343
      %1416 = vst.msk [vmem:[#allocation3 + $0x100] sm:$0xff] %vm1399, %v1345
      %1417 = vst.msk [vmem:[#allocation3 + $0x110] sm:$0xff] %vm1399, %v1347
      %1418 = vst.msk [vmem:[#allocation3 + $0x120] sm:$0xff] %vm1399, %v1349
      %1419 = vst.msk [vmem:[#allocation3 + $0x130] sm:$0xff] %vm1399, %v1351
      %1420 = vst.msk [vmem:[#allocation3 + $0x140] sm:$0xff] %vm1399, %v1353
      %1421 = vst.msk [vmem:[#allocation3 + $0x150] sm:$0xff] %vm1399, %v1355
      %1422 = vst.msk [vmem:[#allocation3 + $0x160] sm:$0xff] %vm1399, %v1357
      %1423 = vst.msk [vmem:[#allocation3 + $0x170] sm:$0xff] %vm1399, %v1359
      %1424 = vst.msk [vmem:[#allocation3 + $0x180] sm:$0xff] %vm1399, %v1361
      %1425 = vst.msk [vmem:[#allocation3 + $0x190] sm:$0xff] %vm1399, %v1363
      %1426 = vst.msk [vmem:[#allocation3 + $0x1a0] sm:$0xff] %vm1399, %v1365
      %1427 = vst.msk [vmem:[#allocation3 + $0x1b0] sm:$0xff] %vm1399, %v1367
      %1428 = vst.msk [vmem:[#allocation3 + $0x1c0] sm:$0xff] %vm1399, %v1369
      %s1429 = sadd.s32 %s1185, 32
      %s1430 = sshra.s32 %s1429, 4
      %s1431 = sand.u32 %s1429, 15
      %s1432 = smul.addr %s1430, 8
      %s1433 = scalar_lea.vmem [#allocation2], %s1432
      %v1434 = vld [vmem:[%s1433] sm:$0xff]
      %v1435 = vld [vmem:[%s1433 + $0x8] sm:$0xff]
      %v1436 = vld [vmem:[%s1433 + $0x10] sm:$0xff]
      %v1437 = vld [vmem:[%s1433 + $0x18] sm:$0xff]
      %v1438 = vld [vmem:[%s1433 + $0x20] sm:$0xff]
      %v1439 = vld [vmem:[%s1433 + $0x28] sm:$0xff]
      %v1440 = vld [vmem:[%s1433 + $0x30] sm:$0xff]
      %v1441 = vld [vmem:[%s1433 + $0x38] sm:$0xff]
      %v1442 = vld [vmem:[%s1433 + $0x40] sm:$0xff]
      %v1443 = vld [vmem:[%s1433 + $0x48] sm:$0xff]
      %v1444 = vld [vmem:[%s1433 + $0x50] sm:$0xff]
      %v1445 = vld [vmem:[%s1433 + $0x58] sm:$0xff]
      %v1446 = vld [vmem:[%s1433 + $0x60] sm:$0xff]
      %v1447 = vld [vmem:[%s1433 + $0x68] sm:$0xff]
      %v1448 = vld [vmem:[%s1433 + $0x70] sm:$0xff]
      %v1449 = vld [vmem:[%s1433 + $0x78] sm:$0xff]
      %v1450 = vld [vmem:[%s1433 + $0x80] sm:$0xff]
      %v1451 = vld [vmem:[%s1433 + $0x88] sm:$0xff]
      %v1452 = vld [vmem:[%s1433 + $0x90] sm:$0xff]
      %v1453 = vld [vmem:[%s1433 + $0x98] sm:$0xff]
      %v1454 = vld [vmem:[%s1433 + $0xa0] sm:$0xff]
      %v1455 = vld [vmem:[%s1433 + $0xa8] sm:$0xff]
      %v1456 = vld [vmem:[%s1433 + $0xb0] sm:$0xff]
      %v1457 = vld [vmem:[%s1433 + $0xb8] sm:$0xff]
      %v1458 = vld [vmem:[%s1433 + $0xc0] sm:$0xff]
      %v1459 = vld [vmem:[%s1433 + $0xc8] sm:$0xff]
      %v1460 = vld [vmem:[%s1433 + $0xd0] sm:$0xff]
      %v1461 = vld [vmem:[%s1433 + $0xd8] sm:$0xff]
      %v1462 = vld [vmem:[%s1433 + $0xe0] sm:$0xff]
      %1492 = vrot.lane.b32.xlu0 %v1434, 32
      %v1493 = vpop.permute.xlu0 %1492
      %1494 = vrot.lane.b32.xlu0 %v1435, 32
      %v1495 = vpop.permute.xlu0 %1494
      %1496 = vrot.lane.b32.xlu0 %v1436, 32
      %v1497 = vpop.permute.xlu0 %1496
      %1498 = vrot.lane.b32.xlu0 %v1437, 32
      %v1499 = vpop.permute.xlu0 %1498
      %1500 = vrot.lane.b32.xlu0 %v1438, 32
      %v1501 = vpop.permute.xlu0 %1500
      %1502 = vrot.lane.b32.xlu0 %v1439, 32
      %v1503 = vpop.permute.xlu0 %1502
      %1504 = vrot.lane.b32.xlu0 %v1440, 32
      %v1505 = vpop.permute.xlu0 %1504
      %1506 = vrot.lane.b32.xlu0 %v1441, 32
      %v1507 = vpop.permute.xlu0 %1506
      %1508 = vrot.lane.b32.xlu0 %v1442, 32
      %v1509 = vpop.permute.xlu0 %1508
      %1510 = vrot.lane.b32.xlu0 %v1443, 32
      %v1511 = vpop.permute.xlu0 %1510
      %1512 = vrot.lane.b32.xlu0 %v1444, 32
      %v1513 = vpop.permute.xlu0 %1512
      %1514 = vrot.lane.b32.xlu0 %v1445, 32
      %v1515 = vpop.permute.xlu0 %1514
      %1516 = vrot.lane.b32.xlu0 %v1446, 32
      %v1517 = vpop.permute.xlu0 %1516
      %1518 = vrot.lane.b32.xlu0 %v1447, 32
      %v1519 = vpop.permute.xlu0 %1518
      %1520 = vrot.lane.b32.xlu0 %v1448, 32
      %v1521 = vpop.permute.xlu0 %1520
      %1522 = vrot.lane.b32.xlu0 %v1449, 32
      %v1523 = vpop.permute.xlu0 %1522
      %1524 = vrot.lane.b32.xlu0 %v1450, 32
      %v1525 = vpop.permute.xlu0 %1524
      %1526 = vrot.lane.b32.xlu0 %v1451, 32
      %v1527 = vpop.permute.xlu0 %1526
      %1528 = vrot.lane.b32.xlu0 %v1452, 32
      %v1529 = vpop.permute.xlu0 %1528
      %1530 = vrot.lane.b32.xlu0 %v1453, 32
      %v1531 = vpop.permute.xlu0 %1530
      %1532 = vrot.lane.b32.xlu0 %v1454, 32
      %v1533 = vpop.permute.xlu0 %1532
      %1534 = vrot.lane.b32.xlu0 %v1455, 32
      %v1535 = vpop.permute.xlu0 %1534
      %1536 = vrot.lane.b32.xlu0 %v1456, 32
      %v1537 = vpop.permute.xlu0 %1536
      %1538 = vrot.lane.b32.xlu0 %v1457, 32
      %v1539 = vpop.permute.xlu0 %1538
      %1540 = vrot.lane.b32.xlu0 %v1458, 32
      %v1541 = vpop.permute.xlu0 %1540
      %1542 = vrot.lane.b32.xlu0 %v1459, 32
      %v1543 = vpop.permute.xlu0 %1542
      %1544 = vrot.lane.b32.xlu0 %v1460, 32
      %v1545 = vpop.permute.xlu0 %1544
      %1546 = vrot.lane.b32.xlu0 %v1461, 32
      %v1547 = vpop.permute.xlu0 %1546
      %1548 = vrot.lane.b32.xlu0 %v1462, 32
      %v1549 = vpop.permute.xlu0 %1548
      %vm1579 = vcmask 392448
      %1580 = vst.msk [vmem:[#allocation3] sm:$0xff] %vm1579, %v1493
      %1581 = vst.msk [vmem:[#allocation3 + $0x10] sm:$0xff] %vm1579, %v1495
      %1582 = vst.msk [vmem:[#allocation3 + $0x20] sm:$0xff] %vm1579, %v1497
      %1583 = vst.msk [vmem:[#allocation3 + $0x30] sm:$0xff] %vm1579, %v1499
      %1584 = vst.msk [vmem:[#allocation3 + $0x40] sm:$0xff] %vm1579, %v1501
      %1585 = vst.msk [vmem:[#allocation3 + $0x50] sm:$0xff] %vm1579, %v1503
      %1586 = vst.msk [vmem:[#allocation3 + $0x60] sm:$0xff] %vm1579, %v1505
      %1587 = vst.msk [vmem:[#allocation3 + $0x70] sm:$0xff] %vm1579, %v1507
      %1588 = vst.msk [vmem:[#allocation3 + $0x80] sm:$0xff] %vm1579, %v1509
      %1589 = vst.msk [vmem:[#allocation3 + $0x90] sm:$0xff] %vm1579, %v1511
      %1590 = vst.msk [vmem:[#allocation3 + $0xa0] sm:$0xff] %vm1579, %v1513
      %1591 = vst.msk [vmem:[#allocation3 + $0xb0] sm:$0xff] %vm1579, %v1515
      %1592 = vst.msk [vmem:[#allocation3 + $0xc0] sm:$0xff] %vm1579, %v1517
      %1593 = vst.msk [vmem:[#allocation3 + $0xd0] sm:$0xff] %vm1579, %v1519
      %1594 = vst.msk [vmem:[#allocation3 + $0xe0] sm:$0xff] %vm1579, %v1521
      %1595 = vst.msk [vmem:[#allocation3 + $0xf0] sm:$0xff] %vm1579, %v1523
      %1596 = vst.msk [vmem:[#allocation3 + $0x100] sm:$0xff] %vm1579, %v1525
      %1597 = vst.msk [vmem:[#allocation3 + $0x110] sm:$0xff] %vm1579, %v1527
      %1598 = vst.msk [vmem:[#allocation3 + $0x120] sm:$0xff] %vm1579, %v1529
      %1599 = vst.msk [vmem:[#allocation3 + $0x130] sm:$0xff] %vm1579, %v1531
      %1600 = vst.msk [vmem:[#allocation3 + $0x140] sm:$0xff] %vm1579, %v1533
      %1601 = vst.msk [vmem:[#allocation3 + $0x150] sm:$0xff] %vm1579, %v1535
      %1602 = vst.msk [vmem:[#allocation3 + $0x160] sm:$0xff] %vm1579, %v1537
      %1603 = vst.msk [vmem:[#allocation3 + $0x170] sm:$0xff] %vm1579, %v1539
      %1604 = vst.msk [vmem:[#allocation3 + $0x180] sm:$0xff] %vm1579, %v1541
      %1605 = vst.msk [vmem:[#allocation3 + $0x190] sm:$0xff] %vm1579, %v1543
      %1606 = vst.msk [vmem:[#allocation3 + $0x1a0] sm:$0xff] %vm1579, %v1545
      %1607 = vst.msk [vmem:[#allocation3 + $0x1b0] sm:$0xff] %vm1579, %v1547
      %1608 = vst.msk [vmem:[#allocation3 + $0x1c0] sm:$0xff] %vm1579, %v1549
      %s1609 = sadd.s32 %s1185, 464
      %s1610 = sshra.s32 %s1609, 4
      %s1611 = sand.u32 %s1609, 15
      %s1612 = smul.addr %s1610, 8
      %s1613 = scalar_lea.vmem [#allocation2], %s1612
      %v1614 = vld [vmem:[%s1613] sm:$0xff]
      %v1615 = vld [vmem:[%s1613 + $0x8] sm:$0xff]
      %v1616 = vld [vmem:[%s1613 + $0x10] sm:$0xff]
      %v1617 = vld [vmem:[%s1613 + $0x18] sm:$0xff]
      %v1618 = vld [vmem:[%s1613 + $0x20] sm:$0xff]
      %v1619 = vld [vmem:[%s1613 + $0x28] sm:$0xff]
      %v1620 = vld [vmem:[%s1613 + $0x30] sm:$0xff]
      %v1621 = vld [vmem:[%s1613 + $0x38] sm:$0xff]
      %v1622 = vld [vmem:[%s1613 + $0x40] sm:$0xff]
      %v1623 = vld [vmem:[%s1613 + $0x48] sm:$0xff]
      %v1624 = vld [vmem:[%s1613 + $0x50] sm:$0xff]
      %v1625 = vld [vmem:[%s1613 + $0x58] sm:$0xff]
      %v1626 = vld [vmem:[%s1613 + $0x60] sm:$0xff]
      %v1627 = vld [vmem:[%s1613 + $0x68] sm:$0xff]
      %v1628 = vld [vmem:[%s1613 + $0x70] sm:$0xff]
      %v1629 = vld [vmem:[%s1613 + $0x78] sm:$0xff]
      %v1630 = vld [vmem:[%s1613 + $0x80] sm:$0xff]
      %v1631 = vld [vmem:[%s1613 + $0x88] sm:$0xff]
      %v1632 = vld [vmem:[%s1613 + $0x90] sm:$0xff]
      %v1633 = vld [vmem:[%s1613 + $0x98] sm:$0xff]
      %v1634 = vld [vmem:[%s1613 + $0xa0] sm:$0xff]
      %v1635 = vld [vmem:[%s1613 + $0xa8] sm:$0xff]
      %v1636 = vld [vmem:[%s1613 + $0xb0] sm:$0xff]
      %v1637 = vld [vmem:[%s1613 + $0xb8] sm:$0xff]
      %v1638 = vld [vmem:[%s1613 + $0xc0] sm:$0xff]
      %v1639 = vld [vmem:[%s1613 + $0xc8] sm:$0xff]
      %v1640 = vld [vmem:[%s1613 + $0xd0] sm:$0xff]
      %v1641 = vld [vmem:[%s1613 + $0xd8] sm:$0xff]
      %v1642 = vld [vmem:[%s1613 + $0xe0] sm:$0xff]
      %1672 = vrot.lane.b32.xlu0 %v1614, 48
      %v1673 = vpop.permute.xlu0 %1672
      %1674 = vrot.lane.b32.xlu0 %v1615, 48
      %v1675 = vpop.permute.xlu0 %1674
      %1676 = vrot.lane.b32.xlu0 %v1616, 48
      %v1677 = vpop.permute.xlu0 %1676
      %1678 = vrot.lane.b32.xlu0 %v1617, 48
      %v1679 = vpop.permute.xlu0 %1678
      %1680 = vrot.lane.b32.xlu0 %v1618, 48
      %v1681 = vpop.permute.xlu0 %1680
      %1682 = vrot.lane.b32.xlu0 %v1619, 48
      %v1683 = vpop.permute.xlu0 %1682
      %1684 = vrot.lane.b32.xlu0 %v1620, 48
      %v1685 = vpop.permute.xlu0 %1684
      %1686 = vrot.lane.b32.xlu0 %v1621, 48
      %v1687 = vpop.permute.xlu0 %1686
      %1688 = vrot.lane.b32.xlu0 %v1622, 48
      %v1689 = vpop.permute.xlu0 %1688
      %1690 = vrot.lane.b32.xlu0 %v1623, 48
      %v1691 = vpop.permute.xlu0 %1690
      %1692 = vrot.lane.b32.xlu0 %v1624, 48
      %v1693 = vpop.permute.xlu0 %1692
      %1694 = vrot.lane.b32.xlu0 %v1625, 48
      %v1695 = vpop.permute.xlu0 %1694
      %1696 = vrot.lane.b32.xlu0 %v1626, 48
      %v1697 = vpop.permute.xlu0 %1696
      %1698 = vrot.lane.b32.xlu0 %v1627, 48
      %v1699 = vpop.permute.xlu0 %1698
      %1700 = vrot.lane.b32.xlu0 %v1628, 48
      %v1701 = vpop.permute.xlu0 %1700
      %1702 = vrot.lane.b32.xlu0 %v1629, 48
      %v1703 = vpop.permute.xlu0 %1702
      %1704 = vrot.lane.b32.xlu0 %v1630, 48
      %v1705 = vpop.permute.xlu0 %1704
      %1706 = vrot.lane.b32.xlu0 %v1631, 48
      %v1707 = vpop.permute.xlu0 %1706
      %1708 = vrot.lane.b32.xlu0 %v1632, 48
      %v1709 = vpop.permute.xlu0 %1708
      %1710 = vrot.lane.b32.xlu0 %v1633, 48
      %v1711 = vpop.permute.xlu0 %1710
      %1712 = vrot.lane.b32.xlu0 %v1634, 48
      %v1713 = vpop.permute.xlu0 %1712
      %1714 = vrot.lane.b32.xlu0 %v1635, 48
      %v1715 = vpop.permute.xlu0 %1714
      %1716 = vrot.lane.b32.xlu0 %v1636, 48
      %v1717 = vpop.permute.xlu0 %1716
      %1718 = vrot.lane.b32.xlu0 %v1637, 48
      %v1719 = vpop.permute.xlu0 %1718
      %1720 = vrot.lane.b32.xlu0 %v1638, 48
      %v1721 = vpop.permute.xlu0 %1720
      %1722 = vrot.lane.b32.xlu0 %v1639, 48
      %v1723 = vpop.permute.xlu0 %1722
      %1724 = vrot.lane.b32.xlu0 %v1640, 48
      %v1725 = vpop.permute.xlu0 %1724
      %1726 = vrot.lane.b32.xlu0 %v1641, 48
      %v1727 = vpop.permute.xlu0 %1726
      %1728 = vrot.lane.b32.xlu0 %v1642, 48
      %v1729 = vpop.permute.xlu0 %1728
      %vm1759 = vcmask 523648
      %1760 = vst.msk [vmem:[#allocation3] sm:$0xff] %vm1759, %v1673
      %1761 = vst.msk [vmem:[#allocation3 + $0x10] sm:$0xff] %vm1759, %v1675
      %1762 = vst.msk [vmem:[#allocation3 + $0x20] sm:$0xff] %vm1759, %v1677
      %1763 = vst.msk [vmem:[#allocation3 + $0x30] sm:$0xff] %vm1759, %v1679
      %1764 = vst.msk [vmem:[#allocation3 + $0x40] sm:$0xff] %vm1759, %v1681
      %1765 = vst.msk [vmem:[#allocation3 + $0x50] sm:$0xff] %vm1759, %v1683
      %1766 = vst.msk [vmem:[#allocation3 + $0x60] sm:$0xff] %vm1759, %v1685
      %1767 = vst.msk [vmem:[#allocation3 + $0x70] sm:$0xff] %vm1759, %v1687
      %1768 = vst.msk [vmem:[#allocation3 + $0x80] sm:$0xff] %vm1759, %v1689
      %1769 = vst.msk [vmem:[#allocation3 + $0x90] sm:$0xff] %vm1759, %v1691
      %1770 = vst.msk [vmem:[#allocation3 + $0xa0] sm:$0xff] %vm1759, %v1693
      %1771 = vst.msk [vmem:[#allocation3 + $0xb0] sm:$0xff] %vm1759, %v1695
      %1772 = vst.msk [vmem:[#allocation3 + $0xc0] sm:$0xff] %vm1759, %v1697
      %1773 = vst.msk [vmem:[#allocation3 + $0xd0] sm:$0xff] %vm1759, %v1699
      %1774 = vst.msk [vmem:[#allocation3 + $0xe0] sm:$0xff] %vm1759, %v1701
      %1775 = vst.msk [vmem:[#allocation3 + $0xf0] sm:$0xff] %vm1759, %v1703
      %1776 = vst.msk [vmem:[#allocation3 + $0x100] sm:$0xff] %vm1759, %v1705
      %1777 = vst.msk [vmem:[#allocation3 + $0x110] sm:$0xff] %vm1759, %v1707
      %1778 = vst.msk [vmem:[#allocation3 + $0x120] sm:$0xff] %vm1759, %v1709
      %1779 = vst.msk [vmem:[#allocation3 + $0x130] sm:$0xff] %vm1759, %v1711
      %1780 = vst.msk [vmem:[#allocation3 + $0x140] sm:$0xff] %vm1759, %v1713
      %1781 = vst.msk [vmem:[#allocation3 + $0x150] sm:$0xff] %vm1759, %v1715
      %1782 = vst.msk [vmem:[#allocation3 + $0x160] sm:$0xff] %vm1759, %v1717
      %1783 = vst.msk [vmem:[#allocation3 + $0x170] sm:$0xff] %vm1759, %v1719
      %1784 = vst.msk [vmem:[#allocation3 + $0x180] sm:$0xff] %vm1759, %v1721
      %1785 = vst.msk [vmem:[#allocation3 + $0x190] sm:$0xff] %vm1759, %v1723
      %1786 = vst.msk [vmem:[#allocation3 + $0x1a0] sm:$0xff] %vm1759, %v1725
      %1787 = vst.msk [vmem:[#allocation3 + $0x1b0] sm:$0xff] %vm1759, %v1727
      %1788 = vst.msk [vmem:[#allocation3 + $0x1c0] sm:$0xff] %vm1759, %v1729
      %s1789 = sshra.s32 %s1186, 4
      %s1790 = sand.u32 %s1186, 15
      %s1791 = smul.addr %s1789, 8
      %s1792 = scalar_lea.vmem [#allocation2], %s1791
      %v1793 = vld [vmem:[%s1792] sm:$0xff]
      %v1794 = vld [vmem:[%s1792 + $0x8] sm:$0xff]
      %v1795 = vld [vmem:[%s1792 + $0x10] sm:$0xff]
      %v1796 = vld [vmem:[%s1792 + $0x18] sm:$0xff]
      %v1797 = vld [vmem:[%s1792 + $0x20] sm:$0xff]
      %v1798 = vld [vmem:[%s1792 + $0x28] sm:$0xff]
      %v1799 = vld [vmem:[%s1792 + $0x30] sm:$0xff]
      %v1800 = vld [vmem:[%s1792 + $0x38] sm:$0xff]
      %v1801 = vld [vmem:[%s1792 + $0x40] sm:$0xff]
      %v1802 = vld [vmem:[%s1792 + $0x48] sm:$0xff]
      %v1803 = vld [vmem:[%s1792 + $0x50] sm:$0xff]
      %v1804 = vld [vmem:[%s1792 + $0x58] sm:$0xff]
      %v1805 = vld [vmem:[%s1792 + $0x60] sm:$0xff]
      %v1806 = vld [vmem:[%s1792 + $0x68] sm:$0xff]
      %v1807 = vld [vmem:[%s1792 + $0x70] sm:$0xff]
      %v1808 = vld [vmem:[%s1792 + $0x78] sm:$0xff]
      %v1809 = vld [vmem:[%s1792 + $0x80] sm:$0xff]
      %v1810 = vld [vmem:[%s1792 + $0x88] sm:$0xff]
      %v1811 = vld [vmem:[%s1792 + $0x90] sm:$0xff]
      %v1812 = vld [vmem:[%s1792 + $0x98] sm:$0xff]
      %v1813 = vld [vmem:[%s1792 + $0xa0] sm:$0xff]
      %v1814 = vld [vmem:[%s1792 + $0xa8] sm:$0xff]
      %v1815 = vld [vmem:[%s1792 + $0xb0] sm:$0xff]
      %v1816 = vld [vmem:[%s1792 + $0xb8] sm:$0xff]
      %v1817 = vld [vmem:[%s1792 + $0xc0] sm:$0xff]
      %v1818 = vld [vmem:[%s1792 + $0xc8] sm:$0xff]
      %v1819 = vld [vmem:[%s1792 + $0xd0] sm:$0xff]
      %v1820 = vld [vmem:[%s1792 + $0xd8] sm:$0xff]
      %v1821 = vld [vmem:[%s1792 + $0xe0] sm:$0xff]
      %1851 = vrot.lane.b32.xlu0 %v1793, 64
      %v1852 = vpop.permute.xlu0 %1851
      %1853 = vrot.lane.b32.xlu0 %v1794, 64
      %v1854 = vpop.permute.xlu0 %1853
      %1855 = vrot.lane.b32.xlu0 %v1795, 64
      %v1856 = vpop.permute.xlu0 %1855
      %1857 = vrot.lane.b32.xlu0 %v1796, 64
      %v1858 = vpop.permute.xlu0 %1857
      %1859 = vrot.lane.b32.xlu0 %v1797, 64
      %v1860 = vpop.permute.xlu0 %1859
      %1861 = vrot.lane.b32.xlu0 %v1798, 64
      %v1862 = vpop.permute.xlu0 %1861
      %1863 = vrot.lane.b32.xlu0 %v1799, 64
      %v1864 = vpop.permute.xlu0 %1863
      %1865 = vrot.lane.b32.xlu0 %v1800, 64
      %v1866 = vpop.permute.xlu0 %1865
      %1867 = vrot.lane.b32.xlu0 %v1801, 64
      %v1868 = vpop.permute.xlu0 %1867
      %1869 = vrot.lane.b32.xlu0 %v1802, 64
      %v1870 = vpop.permute.xlu0 %1869
      %1871 = vrot.lane.b32.xlu0 %v1803, 64
      %v1872 = vpop.permute.xlu0 %1871
      %1873 = vrot.lane.b32.xlu0 %v1804, 64
      %v1874 = vpop.permute.xlu0 %1873
      %1875 = vrot.lane.b32.xlu0 %v1805, 64
      %v1876 = vpop.permute.xlu0 %1875
      %1877 = vrot.lane.b32.xlu0 %v1806, 64
      %v1878 = vpop.permute.xlu0 %1877
      %1879 = vrot.lane.b32.xlu0 %v1807, 64
      %v1880 = vpop.permute.xlu0 %1879
      %1881 = vrot.lane.b32.xlu0 %v1808, 64
      %v1882 = vpop.permute.xlu0 %1881
      %1883 = vrot.lane.b32.xlu0 %v1809, 64
      %v1884 = vpop.permute.xlu0 %1883
      %1885 = vrot.lane.b32.xlu0 %v1810, 64
      %v1886 = vpop.permute.xlu0 %1885
      %1887 = vrot.lane.b32.xlu0 %v1811, 64
      %v1888 = vpop.permute.xlu0 %1887
      %1889 = vrot.lane.b32.xlu0 %v1812, 64
      %v1890 = vpop.permute.xlu0 %1889
      %1891 = vrot.lane.b32.xlu0 %v1813, 64
      %v1892 = vpop.permute.xlu0 %1891
      %1893 = vrot.lane.b32.xlu0 %v1814, 64
      %v1894 = vpop.permute.xlu0 %1893
      %1895 = vrot.lane.b32.xlu0 %v1815, 64
      %v1896 = vpop.permute.xlu0 %1895
      %1897 = vrot.lane.b32.xlu0 %v1816, 64
      %v1898 = vpop.permute.xlu0 %1897
      %1899 = vrot.lane.b32.xlu0 %v1817, 64
      %v1900 = vpop.permute.xlu0 %1899
      %1901 = vrot.lane.b32.xlu0 %v1818, 64
      %v1902 = vpop.permute.xlu0 %1901
      %1903 = vrot.lane.b32.xlu0 %v1819, 64
      %v1904 = vpop.permute.xlu0 %1903
      %1905 = vrot.lane.b32.xlu0 %v1820, 64
      %v1906 = vpop.permute.xlu0 %1905
      %1907 = vrot.lane.b32.xlu0 %v1821, 64
      %v1908 = vpop.permute.xlu0 %1907
      %vm1938 = vcmask 654848
      %1939 = vst.msk [vmem:[#allocation3] sm:$0xff] %vm1938, %v1852
      %1940 = vst.msk [vmem:[#allocation3 + $0x10] sm:$0xff] %vm1938, %v1854
      %1941 = vst.msk [vmem:[#allocation3 + $0x20] sm:$0xff] %vm1938, %v1856
      %1942 = vst.msk [vmem:[#allocation3 + $0x30] sm:$0xff] %vm1938, %v1858
      %1943 = vst.msk [vmem:[#allocation3 + $0x40] sm:$0xff] %vm1938, %v1860
      %1944 = vst.msk [vmem:[#allocation3 + $0x50] sm:$0xff] %vm1938, %v1862
      %1945 = vst.msk [vmem:[#allocation3 + $0x60] sm:$0xff] %vm1938, %v1864
      %1946 = vst.msk [vmem:[#allocation3 + $0x70] sm:$0xff] %vm1938, %v1866
      %1947 = vst.msk [vmem:[#allocation3 + $0x80] sm:$0xff] %vm1938, %v1868
      %1948 = vst.msk [vmem:[#allocation3 + $0x90] sm:$0xff] %vm1938, %v1870
      %1949 = vst.msk [vmem:[#allocation3 + $0xa0] sm:$0xff] %vm1938, %v1872
      %1950 = vst.msk [vmem:[#allocation3 + $0xb0] sm:$0xff] %vm1938, %v1874
      %1951 = vst.msk [vmem:[#allocation3 + $0xc0] sm:$0xff] %vm1938, %v1876
      %1952 = vst.msk [vmem:[#allocation3 + $0xd0] sm:$0xff] %vm1938, %v1878
      %1953 = vst.msk [vmem:[#allocation3 + $0xe0] sm:$0xff] %vm1938, %v1880
      %1954 = vst.msk [vmem:[#allocation3 + $0xf0] sm:$0xff] %vm1938, %v1882
      %1955 = vst.msk [vmem:[#allocation3 + $0x100] sm:$0xff] %vm1938, %v1884
      %1956 = vst.msk [vmem:[#allocation3 + $0x110] sm:$0xff] %vm1938, %v1886
      %1957 = vst.msk [vmem:[#allocation3 + $0x120] sm:$0xff] %vm1938, %v1888
      %1958 = vst.msk [vmem:[#allocation3 + $0x130] sm:$0xff] %vm1938, %v1890
      %1959 = vst.msk [vmem:[#allocation3 + $0x140] sm:$0xff] %vm1938, %v1892
      %1960 = vst.msk [vmem:[#allocation3 + $0x150] sm:$0xff] %vm1938, %v1894
      %1961 = vst.msk [vmem:[#allocation3 + $0x160] sm:$0xff] %vm1938, %v1896
      %1962 = vst.msk [vmem:[#allocation3 + $0x170] sm:$0xff] %vm1938, %v1898
      %1963 = vst.msk [vmem:[#allocation3 + $0x180] sm:$0xff] %vm1938, %v1900
      %1964 = vst.msk [vmem:[#allocation3 + $0x190] sm:$0xff] %vm1938, %v1902
      %1965 = vst.msk [vmem:[#allocation3 + $0x1a0] sm:$0xff] %vm1938, %v1904
      %1966 = vst.msk [vmem:[#allocation3 + $0x1b0] sm:$0xff] %vm1938, %v1906
      %1967 = vst.msk [vmem:[#allocation3 + $0x1c0] sm:$0xff] %vm1938, %v1908
      %s1968 = sadd.s32 %s1185, 496
      %s1969 = sshra.s32 %s1968, 4
      %s1970 = sand.u32 %s1968, 15
      %s1971 = smul.addr %s1969, 8
      %s1972 = scalar_lea.vmem [#allocation2], %s1971
      %v1973 = vld [vmem:[%s1972] sm:$0xff]
      %v1974 = vld [vmem:[%s1972 + $0x8] sm:$0xff]
      %v1975 = vld [vmem:[%s1972 + $0x10] sm:$0xff]
      %v1976 = vld [vmem:[%s1972 + $0x18] sm:$0xff]
      %v1977 = vld [vmem:[%s1972 + $0x20] sm:$0xff]
      %v1978 = vld [vmem:[%s1972 + $0x28] sm:$0xff]
      %v1979 = vld [vmem:[%s1972 + $0x30] sm:$0xff]
      %v1980 = vld [vmem:[%s1972 + $0x38] sm:$0xff]
      %v1981 = vld [vmem:[%s1972 + $0x40] sm:$0xff]
      %v1982 = vld [vmem:[%s1972 + $0x48] sm:$0xff]
      %v1983 = vld [vmem:[%s1972 + $0x50] sm:$0xff]
      %v1984 = vld [vmem:[%s1972 + $0x58] sm:$0xff]
      %v1985 = vld [vmem:[%s1972 + $0x60] sm:$0xff]
      %v1986 = vld [vmem:[%s1972 + $0x68] sm:$0xff]
      %v1987 = vld [vmem:[%s1972 + $0x70] sm:$0xff]
      %v1988 = vld [vmem:[%s1972 + $0x78] sm:$0xff]
      %v1989 = vld [vmem:[%s1972 + $0x80] sm:$0xff]
      %v1990 = vld [vmem:[%s1972 + $0x88] sm:$0xff]
      %v1991 = vld [vmem:[%s1972 + $0x90] sm:$0xff]
      %v1992 = vld [vmem:[%s1972 + $0x98] sm:$0xff]
      %v1993 = vld [vmem:[%s1972 + $0xa0] sm:$0xff]
      %v1994 = vld [vmem:[%s1972 + $0xa8] sm:$0xff]
      %v1995 = vld [vmem:[%s1972 + $0xb0] sm:$0xff]
      %v1996 = vld [vmem:[%s1972 + $0xb8] sm:$0xff]
      %v1997 = vld [vmem:[%s1972 + $0xc0] sm:$0xff]
      %v1998 = vld [vmem:[%s1972 + $0xc8] sm:$0xff]
      %v1999 = vld [vmem:[%s1972 + $0xd0] sm:$0xff]
      %v2000 = vld [vmem:[%s1972 + $0xd8] sm:$0xff]
      %v2001 = vld [vmem:[%s1972 + $0xe0] sm:$0xff]
      %2031 = vrot.lane.b32.xlu0 %v1973, 80
      %v2032 = vpop.permute.xlu0 %2031
      %2033 = vrot.lane.b32.xlu0 %v1974, 80
      %v2034 = vpop.permute.xlu0 %2033
      %2035 = vrot.lane.b32.xlu0 %v1975, 80
      %v2036 = vpop.permute.xlu0 %2035
      %2037 = vrot.lane.b32.xlu0 %v1976, 80
      %v2038 = vpop.permute.xlu0 %2037
      %2039 = vrot.lane.b32.xlu0 %v1977, 80
      %v2040 = vpop.permute.xlu0 %2039
      %2041 = vrot.lane.b32.xlu0 %v1978, 80
      %v2042 = vpop.permute.xlu0 %2041
      %2043 = vrot.lane.b32.xlu0 %v1979, 80
      %v2044 = vpop.permute.xlu0 %2043
      %2045 = vrot.lane.b32.xlu0 %v1980, 80
      %v2046 = vpop.permute.xlu0 %2045
      %2047 = vrot.lane.b32.xlu0 %v1981, 80
      %v2048 = vpop.permute.xlu0 %2047
      %2049 = vrot.lane.b32.xlu0 %v1982, 80
      %v2050 = vpop.permute.xlu0 %2049
      %2051 = vrot.lane.b32.xlu0 %v1983, 80
      %v2052 = vpop.permute.xlu0 %2051
      %2053 = vrot.lane.b32.xlu0 %v1984, 80
      %v2054 = vpop.permute.xlu0 %2053
      %2055 = vrot.lane.b32.xlu0 %v1985, 80
      %v2056 = vpop.permute.xlu0 %2055
      %2057 = vrot.lane.b32.xlu0 %v1986, 80
      %v2058 = vpop.permute.xlu0 %2057
      %2059 = vrot.lane.b32.xlu0 %v1987, 80
      %v2060 = vpop.permute.xlu0 %2059
      %2061 = vrot.lane.b32.xlu0 %v1988, 80
      %v2062 = vpop.permute.xlu0 %2061
      %2063 = vrot.lane.b32.xlu0 %v1989, 80
      %v2064 = vpop.permute.xlu0 %2063
      %2065 = vrot.lane.b32.xlu0 %v1990, 80
      %v2066 = vpop.permute.xlu0 %2065
      %2067 = vrot.lane.b32.xlu0 %v1991, 80
      %v2068 = vpop.permute.xlu0 %2067
      %2069 = vrot.lane.b32.xlu0 %v1992, 80
      %v2070 = vpop.permute.xlu0 %2069
      %2071 = vrot.lane.b32.xlu0 %v1993, 80
      %v2072 = vpop.permute.xlu0 %2071
      %2073 = vrot.lane.b32.xlu0 %v1994, 80
      %v2074 = vpop.permute.xlu0 %2073
      %2075 = vrot.lane.b32.xlu0 %v1995, 80
      %v2076 = vpop.permute.xlu0 %2075
      %2077 = vrot.lane.b32.xlu0 %v1996, 80
      %v2078 = vpop.permute.xlu0 %2077
      %2079 = vrot.lane.b32.xlu0 %v1997, 80
      %v2080 = vpop.permute.xlu0 %2079
      %2081 = vrot.lane.b32.xlu0 %v1998, 80
      %v2082 = vpop.permute.xlu0 %2081
      %2083 = vrot.lane.b32.xlu0 %v1999, 80
      %v2084 = vpop.permute.xlu0 %2083
      %2085 = vrot.lane.b32.xlu0 %v2000, 80
      %v2086 = vpop.permute.xlu0 %2085
      %2087 = vrot.lane.b32.xlu0 %v2001, 80
      %v2088 = vpop.permute.xlu0 %2087
      %vm2118 = vcmask 786048
      %2119 = vst.msk [vmem:[#allocation3] sm:$0xff] %vm2118, %v2032
      %2120 = vst.msk [vmem:[#allocation3 + $0x10] sm:$0xff] %vm2118, %v2034
      %2121 = vst.msk [vmem:[#allocation3 + $0x20] sm:$0xff] %vm2118, %v2036
      %2122 = vst.msk [vmem:[#allocation3 + $0x30] sm:$0xff] %vm2118, %v2038
      %2123 = vst.msk [vmem:[#allocation3 + $0x40] sm:$0xff] %vm2118, %v2040
      %2124 = vst.msk [vmem:[#allocation3 + $0x50] sm:$0xff] %vm2118, %v2042
      %2125 = vst.msk [vmem:[#allocation3 + $0x60] sm:$0xff] %vm2118, %v2044
      %2126 = vst.msk [vmem:[#allocation3 + $0x70] sm:$0xff] %vm2118, %v2046
      %2127 = vst.msk [vmem:[#allocation3 + $0x80] sm:$0xff] %vm2118, %v2048
      %2128 = vst.msk [vmem:[#allocation3 + $0x90] sm:$0xff] %vm2118, %v2050
      %2129 = vst.msk [vmem:[#allocation3 + $0xa0] sm:$0xff] %vm2118, %v2052
      %2130 = vst.msk [vmem:[#allocation3 + $0xb0] sm:$0xff] %vm2118, %v2054
      %2131 = vst.msk [vmem:[#allocation3 + $0xc0] sm:$0xff] %vm2118, %v2056
      %2132 = vst.msk [vmem:[#allocation3 + $0xd0] sm:$0xff] %vm2118, %v2058
      %2133 = vst.msk [vmem:[#allocation3 + $0xe0] sm:$0xff] %vm2118, %v2060
      %2134 = vst.msk [vmem:[#allocation3 + $0xf0] sm:$0xff] %vm2118, %v2062
      %2135 = vst.msk [vmem:[#allocation3 + $0x100] sm:$0xff] %vm2118, %v2064
      %2136 = vst.msk [vmem:[#allocation3 + $0x110] sm:$0xff] %vm2118, %v2066
      %2137 = vst.msk [vmem:[#allocation3 + $0x120] sm:$0xff] %vm2118, %v2068
      %2138 = vst.msk [vmem:[#allocation3 + $0x130] sm:$0xff] %vm2118, %v2070
      %2139 = vst.msk [vmem:[#allocation3 + $0x140] sm:$0xff] %vm2118, %v2072
      %2140 = vst.msk [vmem:[#allocation3 + $0x150] sm:$0xff] %vm2118, %v2074
      %2141 = vst.msk [vmem:[#allocation3 + $0x160] sm:$0xff] %vm2118, %v2076
      %2142 = vst.msk [vmem:[#allocation3 + $0x170] sm:$0xff] %vm2118, %v2078
      %2143 = vst.msk [vmem:[#allocation3 + $0x180] sm:$0xff] %vm2118, %v2080
      %2144 = vst.msk [vmem:[#allocation3 + $0x190] sm:$0xff] %vm2118, %v2082
      %2145 = vst.msk [vmem:[#allocation3 + $0x1a0] sm:$0xff] %vm2118, %v2084
      %2146 = vst.msk [vmem:[#allocation3 + $0x1b0] sm:$0xff] %vm2118, %v2086
      %2147 = vst.msk [vmem:[#allocation3 + $0x1c0] sm:$0xff] %vm2118, %v2088
      %s2148 = sadd.s32 %s1185, 928
      %s2149 = sshra.s32 %s2148, 4
      %s2150 = sand.u32 %s2148, 15
      %s2151 = smul.addr %s2149, 8
      %s2152 = scalar_lea.vmem [#allocation2], %s2151
      %v2153 = vld [vmem:[%s2152] sm:$0xff]
      %v2154 = vld [vmem:[%s2152 + $0x8] sm:$0xff]
      %v2155 = vld [vmem:[%s2152 + $0x10] sm:$0xff]
      %v2156 = vld [vmem:[%s2152 + $0x18] sm:$0xff]
      %v2157 = vld [vmem:[%s2152 + $0x20] sm:$0xff]
      %v2158 = vld [vmem:[%s2152 + $0x28] sm:$0xff]
      %v2159 = vld [vmem:[%s2152 + $0x30] sm:$0xff]
      %v2160 = vld [vmem:[%s2152 + $0x38] sm:$0xff]
      %v2161 = vld [vmem:[%s2152 + $0x40] sm:$0xff]
      %v2162 = vld [vmem:[%s2152 + $0x48] sm:$0xff]
      %v2163 = vld [vmem:[%s2152 + $0x50] sm:$0xff]
      %v2164 = vld [vmem:[%s2152 + $0x58] sm:$0xff]
      %v2165 = vld [vmem:[%s2152 + $0x60] sm:$0xff]
      %v2166 = vld [vmem:[%s2152 + $0x68] sm:$0xff]
      %v2167 = vld [vmem:[%s2152 + $0x70] sm:$0xff]
      %v2168 = vld [vmem:[%s2152 + $0x78] sm:$0xff]
      %v2169 = vld [vmem:[%s2152 + $0x80] sm:$0xff]
      %v2170 = vld [vmem:[%s2152 + $0x88] sm:$0xff]
      %v2171 = vld [vmem:[%s2152 + $0x90] sm:$0xff]
      %v2172 = vld [vmem:[%s2152 + $0x98] sm:$0xff]
      %v2173 = vld [vmem:[%s2152 + $0xa0] sm:$0xff]
      %v2174 = vld [vmem:[%s2152 + $0xa8] sm:$0xff]
      %v2175 = vld [vmem:[%s2152 + $0xb0] sm:$0xff]
      %v2176 = vld [vmem:[%s2152 + $0xb8] sm:$0xff]
      %v2177 = vld [vmem:[%s2152 + $0xc0] sm:$0xff]
      %v2178 = vld [vmem:[%s2152 + $0xc8] sm:$0xff]
      %v2179 = vld [vmem:[%s2152 + $0xd0] sm:$0xff]
      %v2180 = vld [vmem:[%s2152 + $0xd8] sm:$0xff]
      %v2181 = vld [vmem:[%s2152 + $0xe0] sm:$0xff]
      %2211 = vrot.lane.b32.xlu0 %v2153, 96
      %v2212 = vpop.permute.xlu0 %2211
      %2213 = vrot.lane.b32.xlu0 %v2154, 96
      %v2214 = vpop.permute.xlu0 %2213
      %2215 = vrot.lane.b32.xlu0 %v2155, 96
      %v2216 = vpop.permute.xlu0 %2215
      %2217 = vrot.lane.b32.xlu0 %v2156, 96
      %v2218 = vpop.permute.xlu0 %2217
      %2219 = vrot.lane.b32.xlu0 %v2157, 96
      %v2220 = vpop.permute.xlu0 %2219
      %2221 = vrot.lane.b32.xlu0 %v2158, 96
      %v2222 = vpop.permute.xlu0 %2221
      %2223 = vrot.lane.b32.xlu0 %v2159, 96
      %v2224 = vpop.permute.xlu0 %2223
      %2225 = vrot.lane.b32.xlu0 %v2160, 96
      %v2226 = vpop.permute.xlu0 %2225
      %2227 = vrot.lane.b32.xlu0 %v2161, 96
      %v2228 = vpop.permute.xlu0 %2227
      %2229 = vrot.lane.b32.xlu0 %v2162, 96
      %v2230 = vpop.permute.xlu0 %2229
      %2231 = vrot.lane.b32.xlu0 %v2163, 96
      %v2232 = vpop.permute.xlu0 %2231
      %2233 = vrot.lane.b32.xlu0 %v2164, 96
      %v2234 = vpop.permute.xlu0 %2233
      %2235 = vrot.lane.b32.xlu0 %v2165, 96
      %v2236 = vpop.permute.xlu0 %2235
      %2237 = vrot.lane.b32.xlu0 %v2166, 96
      %v2238 = vpop.permute.xlu0 %2237
      %2239 = vrot.lane.b32.xlu0 %v2167, 96
      %v2240 = vpop.permute.xlu0 %2239
      %2241 = vrot.lane.b32.xlu0 %v2168, 96
      %v2242 = vpop.permute.xlu0 %2241
      %2243 = vrot.lane.b32.xlu0 %v2169, 96
      %v2244 = vpop.permute.xlu0 %2243
      %2245 = vrot.lane.b32.xlu0 %v2170, 96
      %v2246 = vpop.permute.xlu0 %2245
      %2247 = vrot.lane.b32.xlu0 %v2171, 96
      %v2248 = vpop.permute.xlu0 %2247
      %2249 = vrot.lane.b32.xlu0 %v2172, 96
      %v2250 = vpop.permute.xlu0 %2249
      %2251 = vrot.lane.b32.xlu0 %v2173, 96
      %v2252 = vpop.permute.xlu0 %2251
      %2253 = vrot.lane.b32.xlu0 %v2174, 96
      %v2254 = vpop.permute.xlu0 %2253
      %2255 = vrot.lane.b32.xlu0 %v2175, 96
      %v2256 = vpop.permute.xlu0 %2255
      %2257 = vrot.lane.b32.xlu0 %v2176, 96
      %v2258 = vpop.permute.xlu0 %2257
      %2259 = vrot.lane.b32.xlu0 %v2177, 96
      %v2260 = vpop.permute.xlu0 %2259
      %2261 = vrot.lane.b32.xlu0 %v2178, 96
      %v2262 = vpop.permute.xlu0 %2261
      %2263 = vrot.lane.b32.xlu0 %v2179, 96
      %v2264 = vpop.permute.xlu0 %2263
      %2265 = vrot.lane.b32.xlu0 %v2180, 96
      %v2266 = vpop.permute.xlu0 %2265
      %2267 = vrot.lane.b32.xlu0 %v2181, 96
      %v2268 = vpop.permute.xlu0 %2267
      %vm2298 = vcmask 917248
      %2299 = vst.msk [vmem:[#allocation3] sm:$0xff] %vm2298, %v2212
      %2300 = vst.msk [vmem:[#allocation3 + $0x10] sm:$0xff] %vm2298, %v2214
      %2301 = vst.msk [vmem:[#allocation3 + $0x20] sm:$0xff] %vm2298, %v2216
      %2302 = vst.msk [vmem:[#allocation3 + $0x30] sm:$0xff] %vm2298, %v2218
      %2303 = vst.msk [vmem:[#allocation3 + $0x40] sm:$0xff] %vm2298, %v2220
      %2304 = vst.msk [vmem:[#allocation3 + $0x50] sm:$0xff] %vm2298, %v2222
      %2305 = vst.msk [vmem:[#allocation3 + $0x60] sm:$0xff] %vm2298, %v2224
      %2306 = vst.msk [vmem:[#allocation3 + $0x70] sm:$0xff] %vm2298, %v2226
      %2307 = vst.msk [vmem:[#allocation3 + $0x80] sm:$0xff] %vm2298, %v2228
      %2308 = vst.msk [vmem:[#allocation3 + $0x90] sm:$0xff] %vm2298, %v2230
      %2309 = vst.msk [vmem:[#allocation3 + $0xa0] sm:$0xff] %vm2298, %v2232
      %2310 = vst.msk [vmem:[#allocation3 + $0xb0] sm:$0xff] %vm2298, %v2234
      %2311 = vst.msk [vmem:[#allocation3 + $0xc0] sm:$0xff] %vm2298, %v2236
      %2312 = vst.msk [vmem:[#allocation3 + $0xd0] sm:$0xff] %vm2298, %v2238
      %2313 = vst.msk [vmem:[#allocation3 + $0xe0] sm:$0xff] %vm2298, %v2240
      %2314 = vst.msk [vmem:[#allocation3 + $0xf0] sm:$0xff] %vm2298, %v2242
      %2315 = vst.msk [vmem:[#allocation3 + $0x100] sm:$0xff] %vm2298, %v2244
      %2316 = vst.msk [vmem:[#allocation3 + $0x110] sm:$0xff] %vm2298, %v2246
      %2317 = vst.msk [vmem:[#allocation3 + $0x120] sm:$0xff] %vm2298, %v2248
      %2318 = vst.msk [vmem:[#allocation3 + $0x130] sm:$0xff] %vm2298, %v2250
      %2319 = vst.msk [vmem:[#allocation3 + $0x140] sm:$0xff] %vm2298, %v2252
      %2320 = vst.msk [vmem:[#allocation3 + $0x150] sm:$0xff] %vm2298, %v2254
      %2321 = vst.msk [vmem:[#allocation3 + $0x160] sm:$0xff] %vm2298, %v2256
      %2322 = vst.msk [vmem:[#allocation3 + $0x170] sm:$0xff] %vm2298, %v2258
      %2323 = vst.msk [vmem:[#allocation3 + $0x180] sm:$0xff] %vm2298, %v2260
      %2324 = vst.msk [vmem:[#allocation3 + $0x190] sm:$0xff] %vm2298, %v2262
      %2325 = vst.msk [vmem:[#allocation3 + $0x1a0] sm:$0xff] %vm2298, %v2264
      %2326 = vst.msk [vmem:[#allocation3 + $0x1b0] sm:$0xff] %vm2298, %v2266
      %2327 = vst.msk [vmem:[#allocation3 + $0x1c0] sm:$0xff] %vm2298, %v2268
      %s2328 = sadd.s32 %s1185, 944
      %s2329 = sshra.s32 %s2328, 4
      %s2330 = sand.u32 %s2328, 15
      %s2331 = smul.addr %s2329, 8
      %s2332 = scalar_lea.vmem [#allocation2], %s2331
      %v2333 = vld [vmem:[%s2332] sm:$0xff]
      %v2334 = vld [vmem:[%s2332 + $0x8] sm:$0xff]
      %v2335 = vld [vmem:[%s2332 + $0x10] sm:$0xff]
      %v2336 = vld [vmem:[%s2332 + $0x18] sm:$0xff]
      %v2337 = vld [vmem:[%s2332 + $0x20] sm:$0xff]
      %v2338 = vld [vmem:[%s2332 + $0x28] sm:$0xff]
      %v2339 = vld [vmem:[%s2332 + $0x30] sm:$0xff]
      %v2340 = vld [vmem:[%s2332 + $0x38] sm:$0xff]
      %v2341 = vld [vmem:[%s2332 + $0x40] sm:$0xff]
      %v2342 = vld [vmem:[%s2332 + $0x48] sm:$0xff]
      %v2343 = vld [vmem:[%s2332 + $0x50] sm:$0xff]
      %v2344 = vld [vmem:[%s2332 + $0x58] sm:$0xff]
      %v2345 = vld [vmem:[%s2332 + $0x60] sm:$0xff]
      %v2346 = vld [vmem:[%s2332 + $0x68] sm:$0xff]
      %v2347 = vld [vmem:[%s2332 + $0x70] sm:$0xff]
      %v2348 = vld [vmem:[%s2332 + $0x78] sm:$0xff]
      %v2349 = vld [vmem:[%s2332 + $0x80] sm:$0xff]
      %v2350 = vld [vmem:[%s2332 + $0x88] sm:$0xff]
      %v2351 = vld [vmem:[%s2332 + $0x90] sm:$0xff]
      %v2352 = vld [vmem:[%s2332 + $0x98] sm:$0xff]
      %v2353 = vld [vmem:[%s2332 + $0xa0] sm:$0xff]
      %v2354 = vld [vmem:[%s2332 + $0xa8] sm:$0xff]
      %v2355 = vld [vmem:[%s2332 + $0xb0] sm:$0xff]
      %v2356 = vld [vmem:[%s2332 + $0xb8] sm:$0xff]
      %v2357 = vld [vmem:[%s2332 + $0xc0] sm:$0xff]
      %v2358 = vld [vmem:[%s2332 + $0xc8] sm:$0xff]
      %v2359 = vld [vmem:[%s2332 + $0xd0] sm:$0xff]
      %v2360 = vld [vmem:[%s2332 + $0xd8] sm:$0xff]
      %v2361 = vld [vmem:[%s2332 + $0xe0] sm:$0xff]
      %2391 = vrot.lane.b32.xlu0 %v2333, 112
      %v2392 = vpop.permute.xlu0 %2391
      %2393 = vrot.lane.b32.xlu0 %v2334, 112
      %v2394 = vpop.permute.xlu0 %2393
      %2395 = vrot.lane.b32.xlu0 %v2335, 112
      %v2396 = vpop.permute.xlu0 %2395
      %2397 = vrot.lane.b32.xlu0 %v2336, 112
      %v2398 = vpop.permute.xlu0 %2397
      %2399 = vrot.lane.b32.xlu0 %v2337, 112
      %v2400 = vpop.permute.xlu0 %2399
      %2401 = vrot.lane.b32.xlu0 %v2338, 112
      %v2402 = vpop.permute.xlu0 %2401
      %2403 = vrot.lane.b32.xlu0 %v2339, 112
      %v2404 = vpop.permute.xlu0 %2403
      %2405 = vrot.lane.b32.xlu0 %v2340, 112
      %v2406 = vpop.permute.xlu0 %2405
      %2407 = vrot.lane.b32.xlu0 %v2341, 112
      %v2408 = vpop.permute.xlu0 %2407
      %2409 = vrot.lane.b32.xlu0 %v2342, 112
      %v2410 = vpop.permute.xlu0 %2409
      %2411 = vrot.lane.b32.xlu0 %v2343, 112
      %v2412 = vpop.permute.xlu0 %2411
      %2413 = vrot.lane.b32.xlu0 %v2344, 112
      %v2414 = vpop.permute.xlu0 %2413
      %2415 = vrot.lane.b32.xlu0 %v2345, 112
      %v2416 = vpop.permute.xlu0 %2415
      %2417 = vrot.lane.b32.xlu0 %v2346, 112
      %v2418 = vpop.permute.xlu0 %2417
      %2419 = vrot.lane.b32.xlu0 %v2347, 112
      %v2420 = vpop.permute.xlu0 %2419
      %2421 = vrot.lane.b32.xlu0 %v2348, 112
      %v2422 = vpop.permute.xlu0 %2421
      %2423 = vrot.lane.b32.xlu0 %v2349, 112
      %v2424 = vpop.permute.xlu0 %2423
      %2425 = vrot.lane.b32.xlu0 %v2350, 112
      %v2426 = vpop.permute.xlu0 %2425
      %2427 = vrot.lane.b32.xlu0 %v2351, 112
      %v2428 = vpop.permute.xlu0 %2427
      %2429 = vrot.lane.b32.xlu0 %v2352, 112
      %v2430 = vpop.permute.xlu0 %2429
      %2431 = vrot.lane.b32.xlu0 %v2353, 112
      %v2432 = vpop.permute.xlu0 %2431
      %2433 = vrot.lane.b32.xlu0 %v2354, 112
      %v2434 = vpop.permute.xlu0 %2433
      %2435 = vrot.lane.b32.xlu0 %v2355, 112
      %v2436 = vpop.permute.xlu0 %2435
      %2437 = vrot.lane.b32.xlu0 %v2356, 112
      %v2438 = vpop.permute.xlu0 %2437
      %2439 = vrot.lane.b32.xlu0 %v2357, 112
      %v2440 = vpop.permute.xlu0 %2439
      %2441 = vrot.lane.b32.xlu0 %v2358, 112
      %v2442 = vpop.permute.xlu0 %2441
      %2443 = vrot.lane.b32.xlu0 %v2359, 112
      %v2444 = vpop.permute.xlu0 %2443
      %2445 = vrot.lane.b32.xlu0 %v2360, 112
      %v2446 = vpop.permute.xlu0 %2445
      %2447 = vrot.lane.b32.xlu0 %v2361, 112
      %v2448 = vpop.permute.xlu0 %2447
      %vm2478 = vcmask 1048448
      %2479 = vst.msk [vmem:[#allocation3] sm:$0xff] %vm2478, %v2392
      %2480 = vst.msk [vmem:[#allocation3 + $0x10] sm:$0xff] %vm2478, %v2394
      %2481 = vst.msk [vmem:[#allocation3 + $0x20] sm:$0xff] %vm2478, %v2396
      %2482 = vst.msk [vmem:[#allocation3 + $0x30] sm:$0xff] %vm2478, %v2398
      %2483 = vst.msk [vmem:[#allocation3 + $0x40] sm:$0xff] %vm2478, %v2400
      %2484 = vst.msk [vmem:[#allocation3 + $0x50] sm:$0xff] %vm2478, %v2402
      %2485 = vst.msk [vmem:[#allocation3 + $0x60] sm:$0xff] %vm2478, %v2404
      %2486 = vst.msk [vmem:[#allocation3 + $0x70] sm:$0xff] %vm2478, %v2406
      %2487 = vst.msk [vmem:[#allocation3 + $0x80] sm:$0xff] %vm2478, %v2408
      %2488 = vst.msk [vmem:[#allocation3 + $0x90] sm:$0xff] %vm2478, %v2410
      %2489 = vst.msk [vmem:[#allocation3 + $0xa0] sm:$0xff] %vm2478, %v2412
      %2490 = vst.msk [vmem:[#allocation3 + $0xb0] sm:$0xff] %vm2478, %v2414
      %2491 = vst.msk [vmem:[#allocation3 + $0xc0] sm:$0xff] %vm2478, %v2416
      %2492 = vst.msk [vmem:[#allocation3 + $0xd0] sm:$0xff] %vm2478, %v2418
      %2493 = vst.msk [vmem:[#allocation3 + $0xe0] sm:$0xff] %vm2478, %v2420
      %2494 = vst.msk [vmem:[#allocation3 + $0xf0] sm:$0xff] %vm2478, %v2422
      %2495 = vst.msk [vmem:[#allocation3 + $0x100] sm:$0xff] %vm2478, %v2424
      %2496 = vst.msk [vmem:[#allocation3 + $0x110] sm:$0xff] %vm2478, %v2426
      %2497 = vst.msk [vmem:[#allocation3 + $0x120] sm:$0xff] %vm2478, %v2428
      %2498 = vst.msk [vmem:[#allocation3 + $0x130] sm:$0xff] %vm2478, %v2430
      %2499 = vst.msk [vmem:[#allocation3 + $0x140] sm:$0xff] %vm2478, %v2432
      %2500 = vst.msk [vmem:[#allocation3 + $0x150] sm:$0xff] %vm2478, %v2434
      %2501 = vst.msk [vmem:[#allocation3 + $0x160] sm:$0xff] %vm2478, %v2436
      %2502 = vst.msk [vmem:[#allocation3 + $0x170] sm:$0xff] %vm2478, %v2438
      %2503 = vst.msk [vmem:[#allocation3 + $0x180] sm:$0xff] %vm2478, %v2440
      %2504 = vst.msk [vmem:[#allocation3 + $0x190] sm:$0xff] %vm2478, %v2442
      %2505 = vst.msk [vmem:[#allocation3 + $0x1a0] sm:$0xff] %vm2478, %v2444
      %2506 = vst.msk [vmem:[#allocation3 + $0x1b0] sm:$0xff] %vm2478, %v2446
      %2507 = vst.msk [vmem:[#allocation3 + $0x1c0] sm:$0xff] %vm2478, %v2448
      %s2508 = sadd.s32 %s1185, 960
      %s2509 = sshra.s32 %s2508, 4
      %s2510 = sand.u32 %s2508, 15
      %s2511 = smul.addr %s2509, 8
      %s2512 = scalar_lea.vmem [#allocation2], %s2511
      %v2513 = vld [vmem:[%s2512] sm:$0xff]
      %v2514 = vld [vmem:[%s2512 + $0x8] sm:$0xff]
      %v2515 = vld [vmem:[%s2512 + $0x10] sm:$0xff]
      %v2516 = vld [vmem:[%s2512 + $0x18] sm:$0xff]
      %v2517 = vld [vmem:[%s2512 + $0x20] sm:$0xff]
      %v2518 = vld [vmem:[%s2512 + $0x28] sm:$0xff]
      %v2519 = vld [vmem:[%s2512 + $0x30] sm:$0xff]
      %v2520 = vld [vmem:[%s2512 + $0x38] sm:$0xff]
      %v2521 = vld [vmem:[%s2512 + $0x40] sm:$0xff]
      %v2522 = vld [vmem:[%s2512 + $0x48] sm:$0xff]
      %v2523 = vld [vmem:[%s2512 + $0x50] sm:$0xff]
      %v2524 = vld [vmem:[%s2512 + $0x58] sm:$0xff]
      %v2525 = vld [vmem:[%s2512 + $0x60] sm:$0xff]
      %v2526 = vld [vmem:[%s2512 + $0x68] sm:$0xff]
      %v2527 = vld [vmem:[%s2512 + $0x70] sm:$0xff]
      %v2528 = vld [vmem:[%s2512 + $0x78] sm:$0xff]
      %v2529 = vld [vmem:[%s2512 + $0x80] sm:$0xff]
      %v2530 = vld [vmem:[%s2512 + $0x88] sm:$0xff]
      %v2531 = vld [vmem:[%s2512 + $0x90] sm:$0xff]
      %v2532 = vld [vmem:[%s2512 + $0x98] sm:$0xff]
      %v2533 = vld [vmem:[%s2512 + $0xa0] sm:$0xff]
      %v2534 = vld [vmem:[%s2512 + $0xa8] sm:$0xff]
      %v2535 = vld [vmem:[%s2512 + $0xb0] sm:$0xff]
      %v2536 = vld [vmem:[%s2512 + $0xb8] sm:$0xff]
      %v2537 = vld [vmem:[%s2512 + $0xc0] sm:$0xff]
      %v2538 = vld [vmem:[%s2512 + $0xc8] sm:$0xff]
      %v2539 = vld [vmem:[%s2512 + $0xd0] sm:$0xff]
      %v2540 = vld [vmem:[%s2512 + $0xd8] sm:$0xff]
      %v2541 = vld [vmem:[%s2512 + $0xe0] sm:$0xff]
      %2542 = vst.msk [vmem:[#allocation3 + $0x8] sm:$0xff] %vm99, %v2513
      %2543 = vst.msk [vmem:[#allocation3 + $0x18] sm:$0xff] %vm99, %v2514
      %2544 = vst.msk [vmem:[#allocation3 + $0x28] sm:$0xff] %vm99, %v2515
      %2545 = vst.msk [vmem:[#allocation3 + $0x38] sm:$0xff] %vm99, %v2516
      %2546 = vst.msk [vmem:[#allocation3 + $0x48] sm:$0xff] %vm99, %v2517
      %2547 = vst.msk [vmem:[#allocation3 + $0x58] sm:$0xff] %vm99, %v2518
      %2548 = vst.msk [vmem:[#allocation3 + $0x68] sm:$0xff] %vm99, %v2519
      %2549 = vst.msk [vmem:[#allocation3 + $0x78] sm:$0xff] %vm99, %v2520
      %2550 = vst.msk [vmem:[#allocation3 + $0x88] sm:$0xff] %vm99, %v2521
      %2551 = vst.msk [vmem:[#allocation3 + $0x98] sm:$0xff] %vm99, %v2522
      %2552 = vst.msk [vmem:[#allocation3 + $0xa8] sm:$0xff] %vm99, %v2523
      %2553 = vst.msk [vmem:[#allocation3 + $0xb8] sm:$0xff] %vm99, %v2524
      %2554 = vst.msk [vmem:[#allocation3 + $0xc8] sm:$0xff] %vm99, %v2525
      %2555 = vst.msk [vmem:[#allocation3 + $0xd8] sm:$0xff] %vm99, %v2526
      %2556 = vst.msk [vmem:[#allocation3 + $0xe8] sm:$0xff] %vm99, %v2527
      %2557 = vst.msk [vmem:[#allocation3 + $0xf8] sm:$0xff] %vm99, %v2528
      %2558 = vst.msk [vmem:[#allocation3 + $0x108] sm:$0xff] %vm99, %v2529
      %2559 = vst.msk [vmem:[#allocation3 + $0x118] sm:$0xff] %vm99, %v2530
      %2560 = vst.msk [vmem:[#allocation3 + $0x128] sm:$0xff] %vm99, %v2531
      %2561 = vst.msk [vmem:[#allocation3 + $0x138] sm:$0xff] %vm99, %v2532
      %2562 = vst.msk [vmem:[#allocation3 + $0x148] sm:$0xff] %vm99, %v2533
      %2563 = vst.msk [vmem:[#allocation3 + $0x158] sm:$0xff] %vm99, %v2534
      %2564 = vst.msk [vmem:[#allocation3 + $0x168] sm:$0xff] %vm99, %v2535
      %2565 = vst.msk [vmem:[#allocation3 + $0x178] sm:$0xff] %vm99, %v2536
      %2566 = vst.msk [vmem:[#allocation3 + $0x188] sm:$0xff] %vm99, %v2537
      %2567 = vst.msk [vmem:[#allocation3 + $0x198] sm:$0xff] %vm99, %v2538
      %2568 = vst.msk [vmem:[#allocation3 + $0x1a8] sm:$0xff] %vm99, %v2539
      %2569 = vst.msk [vmem:[#allocation3 + $0x1b8] sm:$0xff] %vm99, %v2540
      %2570 = vst.msk [vmem:[#allocation3 + $0x1c8] sm:$0xff] %vm99, %v2541
      %v2571 = vld [vmem:[#allocation3] sm:$0xff]
      %v2572 = vld [vmem:[#allocation3 + $0x8] sm:$0xff]
      %v2573 = vld [vmem:[#allocation3 + $0x10] sm:$0xff]
      %v2574 = vld [vmem:[#allocation3 + $0x18] sm:$0xff]
      %v2575 = vld [vmem:[#allocation3 + $0x20] sm:$0xff]
      %v2576 = vld [vmem:[#allocation3 + $0x28] sm:$0xff]
      %v2577 = vld [vmem:[#allocation3 + $0x30] sm:$0xff]
      %v2578 = vld [vmem:[#allocation3 + $0x38] sm:$0xff]
      %v2579 = vld [vmem:[#allocation3 + $0x40] sm:$0xff]
      %v2580 = vld [vmem:[#allocation3 + $0x48] sm:$0xff]
      %v2581 = vld [vmem:[#allocation3 + $0x50] sm:$0xff]
      %v2582 = vld [vmem:[#allocation3 + $0x58] sm:$0xff]
      %v2583 = vld [vmem:[#allocation3 + $0x60] sm:$0xff]
      %v2584 = vld [vmem:[#allocation3 + $0x68] sm:$0xff]
      %v2585 = vld [vmem:[#allocation3 + $0x70] sm:$0xff]
      %v2586 = vld [vmem:[#allocation3 + $0x78] sm:$0xff]
      %v2587 = vld [vmem:[#allocation3 + $0x80] sm:$0xff]
      %v2588 = vld [vmem:[#allocation3 + $0x88] sm:$0xff]
      %v2589 = vld [vmem:[#allocation3 + $0x90] sm:$0xff]
      %v2590 = vld [vmem:[#allocation3 + $0x98] sm:$0xff]
      %v2591 = vld [vmem:[#allocation3 + $0xa0] sm:$0xff]
      %v2592 = vld [vmem:[#allocation3 + $0xa8] sm:$0xff]
      %v2593 = vld [vmem:[#allocation3 + $0xb0] sm:$0xff]
      %v2594 = vld [vmem:[#allocation3 + $0xb8] sm:$0xff]
      %v2595 = vld [vmem:[#allocation3 + $0xc0] sm:$0xff]
      %v2596 = vld [vmem:[#allocation3 + $0xc8] sm:$0xff]
      %v2597 = vld [vmem:[#allocation3 + $0xd0] sm:$0xff]
      %v2598 = vld [vmem:[#allocation3 + $0xd8] sm:$0xff]
      %v2599 = vld [vmem:[#allocation3 + $0xe0] sm:$0xff]
      %v2600 = vld [vmem:[#allocation3 + $0xe8] sm:$0xff]
      %v2601 = vld [vmem:[#allocation3 + $0xf0] sm:$0xff]
      %v2602 = vld [vmem:[#allocation3 + $0xf8] sm:$0xff]
      %v2603 = vld [vmem:[#allocation3 + $0x100] sm:$0xff]
      %v2604 = vld [vmem:[#allocation3 + $0x108] sm:$0xff]
      %v2605 = vld [vmem:[#allocation3 + $0x110] sm:$0xff]
      %v2606 = vld [vmem:[#allocation3 + $0x118] sm:$0xff]
      %v2607 = vld [vmem:[#allocation3 + $0x120] sm:$0xff]
      %v2608 = vld [vmem:[#allocation3 + $0x128] sm:$0xff]
      %v2609 = vld [vmem:[#allocation3 + $0x130] sm:$0xff]
      %v2610 = vld [vmem:[#allocation3 + $0x138] sm:$0xff]
      %v2611 = vld [vmem:[#allocation3 + $0x140] sm:$0xff]
      %v2612 = vld [vmem:[#allocation3 + $0x148] sm:$0xff]
      %v2613 = vld [vmem:[#allocation3 + $0x150] sm:$0xff]
      %v2614 = vld [vmem:[#allocation3 + $0x158] sm:$0xff]
      %v2615 = vld [vmem:[#allocation3 + $0x160] sm:$0xff]
      %v2616 = vld [vmem:[#allocation3 + $0x168] sm:$0xff]
      %v2617 = vld [vmem:[#allocation3 + $0x170] sm:$0xff]
      %v2618 = vld [vmem:[#allocation3 + $0x178] sm:$0xff]
      %v2619 = vld [vmem:[#allocation3 + $0x180] sm:$0xff]
      %v2620 = vld [vmem:[#allocation3 + $0x188] sm:$0xff]
      %v2621 = vld [vmem:[#allocation3 + $0x190] sm:$0xff]
      %v2622 = vld [vmem:[#allocation3 + $0x198] sm:$0xff]
      %v2623 = vld [vmem:[#allocation3 + $0x1a0] sm:$0xff]
      %v2624 = vld [vmem:[#allocation3 + $0x1a8] sm:$0xff]
      %v2625 = vld [vmem:[#allocation3 + $0x1b0] sm:$0xff]
      %v2626 = vld [vmem:[#allocation3 + $0x1b8] sm:$0xff]
      %v2627 = vld [vmem:[#allocation3 + $0x1c0] sm:$0xff]
      %v2628 = vld [vmem:[#allocation3 + $0x1c8] sm:$0xff]
      %v2630 = vlaneseq
      %v2631 = vshrl.u32 %v2630, 7
      %v2632 = vsub.s32 0, %v2631
      %v2633 = vrot.slane %v61, %v2632
      %v2653 = vunpack.c.l.b16 %v43
      %v2654 = vunpack.c.l.b16 %v44
      %v2655 = vunpack.c.l.b16 %v45
      %v2656 = vunpack.c.l.b16 %v46
      %v2657 = vunpack.c.l.b16 %v47
      %v2658 = vunpack.c.l.b16 %v48
      %v2659 = vunpack.c.l.b16 %v49
      %v2660 = vunpack.c.l.b16 %v50
      %v2661 = vunpack.c.l.b16 %v51
      %v2662 = vunpack.c.l.b16 %v52
      %v2663 = vunpack.c.l.b16 %v53
      %v2664 = vunpack.c.l.b16 %v54
      %v2665 = vunpack.c.l.b16 %v55
      %v2666 = vunpack.c.l.b16 %v56
      %v2667 = vunpack.c.l.b16 %v57
      %v2668 = vunpack.c.l.b16 %v58
      %v2669 = vunpack.c.l.b16 %v59
      %v2670 = vunpack.c.l.b16 %v60
      %v2671 = vpack.c.b16 %v2654, %v2653
      %v2672 = vpack.c.b16 %v2656, %v2655
      %v2673 = vpack.c.b16 %v2658, %v2657
      %v2674 = vpack.c.b16 %v2660, %v2659
      %v2675 = vpack.c.b16 %v2662, %v2661
      %v2676 = vpack.c.b16 %v2664, %v2663
      %v2677 = vpack.c.b16 %v2666, %v2665
      %v2678 = vpack.c.b16 %v2668, %v2667
      %v2679 = vpack.c.b16 %v2670, %v2669
      %v2690 = vsel %vm99, %v2572, 0
      %v2693 = vsel %vm99, %v2574, 0
      %v2696 = vsel %vm99, %v2576, 0
      %v2699 = vsel %vm99, %v2578, 0
      %v2702 = vsel %vm99, %v2580, 0
      %v2705 = vsel %vm99, %v2582, 0
      %v2708 = vsel %vm99, %v2584, 0
      %v2711 = vsel %vm99, %v2586, 0
      %v2714 = vsel %vm99, %v2588, 0
      %v2717 = vsel %vm99, %v2590, 0
      %v2720 = vsel %vm99, %v2592, 0
      %v2723 = vsel %vm99, %v2594, 0
      %v2726 = vsel %vm99, %v2596, 0
      %v2729 = vsel %vm99, %v2598, 0
      %v2732 = vsel %vm99, %v2600, 0
      %v2735 = vsel %vm99, %v2602, 0
      %v2738 = vsel %vm99, %v2604, 0
      %v2741 = vsel %vm99, %v2606, 0
      %v2744 = vsel %vm99, %v2608, 0
      %v2747 = vsel %vm99, %v2610, 0
      %v2750 = vsel %vm99, %v2612, 0
      %v2753 = vsel %vm99, %v2614, 0
      %v2756 = vsel %vm99, %v2616, 0
      %v2759 = vsel %vm99, %v2618, 0
      %v2762 = vsel %vm99, %v2620, 0
      %v2765 = vsel %vm99, %v2622, 0
      %v2768 = vsel %vm99, %v2624, 0
      %v2771 = vsel %vm99, %v2626, 0
      %v2774 = vsel %vm99, %v2628, 0
      %2776 = vmatprep.subr.bf16.mxu0 0
      %2777 = vmatpush1.bf16.msra.mxu0 %v2671
      %2778 = vmatprep.subr.bf16.mxu0 0
      %2779 = vmatpush1.bf16.msra.mxu0 %v2672
      %2780 = vmatprep.subr.bf16.mxu0 0
      %2781 = vmatpush1.bf16.msra.mxu0 %v2673
      %2782 = vmatprep.subr.bf16.mxu0 0
      %2783 = vmatpush1.bf16.msra.mxu0 %v2674
      %2784 = vmatprep.subr.bf16.mxu0 0
      %2785 = vmatpush1.bf16.msra.mxu0 %v2675
      %2786 = vmatprep.subr.bf16.mxu0 0
      %2787 = vmatpush1.bf16.msra.mxu0 %v2676
      %2788 = vmatprep.subr.bf16.mxu0 0
      %2789 = vmatpush1.bf16.msra.mxu0 %v2677
      %2790 = vmatprep.subr.bf16.mxu0 0
      %2791 = vmatpush1.bf16.msra.mxu0 %v2678
      %2792 = vmatprep.subr.bf16.mxu0 0
      %2793 = vmatpush1.bf16.msra.mxu0 %v2679
      %2794 = vmatprep.subr.bf16.mxu0 0
      %2795 = vmatpush1.bf16.msra.mxu0 0
      %2796 = vmatprep.subr.bf16.mxu0 0
      %2797 = vmatpush1.bf16.msra.mxu0 0
      %2798 = vmatprep.subr.bf16.mxu0 0
      %2799 = vmatpush1.bf16.msra.mxu0 0
      %2800 = vmatprep.subr.bf16.mxu0 0
      %2801 = vmatpush1.bf16.msra.mxu0 0
      %2802 = vmatprep.subr.bf16.mxu0 0
      %2803 = vmatpush1.bf16.msra.mxu0 0
      %2804 = vmatprep.subr.bf16.mxu0 0
      %2805 = vmatpush1.bf16.msra.mxu0 0
      %2806 = vmatprep.subr.bf16.mxu0 0
      %2807 = vmatpush1.bf16.msra.mxu0 0
      %2808 = vmatprep.mubr.bf16.mxu0 %v2690
      %2809 = vmatmul.mubr.bf16.gmra.mrb[0].mxu0 %v2571
      %v2810 = vpop.f32.mrb[0].mxu0
      %v2811 = vadd.f32 %v2633, %v2810
      %v2812 = vpop.f32.mrb[0].mxu0
      %v2813 = vpop.f32.mrb[0].mxu0
      %v2814 = vadd.f32 %v2633, %v2813
      %v2815 = vpop.f32.mrb[0].mxu0
      %2816 = vmatprep.mubr.bf16.mxu0 %v2693
      %2817 = vmatmul.mubr.bf16.gmra.mrb[0].mxu0 %v2573
      %v2818 = vpop.f32.mrb[0].mxu0
      %v2819 = vadd.f32 %v2633, %v2818
      %v2820 = vpop.f32.mrb[0].mxu0
      %v2821 = vpop.f32.mrb[0].mxu0
      %v2822 = vadd.f32 %v2633, %v2821
      %v2823 = vpop.f32.mrb[0].mxu0
      %2824 = vmatprep.mubr.bf16.mxu0 %v2696
      %2825 = vmatmul.mubr.bf16.gmra.mrb[0].mxu0 %v2575
      %v2826 = vpop.f32.mrb[0].mxu0
      %v2827 = vadd.f32 %v2633, %v2826
      %v2828 = vpop.f32.mrb[0].mxu0
      %v2829 = vpop.f32.mrb[0].mxu0
      %v2830 = vadd.f32 %v2633, %v2829
      %v2831 = vpop.f32.mrb[0].mxu0
      %2832 = vmatprep.mubr.bf16.mxu0 %v2699
      %2833 = vmatmul.mubr.bf16.gmra.mrb[0].mxu0 %v2577
      %v2834 = vpop.f32.mrb[0].mxu0
      %v2835 = vadd.f32 %v2633, %v2834
      %v2836 = vpop.f32.mrb[0].mxu0
      %v2837 = vpop.f32.mrb[0].mxu0
      %v2838 = vadd.f32 %v2633, %v2837
      %v2839 = vpop.f32.mrb[0].mxu0
      %2840 = vmatprep.mubr.bf16.mxu0 %v2702
      %2841 = vmatmul.mubr.bf16.gmra.mrb[0].mxu0 %v2579
      %v2842 = vpop.f32.mrb[0].mxu0
      %v2843 = vadd.f32 %v2633, %v2842
      %v2844 = vpop.f32.mrb[0].mxu0
      %v2845 = vpop.f32.mrb[0].mxu0
      %v2846 = vadd.f32 %v2633, %v2845
      %v2847 = vpop.f32.mrb[0].mxu0
      %2848 = vmatprep.mubr.bf16.mxu0 %v2705
      %2849 = vmatmul.mubr.bf16.gmra.mrb[0].mxu0 %v2581
      %v2850 = vpop.f32.mrb[0].mxu0
      %v2851 = vadd.f32 %v2633, %v2850
      %v2852 = vpop.f32.mrb[0].mxu0
      %v2853 = vpop.f32.mrb[0].mxu0
      %v2854 = vadd.f32 %v2633, %v2853
      %v2855 = vpop.f32.mrb[0].mxu0
      %2856 = vmatprep.mubr.bf16.mxu0 %v2708
      %2857 = vmatmul.mubr.bf16.gmra.mrb[0].mxu0 %v2583
      %v2858 = vpop.f32.mrb[0].mxu0
      %v2859 = vadd.f32 %v2633, %v2858
      %v2860 = vpop.f32.mrb[0].mxu0
      %v2861 = vpop.f32.mrb[0].mxu0
      %v2862 = vadd.f32 %v2633, %v2861
      %v2863 = vpop.f32.mrb[0].mxu0
      %2864 = vmatprep.mubr.bf16.mxu0 %v2711
      %2865 = vmatmul.mubr.bf16.gmra.mrb[0].mxu0 %v2585
      %v2866 = vpop.f32.mrb[0].mxu0
      %v2867 = vadd.f32 %v2633, %v2866
      %v2868 = vpop.f32.mrb[0].mxu0
      %v2869 = vpop.f32.mrb[0].mxu0
      %v2870 = vadd.f32 %v2633, %v2869
      %v2871 = vpop.f32.mrb[0].mxu0
      %2872 = vmatprep.mubr.bf16.mxu0 %v2714
      %2873 = vmatmul.mubr.bf16.gmra.mrb[0].mxu0 %v2587
      %v2874 = vpop.f32.mrb[0].mxu0
      %v2875 = vadd.f32 %v2633, %v2874
      %v2876 = vpop.f32.mrb[0].mxu0
      %v2877 = vpop.f32.mrb[0].mxu0
      %v2878 = vadd.f32 %v2633, %v2877
      %v2879 = vpop.f32.mrb[0].mxu0
      %2880 = vmatprep.mubr.bf16.mxu0 %v2717
      %2881 = vmatmul.mubr.bf16.gmra.mrb[0].mxu0 %v2589
      %v2882 = vpop.f32.mrb[0].mxu0
      %v2883 = vadd.f32 %v2633, %v2882
      %v2884 = vpop.f32.mrb[0].mxu0
      %v2885 = vpop.f32.mrb[0].mxu0
      %v2886 = vadd.f32 %v2633, %v2885
      %v2887 = vpop.f32.mrb[0].mxu0
      %2888 = vmatprep.mubr.bf16.mxu0 %v2720
      %2889 = vmatmul.mubr.bf16.gmra.mrb[0].mxu0 %v2591
      %v2890 = vpop.f32.mrb[0].mxu0
      %v2891 = vadd.f32 %v2633, %v2890
      %v2892 = vpop.f32.mrb[0].mxu0
      %v2893 = vpop.f32.mrb[0].mxu0
      %v2894 = vadd.f32 %v2633, %v2893
      %v2895 = vpop.f32.mrb[0].mxu0
      %2896 = vmatprep.mubr.bf16.mxu0 %v2723
      %2897 = vmatmul.mubr.bf16.gmra.mrb[0].mxu0 %v2593
      %v2898 = vpop.f32.mrb[0].mxu0
      %v2899 = vadd.f32 %v2633, %v2898
      %v2900 = vpop.f32.mrb[0].mxu0
      %v2901 = vpop.f32.mrb[0].mxu0
      %v2902 = vadd.f32 %v2633, %v2901
      %v2903 = vpop.f32.mrb[0].mxu0
      %2904 = vmatprep.mubr.bf16.mxu0 %v2726
      %2905 = vmatmul.mubr.bf16.gmra.mrb[0].mxu0 %v2595
      %v2906 = vpop.f32.mrb[0].mxu0
      %v2907 = vadd.f32 %v2633, %v2906
      %v2908 = vpop.f32.mrb[0].mxu0
      %v2909 = vpop.f32.mrb[0].mxu0
      %v2910 = vadd.f32 %v2633, %v2909
      %v2911 = vpop.f32.mrb[0].mxu0
      %2912 = vmatprep.mubr.bf16.mxu0 %v2729
      %2913 = vmatmul.mubr.bf16.gmra.mrb[0].mxu0 %v2597
      %v2914 = vpop.f32.mrb[0].mxu0
      %v2915 = vadd.f32 %v2633, %v2914
      %v2916 = vpop.f32.mrb[0].mxu0
      %v2917 = vpop.f32.mrb[0].mxu0
      %v2918 = vadd.f32 %v2633, %v2917
      %v2919 = vpop.f32.mrb[0].mxu0
      %2920 = vmatprep.mubr.bf16.mxu0 %v2732
      %2921 = vmatmul.mubr.bf16.gmra.mrb[0].mxu0 %v2599
      %v2922 = vpop.f32.mrb[0].mxu0
      %v2923 = vadd.f32 %v2633, %v2922
      %v2924 = vpop.f32.mrb[0].mxu0
      %v2925 = vpop.f32.mrb[0].mxu0
      %v2926 = vadd.f32 %v2633, %v2925
      %v2927 = vpop.f32.mrb[0].mxu0
      %2928 = vmatprep.mubr.bf16.mxu0 %v2735
      %2929 = vmatmul.mubr.bf16.gmra.mrb[0].mxu0 %v2601
      %v2930 = vpop.f32.mrb[0].mxu0
      %v2931 = vadd.f32 %v2633, %v2930
      %v2932 = vpop.f32.mrb[0].mxu0
      %v2933 = vpop.f32.mrb[0].mxu0
      %v2934 = vadd.f32 %v2633, %v2933
      %v2935 = vpop.f32.mrb[0].mxu0
      %2936 = vmatprep.mubr.bf16.mxu0 %v2738
      %2937 = vmatmul.mubr.bf16.gmra.mrb[0].mxu0 %v2603
      %v2938 = vpop.f32.mrb[0].mxu0
      %v2939 = vadd.f32 %v2633, %v2938
      %v2940 = vpop.f32.mrb[0].mxu0
      %v2941 = vpop.f32.mrb[0].mxu0
      %v2942 = vadd.f32 %v2633, %v2941
      %v2943 = vpop.f32.mrb[0].mxu0
      %2944 = vmatprep.mubr.bf16.mxu0 %v2741
      %2945 = vmatmul.mubr.bf16.gmra.mrb[0].mxu0 %v2605
      %v2946 = vpop.f32.mrb[0].mxu0
      %v2947 = vadd.f32 %v2633, %v2946
      %v2948 = vpop.f32.mrb[0].mxu0
      %v2949 = vpop.f32.mrb[0].mxu0
      %v2950 = vadd.f32 %v2633, %v2949
      %v2951 = vpop.f32.mrb[0].mxu0
      %2952 = vmatprep.mubr.bf16.mxu0 %v2744
      %2953 = vmatmul.mubr.bf16.gmra.mrb[0].mxu0 %v2607
      %v2954 = vpop.f32.mrb[0].mxu0
      %v2955 = vadd.f32 %v2633, %v2954
      %v2956 = vpop.f32.mrb[0].mxu0
      %v2957 = vpop.f32.mrb[0].mxu0
      %v2958 = vadd.f32 %v2633, %v2957
      %v2959 = vpop.f32.mrb[0].mxu0
      %2960 = vmatprep.mubr.bf16.mxu0 %v2747
      %2961 = vmatmul.mubr.bf16.gmra.mrb[0].mxu0 %v2609
      %v2962 = vpop.f32.mrb[0].mxu0
      %v2963 = vadd.f32 %v2633, %v2962
      %v2964 = vpop.f32.mrb[0].mxu0
      %v2965 = vpop.f32.mrb[0].mxu0
      %v2966 = vadd.f32 %v2633, %v2965
      %v2967 = vpop.f32.mrb[0].mxu0
      %2968 = vmatprep.mubr.bf16.mxu0 %v2750
      %2969 = vmatmul.mubr.bf16.gmra.mrb[0].mxu0 %v2611
      %v2970 = vpop.f32.mrb[0].mxu0
      %v2971 = vadd.f32 %v2633, %v2970
      %v2972 = vpop.f32.mrb[0].mxu0
      %v2973 = vpop.f32.mrb[0].mxu0
      %v2974 = vadd.f32 %v2633, %v2973
      %v2975 = vpop.f32.mrb[0].mxu0
      %2976 = vmatprep.mubr.bf16.mxu0 %v2753
      %2977 = vmatmul.mubr.bf16.gmra.mrb[0].mxu0 %v2613
      %v2978 = vpop.f32.mrb[0].mxu0
      %v2979 = vadd.f32 %v2633, %v2978
      %v2980 = vpop.f32.mrb[0].mxu0
      %v2981 = vpop.f32.mrb[0].mxu0
      %v2982 = vadd.f32 %v2633, %v2981
      %v2983 = vpop.f32.mrb[0].mxu0
      %2984 = vmatprep.mubr.bf16.mxu0 %v2756
      %2985 = vmatmul.mubr.bf16.gmra.mrb[0].mxu0 %v2615
      %v2986 = vpop.f32.mrb[0].mxu0
      %v2987 = vadd.f32 %v2633, %v2986
      %v2988 = vpop.f32.mrb[0].mxu0
      %v2989 = vpop.f32.mrb[0].mxu0
      %v2990 = vadd.f32 %v2633, %v2989
      %v2991 = vpop.f32.mrb[0].mxu0
      %2992 = vmatprep.mubr.bf16.mxu0 %v2759
      %2993 = vmatmul.mubr.bf16.gmra.mrb[0].mxu0 %v2617
      %v2994 = vpop.f32.mrb[0].mxu0
      %v2995 = vadd.f32 %v2633, %v2994
      %v2996 = vpop.f32.mrb[0].mxu0
      %v2997 = vpop.f32.mrb[0].mxu0
      %v2998 = vadd.f32 %v2633, %v2997
      %v2999 = vpop.f32.mrb[0].mxu0
      %3000 = vmatprep.mubr.bf16.mxu0 %v2762
      %3001 = vmatmul.mubr.bf16.gmra.mrb[0].mxu0 %v2619
      %v3002 = vpop.f32.mrb[0].mxu0
      %v3003 = vadd.f32 %v2633, %v3002
      %v3004 = vpop.f32.mrb[0].mxu0
      %v3005 = vpop.f32.mrb[0].mxu0
      %v3006 = vadd.f32 %v2633, %v3005
      %v3007 = vpop.f32.mrb[0].mxu0
      %3008 = vmatprep.mubr.bf16.mxu0 %v2765
      %3009 = vmatmul.mubr.bf16.gmra.mrb[0].mxu0 %v2621
      %v3010 = vpop.f32.mrb[0].mxu0
      %v3011 = vadd.f32 %v2633, %v3010
      %v3012 = vpop.f32.mrb[0].mxu0
      %v3013 = vpop.f32.mrb[0].mxu0
      %v3014 = vadd.f32 %v2633, %v3013
      %v3015 = vpop.f32.mrb[0].mxu0
      %3016 = vmatprep.mubr.bf16.mxu0 %v2768
      %3017 = vmatmul.mubr.bf16.gmra.mrb[0].mxu0 %v2623
      %v3018 = vpop.f32.mrb[0].mxu0
      %v3019 = vadd.f32 %v2633, %v3018
      %v3020 = vpop.f32.mrb[0].mxu0
      %v3021 = vpop.f32.mrb[0].mxu0
      %v3022 = vadd.f32 %v2633, %v3021
      %v3023 = vpop.f32.mrb[0].mxu0
      %3024 = vmatprep.mubr.bf16.mxu0 %v2771
      %3025 = vmatmul.mubr.bf16.gmra.mrb[0].mxu0 %v2625
      %v3026 = vpop.f32.mrb[0].mxu0
      %v3027 = vadd.f32 %v2633, %v3026
      %v3028 = vpop.f32.mrb[0].mxu0
      %v3029 = vpop.f32.mrb[0].mxu0
      %v3030 = vadd.f32 %v2633, %v3029
      %v3031 = vpop.f32.mrb[0].mxu0
      %3032 = vmatprep.mubr.bf16.mxu0 %v2774
      %3033 = vmatmul.mubr.bf16.gmra.mrb[0].mxu0 %v2627
      %v3034 = vpop.f32.mrb[0].mxu0
      %v3035 = vadd.f32 %v2633, %v3034
      %v3036 = vpop.f32.mrb[0].mxu0
      %v3037 = vpop.f32.mrb[0].mxu0
      %v3038 = vadd.f32 %v2633, %v3037
      %v3039 = vpop.f32.mrb[0].mxu0
      %3040 = vdwg.mxu0
      %v3041 = vmax.f32 %v2811, 0.0
      %v3042 = vmax.f32 %v2814, 0.0
      %v3043 = vmax.f32 %v2819, 0.0
      %v3044 = vmax.f32 %v2822, 0.0
      %v3045 = vmax.f32 %v2827, 0.0
      %v3046 = vmax.f32 %v2830, 0.0
      %v3047 = vmax.f32 %v2835, 0.0
      %v3048 = vmax.f32 %v2838, 0.0
      %v3049 = vmax.f32 %v2843, 0.0
      %v3050 = vmax.f32 %v2846, 0.0
      %v3051 = vmax.f32 %v2851, 0.0
      %v3052 = vmax.f32 %v2854, 0.0
      %v3053 = vmax.f32 %v2859, 0.0
      %v3054 = vmax.f32 %v2862, 0.0
      %v3055 = vmax.f32 %v2867, 0.0
      %v3056 = vmax.f32 %v2870, 0.0
      %v3057 = vmax.f32 %v2875, 0.0
      %v3058 = vmax.f32 %v2878, 0.0
      %v3059 = vmax.f32 %v2883, 0.0
      %v3060 = vmax.f32 %v2886, 0.0
      %v3061 = vmax.f32 %v2891, 0.0
      %v3062 = vmax.f32 %v2894, 0.0
      %v3063 = vmax.f32 %v2899, 0.0
      %v3064 = vmax.f32 %v2902, 0.0
      %v3065 = vmax.f32 %v2907, 0.0
      %v3066 = vmax.f32 %v2910, 0.0
      %v3067 = vmax.f32 %v2915, 0.0
      %v3068 = vmax.f32 %v2918, 0.0
      %v3069 = vmax.f32 %v2923, 0.0
      %v3070 = vmax.f32 %v2926, 0.0
      %v3071 = vmax.f32 %v2931, 0.0
      %v3072 = vmax.f32 %v2934, 0.0
      %v3073 = vmax.f32 %v2939, 0.0
      %v3074 = vmax.f32 %v2942, 0.0
      %v3075 = vmax.f32 %v2947, 0.0
      %v3076 = vmax.f32 %v2950, 0.0
      %v3077 = vmax.f32 %v2955, 0.0
      %v3078 = vmax.f32 %v2958, 0.0
      %v3079 = vmax.f32 %v2963, 0.0
      %v3080 = vmax.f32 %v2966, 0.0
      %v3081 = vmax.f32 %v2971, 0.0
      %v3082 = vmax.f32 %v2974, 0.0
      %v3083 = vmax.f32 %v2979, 0.0
      %v3084 = vmax.f32 %v2982, 0.0
      %v3085 = vmax.f32 %v2987, 0.0
      %v3086 = vmax.f32 %v2990, 0.0
      %v3087 = vmax.f32 %v2995, 0.0
      %v3088 = vmax.f32 %v2998, 0.0
      %v3089 = vmax.f32 %v3003, 0.0
      %v3090 = vmax.f32 %v3006, 0.0
      %v3091 = vmax.f32 %v3011, 0.0
      %v3092 = vmax.f32 %v3014, 0.0
      %v3093 = vmax.f32 %v3019, 0.0
      %v3094 = vmax.f32 %v3022, 0.0
      %v3095 = vmax.f32 %v3027, 0.0
      %v3096 = vmax.f32 %v3030, 0.0
      %v3097 = vmax.f32 %v3035, 0.0
      %v3098 = vmax.f32 %v3038, 0.0
      %v3099 = vpack.c.bf16 %v3042, %v3041
      %v3100 = vpack.c.bf16 %v3044, %v3043
      %v3101 = vpack.c.bf16 %v3046, %v3045
      %v3102 = vpack.c.bf16 %v3048, %v3047
      %v3103 = vpack.c.bf16 %v3050, %v3049
      %v3104 = vpack.c.bf16 %v3052, %v3051
      %v3105 = vpack.c.bf16 %v3054, %v3053
      %v3106 = vpack.c.bf16 %v3056, %v3055
      %v3107 = vpack.c.bf16 %v3058, %v3057
      %v3108 = vpack.c.bf16 %v3060, %v3059
      %v3109 = vpack.c.bf16 %v3062, %v3061
      %v3110 = vpack.c.bf16 %v3064, %v3063
      %v3111 = vpack.c.bf16 %v3066, %v3065
      %v3112 = vpack.c.bf16 %v3068, %v3067
      %v3113 = vpack.c.bf16 %v3070, %v3069
      %v3114 = vpack.c.bf16 %v3072, %v3071
      %v3115 = vpack.c.bf16 %v3074, %v3073
      %v3116 = vpack.c.bf16 %v3076, %v3075
      %v3117 = vpack.c.bf16 %v3078, %v3077
      %v3118 = vpack.c.bf16 %v3080, %v3079
      %v3119 = vpack.c.bf16 %v3082, %v3081
      %v3120 = vpack.c.bf16 %v3084, %v3083
      %v3121 = vpack.c.bf16 %v3086, %v3085
      %v3122 = vpack.c.bf16 %v3088, %v3087
      %v3123 = vpack.c.bf16 %v3090, %v3089
      %v3124 = vpack.c.bf16 %v3092, %v3091
      %v3125 = vpack.c.bf16 %v3094, %v3093
      %v3126 = vpack.c.bf16 %v3096, %v3095
      %v3127 = vpack.c.bf16 %v3098, %v3097
      %s3128 = smul.addr %s1187, 8
      %s3129 = scalar_lea.vmem [#allocation4], %s3128
      %vm3130 = vcmask 261120
      %3131 = vst.msk [vmem:[%s3129] sm:$0xff] %vm3130, %v3099
      %3132 = vst.msk [vmem:[%s3129 + $0x8] sm:$0xff] %vm3130, %v3100
      %3133 = vst.msk [vmem:[%s3129 + $0x10] sm:$0xff] %vm3130, %v3101
      %3134 = vst.msk [vmem:[%s3129 + $0x18] sm:$0xff] %vm3130, %v3102
      %3135 = vst.msk [vmem:[%s3129 + $0x20] sm:$0xff] %vm3130, %v3103
      %3136 = vst.msk [vmem:[%s3129 + $0x28] sm:$0xff] %vm3130, %v3104
      %3137 = vst.msk [vmem:[%s3129 + $0x30] sm:$0xff] %vm3130, %v3105
      %3138 = vst.msk [vmem:[%s3129 + $0x38] sm:$0xff] %vm3130, %v3106
      %3139 = vst.msk [vmem:[%s3129 + $0x40] sm:$0xff] %vm3130, %v3107
      %3140 = vst.msk [vmem:[%s3129 + $0x48] sm:$0xff] %vm3130, %v3108
      %3141 = vst.msk [vmem:[%s3129 + $0x50] sm:$0xff] %vm3130, %v3109
      %3142 = vst.msk [vmem:[%s3129 + $0x58] sm:$0xff] %vm3130, %v3110
      %3143 = vst.msk [vmem:[%s3129 + $0x60] sm:$0xff] %vm3130, %v3111
      %3144 = vst.msk [vmem:[%s3129 + $0x68] sm:$0xff] %vm3130, %v3112
      %3145 = vst.msk [vmem:[%s3129 + $0x70] sm:$0xff] %vm3130, %v3113
      %3146 = vst.msk [vmem:[%s3129 + $0x78] sm:$0xff] %vm3130, %v3114
      %3147 = vst.msk [vmem:[%s3129 + $0x80] sm:$0xff] %vm3130, %v3115
      %3148 = vst.msk [vmem:[%s3129 + $0x88] sm:$0xff] %vm3130, %v3116
      %3149 = vst.msk [vmem:[%s3129 + $0x90] sm:$0xff] %vm3130, %v3117
      %3150 = vst.msk [vmem:[%s3129 + $0x98] sm:$0xff] %vm3130, %v3118
      %3151 = vst.msk [vmem:[%s3129 + $0xa0] sm:$0xff] %vm3130, %v3119
      %3152 = vst.msk [vmem:[%s3129 + $0xa8] sm:$0xff] %vm3130, %v3120
      %3153 = vst.msk [vmem:[%s3129 + $0xb0] sm:$0xff] %vm3130, %v3121
      %3154 = vst.msk [vmem:[%s3129 + $0xb8] sm:$0xff] %vm3130, %v3122
      %3155 = vst.msk [vmem:[%s3129 + $0xc0] sm:$0xff] %vm3130, %v3123
      %3156 = vst.msk [vmem:[%s3129 + $0xc8] sm:$0xff] %vm3130, %v3124
      %3157 = vst.msk [vmem:[%s3129 + $0xd0] sm:$0xff] %vm3130, %v3125
      %3158 = vst.msk [vmem:[%s3129 + $0xd8] sm:$0xff] %vm3130, %v3126
      %3159 = vst.msk [vmem:[%s3129 + $0xe0] sm:$0xff] %vm3130, %v3127
    $region57: #{cnn_forward.1} parent=1 // loop_footer
      %s1184 = sadd.s32 1, %s1180
    $region58: #{cnn_forward.1} parent=1 // loop_footer_branch
      %1179 = sbr.rel target = $region54
    $region59: #{cnn_forward.1} parent=1 // loop_exit
      _
    %vm3160 = vcmask 261120
    %3161 = vst.msk [vmem:[#allocation5] sm:$0xff] %vm3160, 0
    %3162 = vst.msk [vmem:[#allocation5 + $0x8] sm:$0xff] %vm3160, 0
    %3163 = vst.msk [vmem:[#allocation5 + $0x10] sm:$0xff] %vm3160, 0
    %3164 = vst.msk [vmem:[#allocation5 + $0x18] sm:$0xff] %vm3160, 0
    %3165 = vst.msk [vmem:[#allocation5 + $0x20] sm:$0xff] %vm3160, 0
    %3166 = vst.msk [vmem:[#allocation5 + $0x28] sm:$0xff] %vm3160, 0
    %3167 = vst.msk [vmem:[#allocation5 + $0x30] sm:$0xff] %vm3160, 0
    %3168 = vst.msk [vmem:[#allocation5 + $0x38] sm:$0xff] %vm3160, 0
    %3169 = vst.msk [vmem:[#allocation5 + $0x40] sm:$0xff] %vm3160, 0
    %3170 = vst.msk [vmem:[#allocation5 + $0x48] sm:$0xff] %vm3160, 0
    %3171 = vst.msk [vmem:[#allocation5 + $0x50] sm:$0xff] %vm3160, 0
    %3172 = vst.msk [vmem:[#allocation5 + $0x58] sm:$0xff] %vm3160, 0
    %3173 = vst.msk [vmem:[#allocation5 + $0x60] sm:$0xff] %vm3160, 0
    %3174 = vst.msk [vmem:[#allocation5 + $0x68] sm:$0xff] %vm3160, 0
    %3175 = vst.msk [vmem:[#allocation5 + $0x70] sm:$0xff] %vm3160, 0
    %3176 = vst.msk [vmem:[#allocation5 + $0x78] sm:$0xff] %vm3160, 0
    %3177 = vst.msk [vmem:[#allocation5 + $0x80] sm:$0xff] %vm3160, 0
    %3178 = vst.msk [vmem:[#allocation5 + $0x88] sm:$0xff] %vm3160, 0
    %3179 = vst.msk [vmem:[#allocation5 + $0x90] sm:$0xff] %vm3160, 0
    %3180 = vst.msk [vmem:[#allocation5 + $0x98] sm:$0xff] %vm3160, 0
    %3181 = vst.msk [vmem:[#allocation5 + $0xa0] sm:$0xff] %vm3160, 0
    %3182 = vst.msk [vmem:[#allocation5 + $0xa8] sm:$0xff] %vm3160, 0
    %3183 = vst.msk [vmem:[#allocation5 + $0xb0] sm:$0xff] %vm3160, 0
    %3184 = vst.msk [vmem:[#allocation5 + $0xb8] sm:$0xff] %vm3160, 0
    %3185 = vst.msk [vmem:[#allocation5 + $0xc0] sm:$0xff] %vm3160, 0
    %3186 = vst.msk [vmem:[#allocation5 + $0xc8] sm:$0xff] %vm3160, 0
    %3187 = vst.msk [vmem:[#allocation5 + $0xd0] sm:$0xff] %vm3160, 0
    %3188 = vst.msk [vmem:[#allocation5 + $0xd8] sm:$0xff] %vm3160, 0
    %3189 = vst.msk [vmem:[#allocation5 + $0xe0] sm:$0xff] %vm3160, 0
    %3190 = vst.msk [vmem:[#allocation5 + $0xe8] sm:$0xff] %vm3160, 0
    %3191 = vst.msk [vmem:[#allocation5 + $0xf0] sm:$0xff] %vm3160, 0
    %3192 = vst.msk [vmem:[#allocation5 + $0xf8] sm:$0xff] %vm3160, 0
    %3193 = vst.msk [vmem:[#allocation5 + $0x100] sm:$0xff] %vm3160, 0
    %3194 = vst.msk [vmem:[#allocation5 + $0x108] sm:$0xff] %vm3160, 0
    %3195 = vst.msk [vmem:[#allocation5 + $0x110] sm:$0xff] %vm3160, 0
    %3196 = vst.msk [vmem:[#allocation5 + $0x118] sm:$0xff] %vm3160, 0
    %3197 = vst.msk [vmem:[#allocation5 + $0x120] sm:$0xff] %vm3160, 0
    %3198 = vst.msk [vmem:[#allocation5 + $0x128] sm:$0xff] %vm3160, 0
    %3199 = vst.msk [vmem:[#allocation5 + $0x130] sm:$0xff] %vm3160, 0
    %3200 = vst.msk [vmem:[#allocation5 + $0x138] sm:$0xff] %vm3160, 0
    %3201 = vst.msk [vmem:[#allocation5 + $0x140] sm:$0xff] %vm3160, 0
    %3202 = vst.msk [vmem:[#allocation5 + $0x148] sm:$0xff] %vm3160, 0
    %3203 = vst.msk [vmem:[#allocation5 + $0x150] sm:$0xff] %vm3160, 0
    %3204 = vst.msk [vmem:[#allocation5 + $0x158] sm:$0xff] %vm3160, 0
    %3205 = vst.msk [vmem:[#allocation5 + $0x160] sm:$0xff] %vm3160, 0
    %3206 = vst.msk [vmem:[#allocation5 + $0x168] sm:$0xff] %vm3160, 0
    %3207 = vst.msk [vmem:[#allocation5 + $0x170] sm:$0xff] %vm3160, 0
    %3208 = vst.msk [vmem:[#allocation5 + $0x178] sm:$0xff] %vm3160, 0
    %3209 = vst.msk [vmem:[#allocation5 + $0x180] sm:$0xff] %vm3160, 0
    %3210 = vst.msk [vmem:[#allocation5 + $0x188] sm:$0xff] %vm3160, 0
    %3211 = vst.msk [vmem:[#allocation5 + $0x190] sm:$0xff] %vm3160, 0
    %3212 = vst.msk [vmem:[#allocation5 + $0x198] sm:$0xff] %vm3160, 0
    %3213 = vst.msk [vmem:[#allocation5 + $0x1a0] sm:$0xff] %vm3160, 0
    %3214 = vst.msk [vmem:[#allocation5 + $0x1a8] sm:$0xff] %vm3160, 0
    %3215 = vst.msk [vmem:[#allocation5 + $0x1b0] sm:$0xff] %vm3160, 0
    %3216 = vst.msk [vmem:[#allocation5 + $0x1b8] sm:$0xff] %vm3160, 0
    %3217 = vst.msk [vmem:[#allocation5 + $0x1c0] sm:$0xff] %vm3160, 0
    %3218 = vst.msk [vmem:[#allocation5 + $0x1c8] sm:$0xff] %vm3160, 0
    %3219 = vst.msk [vmem:[#allocation5 + $0x1d0] sm:$0xff] %vm3160, 0
    %3220 = vst.msk [vmem:[#allocation5 + $0x1d8] sm:$0xff] %vm3160, 0
    %3221 = vst.msk [vmem:[#allocation5 + $0x1e0] sm:$0xff] %vm3160, 0
    %3222 = vst.msk [vmem:[#allocation5 + $0x1e8] sm:$0xff] %vm3160, 0
    %3223 = vst.msk [vmem:[#allocation5 + $0x1f0] sm:$0xff] %vm3160, 0
    %3224 = vst.msk [vmem:[#allocation5 + $0x1f8] sm:$0xff] %vm3160, 0
    %3225 = vst.msk [vmem:[#allocation5 + $0x200] sm:$0xff] %vm3160, 0
    %3226 = vst.msk [vmem:[#allocation5 + $0x208] sm:$0xff] %vm3160, 0
    %3227 = vst.msk [vmem:[#allocation5 + $0x210] sm:$0xff] %vm3160, 0
    %3228 = vst.msk [vmem:[#allocation5 + $0x218] sm:$0xff] %vm3160, 0
    %3229 = vst.msk [vmem:[#allocation5 + $0x220] sm:$0xff] %vm3160, 0
    %3230 = vst.msk [vmem:[#allocation5 + $0x228] sm:$0xff] %vm3160, 0
    %3231 = vst.msk [vmem:[#allocation5 + $0x230] sm:$0xff] %vm3160, 0
    %3232 = vst.msk [vmem:[#allocation5 + $0x238] sm:$0xff] %vm3160, 0
    %3233 = vst.msk [vmem:[#allocation5 + $0x240] sm:$0xff] %vm3160, 0
    %3234 = vst.msk [vmem:[#allocation5 + $0x248] sm:$0xff] %vm3160, 0
    %3235 = vst.msk [vmem:[#allocation5 + $0x250] sm:$0xff] %vm3160, 0
    %3236 = vst.msk [vmem:[#allocation5 + $0x258] sm:$0xff] %vm3160, 0
    %3237 = vst.msk [vmem:[#allocation5 + $0x260] sm:$0xff] %vm3160, 0
    %3238 = vst.msk [vmem:[#allocation5 + $0x268] sm:$0xff] %vm3160, 0
    %3239 = vst.msk [vmem:[#allocation5 + $0x270] sm:$0xff] %vm3160, 0
    %3240 = vst.msk [vmem:[#allocation5 + $0x278] sm:$0xff] %vm3160, 0
    %3241 = vst.msk [vmem:[#allocation5 + $0x280] sm:$0xff] %vm3160, 0
    %3242 = vst.msk [vmem:[#allocation5 + $0x288] sm:$0xff] %vm3160, 0
    %3243 = vst.msk [vmem:[#allocation5 + $0x290] sm:$0xff] %vm3160, 0
    %3244 = vst.msk [vmem:[#allocation5 + $0x298] sm:$0xff] %vm3160, 0
    %3245 = vst.msk [vmem:[#allocation5 + $0x2a0] sm:$0xff] %vm3160, 0
    %3246 = vst.msk [vmem:[#allocation5 + $0x2a8] sm:$0xff] %vm3160, 0
    %3247 = vst.msk [vmem:[#allocation5 + $0x2b0] sm:$0xff] %vm3160, 0
    %3248 = vst.msk [vmem:[#allocation5 + $0x2b8] sm:$0xff] %vm3160, 0
    %3249 = vst.msk [vmem:[#allocation5 + $0x2c0] sm:$0xff] %vm3160, 0
    %3250 = vst.msk [vmem:[#allocation5 + $0x2c8] sm:$0xff] %vm3160, 0
    %3251 = vst.msk [vmem:[#allocation5 + $0x2d0] sm:$0xff] %vm3160, 0
    %3252 = vst.msk [vmem:[#allocation5 + $0x2d8] sm:$0xff] %vm3160, 0
    %3253 = vst.msk [vmem:[#allocation5 + $0x2e0] sm:$0xff] %vm3160, 0
    %3254 = vst.msk [vmem:[#allocation5 + $0x2e8] sm:$0xff] %vm3160, 0
    %3255 = vst.msk [vmem:[#allocation5 + $0x2f0] sm:$0xff] %vm3160, 0
    %3256 = vst.msk [vmem:[#allocation5 + $0x2f8] sm:$0xff] %vm3160, 0
    %3257 = vst.msk [vmem:[#allocation5 + $0x300] sm:$0xff] %vm3160, 0
    %3258 = vst.msk [vmem:[#allocation5 + $0x308] sm:$0xff] %vm3160, 0
    %3259 = vst.msk [vmem:[#allocation5 + $0x310] sm:$0xff] %vm3160, 0
    %3260 = vst.msk [vmem:[#allocation5 + $0x318] sm:$0xff] %vm3160, 0
    %3261 = vst.msk [vmem:[#allocation5 + $0x320] sm:$0xff] %vm3160, 0
    %3262 = vst.msk [vmem:[#allocation5 + $0x328] sm:$0xff] %vm3160, 0
    %3263 = vst.msk [vmem:[#allocation5 + $0x330] sm:$0xff] %vm3160, 0
    %3264 = vst.msk [vmem:[#allocation5 + $0x338] sm:$0xff] %vm3160, 0
    %3265 = vst.msk [vmem:[#allocation5 + $0x340] sm:$0xff] %vm3160, 0
    %3266 = vst.msk [vmem:[#allocation5 + $0x348] sm:$0xff] %vm3160, 0
    %3267 = vst.msk [vmem:[#allocation5 + $0x350] sm:$0xff] %vm3160, 0
    %3268 = vst.msk [vmem:[#allocation5 + $0x358] sm:$0xff] %vm3160, 0
    %3269 = vst.msk [vmem:[#allocation5 + $0x360] sm:$0xff] %vm3160, 0
    %3270 = vst.msk [vmem:[#allocation5 + $0x368] sm:$0xff] %vm3160, 0
    %3271 = vst.msk [vmem:[#allocation5 + $0x370] sm:$0xff] %vm3160, 0
    %3272 = vst.msk [vmem:[#allocation5 + $0x378] sm:$0xff] %vm3160, 0
    %3273 = vst.msk [vmem:[#allocation5 + $0x380] sm:$0xff] %vm3160, 0
    %3274 = vst.msk [vmem:[#allocation5 + $0x388] sm:$0xff] %vm3160, 0
    %3275 = vst.msk [vmem:[#allocation5 + $0x390] sm:$0xff] %vm3160, 0
    %3276 = vst.msk [vmem:[#allocation5 + $0x398] sm:$0xff] %vm3160, 0
    %3277 = vst.msk [vmem:[#allocation5 + $0x3a0] sm:$0xff] %vm3160, 0
    %3278 = vst.msk [vmem:[#allocation5 + $0x3a8] sm:$0xff] %vm3160, 0
    %3279 = vst.msk [vmem:[#allocation5 + $0x3b0] sm:$0xff] %vm3160, 0
    %3280 = vst.msk [vmem:[#allocation5 + $0x3b8] sm:$0xff] %vm3160, 0
    %3281 = vst.msk [vmem:[#allocation5 + $0x3c0] sm:$0xff] %vm3160, 0
    %3282 = vst.msk [vmem:[#allocation5 + $0x3c8] sm:$0xff] %vm3160, 0
    %3283 = vst.msk [vmem:[#allocation5 + $0x3d0] sm:$0xff] %vm3160, 0
    %3284 = vst.msk [vmem:[#allocation5 + $0x3d8] sm:$0xff] %vm3160, 0
    %3285 = vst.msk [vmem:[#allocation5 + $0x3e0] sm:$0xff] %vm3160, 0
    %3286 = vst.msk [vmem:[#allocation5 + $0x3e8] sm:$0xff] %vm3160, 0
    %3287 = vst.msk [vmem:[#allocation5 + $0x3f0] sm:$0xff] %vm3160, 0
    %3288 = vst.msk [vmem:[#allocation5 + $0x3f8] sm:$0xff] %vm3160, 0
    %3289 = vst.msk [vmem:[#allocation5 + $0x400] sm:$0xff] %vm3160, 0
    %3290 = vst.msk [vmem:[#allocation5 + $0x408] sm:$0xff] %vm3160, 0
    %3291 = vst.msk [vmem:[#allocation5 + $0x410] sm:$0xff] %vm3160, 0
    %3292 = vst.msk [vmem:[#allocation5 + $0x418] sm:$0xff] %vm3160, 0
    %3293 = vst.msk [vmem:[#allocation5 + $0x420] sm:$0xff] %vm3160, 0
    %3294 = vst.msk [vmem:[#allocation5 + $0x428] sm:$0xff] %vm3160, 0
    %3295 = vst.msk [vmem:[#allocation5 + $0x430] sm:$0xff] %vm3160, 0
    %3296 = vst.msk [vmem:[#allocation5 + $0x438] sm:$0xff] %vm3160, 0
    %3297 = vst.msk [vmem:[#allocation5 + $0x440] sm:$0xff] %vm3160, 0
    %3298 = vst.msk [vmem:[#allocation5 + $0x448] sm:$0xff] %vm3160, 0
    %3299 = vst.msk [vmem:[#allocation5 + $0x450] sm:$0xff] %vm3160, 0
    %3300 = vst.msk [vmem:[#allocation5 + $0x458] sm:$0xff] %vm3160, 0
    %3301 = vst.msk [vmem:[#allocation5 + $0x460] sm:$0xff] %vm3160, 0
    %3302 = vst.msk [vmem:[#allocation5 + $0x468] sm:$0xff] %vm3160, 0
    %3303 = vst.msk [vmem:[#allocation5 + $0x470] sm:$0xff] %vm3160, 0
    %3304 = vst.msk [vmem:[#allocation5 + $0x478] sm:$0xff] %vm3160, 0
    %3305 = vst.msk [vmem:[#allocation5 + $0x480] sm:$0xff] %vm3160, 0
    %3306 = vst.msk [vmem:[#allocation5 + $0x488] sm:$0xff] %vm3160, 0
    %3307 = vst.msk [vmem:[#allocation5 + $0x490] sm:$0xff] %vm3160, 0
    %3308 = vst.msk [vmem:[#allocation5 + $0x498] sm:$0xff] %vm3160, 0
    %3309 = vst.msk [vmem:[#allocation5 + $0x4a0] sm:$0xff] %vm3160, 0
    %3310 = vst.msk [vmem:[#allocation5 + $0x4a8] sm:$0xff] %vm3160, 0
    %3311 = vst.msk [vmem:[#allocation5 + $0x4b0] sm:$0xff] %vm3160, 0
    %3312 = vst.msk [vmem:[#allocation5 + $0x4b8] sm:$0xff] %vm3160, 0
    %3313 = vst.msk [vmem:[#allocation5 + $0x4c0] sm:$0xff] %vm3160, 0
    %3314 = vst.msk [vmem:[#allocation5 + $0x4c8] sm:$0xff] %vm3160, 0
    %3315 = vst.msk [vmem:[#allocation5 + $0x4d0] sm:$0xff] %vm3160, 0
    %3316 = vst.msk [vmem:[#allocation5 + $0x4d8] sm:$0xff] %vm3160, 0
    %3317 = vst.msk [vmem:[#allocation5 + $0x4e0] sm:$0xff] %vm3160, 0
    %3318 = vst.msk [vmem:[#allocation5 + $0x4e8] sm:$0xff] %vm3160, 0
    %3319 = vst.msk [vmem:[#allocation5 + $0x4f0] sm:$0xff] %vm3160, 0
    %3320 = vst.msk [vmem:[#allocation5 + $0x4f8] sm:$0xff] %vm3160, 0
    %3321 = vst.msk [vmem:[#allocation5 + $0x500] sm:$0xff] %vm3160, 0
    %3322 = vst.msk [vmem:[#allocation5 + $0x508] sm:$0xff] %vm3160, 0
    %3323 = vst.msk [vmem:[#allocation5 + $0x510] sm:$0xff] %vm3160, 0
    %3324 = vst.msk [vmem:[#allocation5 + $0x518] sm:$0xff] %vm3160, 0
    %3325 = vst.msk [vmem:[#allocation5 + $0x520] sm:$0xff] %vm3160, 0
    %3326 = vst.msk [vmem:[#allocation5 + $0x528] sm:$0xff] %vm3160, 0
    %3327 = vst.msk [vmem:[#allocation5 + $0x530] sm:$0xff] %vm3160, 0
    %3328 = vst.msk [vmem:[#allocation5 + $0x538] sm:$0xff] %vm3160, 0
    %3329 = vst.msk [vmem:[#allocation5 + $0x540] sm:$0xff] %vm3160, 0
    %3330 = vst.msk [vmem:[#allocation5 + $0x548] sm:$0xff] %vm3160, 0
    %3331 = vst.msk [vmem:[#allocation5 + $0x550] sm:$0xff] %vm3160, 0
    %3332 = vst.msk [vmem:[#allocation5 + $0x558] sm:$0xff] %vm3160, 0
    %3333 = vst.msk [vmem:[#allocation5 + $0x560] sm:$0xff] %vm3160, 0
    %3334 = vst.msk [vmem:[#allocation5 + $0x568] sm:$0xff] %vm3160, 0
    %3335 = vst.msk [vmem:[#allocation5 + $0x570] sm:$0xff] %vm3160, 0
    %3336 = vst.msk [vmem:[#allocation5 + $0x578] sm:$0xff] %vm3160, 0
    %3337 = vst.msk [vmem:[#allocation5 + $0x580] sm:$0xff] %vm3160, 0
    %3338 = vst.msk [vmem:[#allocation5 + $0x588] sm:$0xff] %vm3160, 0
    %3339 = vst.msk [vmem:[#allocation5 + $0x590] sm:$0xff] %vm3160, 0
    %3340 = vst.msk [vmem:[#allocation5 + $0x598] sm:$0xff] %vm3160, 0
    %3341 = vst.msk [vmem:[#allocation5 + $0x5a0] sm:$0xff] %vm3160, 0
    %3342 = vst.msk [vmem:[#allocation5 + $0x5a8] sm:$0xff] %vm3160, 0
    %3343 = vst.msk [vmem:[#allocation5 + $0x5b0] sm:$0xff] %vm3160, 0
    %3344 = vst.msk [vmem:[#allocation5 + $0x5b8] sm:$0xff] %vm3160, 0
    %3345 = vst.msk [vmem:[#allocation5 + $0x5c0] sm:$0xff] %vm3160, 0
    %3346 = vst.msk [vmem:[#allocation5 + $0x5c8] sm:$0xff] %vm3160, 0
    %3347 = vst.msk [vmem:[#allocation5 + $0x5d0] sm:$0xff] %vm3160, 0
    %3348 = vst.msk [vmem:[#allocation5 + $0x5d8] sm:$0xff] %vm3160, 0
    %3349 = vst.msk [vmem:[#allocation5 + $0x5e0] sm:$0xff] %vm3160, 0
    %3350 = vst.msk [vmem:[#allocation5 + $0x5e8] sm:$0xff] %vm3160, 0
    %3351 = vst.msk [vmem:[#allocation5 + $0x5f0] sm:$0xff] %vm3160, 0
    %3352 = vst.msk [vmem:[#allocation5 + $0x5f8] sm:$0xff] %vm3160, 0
    %3353 = vst.msk [vmem:[#allocation5 + $0x600] sm:$0xff] %vm3160, 0
    %3354 = vst.msk [vmem:[#allocation5 + $0x608] sm:$0xff] %vm3160, 0
    %3355 = vst.msk [vmem:[#allocation5 + $0x610] sm:$0xff] %vm3160, 0
    %3356 = vst.msk [vmem:[#allocation5 + $0x618] sm:$0xff] %vm3160, 0
    %3357 = vst.msk [vmem:[#allocation5 + $0x620] sm:$0xff] %vm3160, 0
    %3358 = vst.msk [vmem:[#allocation5 + $0x628] sm:$0xff] %vm3160, 0
    %3359 = vst.msk [vmem:[#allocation5 + $0x630] sm:$0xff] %vm3160, 0
    %3360 = vst.msk [vmem:[#allocation5 + $0x638] sm:$0xff] %vm3160, 0
    %3361 = vst.msk [vmem:[#allocation5 + $0x640] sm:$0xff] %vm3160, 0
    %3362 = vst.msk [vmem:[#allocation5 + $0x648] sm:$0xff] %vm3160, 0
    %3363 = vst.msk [vmem:[#allocation5 + $0x650] sm:$0xff] %vm3160, 0
    %3364 = vst.msk [vmem:[#allocation5 + $0x658] sm:$0xff] %vm3160, 0
    %3365 = vst.msk [vmem:[#allocation5 + $0x660] sm:$0xff] %vm3160, 0
    %3366 = vst.msk [vmem:[#allocation5 + $0x668] sm:$0xff] %vm3160, 0
    %3367 = vst.msk [vmem:[#allocation5 + $0x670] sm:$0xff] %vm3160, 0
    %3368 = vst.msk [vmem:[#allocation5 + $0x678] sm:$0xff] %vm3160, 0
    %3369 = vst.msk [vmem:[#allocation5 + $0x680] sm:$0xff] %vm3160, 0
    %3370 = vst.msk [vmem:[#allocation5 + $0x688] sm:$0xff] %vm3160, 0
    %3371 = vst.msk [vmem:[#allocation5 + $0x690] sm:$0xff] %vm3160, 0
    %3372 = vst.msk [vmem:[#allocation5 + $0x698] sm:$0xff] %vm3160, 0
    %3373 = vst.msk [vmem:[#allocation5 + $0x6a0] sm:$0xff] %vm3160, 0
    %3374 = vst.msk [vmem:[#allocation5 + $0x6a8] sm:$0xff] %vm3160, 0
    %3375 = vst.msk [vmem:[#allocation5 + $0x6b0] sm:$0xff] %vm3160, 0
    %3376 = vst.msk [vmem:[#allocation5 + $0x6b8] sm:$0xff] %vm3160, 0
    %3377 = vst.msk [vmem:[#allocation5 + $0x6c0] sm:$0xff] %vm3160, 0
    %3378 = vst.msk [vmem:[#allocation5 + $0x6c8] sm:$0xff] %vm3160, 0
    %3379 = vst.msk [vmem:[#allocation5 + $0x6d0] sm:$0xff] %vm3160, 0
    %3380 = vst.msk [vmem:[#allocation5 + $0x6d8] sm:$0xff] %vm3160, 0
    %3381 = vst.msk [vmem:[#allocation5 + $0x6e0] sm:$0xff] %vm3160, 0
    %3382 = vst.msk [vmem:[#allocation5 + $0x6e8] sm:$0xff] %vm3160, 0
    %3383 = vst.msk [vmem:[#allocation5 + $0x6f0] sm:$0xff] %vm3160, 0
    %3384 = vst.msk [vmem:[#allocation5 + $0x6f8] sm:$0xff] %vm3160, 0
    %3385 = vst.msk [vmem:[#allocation5 + $0x700] sm:$0xff] %vm3160, 0
    %3386 = vst.msk [vmem:[#allocation5 + $0x708] sm:$0xff] %vm3160, 0
    %3387 = vst.msk [vmem:[#allocation5 + $0x710] sm:$0xff] %vm3160, 0
    %3388 = vst.msk [vmem:[#allocation5 + $0x718] sm:$0xff] %vm3160, 0
    %3389 = vst.msk [vmem:[#allocation5 + $0x720] sm:$0xff] %vm3160, 0
    %3390 = vst.msk [vmem:[#allocation5 + $0x728] sm:$0xff] %vm3160, 0
    %3391 = vst.msk [vmem:[#allocation5 + $0x730] sm:$0xff] %vm3160, 0
    %3392 = vst.msk [vmem:[#allocation5 + $0x738] sm:$0xff] %vm3160, 0
    %3393 = vst.msk [vmem:[#allocation5 + $0x740] sm:$0xff] %vm3160, 0
    %3394 = vst.msk [vmem:[#allocation5 + $0x748] sm:$0xff] %vm3160, 0
    %3395 = vst.msk [vmem:[#allocation5 + $0x750] sm:$0xff] %vm3160, 0
    %3396 = vst.msk [vmem:[#allocation5 + $0x758] sm:$0xff] %vm3160, 0
    %3397 = vst.msk [vmem:[#allocation5 + $0x760] sm:$0xff] %vm3160, 0
    %3398 = vst.msk [vmem:[#allocation5 + $0x768] sm:$0xff] %vm3160, 0
    %3399 = vst.msk [vmem:[#allocation5 + $0x770] sm:$0xff] %vm3160, 0
    %3400 = vst.msk [vmem:[#allocation5 + $0x778] sm:$0xff] %vm3160, 0
    %3401 = vst.msk [vmem:[#allocation5 + $0x780] sm:$0xff] %vm3160, 0
    %3402 = vst.msk [vmem:[#allocation5 + $0x788] sm:$0xff] %vm3160, 0
    %3403 = vst.msk [vmem:[#allocation5 + $0x790] sm:$0xff] %vm3160, 0
    %3404 = vst.msk [vmem:[#allocation5 + $0x798] sm:$0xff] %vm3160, 0
    %3405 = vst.msk [vmem:[#allocation5 + $0x7a0] sm:$0xff] %vm3160, 0
    %3406 = vst.msk [vmem:[#allocation5 + $0x7a8] sm:$0xff] %vm3160, 0
    %3407 = vst.msk [vmem:[#allocation5 + $0x7b0] sm:$0xff] %vm3160, 0
    %3408 = vst.msk [vmem:[#allocation5 + $0x7b8] sm:$0xff] %vm3160, 0
    %3409 = vst.msk [vmem:[#allocation5 + $0x7c0] sm:$0xff] %vm3160, 0
    %3410 = vst.msk [vmem:[#allocation5 + $0x7c8] sm:$0xff] %vm3160, 0
    %3411 = vst.msk [vmem:[#allocation5 + $0x7d0] sm:$0xff] %vm3160, 0
    %3412 = vst.msk [vmem:[#allocation5 + $0x7d8] sm:$0xff] %vm3160, 0
    %3413 = vst.msk [vmem:[#allocation5 + $0x7e0] sm:$0xff] %vm3160, 0
    %3414 = vst.msk [vmem:[#allocation5 + $0x7e8] sm:$0xff] %vm3160, 0
    %3415 = vst.msk [vmem:[#allocation5 + $0x7f0] sm:$0xff] %vm3160, 0
    %3416 = vst.msk [vmem:[#allocation5 + $0x7f8] sm:$0xff] %vm3160, 0
    %3417 = vst.msk [vmem:[#allocation5 + $0x800] sm:$0xff] %vm3160, 0
    loop: start=0, step=1, limit=14
    $region60: #{cnn_forward.1} parent=1 // loop_pre_header
      _
    $region61: #{cnn_forward.1} parent=1 // loop_header
      %s3419 = sphi 0, %s3423
      %p3420 = scmp.ge.s32.totalorder %s3419, 14
    $region62: #{cnn_forward.1} parent=1 // loop_header_branch
      %3422 = sbr.rel (%p3420) target = $region66
    $region63: #{cnn_forward.1} parent=1 // loop_body
      loop: start=0, step=1, limit=14
      $region67: #{cnn_forward.1} parent=63 // loop_pre_header
        _
      $region68: #{cnn_forward.1} parent=63 // loop_header
        %s3425 = sphi 0, %s3429
        %p3426 = scmp.ge.s32.totalorder %s3425, 14
      $region69: #{cnn_forward.1} parent=63 // loop_header_branch
        %3428 = sbr.rel (%p3426) target = $region73
      $region70: #{cnn_forward.1} parent=63 // loop_body
        %s3430 = smul.u32 %s3419, 928
        %s3431 = smul.u32 %s3425, 32
        %s3432 = sadd.s32 %s3430, %s3431
        %s3433 = sshra.s32 %s3432, 4
        %s3434 = sand.u32 %s3432, 15
        %s3435 = smul.addr %s3433, 8
        %s3436 = scalar_lea.vmem [#allocation4], %s3435
        %v3437 = vld [vmem:[%s3436] sm:$0xff]
        %s3438 = sadd.s32 %s3432, 16
        %s3439 = sshra.s32 %s3438, 4
        %s3440 = sand.u32 %s3438, 15
        %s3441 = smul.addr %s3439, 8
        %s3442 = scalar_lea.vmem [#allocation4], %s3441
        %v3443 = vld [vmem:[%s3442] sm:$0xff]
        %v3444 = vmax.bf16 %v3437, %v3443
        %s3445 = sadd.s32 %s3432, 464
        %s3446 = sshra.s32 %s3445, 4
        %s3447 = sand.u32 %s3445, 15
        %s3448 = smul.addr %s3446, 8
        %s3449 = scalar_lea.vmem [#allocation4], %s3448
        %v3450 = vld [vmem:[%s3449] sm:$0xff]
        %s3451 = sadd.s32 %s3432, 480
        %s3452 = sshra.s32 %s3451, 4
        %s3453 = sand.u32 %s3451, 15
        %s3454 = smul.addr %s3452, 8
        %s3455 = scalar_lea.vmem [#allocation4], %s3454
        %v3456 = vld [vmem:[%s3455] sm:$0xff]
        %v3457 = vmax.bf16 %v3450, %v3456
        %v3458 = vmax.bf16 %v3444, %v3457
        %s3459 = smul.u32 %s3419, 15
        %s3460 = sadd.s32 %s3459, %s3425
        %s3461 = smul.u32 %s3460, 16
        %s3462 = sadd.s32 %s3461, 256
        %s3463 = sshra.s32 %s3462, 4
        %s3464 = sand.u32 %s3462, 15
        %s3465 = smul.addr %s3463, 8
        %s3466 = scalar_lea.vmem [#allocation5], %s3465
        %3467 = vst.msk [vmem:[%s3466] sm:$0xff] %vm3160, %v3458
      $region71: #{cnn_forward.1} parent=63 // loop_footer
        %s3429 = sadd.s32 1, %s3425
      $region72: #{cnn_forward.1} parent=63 // loop_footer_branch
        %3424 = sbr.rel target = $region68
      $region73: #{cnn_forward.1} parent=63 // loop_exit
        _
    $region64: #{cnn_forward.1} parent=1 // loop_footer
      %s3423 = sadd.s32 1, %s3419
    $region65: #{cnn_forward.1} parent=1 // loop_footer_branch
      %3418 = sbr.rel target = $region61
    $region66: #{cnn_forward.1} parent=1 // loop_exit
      _
    loop: start=0, step=1, limit=14
    $region74: #{cnn_forward.1} parent=1 // loop_pre_header
      _
    $region75: #{cnn_forward.1} parent=1 // loop_header
      %s3469 = sphi 0, %s3473
      %p3470 = scmp.ge.s32.totalorder %s3469, 14
    $region76: #{cnn_forward.1} parent=1 // loop_header_branch
      %3472 = sbr.rel (%p3470) target = $region80
    $region77: #{cnn_forward.1} parent=1 // loop_body
      %s3474 = smul.u32 %s3469, 240
      %s3475 = sadd.s32 %s3474, 256
      %s3476 = sshra.s32 %s3474, 4
      %s3477 = sand.u32 %s3474, 15
      %s3478 = smul.addr %s3476, 8
      %s3479 = scalar_lea.vmem [#allocation5], %s3478
      %v3480 = vld [vmem:[%s3479] sm:$0xff]
      %v3481 = vld [vmem:[%s3479 + $0x8] sm:$0xff]
      %v3482 = vld [vmem:[%s3479 + $0x10] sm:$0xff]
      %v3483 = vld [vmem:[%s3479 + $0x18] sm:$0xff]
      %v3484 = vld [vmem:[%s3479 + $0x20] sm:$0xff]
      %v3485 = vld [vmem:[%s3479 + $0x28] sm:$0xff]
      %v3486 = vld [vmem:[%s3479 + $0x30] sm:$0xff]
      %v3487 = vld [vmem:[%s3479 + $0x38] sm:$0xff]
      %v3488 = vld [vmem:[%s3479 + $0x40] sm:$0xff]
      %v3489 = vld [vmem:[%s3479 + $0x48] sm:$0xff]
      %v3490 = vld [vmem:[%s3479 + $0x50] sm:$0xff]
      %v3491 = vld [vmem:[%s3479 + $0x58] sm:$0xff]
      %v3492 = vld [vmem:[%s3479 + $0x60] sm:$0xff]
      %v3493 = vld [vmem:[%s3479 + $0x68] sm:$0xff]
      %v3494 = vld [vmem:[%s3479 + $0x70] sm:$0xff]
      %3495 = vst.msk [vmem:[#allocation6] sm:$0xff] %vm3160, %v3480
      %3496 = vst.msk [vmem:[#allocation6 + $0x18] sm:$0xff] %vm3160, %v3481
      %3497 = vst.msk [vmem:[#allocation6 + $0x30] sm:$0xff] %vm3160, %v3482
      %3498 = vst.msk [vmem:[#allocation6 + $0x48] sm:$0xff] %vm3160, %v3483
      %3499 = vst.msk [vmem:[#allocation6 + $0x60] sm:$0xff] %vm3160, %v3484
      %3500 = vst.msk [vmem:[#allocation6 + $0x78] sm:$0xff] %vm3160, %v3485
      %3501 = vst.msk [vmem:[#allocation6 + $0x90] sm:$0xff] %vm3160, %v3486
      %3502 = vst.msk [vmem:[#allocation6 + $0xa8] sm:$0xff] %vm3160, %v3487
      %3503 = vst.msk [vmem:[#allocation6 + $0xc0] sm:$0xff] %vm3160, %v3488
      %3504 = vst.msk [vmem:[#allocation6 + $0xd8] sm:$0xff] %vm3160, %v3489
      %3505 = vst.msk [vmem:[#allocation6 + $0xf0] sm:$0xff] %vm3160, %v3490
      %3506 = vst.msk [vmem:[#allocation6 + $0x108] sm:$0xff] %vm3160, %v3491
      %3507 = vst.msk [vmem:[#allocation6 + $0x120] sm:$0xff] %vm3160, %v3492
      %3508 = vst.msk [vmem:[#allocation6 + $0x138] sm:$0xff] %vm3160, %v3493
      %3509 = vst.msk [vmem:[#allocation6 + $0x150] sm:$0xff] %vm3160, %v3494
      %s3510 = sadd.s32 %s3474, 16
      %s3511 = sshra.s32 %s3510, 4
      %s3512 = sand.u32 %s3510, 15
      %s3513 = smul.addr %s3511, 8
      %s3514 = scalar_lea.vmem [#allocation5], %s3513
      %v3515 = vld [vmem:[%s3514] sm:$0xff]
      %v3516 = vld [vmem:[%s3514 + $0x8] sm:$0xff]
      %v3517 = vld [vmem:[%s3514 + $0x10] sm:$0xff]
      %v3518 = vld [vmem:[%s3514 + $0x18] sm:$0xff]
      %v3519 = vld [vmem:[%s3514 + $0x20] sm:$0xff]
      %v3520 = vld [vmem:[%s3514 + $0x28] sm:$0xff]
      %v3521 = vld [vmem:[%s3514 + $0x30] sm:$0xff]
      %v3522 = vld [vmem:[%s3514 + $0x38] sm:$0xff]
      %v3523 = vld [vmem:[%s3514 + $0x40] sm:$0xff]
      %v3524 = vld [vmem:[%s3514 + $0x48] sm:$0xff]
      %v3525 = vld [vmem:[%s3514 + $0x50] sm:$0xff]
      %v3526 = vld [vmem:[%s3514 + $0x58] sm:$0xff]
      %v3527 = vld [vmem:[%s3514 + $0x60] sm:$0xff]
      %v3528 = vld [vmem:[%s3514 + $0x68] sm:$0xff]
      %v3529 = vld [vmem:[%s3514 + $0x70] sm:$0xff]
      %3545 = vrot.lane.b32.xlu0 %v3515, 32
      %v3546 = vpop.permute.xlu0 %3545
      %3547 = vrot.lane.b32.xlu0 %v3516, 32
      %v3548 = vpop.permute.xlu0 %3547
      %3549 = vrot.lane.b32.xlu0 %v3517, 32
      %v3550 = vpop.permute.xlu0 %3549
      %3551 = vrot.lane.b32.xlu0 %v3518, 32
      %v3552 = vpop.permute.xlu0 %3551
      %3553 = vrot.lane.b32.xlu0 %v3519, 32
      %v3554 = vpop.permute.xlu0 %3553
      %3555 = vrot.lane.b32.xlu0 %v3520, 32
      %v3556 = vpop.permute.xlu0 %3555
      %3557 = vrot.lane.b32.xlu0 %v3521, 32
      %v3558 = vpop.permute.xlu0 %3557
      %3559 = vrot.lane.b32.xlu0 %v3522, 32
      %v3560 = vpop.permute.xlu0 %3559
      %3561 = vrot.lane.b32.xlu0 %v3523, 32
      %v3562 = vpop.permute.xlu0 %3561
      %3563 = vrot.lane.b32.xlu0 %v3524, 32
      %v3564 = vpop.permute.xlu0 %3563
      %3565 = vrot.lane.b32.xlu0 %v3525, 32
      %v3566 = vpop.permute.xlu0 %3565
      %3567 = vrot.lane.b32.xlu0 %v3526, 32
      %v3568 = vpop.permute.xlu0 %3567
      %3569 = vrot.lane.b32.xlu0 %v3527, 32
      %v3570 = vpop.permute.xlu0 %3569
      %3571 = vrot.lane.b32.xlu0 %v3528, 32
      %v3572 = vpop.permute.xlu0 %3571
      %3573 = vrot.lane.b32.xlu0 %v3529, 32
      %v3574 = vpop.permute.xlu0 %3573
      %vm3590 = vcmask 523520
      %3591 = vst.msk [vmem:[#allocation6] sm:$0xff] %vm3590, %v3546
      %3592 = vst.msk [vmem:[#allocation6 + $0x18] sm:$0xff] %vm3590, %v3548
      %3593 = vst.msk [vmem:[#allocation6 + $0x30] sm:$0xff] %vm3590, %v3550
      %3594 = vst.msk [vmem:[#allocation6 + $0x48] sm:$0xff] %vm3590, %v3552
      %3595 = vst.msk [vmem:[#allocation6 + $0x60] sm:$0xff] %vm3590, %v3554
      %3596 = vst.msk [vmem:[#allocation6 + $0x78] sm:$0xff] %vm3590, %v3556
      %3597 = vst.msk [vmem:[#allocation6 + $0x90] sm:$0xff] %vm3590, %v3558
      %3598 = vst.msk [vmem:[#allocation6 + $0xa8] sm:$0xff] %vm3590, %v3560
      %3599 = vst.msk [vmem:[#allocation6 + $0xc0] sm:$0xff] %vm3590, %v3562
      %3600 = vst.msk [vmem:[#allocation6 + $0xd8] sm:$0xff] %vm3590, %v3564
      %3601 = vst.msk [vmem:[#allocation6 + $0xf0] sm:$0xff] %vm3590, %v3566
      %3602 = vst.msk [vmem:[#allocation6 + $0x108] sm:$0xff] %vm3590, %v3568
      %3603 = vst.msk [vmem:[#allocation6 + $0x120] sm:$0xff] %vm3590, %v3570
      %3604 = vst.msk [vmem:[#allocation6 + $0x138] sm:$0xff] %vm3590, %v3572
      %3605 = vst.msk [vmem:[#allocation6 + $0x150] sm:$0xff] %vm3590, %v3574
      %s3606 = sadd.s32 %s3474, 32
      %s3607 = sshra.s32 %s3606, 4
      %s3608 = sand.u32 %s3606, 15
      %s3609 = smul.addr %s3607, 8
      %s3610 = scalar_lea.vmem [#allocation5], %s3609
      %v3611 = vld [vmem:[%s3610] sm:$0xff]
      %v3612 = vld [vmem:[%s3610 + $0x8] sm:$0xff]
      %v3613 = vld [vmem:[%s3610 + $0x10] sm:$0xff]
      %v3614 = vld [vmem:[%s3610 + $0x18] sm:$0xff]
      %v3615 = vld [vmem:[%s3610 + $0x20] sm:$0xff]
      %v3616 = vld [vmem:[%s3610 + $0x28] sm:$0xff]
      %v3617 = vld [vmem:[%s3610 + $0x30] sm:$0xff]
      %v3618 = vld [vmem:[%s3610 + $0x38] sm:$0xff]
      %v3619 = vld [vmem:[%s3610 + $0x40] sm:$0xff]
      %v3620 = vld [vmem:[%s3610 + $0x48] sm:$0xff]
      %v3621 = vld [vmem:[%s3610 + $0x50] sm:$0xff]
      %v3622 = vld [vmem:[%s3610 + $0x58] sm:$0xff]
      %v3623 = vld [vmem:[%s3610 + $0x60] sm:$0xff]
      %v3624 = vld [vmem:[%s3610 + $0x68] sm:$0xff]
      %v3625 = vld [vmem:[%s3610 + $0x70] sm:$0xff]
      %3641 = vrot.lane.b32.xlu0 %v3611, 64
      %v3642 = vpop.permute.xlu0 %3641
      %3643 = vrot.lane.b32.xlu0 %v3612, 64
      %v3644 = vpop.permute.xlu0 %3643
      %3645 = vrot.lane.b32.xlu0 %v3613, 64
      %v3646 = vpop.permute.xlu0 %3645
      %3647 = vrot.lane.b32.xlu0 %v3614, 64
      %v3648 = vpop.permute.xlu0 %3647
      %3649 = vrot.lane.b32.xlu0 %v3615, 64
      %v3650 = vpop.permute.xlu0 %3649
      %3651 = vrot.lane.b32.xlu0 %v3616, 64
      %v3652 = vpop.permute.xlu0 %3651
      %3653 = vrot.lane.b32.xlu0 %v3617, 64
      %v3654 = vpop.permute.xlu0 %3653
      %3655 = vrot.lane.b32.xlu0 %v3618, 64
      %v3656 = vpop.permute.xlu0 %3655
      %3657 = vrot.lane.b32.xlu0 %v3619, 64
      %v3658 = vpop.permute.xlu0 %3657
      %3659 = vrot.lane.b32.xlu0 %v3620, 64
      %v3660 = vpop.permute.xlu0 %3659
      %3661 = vrot.lane.b32.xlu0 %v3621, 64
      %v3662 = vpop.permute.xlu0 %3661
      %3663 = vrot.lane.b32.xlu0 %v3622, 64
      %v3664 = vpop.permute.xlu0 %3663
      %3665 = vrot.lane.b32.xlu0 %v3623, 64
      %v3666 = vpop.permute.xlu0 %3665
      %3667 = vrot.lane.b32.xlu0 %v3624, 64
      %v3668 = vpop.permute.xlu0 %3667
      %3669 = vrot.lane.b32.xlu0 %v3625, 64
      %v3670 = vpop.permute.xlu0 %3669
      %vm3686 = vcmask 785920
      %3687 = vst.msk [vmem:[#allocation6] sm:$0xff] %vm3686, %v3642
      %3688 = vst.msk [vmem:[#allocation6 + $0x18] sm:$0xff] %vm3686, %v3644
      %3689 = vst.msk [vmem:[#allocation6 + $0x30] sm:$0xff] %vm3686, %v3646
      %3690 = vst.msk [vmem:[#allocation6 + $0x48] sm:$0xff] %vm3686, %v3648
      %3691 = vst.msk [vmem:[#allocation6 + $0x60] sm:$0xff] %vm3686, %v3650
      %3692 = vst.msk [vmem:[#allocation6 + $0x78] sm:$0xff] %vm3686, %v3652
      %3693 = vst.msk [vmem:[#allocation6 + $0x90] sm:$0xff] %vm3686, %v3654
      %3694 = vst.msk [vmem:[#allocation6 + $0xa8] sm:$0xff] %vm3686, %v3656
      %3695 = vst.msk [vmem:[#allocation6 + $0xc0] sm:$0xff] %vm3686, %v3658
      %3696 = vst.msk [vmem:[#allocation6 + $0xd8] sm:$0xff] %vm3686, %v3660
      %3697 = vst.msk [vmem:[#allocation6 + $0xf0] sm:$0xff] %vm3686, %v3662
      %3698 = vst.msk [vmem:[#allocation6 + $0x108] sm:$0xff] %vm3686, %v3664
      %3699 = vst.msk [vmem:[#allocation6 + $0x120] sm:$0xff] %vm3686, %v3666
      %3700 = vst.msk [vmem:[#allocation6 + $0x138] sm:$0xff] %vm3686, %v3668
      %3701 = vst.msk [vmem:[#allocation6 + $0x150] sm:$0xff] %vm3686, %v3670
      %s3702 = sadd.s32 %s3474, 240
      %s3703 = sshra.s32 %s3702, 4
      %s3704 = sand.u32 %s3702, 15
      %s3705 = smul.addr %s3703, 8
      %s3706 = scalar_lea.vmem [#allocation5], %s3705
      %v3707 = vld [vmem:[%s3706] sm:$0xff]
      %v3708 = vld [vmem:[%s3706 + $0x8] sm:$0xff]
      %v3709 = vld [vmem:[%s3706 + $0x10] sm:$0xff]
      %v3710 = vld [vmem:[%s3706 + $0x18] sm:$0xff]
      %v3711 = vld [vmem:[%s3706 + $0x20] sm:$0xff]
      %v3712 = vld [vmem:[%s3706 + $0x28] sm:$0xff]
      %v3713 = vld [vmem:[%s3706 + $0x30] sm:$0xff]
      %v3714 = vld [vmem:[%s3706 + $0x38] sm:$0xff]
      %v3715 = vld [vmem:[%s3706 + $0x40] sm:$0xff]
      %v3716 = vld [vmem:[%s3706 + $0x48] sm:$0xff]
      %v3717 = vld [vmem:[%s3706 + $0x50] sm:$0xff]
      %v3718 = vld [vmem:[%s3706 + $0x58] sm:$0xff]
      %v3719 = vld [vmem:[%s3706 + $0x60] sm:$0xff]
      %v3720 = vld [vmem:[%s3706 + $0x68] sm:$0xff]
      %v3721 = vld [vmem:[%s3706 + $0x70] sm:$0xff]
      %3737 = vrot.lane.b32.xlu0 %v3707, 96
      %v3738 = vpop.permute.xlu0 %3737
      %3739 = vrot.lane.b32.xlu0 %v3708, 96
      %v3740 = vpop.permute.xlu0 %3739
      %3741 = vrot.lane.b32.xlu0 %v3709, 96
      %v3742 = vpop.permute.xlu0 %3741
      %3743 = vrot.lane.b32.xlu0 %v3710, 96
      %v3744 = vpop.permute.xlu0 %3743
      %3745 = vrot.lane.b32.xlu0 %v3711, 96
      %v3746 = vpop.permute.xlu0 %3745
      %3747 = vrot.lane.b32.xlu0 %v3712, 96
      %v3748 = vpop.permute.xlu0 %3747
      %3749 = vrot.lane.b32.xlu0 %v3713, 96
      %v3750 = vpop.permute.xlu0 %3749
      %3751 = vrot.lane.b32.xlu0 %v3714, 96
      %v3752 = vpop.permute.xlu0 %3751
      %3753 = vrot.lane.b32.xlu0 %v3715, 96
      %v3754 = vpop.permute.xlu0 %3753
      %3755 = vrot.lane.b32.xlu0 %v3716, 96
      %v3756 = vpop.permute.xlu0 %3755
      %3757 = vrot.lane.b32.xlu0 %v3717, 96
      %v3758 = vpop.permute.xlu0 %3757
      %3759 = vrot.lane.b32.xlu0 %v3718, 96
      %v3760 = vpop.permute.xlu0 %3759
      %3761 = vrot.lane.b32.xlu0 %v3719, 96
      %v3762 = vpop.permute.xlu0 %3761
      %3763 = vrot.lane.b32.xlu0 %v3720, 96
      %v3764 = vpop.permute.xlu0 %3763
      %3765 = vrot.lane.b32.xlu0 %v3721, 96
      %v3766 = vpop.permute.xlu0 %3765
      %vm3782 = vcmask 1048320
      %3783 = vst.msk [vmem:[#allocation6] sm:$0xff] %vm3782, %v3738
      %3784 = vst.msk [vmem:[#allocation6 + $0x18] sm:$0xff] %vm3782, %v3740
      %3785 = vst.msk [vmem:[#allocation6 + $0x30] sm:$0xff] %vm3782, %v3742
      %3786 = vst.msk [vmem:[#allocation6 + $0x48] sm:$0xff] %vm3782, %v3744
      %3787 = vst.msk [vmem:[#allocation6 + $0x60] sm:$0xff] %vm3782, %v3746
      %3788 = vst.msk [vmem:[#allocation6 + $0x78] sm:$0xff] %vm3782, %v3748
      %3789 = vst.msk [vmem:[#allocation6 + $0x90] sm:$0xff] %vm3782, %v3750
      %3790 = vst.msk [vmem:[#allocation6 + $0xa8] sm:$0xff] %vm3782, %v3752
      %3791 = vst.msk [vmem:[#allocation6 + $0xc0] sm:$0xff] %vm3782, %v3754
      %3792 = vst.msk [vmem:[#allocation6 + $0xd8] sm:$0xff] %vm3782, %v3756
      %3793 = vst.msk [vmem:[#allocation6 + $0xf0] sm:$0xff] %vm3782, %v3758
      %3794 = vst.msk [vmem:[#allocation6 + $0x108] sm:$0xff] %vm3782, %v3760
      %3795 = vst.msk [vmem:[#allocation6 + $0x120] sm:$0xff] %vm3782, %v3762
      %3796 = vst.msk [vmem:[#allocation6 + $0x138] sm:$0xff] %vm3782, %v3764
      %3797 = vst.msk [vmem:[#allocation6 + $0x150] sm:$0xff] %vm3782, %v3766
      %s3798 = sshra.s32 %s3475, 4
      %s3799 = sand.u32 %s3475, 15
      %s3800 = smul.addr %s3798, 8
      %s3801 = scalar_lea.vmem [#allocation5], %s3800
      %v3802 = vld [vmem:[%s3801] sm:$0xff]
      %v3803 = vld [vmem:[%s3801 + $0x8] sm:$0xff]
      %v3804 = vld [vmem:[%s3801 + $0x10] sm:$0xff]
      %v3805 = vld [vmem:[%s3801 + $0x18] sm:$0xff]
      %v3806 = vld [vmem:[%s3801 + $0x20] sm:$0xff]
      %v3807 = vld [vmem:[%s3801 + $0x28] sm:$0xff]
      %v3808 = vld [vmem:[%s3801 + $0x30] sm:$0xff]
      %v3809 = vld [vmem:[%s3801 + $0x38] sm:$0xff]
      %v3810 = vld [vmem:[%s3801 + $0x40] sm:$0xff]
      %v3811 = vld [vmem:[%s3801 + $0x48] sm:$0xff]
      %v3812 = vld [vmem:[%s3801 + $0x50] sm:$0xff]
      %v3813 = vld [vmem:[%s3801 + $0x58] sm:$0xff]
      %v3814 = vld [vmem:[%s3801 + $0x60] sm:$0xff]
      %v3815 = vld [vmem:[%s3801 + $0x68] sm:$0xff]
      %v3816 = vld [vmem:[%s3801 + $0x70] sm:$0xff]
      %3817 = vst.msk [vmem:[#allocation6 + $0x8] sm:$0xff] %vm3160, %v3802
      %3818 = vst.msk [vmem:[#allocation6 + $0x20] sm:$0xff] %vm3160, %v3803
      %3819 = vst.msk [vmem:[#allocation6 + $0x38] sm:$0xff] %vm3160, %v3804
      %3820 = vst.msk [vmem:[#allocation6 + $0x50] sm:$0xff] %vm3160, %v3805
      %3821 = vst.msk [vmem:[#allocation6 + $0x68] sm:$0xff] %vm3160, %v3806
      %3822 = vst.msk [vmem:[#allocation6 + $0x80] sm:$0xff] %vm3160, %v3807
      %3823 = vst.msk [vmem:[#allocation6 + $0x98] sm:$0xff] %vm3160, %v3808
      %3824 = vst.msk [vmem:[#allocation6 + $0xb0] sm:$0xff] %vm3160, %v3809
      %3825 = vst.msk [vmem:[#allocation6 + $0xc8] sm:$0xff] %vm3160, %v3810
      %3826 = vst.msk [vmem:[#allocation6 + $0xe0] sm:$0xff] %vm3160, %v3811
      %3827 = vst.msk [vmem:[#allocation6 + $0xf8] sm:$0xff] %vm3160, %v3812
      %3828 = vst.msk [vmem:[#allocation6 + $0x110] sm:$0xff] %vm3160, %v3813
      %3829 = vst.msk [vmem:[#allocation6 + $0x128] sm:$0xff] %vm3160, %v3814
      %3830 = vst.msk [vmem:[#allocation6 + $0x140] sm:$0xff] %vm3160, %v3815
      %3831 = vst.msk [vmem:[#allocation6 + $0x158] sm:$0xff] %vm3160, %v3816
      %s3832 = sadd.s32 %s3474, 272
      %s3833 = sshra.s32 %s3832, 4
      %s3834 = sand.u32 %s3832, 15
      %s3835 = smul.addr %s3833, 8
      %s3836 = scalar_lea.vmem [#allocation5], %s3835
      %v3837 = vld [vmem:[%s3836] sm:$0xff]
      %v3838 = vld [vmem:[%s3836 + $0x8] sm:$0xff]
      %v3839 = vld [vmem:[%s3836 + $0x10] sm:$0xff]
      %v3840 = vld [vmem:[%s3836 + $0x18] sm:$0xff]
      %v3841 = vld [vmem:[%s3836 + $0x20] sm:$0xff]
      %v3842 = vld [vmem:[%s3836 + $0x28] sm:$0xff]
      %v3843 = vld [vmem:[%s3836 + $0x30] sm:$0xff]
      %v3844 = vld [vmem:[%s3836 + $0x38] sm:$0xff]
      %v3845 = vld [vmem:[%s3836 + $0x40] sm:$0xff]
      %v3846 = vld [vmem:[%s3836 + $0x48] sm:$0xff]
      %v3847 = vld [vmem:[%s3836 + $0x50] sm:$0xff]
      %v3848 = vld [vmem:[%s3836 + $0x58] sm:$0xff]
      %v3849 = vld [vmem:[%s3836 + $0x60] sm:$0xff]
      %v3850 = vld [vmem:[%s3836 + $0x68] sm:$0xff]
      %v3851 = vld [vmem:[%s3836 + $0x70] sm:$0xff]
      %3867 = vrot.lane.b32.xlu0 %v3837, 32
      %v3868 = vpop.permute.xlu0 %3867
      %3869 = vrot.lane.b32.xlu0 %v3838, 32
      %v3870 = vpop.permute.xlu0 %3869
      %3871 = vrot.lane.b32.xlu0 %v3839, 32
      %v3872 = vpop.permute.xlu0 %3871
      %3873 = vrot.lane.b32.xlu0 %v3840, 32
      %v3874 = vpop.permute.xlu0 %3873
      %3875 = vrot.lane.b32.xlu0 %v3841, 32
      %v3876 = vpop.permute.xlu0 %3875
      %3877 = vrot.lane.b32.xlu0 %v3842, 32
      %v3878 = vpop.permute.xlu0 %3877
      %3879 = vrot.lane.b32.xlu0 %v3843, 32
      %v3880 = vpop.permute.xlu0 %3879
      %3881 = vrot.lane.b32.xlu0 %v3844, 32
      %v3882 = vpop.permute.xlu0 %3881
      %3883 = vrot.lane.b32.xlu0 %v3845, 32
      %v3884 = vpop.permute.xlu0 %3883
      %3885 = vrot.lane.b32.xlu0 %v3846, 32
      %v3886 = vpop.permute.xlu0 %3885
      %3887 = vrot.lane.b32.xlu0 %v3847, 32
      %v3888 = vpop.permute.xlu0 %3887
      %3889 = vrot.lane.b32.xlu0 %v3848, 32
      %v3890 = vpop.permute.xlu0 %3889
      %3891 = vrot.lane.b32.xlu0 %v3849, 32
      %v3892 = vpop.permute.xlu0 %3891
      %3893 = vrot.lane.b32.xlu0 %v3850, 32
      %v3894 = vpop.permute.xlu0 %3893
      %3895 = vrot.lane.b32.xlu0 %v3851, 32
      %v3896 = vpop.permute.xlu0 %3895
      %3912 = vst.msk [vmem:[#allocation6 + $0x8] sm:$0xff] %vm3590, %v3868
      %3913 = vst.msk [vmem:[#allocation6 + $0x20] sm:$0xff] %vm3590, %v3870
      %3914 = vst.msk [vmem:[#allocation6 + $0x38] sm:$0xff] %vm3590, %v3872
      %3915 = vst.msk [vmem:[#allocation6 + $0x50] sm:$0xff] %vm3590, %v3874
      %3916 = vst.msk [vmem:[#allocation6 + $0x68] sm:$0xff] %vm3590, %v3876
      %3917 = vst.msk [vmem:[#allocation6 + $0x80] sm:$0xff] %vm3590, %v3878
      %3918 = vst.msk [vmem:[#allocation6 + $0x98] sm:$0xff] %vm3590, %v3880
      %3919 = vst.msk [vmem:[#allocation6 + $0xb0] sm:$0xff] %vm3590, %v3882
      %3920 = vst.msk [vmem:[#allocation6 + $0xc8] sm:$0xff] %vm3590, %v3884
      %3921 = vst.msk [vmem:[#allocation6 + $0xe0] sm:$0xff] %vm3590, %v3886
      %3922 = vst.msk [vmem:[#allocation6 + $0xf8] sm:$0xff] %vm3590, %v3888
      %3923 = vst.msk [vmem:[#allocation6 + $0x110] sm:$0xff] %vm3590, %v3890
      %3924 = vst.msk [vmem:[#allocation6 + $0x128] sm:$0xff] %vm3590, %v3892
      %3925 = vst.msk [vmem:[#allocation6 + $0x140] sm:$0xff] %vm3590, %v3894
      %3926 = vst.msk [vmem:[#allocation6 + $0x158] sm:$0xff] %vm3590, %v3896
      %s3927 = sadd.s32 %s3474, 480
      %s3928 = sshra.s32 %s3927, 4
      %s3929 = sand.u32 %s3927, 15
      %s3930 = smul.addr %s3928, 8
      %s3931 = scalar_lea.vmem [#allocation5], %s3930
      %v3932 = vld [vmem:[%s3931] sm:$0xff]
      %v3933 = vld [vmem:[%s3931 + $0x8] sm:$0xff]
      %v3934 = vld [vmem:[%s3931 + $0x10] sm:$0xff]
      %v3935 = vld [vmem:[%s3931 + $0x18] sm:$0xff]
      %v3936 = vld [vmem:[%s3931 + $0x20] sm:$0xff]
      %v3937 = vld [vmem:[%s3931 + $0x28] sm:$0xff]
      %v3938 = vld [vmem:[%s3931 + $0x30] sm:$0xff]
      %v3939 = vld [vmem:[%s3931 + $0x38] sm:$0xff]
      %v3940 = vld [vmem:[%s3931 + $0x40] sm:$0xff]
      %v3941 = vld [vmem:[%s3931 + $0x48] sm:$0xff]
      %v3942 = vld [vmem:[%s3931 + $0x50] sm:$0xff]
      %v3943 = vld [vmem:[%s3931 + $0x58] sm:$0xff]
      %v3944 = vld [vmem:[%s3931 + $0x60] sm:$0xff]
      %v3945 = vld [vmem:[%s3931 + $0x68] sm:$0xff]
      %v3946 = vld [vmem:[%s3931 + $0x70] sm:$0xff]
      %3962 = vrot.lane.b32.xlu0 %v3932, 64
      %v3963 = vpop.permute.xlu0 %3962
      %3964 = vrot.lane.b32.xlu0 %v3933, 64
      %v3965 = vpop.permute.xlu0 %3964
      %3966 = vrot.lane.b32.xlu0 %v3934, 64
      %v3967 = vpop.permute.xlu0 %3966
      %3968 = vrot.lane.b32.xlu0 %v3935, 64
      %v3969 = vpop.permute.xlu0 %3968
      %3970 = vrot.lane.b32.xlu0 %v3936, 64
      %v3971 = vpop.permute.xlu0 %3970
      %3972 = vrot.lane.b32.xlu0 %v3937, 64
      %v3973 = vpop.permute.xlu0 %3972
      %3974 = vrot.lane.b32.xlu0 %v3938, 64
      %v3975 = vpop.permute.xlu0 %3974
      %3976 = vrot.lane.b32.xlu0 %v3939, 64
      %v3977 = vpop.permute.xlu0 %3976
      %3978 = vrot.lane.b32.xlu0 %v3940, 64
      %v3979 = vpop.permute.xlu0 %3978
      %3980 = vrot.lane.b32.xlu0 %v3941, 64
      %v3981 = vpop.permute.xlu0 %3980
      %3982 = vrot.lane.b32.xlu0 %v3942, 64
      %v3983 = vpop.permute.xlu0 %3982
      %3984 = vrot.lane.b32.xlu0 %v3943, 64
      %v3985 = vpop.permute.xlu0 %3984
      %3986 = vrot.lane.b32.xlu0 %v3944, 64
      %v3987 = vpop.permute.xlu0 %3986
      %3988 = vrot.lane.b32.xlu0 %v3945, 64
      %v3989 = vpop.permute.xlu0 %3988
      %3990 = vrot.lane.b32.xlu0 %v3946, 64
      %v3991 = vpop.permute.xlu0 %3990
      %4007 = vst.msk [vmem:[#allocation6 + $0x8] sm:$0xff] %vm3686, %v3963
      %4008 = vst.msk [vmem:[#allocation6 + $0x20] sm:$0xff] %vm3686, %v3965
      %4009 = vst.msk [vmem:[#allocation6 + $0x38] sm:$0xff] %vm3686, %v3967
      %4010 = vst.msk [vmem:[#allocation6 + $0x50] sm:$0xff] %vm3686, %v3969
      %4011 = vst.msk [vmem:[#allocation6 + $0x68] sm:$0xff] %vm3686, %v3971
      %4012 = vst.msk [vmem:[#allocation6 + $0x80] sm:$0xff] %vm3686, %v3973
      %4013 = vst.msk [vmem:[#allocation6 + $0x98] sm:$0xff] %vm3686, %v3975
      %4014 = vst.msk [vmem:[#allocation6 + $0xb0] sm:$0xff] %vm3686, %v3977
      %4015 = vst.msk [vmem:[#allocation6 + $0xc8] sm:$0xff] %vm3686, %v3979
      %4016 = vst.msk [vmem:[#allocation6 + $0xe0] sm:$0xff] %vm3686, %v3981
      %4017 = vst.msk [vmem:[#allocation6 + $0xf8] sm:$0xff] %vm3686, %v3983
      %4018 = vst.msk [vmem:[#allocation6 + $0x110] sm:$0xff] %vm3686, %v3985
      %4019 = vst.msk [vmem:[#allocation6 + $0x128] sm:$0xff] %vm3686, %v3987
      %4020 = vst.msk [vmem:[#allocation6 + $0x140] sm:$0xff] %vm3686, %v3989
      %4021 = vst.msk [vmem:[#allocation6 + $0x158] sm:$0xff] %vm3686, %v3991
      %s4022 = sadd.s32 %s3474, 496
      %s4023 = sshra.s32 %s4022, 4
      %s4024 = sand.u32 %s4022, 15
      %s4025 = smul.addr %s4023, 8
      %s4026 = scalar_lea.vmem [#allocation5], %s4025
      %v4027 = vld [vmem:[%s4026] sm:$0xff]
      %v4028 = vld [vmem:[%s4026 + $0x8] sm:$0xff]
      %v4029 = vld [vmem:[%s4026 + $0x10] sm:$0xff]
      %v4030 = vld [vmem:[%s4026 + $0x18] sm:$0xff]
      %v4031 = vld [vmem:[%s4026 + $0x20] sm:$0xff]
      %v4032 = vld [vmem:[%s4026 + $0x28] sm:$0xff]
      %v4033 = vld [vmem:[%s4026 + $0x30] sm:$0xff]
      %v4034 = vld [vmem:[%s4026 + $0x38] sm:$0xff]
      %v4035 = vld [vmem:[%s4026 + $0x40] sm:$0xff]
      %v4036 = vld [vmem:[%s4026 + $0x48] sm:$0xff]
      %v4037 = vld [vmem:[%s4026 + $0x50] sm:$0xff]
      %v4038 = vld [vmem:[%s4026 + $0x58] sm:$0xff]
      %v4039 = vld [vmem:[%s4026 + $0x60] sm:$0xff]
      %v4040 = vld [vmem:[%s4026 + $0x68] sm:$0xff]
      %v4041 = vld [vmem:[%s4026 + $0x70] sm:$0xff]
      %4057 = vrot.lane.b32.xlu0 %v4027, 96
      %v4058 = vpop.permute.xlu0 %4057
      %4059 = vrot.lane.b32.xlu0 %v4028, 96
      %v4060 = vpop.permute.xlu0 %4059
      %4061 = vrot.lane.b32.xlu0 %v4029, 96
      %v4062 = vpop.permute.xlu0 %4061
      %4063 = vrot.lane.b32.xlu0 %v4030, 96
      %v4064 = vpop.permute.xlu0 %4063
      %4065 = vrot.lane.b32.xlu0 %v4031, 96
      %v4066 = vpop.permute.xlu0 %4065
      %4067 = vrot.lane.b32.xlu0 %v4032, 96
      %v4068 = vpop.permute.xlu0 %4067
      %4069 = vrot.lane.b32.xlu0 %v4033, 96
      %v4070 = vpop.permute.xlu0 %4069
      %4071 = vrot.lane.b32.xlu0 %v4034, 96
      %v4072 = vpop.permute.xlu0 %4071
      %4073 = vrot.lane.b32.xlu0 %v4035, 96
      %v4074 = vpop.permute.xlu0 %4073
      %4075 = vrot.lane.b32.xlu0 %v4036, 96
      %v4076 = vpop.permute.xlu0 %4075
      %4077 = vrot.lane.b32.xlu0 %v4037, 96
      %v4078 = vpop.permute.xlu0 %4077
      %4079 = vrot.lane.b32.xlu0 %v4038, 96
      %v4080 = vpop.permute.xlu0 %4079
      %4081 = vrot.lane.b32.xlu0 %v4039, 96
      %v4082 = vpop.permute.xlu0 %4081
      %4083 = vrot.lane.b32.xlu0 %v4040, 96
      %v4084 = vpop.permute.xlu0 %4083
      %4085 = vrot.lane.b32.xlu0 %v4041, 96
      %v4086 = vpop.permute.xlu0 %4085
      %4102 = vst.msk [vmem:[#allocation6 + $0x8] sm:$0xff] %vm3782, %v4058
      %4103 = vst.msk [vmem:[#allocation6 + $0x20] sm:$0xff] %vm3782, %v4060
      %4104 = vst.msk [vmem:[#allocation6 + $0x38] sm:$0xff] %vm3782, %v4062
      %4105 = vst.msk [vmem:[#allocation6 + $0x50] sm:$0xff] %vm3782, %v4064
      %4106 = vst.msk [vmem:[#allocation6 + $0x68] sm:$0xff] %vm3782, %v4066
      %4107 = vst.msk [vmem:[#allocation6 + $0x80] sm:$0xff] %vm3782, %v4068
      %4108 = vst.msk [vmem:[#allocation6 + $0x98] sm:$0xff] %vm3782, %v4070
      %4109 = vst.msk [vmem:[#allocation6 + $0xb0] sm:$0xff] %vm3782, %v4072
      %4110 = vst.msk [vmem:[#allocation6 + $0xc8] sm:$0xff] %vm3782, %v4074
      %4111 = vst.msk [vmem:[#allocation6 + $0xe0] sm:$0xff] %vm3782, %v4076
      %4112 = vst.msk [vmem:[#allocation6 + $0xf8] sm:$0xff] %vm3782, %v4078
      %4113 = vst.msk [vmem:[#allocation6 + $0x110] sm:$0xff] %vm3782, %v4080
      %4114 = vst.msk [vmem:[#allocation6 + $0x128] sm:$0xff] %vm3782, %v4082
      %4115 = vst.msk [vmem:[#allocation6 + $0x140] sm:$0xff] %vm3782, %v4084
      %4116 = vst.msk [vmem:[#allocation6 + $0x158] sm:$0xff] %vm3782, %v4086
      %s4117 = sadd.s32 %s3474, 512
      %s4118 = sshra.s32 %s4117, 4
      %s4119 = sand.u32 %s4117, 15
      %s4120 = smul.addr %s4118, 8
      %s4121 = scalar_lea.vmem [#allocation5], %s4120
      %v4122 = vld [vmem:[%s4121] sm:$0xff]
      %v4123 = vld [vmem:[%s4121 + $0x8] sm:$0xff]
      %v4124 = vld [vmem:[%s4121 + $0x10] sm:$0xff]
      %v4125 = vld [vmem:[%s4121 + $0x18] sm:$0xff]
      %v4126 = vld [vmem:[%s4121 + $0x20] sm:$0xff]
      %v4127 = vld [vmem:[%s4121 + $0x28] sm:$0xff]
      %v4128 = vld [vmem:[%s4121 + $0x30] sm:$0xff]
      %v4129 = vld [vmem:[%s4121 + $0x38] sm:$0xff]
      %v4130 = vld [vmem:[%s4121 + $0x40] sm:$0xff]
      %v4131 = vld [vmem:[%s4121 + $0x48] sm:$0xff]
      %v4132 = vld [vmem:[%s4121 + $0x50] sm:$0xff]
      %v4133 = vld [vmem:[%s4121 + $0x58] sm:$0xff]
      %v4134 = vld [vmem:[%s4121 + $0x60] sm:$0xff]
      %v4135 = vld [vmem:[%s4121 + $0x68] sm:$0xff]
      %v4136 = vld [vmem:[%s4121 + $0x70] sm:$0xff]
      %4137 = vst.msk [vmem:[#allocation6 + $0x10] sm:$0xff] %vm3160, %v4122
      %4138 = vst.msk [vmem:[#allocation6 + $0x28] sm:$0xff] %vm3160, %v4123
      %4139 = vst.msk [vmem:[#allocation6 + $0x40] sm:$0xff] %vm3160, %v4124
      %4140 = vst.msk [vmem:[#allocation6 + $0x58] sm:$0xff] %vm3160, %v4125
      %4141 = vst.msk [vmem:[#allocation6 + $0x70] sm:$0xff] %vm3160, %v4126
      %4142 = vst.msk [vmem:[#allocation6 + $0x88] sm:$0xff] %vm3160, %v4127
      %4143 = vst.msk [vmem:[#allocation6 + $0xa0] sm:$0xff] %vm3160, %v4128
      %4144 = vst.msk [vmem:[#allocation6 + $0xb8] sm:$0xff] %vm3160, %v4129
      %4145 = vst.msk [vmem:[#allocation6 + $0xd0] sm:$0xff] %vm3160, %v4130
      %4146 = vst.msk [vmem:[#allocation6 + $0xe8] sm:$0xff] %vm3160, %v4131
      %4147 = vst.msk [vmem:[#allocation6 + $0x100] sm:$0xff] %vm3160, %v4132
      %4148 = vst.msk [vmem:[#allocation6 + $0x118] sm:$0xff] %vm3160, %v4133
      %4149 = vst.msk [vmem:[#allocation6 + $0x130] sm:$0xff] %vm3160, %v4134
      %4150 = vst.msk [vmem:[#allocation6 + $0x148] sm:$0xff] %vm3160, %v4135
      %4151 = vst.msk [vmem:[#allocation6 + $0x160] sm:$0xff] %vm3160, %v4136
      %v4152 = vld [vmem:[#allocation6] sm:$0xff]
      %v4153 = vld [vmem:[#allocation6 + $0x8] sm:$0xff]
      %v4154 = vld [vmem:[#allocation6 + $0x10] sm:$0xff]
      %v4155 = vld [vmem:[#allocation6 + $0x18] sm:$0xff]
      %v4156 = vld [vmem:[#allocation6 + $0x20] sm:$0xff]
      %v4157 = vld [vmem:[#allocation6 + $0x28] sm:$0xff]
      %v4158 = vld [vmem:[#allocation6 + $0x30] sm:$0xff]
      %v4159 = vld [vmem:[#allocation6 + $0x38] sm:$0xff]
      %v4160 = vld [vmem:[#allocation6 + $0x40] sm:$0xff]
      %v4161 = vld [vmem:[#allocation6 + $0x48] sm:$0xff]
      %v4162 = vld [vmem:[#allocation6 + $0x50] sm:$0xff]
      %v4163 = vld [vmem:[#allocation6 + $0x58] sm:$0xff]
      %v4164 = vld [vmem:[#allocation6 + $0x60] sm:$0xff]
      %v4165 = vld [vmem:[#allocation6 + $0x68] sm:$0xff]
      %v4166 = vld [vmem:[#allocation6 + $0x70] sm:$0xff]
      %v4167 = vld [vmem:[#allocation6 + $0x78] sm:$0xff]
      %v4168 = vld [vmem:[#allocation6 + $0x80] sm:$0xff]
      %v4169 = vld [vmem:[#allocation6 + $0x88] sm:$0xff]
      %v4170 = vld [vmem:[#allocation6 + $0x90] sm:$0xff]
      %v4171 = vld [vmem:[#allocation6 + $0x98] sm:$0xff]
      %v4172 = vld [vmem:[#allocation6 + $0xa0] sm:$0xff]
      %v4173 = vld [vmem:[#allocation6 + $0xa8] sm:$0xff]
      %v4174 = vld [vmem:[#allocation6 + $0xb0] sm:$0xff]
      %v4175 = vld [vmem:[#allocation6 + $0xb8] sm:$0xff]
      %v4176 = vld [vmem:[#allocation6 + $0xc0] sm:$0xff]
      %v4177 = vld [vmem:[#allocation6 + $0xc8] sm:$0xff]
      %v4178 = vld [vmem:[#allocation6 + $0xd0] sm:$0xff]
      %v4179 = vld [vmem:[#allocation6 + $0xd8] sm:$0xff]
      %v4180 = vld [vmem:[#allocation6 + $0xe0] sm:$0xff]
      %v4181 = vld [vmem:[#allocation6 + $0xe8] sm:$0xff]
      %v4182 = vld [vmem:[#allocation6 + $0xf0] sm:$0xff]
      %v4183 = vld [vmem:[#allocation6 + $0xf8] sm:$0xff]
      %v4184 = vld [vmem:[#allocation6 + $0x100] sm:$0xff]
      %v4185 = vld [vmem:[#allocation6 + $0x108] sm:$0xff]
      %v4186 = vld [vmem:[#allocation6 + $0x110] sm:$0xff]
      %v4187 = vld [vmem:[#allocation6 + $0x118] sm:$0xff]
      %v4188 = vld [vmem:[#allocation6 + $0x120] sm:$0xff]
      %v4189 = vld [vmem:[#allocation6 + $0x128] sm:$0xff]
      %v4190 = vld [vmem:[#allocation6 + $0x130] sm:$0xff]
      %v4191 = vld [vmem:[#allocation6 + $0x138] sm:$0xff]
      %v4192 = vld [vmem:[#allocation6 + $0x140] sm:$0xff]
      %v4193 = vld [vmem:[#allocation6 + $0x148] sm:$0xff]
      %v4194 = vld [vmem:[#allocation6 + $0x150] sm:$0xff]
      %v4195 = vld [vmem:[#allocation6 + $0x158] sm:$0xff]
      %v4196 = vld [vmem:[#allocation6 + $0x160] sm:$0xff]
      %v4198 = vlaneseq
      %v4199 = vshrl.u32 %v4198, 7
      %v4200 = vsub.s32 0, %v4199
      %v4201 = vrot.slane %v98, %v4200
      %v4239 = vunpack.c.l.b16 %v62
      %v4240 = vunpack.c.l.b16 %v63
      %v4241 = vunpack.c.l.b16 %v64
      %v4242 = vunpack.c.l.b16 %v65
      %v4243 = vunpack.c.l.b16 %v66
      %v4244 = vunpack.c.l.b16 %v67
      %v4245 = vunpack.c.l.b16 %v68
      %v4246 = vunpack.c.l.b16 %v69
      %v4247 = vunpack.c.l.b16 %v70
      %v4248 = vunpack.c.l.b16 %v71
      %v4249 = vunpack.c.l.b16 %v72
      %v4250 = vunpack.c.l.b16 %v73
      %v4251 = vunpack.c.l.b16 %v74
      %v4252 = vunpack.c.l.b16 %v75
      %v4253 = vunpack.c.l.b16 %v76
      %v4254 = vunpack.c.l.b16 %v77
      %v4255 = vunpack.c.l.b16 %v78
      %v4256 = vunpack.c.l.b16 %v79
      %v4257 = vunpack.c.l.b16 %v80
      %v4258 = vunpack.c.l.b16 %v81
      %v4259 = vunpack.c.l.b16 %v82
      %v4260 = vunpack.c.l.b16 %v83
      %v4261 = vunpack.c.l.b16 %v84
      %v4262 = vunpack.c.l.b16 %v85
      %v4263 = vunpack.c.l.b16 %v86
      %v4264 = vunpack.c.l.b16 %v87
      %v4265 = vunpack.c.l.b16 %v88
      %v4266 = vunpack.c.l.b16 %v89
      %v4267 = vunpack.c.l.b16 %v90
      %v4268 = vunpack.c.l.b16 %v91
      %v4269 = vunpack.c.l.b16 %v92
      %v4270 = vunpack.c.l.b16 %v93
      %v4271 = vunpack.c.l.b16 %v94
      %v4272 = vunpack.c.l.b16 %v95
      %v4273 = vunpack.c.l.b16 %v96
      %v4274 = vunpack.c.l.b16 %v97
      %v4275 = vpack.c.b16 %v4240, %v4239
      %v4276 = vpack.c.b16 %v4242, %v4241
      %v4277 = vpack.c.b16 %v4244, %v4243
      %v4278 = vpack.c.b16 %v4246, %v4245
      %v4279 = vpack.c.b16 %v4248, %v4247
      %v4280 = vpack.c.b16 %v4250, %v4249
      %v4281 = vpack.c.b16 %v4252, %v4251
      %v4282 = vpack.c.b16 %v4254, %v4253
      %v4283 = vpack.c.b16 %v4256, %v4255
      %v4284 = vpack.c.b16 %v4258, %v4257
      %v4285 = vpack.c.b16 %v4260, %v4259
      %v4286 = vpack.c.b16 %v4262, %v4261
      %v4287 = vpack.c.b16 %v4264, %v4263
      %v4288 = vpack.c.b16 %v4266, %v4265
      %v4289 = vpack.c.b16 %v4268, %v4267
      %v4290 = vpack.c.b16 %v4270, %v4269
      %v4291 = vpack.c.b16 %v4272, %v4271
      %v4292 = vpack.c.b16 %v4274, %v4273
      %v4312 = vsel %vm3160, %v4154, 0
      %v4315 = vsel %vm3160, %v4157, 0
      %v4318 = vsel %vm3160, %v4160, 0
      %v4321 = vsel %vm3160, %v4163, 0
      %v4324 = vsel %vm3160, %v4166, 0
      %v4327 = vsel %vm3160, %v4169, 0
      %v4330 = vsel %vm3160, %v4172, 0
      %v4333 = vsel %vm3160, %v4175, 0
      %v4336 = vsel %vm3160, %v4178, 0
      %v4339 = vsel %vm3160, %v4181, 0
      %v4342 = vsel %vm3160, %v4184, 0
      %v4345 = vsel %vm3160, %v4187, 0
      %v4348 = vsel %vm3160, %v4190, 0
      %v4351 = vsel %vm3160, %v4193, 0
      %v4354 = vsel %vm3160, %v4196, 0
      %4356 = vmatprep.subr.bf16.mxu0 0
      %4357 = vmatpush1.bf16.msra.mxu0 %v4275
      %4358 = vmatprep.subr.bf16.mxu0 0
      %4359 = vmatpush1.bf16.msra.mxu0 %v4276
      %4360 = vmatprep.subr.bf16.mxu0 0
      %4361 = vmatpush1.bf16.msra.mxu0 %v4277
      %4362 = vmatprep.subr.bf16.mxu0 0
      %4363 = vmatpush1.bf16.msra.mxu0 %v4278
      %4364 = vmatprep.subr.bf16.mxu0 0
      %4365 = vmatpush1.bf16.msra.mxu0 %v4279
      %4366 = vmatprep.subr.bf16.mxu0 0
      %4367 = vmatpush1.bf16.msra.mxu0 %v4280
      %4368 = vmatprep.subr.bf16.mxu0 0
      %4369 = vmatpush1.bf16.msra.mxu0 %v4281
      %4370 = vmatprep.subr.bf16.mxu0 0
      %4371 = vmatpush1.bf16.msra.mxu0 %v4282
      %4372 = vmatprep.subr.bf16.mxu0 0
      %4373 = vmatpush1.bf16.msra.mxu0 %v4283
      %4374 = vmatprep.subr.bf16.mxu0 0
      %4375 = vmatpush1.bf16.msra.mxu0 %v4284
      %4376 = vmatprep.subr.bf16.mxu0 0
      %4377 = vmatpush1.bf16.msra.mxu0 %v4285
      %4378 = vmatprep.subr.bf16.mxu0 0
      %4379 = vmatpush1.bf16.msra.mxu0 %v4286
      %4380 = vmatprep.subr.bf16.mxu0 0
      %4381 = vmatpush1.bf16.msra.mxu0 %v4287
      %4382 = vmatprep.subr.bf16.mxu0 0
      %4383 = vmatpush1.bf16.msra.mxu0 %v4288
      %4384 = vmatprep.subr.bf16.mxu0 0
      %4385 = vmatpush1.bf16.msra.mxu0 %v4289
      %4386 = vmatprep.subr.bf16.mxu0 0
      %4387 = vmatpush1.bf16.msra.mxu0 %v4290
      %4388 = vmatprep.mubr.bf16.mxu0 %v4153
      %4389 = vmatmul.mubr.bf16.gmra.mrb[0].mxu0 %v4152
      %v4390 = vpop.f32.mrb[0].mxu0
      %v4391 = vadd.f32 %v4201, %v4390
      %v4392 = vpop.f32.mrb[0].mxu0
      %v4393 = vpop.f32.mrb[0].mxu0
      %v4394 = vadd.f32 %v4201, %v4393
      %v4395 = vpop.f32.mrb[0].mxu0
      %4396 = vmatprep.mubr.bf16.mxu0 %v4156
      %4397 = vmatmul.mubr.bf16.gmra.mrb[0].mxu0 %v4155
      %v4398 = vpop.f32.mrb[0].mxu0
      %v4399 = vadd.f32 %v4201, %v4398
      %v4400 = vpop.f32.mrb[0].mxu0
      %v4401 = vpop.f32.mrb[0].mxu0
      %v4402 = vadd.f32 %v4201, %v4401
      %v4403 = vpop.f32.mrb[0].mxu0
      %4404 = vmatprep.mubr.bf16.mxu0 %v4159
      %4405 = vmatmul.mubr.bf16.gmra.mrb[0].mxu0 %v4158
      %v4406 = vpop.f32.mrb[0].mxu0
      %v4407 = vadd.f32 %v4201, %v4406
      %v4408 = vpop.f32.mrb[0].mxu0
      %v4409 = vpop.f32.mrb[0].mxu0
      %v4410 = vadd.f32 %v4201, %v4409
      %v4411 = vpop.f32.mrb[0].mxu0
      %4412 = vmatprep.mubr.bf16.mxu0 %v4162
      %4413 = vmatmul.mubr.bf16.gmra.mrb[0].mxu0 %v4161
      %v4414 = vpop.f32.mrb[0].mxu0
      %v4415 = vadd.f32 %v4201, %v4414
      %v4416 = vpop.f32.mrb[0].mxu0
      %v4417 = vpop.f32.mrb[0].mxu0
      %v4418 = vadd.f32 %v4201, %v4417
      %v4419 = vpop.f32.mrb[0].mxu0
      %4420 = vmatprep.mubr.bf16.mxu0 %v4165
      %4421 = vmatmul.mubr.bf16.gmra.mrb[0].mxu0 %v4164
      %v4422 = vpop.f32.mrb[0].mxu0
      %v4423 = vadd.f32 %v4201, %v4422
      %v4424 = vpop.f32.mrb[0].mxu0
      %v4425 = vpop.f32.mrb[0].mxu0
      %v4426 = vadd.f32 %v4201, %v4425
      %v4427 = vpop.f32.mrb[0].mxu0
      %4428 = vmatprep.mubr.bf16.mxu0 %v4168
      %4429 = vmatmul.mubr.bf16.gmra.mrb[0].mxu0 %v4167
      %v4430 = vpop.f32.mrb[0].mxu0
      %v4431 = vadd.f32 %v4201, %v4430
      %v4432 = vpop.f32.mrb[0].mxu0
      %v4433 = vpop.f32.mrb[0].mxu0
      %v4434 = vadd.f32 %v4201, %v4433
      %v4435 = vpop.f32.mrb[0].mxu0
      %4436 = vmatprep.mubr.bf16.mxu0 %v4171
      %4437 = vmatmul.mubr.bf16.gmra.mrb[0].mxu0 %v4170
      %v4438 = vpop.f32.mrb[0].mxu0
      %v4439 = vadd.f32 %v4201, %v4438
      %v4440 = vpop.f32.mrb[0].mxu0
      %v4441 = vpop.f32.mrb[0].mxu0
      %v4442 = vadd.f32 %v4201, %v4441
      %v4443 = vpop.f32.mrb[0].mxu0
      %4444 = vmatprep.mubr.bf16.mxu0 %v4174
      %4445 = vmatmul.mubr.bf16.gmra.mrb[0].mxu0 %v4173
      %v4446 = vpop.f32.mrb[0].mxu0
      %v4447 = vadd.f32 %v4201, %v4446
      %v4448 = vpop.f32.mrb[0].mxu0
      %v4449 = vpop.f32.mrb[0].mxu0
      %v4450 = vadd.f32 %v4201, %v4449
      %v4451 = vpop.f32.mrb[0].mxu0
      %4452 = vmatprep.mubr.bf16.mxu0 %v4177
      %4453 = vmatmul.mubr.bf16.gmra.mrb[0].mxu0 %v4176
      %v4454 = vpop.f32.mrb[0].mxu0
      %v4455 = vadd.f32 %v4201, %v4454
      %v4456 = vpop.f32.mrb[0].mxu0
      %v4457 = vpop.f32.mrb[0].mxu0
      %v4458 = vadd.f32 %v4201, %v4457
      %v4459 = vpop.f32.mrb[0].mxu0
      %4460 = vmatprep.mubr.bf16.mxu0 %v4180
      %4461 = vmatmul.mubr.bf16.gmra.mrb[0].mxu0 %v4179
      %v4462 = vpop.f32.mrb[0].mxu0
      %v4463 = vadd.f32 %v4201, %v4462
      %v4464 = vpop.f32.mrb[0].mxu0
      %v4465 = vpop.f32.mrb[0].mxu0
      %v4466 = vadd.f32 %v4201, %v4465
      %v4467 = vpop.f32.mrb[0].mxu0
      %4468 = vmatprep.mubr.bf16.mxu0 %v4183
      %4469 = vmatmul.mubr.bf16.gmra.mrb[0].mxu0 %v4182
      %v4470 = vpop.f32.mrb[0].mxu0
      %v4471 = vadd.f32 %v4201, %v4470
      %v4472 = vpop.f32.mrb[0].mxu0
      %v4473 = vpop.f32.mrb[0].mxu0
      %v4474 = vadd.f32 %v4201, %v4473
      %v4475 = vpop.f32.mrb[0].mxu0
      %4476 = vmatprep.mubr.bf16.mxu0 %v4186
      %4477 = vmatmul.mubr.bf16.gmra.mrb[0].mxu0 %v4185
      %v4478 = vpop.f32.mrb[0].mxu0
      %v4479 = vadd.f32 %v4201, %v4478
      %v4480 = vpop.f32.mrb[0].mxu0
      %v4481 = vpop.f32.mrb[0].mxu0
      %v4482 = vadd.f32 %v4201, %v4481
      %v4483 = vpop.f32.mrb[0].mxu0
      %4484 = vmatprep.mubr.bf16.mxu0 %v4189
      %4485 = vmatmul.mubr.bf16.gmra.mrb[0].mxu0 %v4188
      %v4486 = vpop.f32.mrb[0].mxu0
      %v4487 = vadd.f32 %v4201, %v4486
      %v4488 = vpop.f32.mrb[0].mxu0
      %v4489 = vpop.f32.mrb[0].mxu0
      %v4490 = vadd.f32 %v4201, %v4489
      %v4491 = vpop.f32.mrb[0].mxu0
      %4492 = vmatprep.mubr.bf16.mxu0 %v4192
      %4493 = vmatmul.mubr.bf16.gmra.mrb[0].mxu0 %v4191
      %v4494 = vpop.f32.mrb[0].mxu0
      %v4495 = vadd.f32 %v4201, %v4494
      %v4496 = vpop.f32.mrb[0].mxu0
      %v4497 = vpop.f32.mrb[0].mxu0
      %v4498 = vadd.f32 %v4201, %v4497
      %v4499 = vpop.f32.mrb[0].mxu0
      %4500 = vmatprep.mubr.bf16.mxu0 %v4195
      %4501 = vmatmul.mubr.bf16.gmra.mrb[0].mxu0 %v4194
      %v4502 = vpop.f32.mrb[0].mxu0
      %v4503 = vadd.f32 %v4201, %v4502
      %v4504 = vpop.f32.mrb[0].mxu0
      %v4505 = vpop.f32.mrb[0].mxu0
      %v4506 = vadd.f32 %v4201, %v4505
      %v4507 = vpop.f32.mrb[0].mxu0
      %4508 = vdwg.mxu0
      %4509 = vmatprep.subr.bf16.mxu0 0
      %4510 = vmatpush1.bf16.msra.mxu0 %v4291
      %4511 = vmatprep.subr.bf16.mxu0 0
      %4512 = vmatpush1.bf16.msra.mxu0 %v4292
      %4513 = vmatprep.subr.bf16.mxu0 0
      %4514 = vmatpush1.bf16.msra.mxu0 0
      %4515 = vmatprep.subr.bf16.mxu0 0
      %4516 = vmatpush1.bf16.msra.mxu0 0
      %4517 = vmatprep.subr.bf16.mxu0 0
      %4518 = vmatpush1.bf16.msra.mxu0 0
      %4519 = vmatprep.subr.bf16.mxu0 0
      %4520 = vmatpush1.bf16.msra.mxu0 0
      %4521 = vmatprep.subr.bf16.mxu0 0
      %4522 = vmatpush1.bf16.msra.mxu0 0
      %4523 = vmatprep.subr.bf16.mxu0 0
      %4524 = vmatpush1.bf16.msra.mxu0 0
      %4525 = vmatprep.subr.bf16.mxu0 0
      %4526 = vmatpush1.bf16.msra.mxu0 0
      %4527 = vmatprep.subr.bf16.mxu0 0
      %4528 = vmatpush1.bf16.msra.mxu0 0
      %4529 = vmatprep.subr.bf16.mxu0 0
      %4530 = vmatpush1.bf16.msra.mxu0 0
      %4531 = vmatprep.subr.bf16.mxu0 0
      %4532 = vmatpush1.bf16.msra.mxu0 0
      %4533 = vmatprep.subr.bf16.mxu0 0
      %4534 = vmatpush1.bf16.msra.mxu0 0
      %4535 = vmatprep.subr.bf16.mxu0 0
      %4536 = vmatpush1.bf16.msra.mxu0 0
      %4537 = vmatprep.subr.bf16.mxu0 0
      %4538 = vmatpush1.bf16.msra.mxu0 0
      %4539 = vmatprep.subr.bf16.mxu0 0
      %4540 = vmatpush1.bf16.msra.mxu0 0
      %4541 = vmatprep.mubr.bf16.mxu0 0
      %4542 = vmatmul.mubr.bf16.gmra.mrb[0].mxu0 %v4312
      %v4543 = vpop.f32.mrb[0].mxu0
      %v4544 = vadd.f32 %v4391, %v4543
      %v4545 = vpop.f32.mrb[0].mxu0
      %v4546 = vpop.f32.mrb[0].mxu0
      %v4547 = vadd.f32 %v4394, %v4546
      %v4548 = vpop.f32.mrb[0].mxu0
      %4549 = vmatprep.mubr.bf16.mxu0 0
      %4550 = vmatmul.mubr.bf16.gmra.mrb[0].mxu0 %v4315
      %v4551 = vpop.f32.mrb[0].mxu0
      %v4552 = vadd.f32 %v4399, %v4551
      %v4553 = vpop.f32.mrb[0].mxu0
      %v4554 = vpop.f32.mrb[0].mxu0
      %v4555 = vadd.f32 %v4402, %v4554
      %v4556 = vpop.f32.mrb[0].mxu0
      %4557 = vmatprep.mubr.bf16.mxu0 0
      %4558 = vmatmul.mubr.bf16.gmra.mrb[0].mxu0 %v4318
      %v4559 = vpop.f32.mrb[0].mxu0
      %v4560 = vadd.f32 %v4407, %v4559
      %v4561 = vpop.f32.mrb[0].mxu0
      %v4562 = vpop.f32.mrb[0].mxu0
      %v4563 = vadd.f32 %v4410, %v4562
      %v4564 = vpop.f32.mrb[0].mxu0
      %4565 = vmatprep.mubr.bf16.mxu0 0
      %4566 = vmatmul.mubr.bf16.gmra.mrb[0].mxu0 %v4321
      %v4567 = vpop.f32.mrb[0].mxu0
      %v4568 = vadd.f32 %v4415, %v4567
      %v4569 = vpop.f32.mrb[0].mxu0
      %v4570 = vpop.f32.mrb[0].mxu0
      %v4571 = vadd.f32 %v4418, %v4570
      %v4572 = vpop.f32.mrb[0].mxu0
      %4573 = vmatprep.mubr.bf16.mxu0 0
      %4574 = vmatmul.mubr.bf16.gmra.mrb[0].mxu0 %v4324
      %v4575 = vpop.f32.mrb[0].mxu0
      %v4576 = vadd.f32 %v4423, %v4575
      %v4577 = vpop.f32.mrb[0].mxu0
      %v4578 = vpop.f32.mrb[0].mxu0
      %v4579 = vadd.f32 %v4426, %v4578
      %v4580 = vpop.f32.mrb[0].mxu0
      %4581 = vmatprep.mubr.bf16.mxu0 0
      %4582 = vmatmul.mubr.bf16.gmra.mrb[0].mxu0 %v4327
      %v4583 = vpop.f32.mrb[0].mxu0
      %v4584 = vadd.f32 %v4431, %v4583
      %v4585 = vpop.f32.mrb[0].mxu0
      %v4586 = vpop.f32.mrb[0].mxu0
      %v4587 = vadd.f32 %v4434, %v4586
      %v4588 = vpop.f32.mrb[0].mxu0
      %4589 = vmatprep.mubr.bf16.mxu0 0
      %4590 = vmatmul.mubr.bf16.gmra.mrb[0].mxu0 %v4330
      %v4591 = vpop.f32.mrb[0].mxu0
      %v4592 = vadd.f32 %v4439, %v4591
      %v4593 = vpop.f32.mrb[0].mxu0
      %v4594 = vpop.f32.mrb[0].mxu0
      %v4595 = vadd.f32 %v4442, %v4594
      %v4596 = vpop.f32.mrb[0].mxu0
      %4597 = vmatprep.mubr.bf16.mxu0 0
      %4598 = vmatmul.mubr.bf16.gmra.mrb[0].mxu0 %v4333
      %v4599 = vpop.f32.mrb[0].mxu0
      %v4600 = vadd.f32 %v4447, %v4599
      %v4601 = vpop.f32.mrb[0].mxu0
      %v4602 = vpop.f32.mrb[0].mxu0
      %v4603 = vadd.f32 %v4450, %v4602
      %v4604 = vpop.f32.mrb[0].mxu0
      %4605 = vmatprep.mubr.bf16.mxu0 0
      %4606 = vmatmul.mubr.bf16.gmra.mrb[0].mxu0 %v4336
      %v4607 = vpop.f32.mrb[0].mxu0
      %v4608 = vadd.f32 %v4455, %v4607
      %v4609 = vpop.f32.mrb[0].mxu0
      %v4610 = vpop.f32.mrb[0].mxu0
      %v4611 = vadd.f32 %v4458, %v4610
      %v4612 = vpop.f32.mrb[0].mxu0
      %4613 = vmatprep.mubr.bf16.mxu0 0
      %4614 = vmatmul.mubr.bf16.gmra.mrb[0].mxu0 %v4339
      %v4615 = vpop.f32.mrb[0].mxu0
      %v4616 = vadd.f32 %v4463, %v4615
      %v4617 = vpop.f32.mrb[0].mxu0
      %v4618 = vpop.f32.mrb[0].mxu0
      %v4619 = vadd.f32 %v4466, %v4618
      %v4620 = vpop.f32.mrb[0].mxu0
      %4621 = vmatprep.mubr.bf16.mxu0 0
      %4622 = vmatmul.mubr.bf16.gmra.mrb[0].mxu0 %v4342
      %v4623 = vpop.f32.mrb[0].mxu0
      %v4624 = vadd.f32 %v4471, %v4623
      %v4625 = vpop.f32.mrb[0].mxu0
      %v4626 = vpop.f32.mrb[0].mxu0
      %v4627 = vadd.f32 %v4474, %v4626
      %v4628 = vpop.f32.mrb[0].mxu0
      %4629 = vmatprep.mubr.bf16.mxu0 0
      %4630 = vmatmul.mubr.bf16.gmra.mrb[0].mxu0 %v4345
      %v4631 = vpop.f32.mrb[0].mxu0
      %v4632 = vadd.f32 %v4479, %v4631
      %v4633 = vpop.f32.mrb[0].mxu0
      %v4634 = vpop.f32.mrb[0].mxu0
      %v4635 = vadd.f32 %v4482, %v4634
      %v4636 = vpop.f32.mrb[0].mxu0
      %4637 = vmatprep.mubr.bf16.mxu0 0
      %4638 = vmatmul.mubr.bf16.gmra.mrb[0].mxu0 %v4348
      %v4639 = vpop.f32.mrb[0].mxu0
      %v4640 = vadd.f32 %v4487, %v4639
      %v4641 = vpop.f32.mrb[0].mxu0
      %v4642 = vpop.f32.mrb[0].mxu0
      %v4643 = vadd.f32 %v4490, %v4642
      %v4644 = vpop.f32.mrb[0].mxu0
      %4645 = vmatprep.mubr.bf16.mxu0 0
      %4646 = vmatmul.mubr.bf16.gmra.mrb[0].mxu0 %v4351
      %v4647 = vpop.f32.mrb[0].mxu0
      %v4648 = vadd.f32 %v4495, %v4647
      %v4649 = vpop.f32.mrb[0].mxu0
      %v4650 = vpop.f32.mrb[0].mxu0
      %v4651 = vadd.f32 %v4498, %v4650
      %v4652 = vpop.f32.mrb[0].mxu0
      %4653 = vmatprep.mubr.bf16.mxu0 0
      %4654 = vmatmul.mubr.bf16.gmra.mrb[0].mxu0 %v4354
      %v4655 = vpop.f32.mrb[0].mxu0
      %v4656 = vadd.f32 %v4503, %v4655
      %v4657 = vpop.f32.mrb[0].mxu0
      %v4658 = vpop.f32.mrb[0].mxu0
      %v4659 = vadd.f32 %v4506, %v4658
      %v4660 = vpop.f32.mrb[0].mxu0
      %4661 = vdwg.mxu0
      %v4662 = vmax.f32 %v4544, 0.0
      %v4663 = vmax.f32 %v4547, 0.0
      %v4664 = vmax.f32 %v4552, 0.0
      %v4665 = vmax.f32 %v4555, 0.0
      %v4666 = vmax.f32 %v4560, 0.0
      %v4667 = vmax.f32 %v4563, 0.0
      %v4668 = vmax.f32 %v4568, 0.0
      %v4669 = vmax.f32 %v4571, 0.0
      %v4670 = vmax.f32 %v4576, 0.0
      %v4671 = vmax.f32 %v4579, 0.0
      %v4672 = vmax.f32 %v4584, 0.0
      %v4673 = vmax.f32 %v4587, 0.0
      %v4674 = vmax.f32 %v4592, 0.0
      %v4675 = vmax.f32 %v4595, 0.0
      %v4676 = vmax.f32 %v4600, 0.0
      %v4677 = vmax.f32 %v4603, 0.0
      %v4678 = vmax.f32 %v4608, 0.0
      %v4679 = vmax.f32 %v4611, 0.0
      %v4680 = vmax.f32 %v4616, 0.0
      %v4681 = vmax.f32 %v4619, 0.0
      %v4682 = vmax.f32 %v4624, 0.0
      %v4683 = vmax.f32 %v4627, 0.0
      %v4684 = vmax.f32 %v4632, 0.0
      %v4685 = vmax.f32 %v4635, 0.0
      %v4686 = vmax.f32 %v4640, 0.0
      %v4687 = vmax.f32 %v4643, 0.0
      %v4688 = vmax.f32 %v4648, 0.0
      %v4689 = vmax.f32 %v4651, 0.0
      %v4690 = vmax.f32 %v4656, 0.0
      %v4691 = vmax.f32 %v4659, 0.0
      %v4692 = vpack.c.bf16 %v4663, %v4662
      %v4693 = vpack.c.bf16 %v4665, %v4664
      %v4694 = vpack.c.bf16 %v4667, %v4666
      %v4695 = vpack.c.bf16 %v4669, %v4668
      %v4696 = vpack.c.bf16 %v4671, %v4670
      %v4697 = vpack.c.bf16 %v4673, %v4672
      %v4698 = vpack.c.bf16 %v4675, %v4674
      %v4699 = vpack.c.bf16 %v4677, %v4676
      %v4700 = vpack.c.bf16 %v4679, %v4678
      %v4701 = vpack.c.bf16 %v4681, %v4680
      %v4702 = vpack.c.bf16 %v4683, %v4682
      %v4703 = vpack.c.bf16 %v4685, %v4684
      %v4704 = vpack.c.bf16 %v4687, %v4686
      %v4705 = vpack.c.bf16 %v4689, %v4688
      %v4706 = vpack.c.bf16 %v4691, %v4690
      %s4707 = smul.addr %s3476, 8
      %s4708 = scalar_lea.vmem [#allocation7], %s4707
      %vm4709 = vcmask 523264
      %4710 = vst.msk [vmem:[%s4708] sm:$0xff] %vm4709, %v4692
      %4711 = vst.msk [vmem:[%s4708 + $0x8] sm:$0xff] %vm4709, %v4693
      %4712 = vst.msk [vmem:[%s4708 + $0x10] sm:$0xff] %vm4709, %v4694
      %4713 = vst.msk [vmem:[%s4708 + $0x18] sm:$0xff] %vm4709, %v4695
      %4714 = vst.msk [vmem:[%s4708 + $0x20] sm:$0xff] %vm4709, %v4696
      %4715 = vst.msk [vmem:[%s4708 + $0x28] sm:$0xff] %vm4709, %v4697
      %4716 = vst.msk [vmem:[%s4708 + $0x30] sm:$0xff] %vm4709, %v4698
      %4717 = vst.msk [vmem:[%s4708 + $0x38] sm:$0xff] %vm4709, %v4699
      %4718 = vst.msk [vmem:[%s4708 + $0x40] sm:$0xff] %vm4709, %v4700
      %4719 = vst.msk [vmem:[%s4708 + $0x48] sm:$0xff] %vm4709, %v4701
      %4720 = vst.msk [vmem:[%s4708 + $0x50] sm:$0xff] %vm4709, %v4702
      %4721 = vst.msk [vmem:[%s4708 + $0x58] sm:$0xff] %vm4709, %v4703
      %4722 = vst.msk [vmem:[%s4708 + $0x60] sm:$0xff] %vm4709, %v4704
      %4723 = vst.msk [vmem:[%s4708 + $0x68] sm:$0xff] %vm4709, %v4705
      %4724 = vst.msk [vmem:[%s4708 + $0x70] sm:$0xff] %vm4709, %v4706
    $region78: #{cnn_forward.1} parent=1 // loop_footer
      %s3473 = sadd.s32 1, %s3469
    $region79: #{cnn_forward.1} parent=1 // loop_footer_branch
      %3468 = sbr.rel target = $region75
    $region80: #{cnn_forward.1} parent=1 // loop_exit
      _
    %v4725 = vld [vmem:[#allocation7] sm:$0xff]
    %v4726 = vld [vmem:[#allocation7 + $0x8] sm:$0xff]
    %v4727 = vmax.bf16 %v4725, %v4726
    %v4728 = vld [vmem:[#allocation7 + $0x78] sm:$0xff]
    %v4729 = vld [vmem:[#allocation7 + $0x80] sm:$0xff]
    %v4730 = vmax.bf16 %v4728, %v4729
    %v4731 = vmax.bf16 %v4727, %v4730
    %vm4732 = vcmask 523264
    %4733 = vst.msk [vmem:[#allocation8] sm:$0xff] %vm4732, %v4731
    %v4734 = vld [vmem:[#allocation7 + $0x10] sm:$0xff]
    %v4735 = vld [vmem:[#allocation7 + $0x18] sm:$0xff]
    %v4736 = vmax.bf16 %v4734, %v4735
    %v4737 = vld [vmem:[#allocation7 + $0x88] sm:$0xff]
    %v4738 = vld [vmem:[#allocation7 + $0x90] sm:$0xff]
    %v4739 = vmax.bf16 %v4737, %v4738
    %v4740 = vmax.bf16 %v4736, %v4739
    %4742 = vrot.lane.b32.xlu0 %v4740, 64
    %v4743 = vpop.permute.xlu0 %4742
    %vm4745 = vcmask 1048064
    %4746 = vst.msk [vmem:[#allocation8] sm:$0xff] %vm4745, %v4743
    %v4747 = vld [vmem:[#allocation7 + $0x20] sm:$0xff]
    %v4748 = vld [vmem:[#allocation7 + $0x28] sm:$0xff]
    %v4749 = vmax.bf16 %v4747, %v4748
    %v4750 = vld [vmem:[#allocation7 + $0x98] sm:$0xff]
    %v4751 = vld [vmem:[#allocation7 + $0xa0] sm:$0xff]
    %v4752 = vmax.bf16 %v4750, %v4751
    %v4753 = vmax.bf16 %v4749, %v4752
    %4754 = vst.msk [vmem:[#allocation8 + $0x8] sm:$0xff] %vm4732, %v4753
    %v4755 = vld [vmem:[#allocation7 + $0x30] sm:$0xff]
    %v4756 = vld [vmem:[#allocation7 + $0x38] sm:$0xff]
    %v4757 = vmax.bf16 %v4755, %v4756
    %v4758 = vld [vmem:[#allocation7 + $0xa8] sm:$0xff]
    %v4759 = vld [vmem:[#allocation7 + $0xb0] sm:$0xff]
    %v4760 = vmax.bf16 %v4758, %v4759
    %v4761 = vmax.bf16 %v4757, %v4760
    %4763 = vrot.lane.b32.xlu0 %v4761, 64
    %v4764 = vpop.permute.xlu0 %4763
    %4766 = vst.msk [vmem:[#allocation8 + $0x8] sm:$0xff] %vm4745, %v4764
    %v4767 = vld [vmem:[#allocation7 + $0x40] sm:$0xff]
    %v4768 = vld [vmem:[#allocation7 + $0x48] sm:$0xff]
    %v4769 = vmax.bf16 %v4767, %v4768
    %v4770 = vld [vmem:[#allocation7 + $0xb8] sm:$0xff]
    %v4771 = vld [vmem:[#allocation7 + $0xc0] sm:$0xff]
    %v4772 = vmax.bf16 %v4770, %v4771
    %v4773 = vmax.bf16 %v4769, %v4772
    %4774 = vst.msk [vmem:[#allocation8 + $0x10] sm:$0xff] %vm4732, %v4773
    %v4775 = vld [vmem:[#allocation7 + $0x50] sm:$0xff]
    %v4776 = vld [vmem:[#allocation7 + $0x58] sm:$0xff]
    %v4777 = vmax.bf16 %v4775, %v4776
    %v4778 = vld [vmem:[#allocation7 + $0xc8] sm:$0xff]
    %v4779 = vld [vmem:[#allocation7 + $0xd0] sm:$0xff]
    %v4780 = vmax.bf16 %v4778, %v4779
    %v4781 = vmax.bf16 %v4777, %v4780
    %4783 = vrot.lane.b32.xlu0 %v4781, 64
    %v4784 = vpop.permute.xlu0 %4783
    %4786 = vst.msk [vmem:[#allocation8 + $0x10] sm:$0xff] %vm4745, %v4784
    %v4787 = vld [vmem:[#allocation7 + $0x60] sm:$0xff]
    %v4788 = vld [vmem:[#allocation7 + $0x68] sm:$0xff]
    %v4789 = vmax.bf16 %v4787, %v4788
    %v4790 = vld [vmem:[#allocation7 + $0xd8] sm:$0xff]
    %v4791 = vld [vmem:[#allocation7 + $0xe0] sm:$0xff]
    %v4792 = vmax.bf16 %v4790, %v4791
    %v4793 = vmax.bf16 %v4789, %v4792
    %4794 = vst.msk [vmem:[#allocation8 + $0x18] sm:$0xff] %vm4732, %v4793
    %v4795 = vld [vmem:[#allocation7 + $0xf0] sm:$0xff]
    %v4796 = vld [vmem:[#allocation7 + $0xf8] sm:$0xff]
    %v4797 = vmax.bf16 %v4795, %v4796
    %v4798 = vld [vmem:[#allocation7 + $0x168] sm:$0xff]
    %v4799 = vld [vmem:[#allocation7 + $0x170] sm:$0xff]
    %v4800 = vmax.bf16 %v4798, %v4799
    %v4801 = vmax.bf16 %v4797, %v4800
    %4803 = vrot.lane.b32.xlu0 %v4801, 64
    %v4804 = vpop.permute.xlu0 %4803
    %4806 = vst.msk [vmem:[#allocation8 + $0x18] sm:$0xff] %vm4745, %v4804
    %v4807 = vld [vmem:[#allocation7 + $0x100] sm:$0xff]
    %v4808 = vld [vmem:[#allocation7 + $0x108] sm:$0xff]
    %v4809 = vmax.bf16 %v4807, %v4808
    %v4810 = vld [vmem:[#allocation7 + $0x178] sm:$0xff]
    %v4811 = vld [vmem:[#allocation7 + $0x180] sm:$0xff]
    %v4812 = vmax.bf16 %v4810, %v4811
    %v4813 = vmax.bf16 %v4809, %v4812
    %4814 = vst.msk [vmem:[#allocation8 + $0x20] sm:$0xff] %vm4732, %v4813
    %v4815 = vld [vmem:[#allocation7 + $0x110] sm:$0xff]
    %v4816 = vld [vmem:[#allocation7 + $0x118] sm:$0xff]
    %v4817 = vmax.bf16 %v4815, %v4816
    %v4818 = vld [vmem:[#allocation7 + $0x188] sm:$0xff]
    %v4819 = vld [vmem:[#allocation7 + $0x190] sm:$0xff]
    %v4820 = vmax.bf16 %v4818, %v4819
    %v4821 = vmax.bf16 %v4817, %v4820
    %4823 = vrot.lane.b32.xlu0 %v4821, 64
    %v4824 = vpop.permute.xlu0 %4823
    %4826 = vst.msk [vmem:[#allocation8 + $0x20] sm:$0xff] %vm4745, %v4824
    %v4827 = vld [vmem:[#allocation7 + $0x120] sm:$0xff]
    %v4828 = vld [vmem:[#allocation7 + $0x128] sm:$0xff]
    %v4829 = vmax.bf16 %v4827, %v4828
    %v4830 = vld [vmem:[#allocation7 + $0x198] sm:$0xff]
    %v4831 = vld [vmem:[#allocation7 + $0x1a0] sm:$0xff]
    %v4832 = vmax.bf16 %v4830, %v4831
    %v4833 = vmax.bf16 %v4829, %v4832
    %4834 = vst.msk [vmem:[#allocation8 + $0x28] sm:$0xff] %vm4732, %v4833
    %v4835 = vld [vmem:[#allocation7 + $0x130] sm:$0xff]
    %v4836 = vld [vmem:[#allocation7 + $0x138] sm:$0xff]
    %v4837 = vmax.bf16 %v4835, %v4836
    %v4838 = vld [vmem:[#allocation7 + $0x1a8] sm:$0xff]
    %v4839 = vld [vmem:[#allocation7 + $0x1b0] sm:$0xff]
    %v4840 = vmax.bf16 %v4838, %v4839
    %v4841 = vmax.bf16 %v4837, %v4840
    %4843 = vrot.lane.b32.xlu0 %v4841, 64
    %v4844 = vpop.permute.xlu0 %4843
    %4846 = vst.msk [vmem:[#allocation8 + $0x28] sm:$0xff] %vm4745, %v4844
    %v4847 = vld [vmem:[#allocation7 + $0x140] sm:$0xff]
    %v4848 = vld [vmem:[#allocation7 + $0x148] sm:$0xff]
    %v4849 = vmax.bf16 %v4847, %v4848
    %v4850 = vld [vmem:[#allocation7 + $0x1b8] sm:$0xff]
    %v4851 = vld [vmem:[#allocation7 + $0x1c0] sm:$0xff]
    %v4852 = vmax.bf16 %v4850, %v4851
    %v4853 = vmax.bf16 %v4849, %v4852
    %4854 = vst.msk [vmem:[#allocation8 + $0x30] sm:$0xff] %vm4732, %v4853
    %v4855 = vld [vmem:[#allocation7 + $0x150] sm:$0xff]
    %v4856 = vld [vmem:[#allocation7 + $0x158] sm:$0xff]
    %v4857 = vmax.bf16 %v4855, %v4856
    %v4858 = vld [vmem:[#allocation7 + $0x1c8] sm:$0xff]
    %v4859 = vld [vmem:[#allocation7 + $0x1d0] sm:$0xff]
    %v4860 = vmax.bf16 %v4858, %v4859
    %v4861 = vmax.bf16 %v4857, %v4860
    %4863 = vrot.lane.b32.xlu0 %v4861, 64
    %v4864 = vpop.permute.xlu0 %4863
    %4866 = vst.msk [vmem:[#allocation8 + $0x30] sm:$0xff] %vm4745, %v4864
    %v4867 = vld [vmem:[#allocation7 + $0x1e0] sm:$0xff]
    %v4868 = vld [vmem:[#allocation7 + $0x1e8] sm:$0xff]
    %v4869 = vmax.bf16 %v4867, %v4868
    %v4870 = vld [vmem:[#allocation7 + $0x258] sm:$0xff]
    %v4871 = vld [vmem:[#allocation7 + $0x260] sm:$0xff]
    %v4872 = vmax.bf16 %v4870, %v4871
    %v4873 = vmax.bf16 %v4869, %v4872
    %4874 = vst.msk [vmem:[#allocation8 + $0x38] sm:$0xff] %vm4732, %v4873
    %v4875 = vld [vmem:[#allocation7 + $0x1f0] sm:$0xff]
    %v4876 = vld [vmem:[#allocation7 + $0x1f8] sm:$0xff]
    %v4877 = vmax.bf16 %v4875, %v4876
    %v4878 = vld [vmem:[#allocation7 + $0x268] sm:$0xff]
    %v4879 = vld [vmem:[#allocation7 + $0x270] sm:$0xff]
    %v4880 = vmax.bf16 %v4878, %v4879
    %v4881 = vmax.bf16 %v4877, %v4880
    %4883 = vrot.lane.b32.xlu0 %v4881, 64
    %v4884 = vpop.permute.xlu0 %4883
    %4886 = vst.msk [vmem:[#allocation8 + $0x38] sm:$0xff] %vm4745, %v4884
    %v4887 = vld [vmem:[#allocation7 + $0x200] sm:$0xff]
    %v4888 = vld [vmem:[#allocation7 + $0x208] sm:$0xff]
    %v4889 = vmax.bf16 %v4887, %v4888
    %v4890 = vld [vmem:[#allocation7 + $0x278] sm:$0xff]
    %v4891 = vld [vmem:[#allocation7 + $0x280] sm:$0xff]
    %v4892 = vmax.bf16 %v4890, %v4891
    %v4893 = vmax.bf16 %v4889, %v4892
    %4894 = vst.msk [vmem:[#allocation8 + $0x40] sm:$0xff] %vm4732, %v4893
    %v4895 = vld [vmem:[#allocation7 + $0x210] sm:$0xff]
    %v4896 = vld [vmem:[#allocation7 + $0x218] sm:$0xff]
    %v4897 = vmax.bf16 %v4895, %v4896
    %v4898 = vld [vmem:[#allocation7 + $0x288] sm:$0xff]
    %v4899 = vld [vmem:[#allocation7 + $0x290] sm:$0xff]
    %v4900 = vmax.bf16 %v4898, %v4899
    %v4901 = vmax.bf16 %v4897, %v4900
    %4903 = vrot.lane.b32.xlu0 %v4901, 64
    %v4904 = vpop.permute.xlu0 %4903
    %4906 = vst.msk [vmem:[#allocation8 + $0x40] sm:$0xff] %vm4745, %v4904
    %v4907 = vld [vmem:[#allocation7 + $0x220] sm:$0xff]
    %v4908 = vld [vmem:[#allocation7 + $0x228] sm:$0xff]
    %v4909 = vmax.bf16 %v4907, %v4908
    %v4910 = vld [vmem:[#allocation7 + $0x298] sm:$0xff]
    %v4911 = vld [vmem:[#allocation7 + $0x2a0] sm:$0xff]
    %v4912 = vmax.bf16 %v4910, %v4911
    %v4913 = vmax.bf16 %v4909, %v4912
    %4914 = vst.msk [vmem:[#allocation8 + $0x48] sm:$0xff] %vm4732, %v4913
    %v4915 = vld [vmem:[#allocation7 + $0x230] sm:$0xff]
    %v4916 = vld [vmem:[#allocation7 + $0x238] sm:$0xff]
    %v4917 = vmax.bf16 %v4915, %v4916
    %v4918 = vld [vmem:[#allocation7 + $0x2a8] sm:$0xff]
    %v4919 = vld [vmem:[#allocation7 + $0x2b0] sm:$0xff]
    %v4920 = vmax.bf16 %v4918, %v4919
    %v4921 = vmax.bf16 %v4917, %v4920
    %4923 = vrot.lane.b32.xlu0 %v4921, 64
    %v4924 = vpop.permute.xlu0 %4923
    %4926 = vst.msk [vmem:[#allocation8 + $0x48] sm:$0xff] %vm4745, %v4924
    %v4927 = vld [vmem:[#allocation7 + $0x240] sm:$0xff]
    %v4928 = vld [vmem:[#allocation7 + $0x248] sm:$0xff]
    %v4929 = vmax.bf16 %v4927, %v4928
    %v4930 = vld [vmem:[#allocation7 + $0x2b8] sm:$0xff]
    %v4931 = vld [vmem:[#allocation7 + $0x2c0] sm:$0xff]
    %v4932 = vmax.bf16 %v4930, %v4931
    %v4933 = vmax.bf16 %v4929, %v4932
    %4934 = vst.msk [vmem:[#allocation8 + $0x50] sm:$0xff] %vm4732, %v4933
    %v4935 = vld [vmem:[#allocation7 + $0x2d0] sm:$0xff]
    %v4936 = vld [vmem:[#allocation7 + $0x2d8] sm:$0xff]
    %v4937 = vmax.bf16 %v4935, %v4936
    %v4938 = vld [vmem:[#allocation7 + $0x348] sm:$0xff]
    %v4939 = vld [vmem:[#allocation7 + $0x350] sm:$0xff]
    %v4940 = vmax.bf16 %v4938, %v4939
    %v4941 = vmax.bf16 %v4937, %v4940
    %4943 = vrot.lane.b32.xlu0 %v4941, 64
    %v4944 = vpop.permute.xlu0 %4943
    %4946 = vst.msk [vmem:[#allocation8 + $0x50] sm:$0xff] %vm4745, %v4944
    %v4947 = vld [vmem:[#allocation7 + $0x2e0] sm:$0xff]
    %v4948 = vld [vmem:[#allocation7 + $0x2e8] sm:$0xff]
    %v4949 = vmax.bf16 %v4947, %v4948
    %v4950 = vld [vmem:[#allocation7 + $0x358] sm:$0xff]
    %v4951 = vld [vmem:[#allocation7 + $0x360] sm:$0xff]
    %v4952 = vmax.bf16 %v4950, %v4951
    %v4953 = vmax.bf16 %v4949, %v4952
    %4954 = vst.msk [vmem:[#allocation8 + $0x58] sm:$0xff] %vm4732, %v4953
    %v4955 = vld [vmem:[#allocation7 + $0x2f0] sm:$0xff]
    %v4956 = vld [vmem:[#allocation7 + $0x2f8] sm:$0xff]
    %v4957 = vmax.bf16 %v4955, %v4956
    %v4958 = vld [vmem:[#allocation7 + $0x368] sm:$0xff]
    %v4959 = vld [vmem:[#allocation7 + $0x370] sm:$0xff]
    %v4960 = vmax.bf16 %v4958, %v4959
    %v4961 = vmax.bf16 %v4957, %v4960
    %4963 = vrot.lane.b32.xlu0 %v4961, 64
    %v4964 = vpop.permute.xlu0 %4963
    %4966 = vst.msk [vmem:[#allocation8 + $0x58] sm:$0xff] %vm4745, %v4964
    %v4967 = vld [vmem:[#allocation7 + $0x300] sm:$0xff]
    %v4968 = vld [vmem:[#allocation7 + $0x308] sm:$0xff]
    %v4969 = vmax.bf16 %v4967, %v4968
    %v4970 = vld [vmem:[#allocation7 + $0x378] sm:$0xff]
    %v4971 = vld [vmem:[#allocation7 + $0x380] sm:$0xff]
    %v4972 = vmax.bf16 %v4970, %v4971
    %v4973 = vmax.bf16 %v4969, %v4972
    %4974 = vst.msk [vmem:[#allocation8 + $0x60] sm:$0xff] %vm4732, %v4973
    %v4975 = vld [vmem:[#allocation7 + $0x310] sm:$0xff]
    %v4976 = vld [vmem:[#allocation7 + $0x318] sm:$0xff]
    %v4977 = vmax.bf16 %v4975, %v4976
    %v4978 = vld [vmem:[#allocation7 + $0x388] sm:$0xff]
    %v4979 = vld [vmem:[#allocation7 + $0x390] sm:$0xff]
    %v4980 = vmax.bf16 %v4978, %v4979
    %v4981 = vmax.bf16 %v4977, %v4980
    %4983 = vrot.lane.b32.xlu0 %v4981, 64
    %v4984 = vpop.permute.xlu0 %4983
    %4986 = vst.msk [vmem:[#allocation8 + $0x60] sm:$0xff] %vm4745, %v4984
    %v4987 = vld [vmem:[#allocation7 + $0x320] sm:$0xff]
    %v4988 = vld [vmem:[#allocation7 + $0x328] sm:$0xff]
    %v4989 = vmax.bf16 %v4987, %v4988
    %v4990 = vld [vmem:[#allocation7 + $0x398] sm:$0xff]
    %v4991 = vld [vmem:[#allocation7 + $0x3a0] sm:$0xff]
    %v4992 = vmax.bf16 %v4990, %v4991
    %v4993 = vmax.bf16 %v4989, %v4992
    %4994 = vst.msk [vmem:[#allocation8 + $0x68] sm:$0xff] %vm4732, %v4993
    %v4995 = vld [vmem:[#allocation7 + $0x330] sm:$0xff]
    %v4996 = vld [vmem:[#allocation7 + $0x338] sm:$0xff]
    %v4997 = vmax.bf16 %v4995, %v4996
    %v4998 = vld [vmem:[#allocation7 + $0x3a8] sm:$0xff]
    %v4999 = vld [vmem:[#allocation7 + $0x3b0] sm:$0xff]
    %v5000 = vmax.bf16 %v4998, %v4999
    %v5001 = vmax.bf16 %v4997, %v5000
    %5003 = vrot.lane.b32.xlu0 %v5001, 64
    %v5004 = vpop.permute.xlu0 %5003
    %5006 = vst.msk [vmem:[#allocation8 + $0x68] sm:$0xff] %vm4745, %v5004
    %v5007 = vld [vmem:[#allocation7 + $0x3c0] sm:$0xff]
    %v5008 = vld [vmem:[#allocation7 + $0x3c8] sm:$0xff]
    %v5009 = vmax.bf16 %v5007, %v5008
    %v5010 = vld [vmem:[#allocation7 + $0x438] sm:$0xff]
    %v5011 = vld [vmem:[#allocation7 + $0x440] sm:$0xff]
    %v5012 = vmax.bf16 %v5010, %v5011
    %v5013 = vmax.bf16 %v5009, %v5012
    %5014 = vst.msk [vmem:[#allocation8 + $0x70] sm:$0xff] %vm4732, %v5013
    %v5015 = vld [vmem:[#allocation7 + $0x3d0] sm:$0xff]
    %v5016 = vld [vmem:[#allocation7 + $0x3d8] sm:$0xff]
    %v5017 = vmax.bf16 %v5015, %v5016
    %v5018 = vld [vmem:[#allocation7 + $0x448] sm:$0xff]
    %v5019 = vld [vmem:[#allocation7 + $0x450] sm:$0xff]
    %v5020 = vmax.bf16 %v5018, %v5019
    %v5021 = vmax.bf16 %v5017, %v5020
    %5023 = vrot.lane.b32.xlu0 %v5021, 64
    %v5024 = vpop.permute.xlu0 %5023
    %5026 = vst.msk [vmem:[#allocation8 + $0x70] sm:$0xff] %vm4745, %v5024
    %v5027 = vld [vmem:[#allocation7 + $0x3e0] sm:$0xff]
    %v5028 = vld [vmem:[#allocation7 + $0x3e8] sm:$0xff]
    %v5029 = vmax.bf16 %v5027, %v5028
    %v5030 = vld [vmem:[#allocation7 + $0x458] sm:$0xff]
    %v5031 = vld [vmem:[#allocation7 + $0x460] sm:$0xff]
    %v5032 = vmax.bf16 %v5030, %v5031
    %v5033 = vmax.bf16 %v5029, %v5032
    %5034 = vst.msk [vmem:[#allocation8 + $0x78] sm:$0xff] %vm4732, %v5033
    %v5035 = vld [vmem:[#allocation7 + $0x3f0] sm:$0xff]
    %v5036 = vld [vmem:[#allocation7 + $0x3f8] sm:$0xff]
    %v5037 = vmax.bf16 %v5035, %v5036
    %v5038 = vld [vmem:[#allocation7 + $0x468] sm:$0xff]
    %v5039 = vld [vmem:[#allocation7 + $0x470] sm:$0xff]
    %v5040 = vmax.bf16 %v5038, %v5039
    %v5041 = vmax.bf16 %v5037, %v5040
    %5043 = vrot.lane.b32.xlu0 %v5041, 64
    %v5044 = vpop.permute.xlu0 %5043
    %5046 = vst.msk [vmem:[#allocation8 + $0x78] sm:$0xff] %vm4745, %v5044
    %v5047 = vld [vmem:[#allocation7 + $0x400] sm:$0xff]
    %v5048 = vld [vmem:[#allocation7 + $0x408] sm:$0xff]
    %v5049 = vmax.bf16 %v5047, %v5048
    %v5050 = vld [vmem:[#allocation7 + $0x478] sm:$0xff]
    %v5051 = vld [vmem:[#allocation7 + $0x480] sm:$0xff]
    %v5052 = vmax.bf16 %v5050, %v5051
    %v5053 = vmax.bf16 %v5049, %v5052
    %5054 = vst.msk [vmem:[#allocation8 + $0x80] sm:$0xff] %vm4732, %v5053
    %v5055 = vld [vmem:[#allocation7 + $0x410] sm:$0xff]
    %v5056 = vld [vmem:[#allocation7 + $0x418] sm:$0xff]
    %v5057 = vmax.bf16 %v5055, %v5056
    %v5058 = vld [vmem:[#allocation7 + $0x488] sm:$0xff]
    %v5059 = vld [vmem:[#allocation7 + $0x490] sm:$0xff]
    %v5060 = vmax.bf16 %v5058, %v5059
    %v5061 = vmax.bf16 %v5057, %v5060
    %5063 = vrot.lane.b32.xlu0 %v5061, 64
    %v5064 = vpop.permute.xlu0 %5063
    %5066 = vst.msk [vmem:[#allocation8 + $0x80] sm:$0xff] %vm4745, %v5064
    %v5067 = vld [vmem:[#allocation7 + $0x420] sm:$0xff]
    %v5068 = vld [vmem:[#allocation7 + $0x428] sm:$0xff]
    %v5069 = vmax.bf16 %v5067, %v5068
    %v5070 = vld [vmem:[#allocation7 + $0x498] sm:$0xff]
    %v5071 = vld [vmem:[#allocation7 + $0x4a0] sm:$0xff]
    %v5072 = vmax.bf16 %v5070, %v5071
    %v5073 = vmax.bf16 %v5069, %v5072
    %5074 = vst.msk [vmem:[#allocation8 + $0x88] sm:$0xff] %vm4732, %v5073
    %v5075 = vld [vmem:[#allocation7 + $0x4b0] sm:$0xff]
    %v5076 = vld [vmem:[#allocation7 + $0x4b8] sm:$0xff]
    %v5077 = vmax.bf16 %v5075, %v5076
    %v5078 = vld [vmem:[#allocation7 + $0x528] sm:$0xff]
    %v5079 = vld [vmem:[#allocation7 + $0x530] sm:$0xff]
    %v5080 = vmax.bf16 %v5078, %v5079
    %v5081 = vmax.bf16 %v5077, %v5080
    %5083 = vrot.lane.b32.xlu0 %v5081, 64
    %v5084 = vpop.permute.xlu0 %5083
    %5086 = vst.msk [vmem:[#allocation8 + $0x88] sm:$0xff] %vm4745, %v5084
    %v5087 = vld [vmem:[#allocation7 + $0x4c0] sm:$0xff]
    %v5088 = vld [vmem:[#allocation7 + $0x4c8] sm:$0xff]
    %v5089 = vmax.bf16 %v5087, %v5088
    %v5090 = vld [vmem:[#allocation7 + $0x538] sm:$0xff]
    %v5091 = vld [vmem:[#allocation7 + $0x540] sm:$0xff]
    %v5092 = vmax.bf16 %v5090, %v5091
    %v5093 = vmax.bf16 %v5089, %v5092
    %5094 = vst.msk [vmem:[#allocation8 + $0x90] sm:$0xff] %vm4732, %v5093
    %v5095 = vld [vmem:[#allocation7 + $0x4d0] sm:$0xff]
    %v5096 = vld [vmem:[#allocation7 + $0x4d8] sm:$0xff]
    %v5097 = vmax.bf16 %v5095, %v5096
    %v5098 = vld [vmem:[#allocation7 + $0x548] sm:$0xff]
    %v5099 = vld [vmem:[#allocation7 + $0x550] sm:$0xff]
    %v5100 = vmax.bf16 %v5098, %v5099
    %v5101 = vmax.bf16 %v5097, %v5100
    %5103 = vrot.lane.b32.xlu0 %v5101, 64
    %v5104 = vpop.permute.xlu0 %5103
    %5106 = vst.msk [vmem:[#allocation8 + $0x90] sm:$0xff] %vm4745, %v5104
    %v5107 = vld [vmem:[#allocation7 + $0x4e0] sm:$0xff]
    %v5108 = vld [vmem:[#allocation7 + $0x4e8] sm:$0xff]
    %v5109 = vmax.bf16 %v5107, %v5108
    %v5110 = vld [vmem:[#allocation7 + $0x558] sm:$0xff]
    %v5111 = vld [vmem:[#allocation7 + $0x560] sm:$0xff]
    %v5112 = vmax.bf16 %v5110, %v5111
    %v5113 = vmax.bf16 %v5109, %v5112
    %5114 = vst.msk [vmem:[#allocation8 + $0x98] sm:$0xff] %vm4732, %v5113
    %v5115 = vld [vmem:[#allocation7 + $0x4f0] sm:$0xff]
    %v5116 = vld [vmem:[#allocation7 + $0x4f8] sm:$0xff]
    %v5117 = vmax.bf16 %v5115, %v5116
    %v5118 = vld [vmem:[#allocation7 + $0x568] sm:$0xff]
    %v5119 = vld [vmem:[#allocation7 + $0x570] sm:$0xff]
    %v5120 = vmax.bf16 %v5118, %v5119
    %v5121 = vmax.bf16 %v5117, %v5120
    %5123 = vrot.lane.b32.xlu0 %v5121, 64
    %v5124 = vpop.permute.xlu0 %5123
    %5126 = vst.msk [vmem:[#allocation8 + $0x98] sm:$0xff] %vm4745, %v5124
    %v5127 = vld [vmem:[#allocation7 + $0x500] sm:$0xff]
    %v5128 = vld [vmem:[#allocation7 + $0x508] sm:$0xff]
    %v5129 = vmax.bf16 %v5127, %v5128
    %v5130 = vld [vmem:[#allocation7 + $0x578] sm:$0xff]
    %v5131 = vld [vmem:[#allocation7 + $0x580] sm:$0xff]
    %v5132 = vmax.bf16 %v5130, %v5131
    %v5133 = vmax.bf16 %v5129, %v5132
    %5134 = vst.msk [vmem:[#allocation8 + $0xa0] sm:$0xff] %vm4732, %v5133
    %v5135 = vld [vmem:[#allocation7 + $0x510] sm:$0xff]
    %v5136 = vld [vmem:[#allocation7 + $0x518] sm:$0xff]
    %v5137 = vmax.bf16 %v5135, %v5136
    %v5138 = vld [vmem:[#allocation7 + $0x588] sm:$0xff]
    %v5139 = vld [vmem:[#allocation7 + $0x590] sm:$0xff]
    %v5140 = vmax.bf16 %v5138, %v5139
    %v5141 = vmax.bf16 %v5137, %v5140
    %5143 = vrot.lane.b32.xlu0 %v5141, 64
    %v5144 = vpop.permute.xlu0 %5143
    %5146 = vst.msk [vmem:[#allocation8 + $0xa0] sm:$0xff] %vm4745, %v5144
    %v5147 = vld [vmem:[#allocation7 + $0x5a0] sm:$0xff]
    %v5148 = vld [vmem:[#allocation7 + $0x5a8] sm:$0xff]
    %v5149 = vmax.bf16 %v5147, %v5148
    %v5150 = vld [vmem:[#allocation7 + $0x618] sm:$0xff]
    %v5151 = vld [vmem:[#allocation7 + $0x620] sm:$0xff]
    %v5152 = vmax.bf16 %v5150, %v5151
    %v5153 = vmax.bf16 %v5149, %v5152
    %5154 = vst.msk [vmem:[#allocation8 + $0xa8] sm:$0xff] %vm4732, %v5153
    %v5155 = vld [vmem:[#allocation7 + $0x5b0] sm:$0xff]
    %v5156 = vld [vmem:[#allocation7 + $0x5b8] sm:$0xff]
    %v5157 = vmax.bf16 %v5155, %v5156
    %v5158 = vld [vmem:[#allocation7 + $0x628] sm:$0xff]
    %v5159 = vld [vmem:[#allocation7 + $0x630] sm:$0xff]
    %v5160 = vmax.bf16 %v5158, %v5159
    %v5161 = vmax.bf16 %v5157, %v5160
    %5163 = vrot.lane.b32.xlu0 %v5161, 64
    %v5164 = vpop.permute.xlu0 %5163
    %5166 = vst.msk [vmem:[#allocation8 + $0xa8] sm:$0xff] %vm4745, %v5164
    %v5167 = vld [vmem:[#allocation7 + $0x5c0] sm:$0xff]
    %v5168 = vld [vmem:[#allocation7 + $0x5c8] sm:$0xff]
    %v5169 = vmax.bf16 %v5167, %v5168
    %v5170 = vld [vmem:[#allocation7 + $0x638] sm:$0xff]
    %v5171 = vld [vmem:[#allocation7 + $0x640] sm:$0xff]
    %v5172 = vmax.bf16 %v5170, %v5171
    %v5173 = vmax.bf16 %v5169, %v5172
    %5174 = vst.msk [vmem:[#allocation8 + $0xb0] sm:$0xff] %vm4732, %v5173
    %v5175 = vld [vmem:[#allocation7 + $0x5d0] sm:$0xff]
    %v5176 = vld [vmem:[#allocation7 + $0x5d8] sm:$0xff]
    %v5177 = vmax.bf16 %v5175, %v5176
    %v5178 = vld [vmem:[#allocation7 + $0x648] sm:$0xff]
    %v5179 = vld [vmem:[#allocation7 + $0x650] sm:$0xff]
    %v5180 = vmax.bf16 %v5178, %v5179
    %v5181 = vmax.bf16 %v5177, %v5180
    %5183 = vrot.lane.b32.xlu0 %v5181, 64
    %v5184 = vpop.permute.xlu0 %5183
    %5186 = vst.msk [vmem:[#allocation8 + $0xb0] sm:$0xff] %vm4745, %v5184
    %v5187 = vld [vmem:[#allocation7 + $0x5e0] sm:$0xff]
    %v5188 = vld [vmem:[#allocation7 + $0x5e8] sm:$0xff]
    %v5189 = vmax.bf16 %v5187, %v5188
    %v5190 = vld [vmem:[#allocation7 + $0x658] sm:$0xff]
    %v5191 = vld [vmem:[#allocation7 + $0x660] sm:$0xff]
    %v5192 = vmax.bf16 %v5190, %v5191
    %v5193 = vmax.bf16 %v5189, %v5192
    %5194 = vst.msk [vmem:[#allocation8 + $0xb8] sm:$0xff] %vm4732, %v5193
    %v5195 = vld [vmem:[#allocation7 + $0x5f0] sm:$0xff]
    %v5196 = vld [vmem:[#allocation7 + $0x5f8] sm:$0xff]
    %v5197 = vmax.bf16 %v5195, %v5196
    %v5198 = vld [vmem:[#allocation7 + $0x668] sm:$0xff]
    %v5199 = vld [vmem:[#allocation7 + $0x670] sm:$0xff]
    %v5200 = vmax.bf16 %v5198, %v5199
    %v5201 = vmax.bf16 %v5197, %v5200
    %5203 = vrot.lane.b32.xlu0 %v5201, 64
    %v5204 = vpop.permute.xlu0 %5203
    %5206 = vst.msk [vmem:[#allocation8 + $0xb8] sm:$0xff] %vm4745, %v5204
    %v5207 = vld [vmem:[#allocation7 + $0x600] sm:$0xff]
    %v5208 = vld [vmem:[#allocation7 + $0x608] sm:$0xff]
    %v5209 = vmax.bf16 %v5207, %v5208
    %v5210 = vld [vmem:[#allocation7 + $0x678] sm:$0xff]
    %v5211 = vld [vmem:[#allocation7 + $0x680] sm:$0xff]
    %v5212 = vmax.bf16 %v5210, %v5211
    %v5213 = vmax.bf16 %v5209, %v5212
    %5214 = vst.msk [vmem:[#allocation8 + $0xc0] sm:$0xff] %vm4732, %v5213
    %v5215 = vld [vmem:[#allocation8] sm:$0xff]
    %v5216 = vld [vmem:[#allocation8 + $0x8] sm:$0xff]
    %v5217 = vld [vmem:[#allocation8 + $0x10] sm:$0xff]
    %v5218 = vld [vmem:[#allocation8 + $0x18] sm:$0xff]
    %v5219 = vld [vmem:[%s7] sm:$0xf]
    %v5220 = vld [vmem:[%s7 + $0x4] sm:$0xf]
    %v5221 = vld [vmem:[%s7 + $0x8] sm:$0xf]
    %v5222 = vld [vmem:[%s7 + $0xc] sm:$0xf]
    %v5223 = vld [vmem:[%s7 + $0x10] sm:$0xf]
    %v5224 = vld [vmem:[%s7 + $0x14] sm:$0xf]
    %v5225 = vld [vmem:[%s7 + $0x18] sm:$0xf]
    %v5226 = vld [vmem:[%s7 + $0x1c] sm:$0xf]
    %v5227 = vld [vmem:[%s7 + $0x20] sm:$0xf]
    %v5228 = vld [vmem:[%s7 + $0x24] sm:$0xf]
    %v5229 = vld [vmem:[%s7 + $0x28] sm:$0xf]
    %v5230 = vld [vmem:[%s7 + $0x2c] sm:$0xf]
    %v5231 = vld [vmem:[%s7 + $0x30] sm:$0xf]
    %v5232 = vld [vmem:[%s7 + $0x34] sm:$0xf]
    %v5233 = vld [vmem:[%s7 + $0x38] sm:$0xf]
    %v5234 = vld [vmem:[%s7 + $0x3c] sm:$0xf]
    %v5235 = vld [vmem:[%s7 + $0x40] sm:$0xf]
    %v5236 = vld [vmem:[%s7 + $0x44] sm:$0xf]
    %v5237 = vld [vmem:[%s7 + $0x48] sm:$0xf]
    %v5238 = vld [vmem:[%s7 + $0x4c] sm:$0xf]
    %v5239 = vld [vmem:[%s7 + $0x50] sm:$0xf]
    %v5240 = vld [vmem:[%s7 + $0x54] sm:$0xf]
    %v5241 = vld [vmem:[%s7 + $0x58] sm:$0xf]
    %v5242 = vld [vmem:[%s7 + $0x5c] sm:$0xf]
    %v5243 = vld [vmem:[%s7 + $0x60] sm:$0xf]
    %v5244 = vld [vmem:[%s7 + $0x64] sm:$0xf]
    %v5245 = vld [vmem:[%s7 + $0x68] sm:$0xf]
    %v5246 = vld [vmem:[%s7 + $0x6c] sm:$0xf]
    %v5247 = vld [vmem:[%s7 + $0x70] sm:$0xf]
    %v5248 = vld [vmem:[%s7 + $0x74] sm:$0xf]
    %v5249 = vld [vmem:[%s7 + $0x78] sm:$0xf]
    %v5250 = vld [vmem:[%s7 + $0x7c] sm:$0xf]
    %v5251 = vld [vmem:[%s7 + $0x80] sm:$0xf]
    %v5252 = vld [vmem:[%s7 + $0x84] sm:$0xf]
    %v5253 = vld [vmem:[%s7 + $0x88] sm:$0xf]
    %v5254 = vld [vmem:[%s7 + $0x8c] sm:$0xf]
    %v5255 = vld [vmem:[%s7 + $0x90] sm:$0xf]
    %v5256 = vld [vmem:[%s7 + $0x94] sm:$0xf]
    %v5257 = vld [vmem:[%s7 + $0x98] sm:$0xf]
    %v5258 = vld [vmem:[%s7 + $0x9c] sm:$0xf]
    %v5259 = vld [vmem:[%s7 + $0xa0] sm:$0xf]
    %v5260 = vld [vmem:[%s7 + $0xa4] sm:$0xf]
    %v5261 = vld [vmem:[%s7 + $0xa8] sm:$0xf]
    %v5262 = vld [vmem:[%s7 + $0xac] sm:$0xf]
    %v5263 = vld [vmem:[%s7 + $0xb0] sm:$0xf]
    %v5264 = vld [vmem:[%s7 + $0xb4] sm:$0xf]
    %v5265 = vld [vmem:[%s7 + $0xb8] sm:$0xf]
    %v5266 = vld [vmem:[%s7 + $0xbc] sm:$0xf]
    %v5267 = vld [vmem:[%s7 + $0xc0] sm:$0xf]
    %v5268 = vld [vmem:[%s7 + $0xc4] sm:$0xf]
    %v5269 = vld [vmem:[%s7 + $0xc8] sm:$0xf]
    %v5270 = vld [vmem:[%s7 + $0xcc] sm:$0xf]
    %v5271 = vld [vmem:[%s7 + $0xd0] sm:$0xf]
    %v5272 = vld [vmem:[%s7 + $0xd4] sm:$0xf]
    %v5273 = vld [vmem:[%s7 + $0xd8] sm:$0xf]
    %v5274 = vld [vmem:[%s7 + $0xdc] sm:$0xf]
    %v5275 = vld [vmem:[#allocation8 + $0x20] sm:$0xff]
    %v5276 = vld [vmem:[#allocation8 + $0x28] sm:$0xff]
    %v5277 = vld [vmem:[#allocation8 + $0x30] sm:$0xff]
    %v5278 = vld [vmem:[%s7 + $0xe0] sm:$0xf]
    %v5279 = vld [vmem:[%s7 + $0xe4] sm:$0xf]
    %v5280 = vld [vmem:[%s7 + $0xe8] sm:$0xf]
    %v5281 = vld [vmem:[%s7 + $0xec] sm:$0xf]
    %v5282 = vld [vmem:[%s7 + $0xf0] sm:$0xf]
    %v5283 = vld [vmem:[%s7 + $0xf4] sm:$0xf]
    %v5284 = vld [vmem:[%s7 + $0xf8] sm:$0xf]
    %v5285 = vld [vmem:[%s7 + $0xfc] sm:$0xf]
    %v5286 = vld [vmem:[%s7 + $0x100] sm:$0xf]
    %v5287 = vld [vmem:[%s7 + $0x104] sm:$0xf]
    %v5288 = vld [vmem:[%s7 + $0x108] sm:$0xf]
    %v5289 = vld [vmem:[%s7 + $0x10c] sm:$0xf]
    %v5290 = vld [vmem:[%s7 + $0x110] sm:$0xf]
    %v5291 = vld [vmem:[%s7 + $0x114] sm:$0xf]
    %v5292 = vld [vmem:[%s7 + $0x118] sm:$0xf]
    %v5293 = vld [vmem:[%s7 + $0x11c] sm:$0xf]
    %v5294 = vld [vmem:[%s7 + $0x120] sm:$0xf]
    %v5295 = vld [vmem:[%s7 + $0x124] sm:$0xf]
    %v5296 = vld [vmem:[%s7 + $0x128] sm:$0xf]
    %v5297 = vld [vmem:[%s7 + $0x12c] sm:$0xf]
    %v5298 = vld [vmem:[%s7 + $0x130] sm:$0xf]
    %v5299 = vld [vmem:[%s7 + $0x134] sm:$0xf]
    %v5300 = vld [vmem:[%s7 + $0x138] sm:$0xf]
    %v5301 = vld [vmem:[%s7 + $0x13c] sm:$0xf]
    %v5302 = vld [vmem:[%s7 + $0x140] sm:$0xf]
    %v5303 = vld [vmem:[%s7 + $0x144] sm:$0xf]
    %v5304 = vld [vmem:[%s7 + $0x148] sm:$0xf]
    %v5305 = vld [vmem:[%s7 + $0x14c] sm:$0xf]
    %v5306 = vld [vmem:[%s7 + $0x150] sm:$0xf]
    %v5307 = vld [vmem:[%s7 + $0x154] sm:$0xf]
    %v5308 = vld [vmem:[%s7 + $0x158] sm:$0xf]
    %v5309 = vld [vmem:[%s7 + $0x15c] sm:$0xf]
    %v5310 = vld [vmem:[%s7 + $0x160] sm:$0xf]
    %v5311 = vld [vmem:[%s7 + $0x164] sm:$0xf]
    %v5312 = vld [vmem:[%s7 + $0x168] sm:$0xf]
    %v5313 = vld [vmem:[%s7 + $0x16c] sm:$0xf]
    %v5314 = vld [vmem:[%s7 + $0x170] sm:$0xf]
    %v5315 = vld [vmem:[%s7 + $0x174] sm:$0xf]
    %v5316 = vld [vmem:[%s7 + $0x178] sm:$0xf]
    %v5317 = vld [vmem:[%s7 + $0x17c] sm:$0xf]
    %v5318 = vld [vmem:[%s7 + $0x180] sm:$0xf]
    %v5319 = vld [vmem:[%s7 + $0x184] sm:$0xf]
    %v5320 = vld [vmem:[%s7 + $0x188] sm:$0xf]
    %v5321 = vld [vmem:[%s7 + $0x18c] sm:$0xf]
    %v5322 = vld [vmem:[%s7 + $0x190] sm:$0xf]
    %v5323 = vld [vmem:[%s7 + $0x194] sm:$0xf]
    %v5324 = vld [vmem:[%s7 + $0x198] sm:$0xf]
    %v5325 = vld [vmem:[%s7 + $0x19c] sm:$0xf]
    %v5326 = vld [vmem:[%s7 + $0x1a0] sm:$0xf]
    %v5327 = vld [vmem:[%s7 + $0x1a4] sm:$0xf]
    %v5328 = vld [vmem:[%s7 + $0x1a8] sm:$0xf]
    %v5329 = vld [vmem:[%s7 + $0x1ac] sm:$0xf]
    %v5330 = vld [vmem:[%s7 + $0x1b0] sm:$0xf]
    %v5331 = vld [vmem:[%s7 + $0x1b4] sm:$0xf]
    %v5332 = vld [vmem:[%s7 + $0x1b8] sm:$0xf]
    %v5333 = vld [vmem:[%s7 + $0x1bc] sm:$0xf]
    %5338 = vrot.lane.b32.xlu0 %v5218, 64
    %v5339 = vpop.permute.xlu0 %5338
    %5340 = vrot.lane.b32.xlu0 %v5275, 64
    %v5341 = vpop.permute.xlu0 %5340
    %5342 = vrot.lane.b32.xlu0 %v5276, 64
    %v5343 = vpop.permute.xlu0 %5342
    %5344 = vrot.lane.b32.xlu0 %v5277, 64
    %v5345 = vpop.permute.xlu0 %5344
    %vm5346 = vcmask 523264
    %v5347 = vsel %vm5346, %v5339, %v5341
    %v5348 = vsel %vm5346, %v5341, %v5343
    %v5349 = vsel %vm5346, %v5343, %v5345
    %v5409 = vunpack.c.l.b16 %v5278
    %v5410 = vunpack.c.l.b16 %v5279
    %v5411 = vunpack.c.l.b16 %v5280
    %v5412 = vunpack.c.l.b16 %v5281
    %v5413 = vunpack.c.l.b16 %v5282
    %v5414 = vunpack.c.l.b16 %v5283
    %v5415 = vunpack.c.l.b16 %v5284
    %v5416 = vunpack.c.l.b16 %v5285
    %v5417 = vunpack.c.l.b16 %v5286
    %v5418 = vunpack.c.l.b16 %v5287
    %v5419 = vunpack.c.l.b16 %v5288
    %v5420 = vunpack.c.l.b16 %v5289
    %v5421 = vunpack.c.l.b16 %v5290
    %v5422 = vunpack.c.l.b16 %v5291
    %v5423 = vunpack.c.l.b16 %v5292
    %v5424 = vunpack.c.l.b16 %v5293
    %v5425 = vunpack.c.l.b16 %v5294
    %v5426 = vunpack.c.l.b16 %v5295
    %v5427 = vunpack.c.l.b16 %v5296
    %v5428 = vunpack.c.l.b16 %v5297
    %v5429 = vunpack.c.l.b16 %v5298
    %v5430 = vunpack.c.l.b16 %v5299
    %v5431 = vunpack.c.l.b16 %v5300
    %v5432 = vunpack.c.l.b16 %v5301
    %v5433 = vunpack.c.l.b16 %v5302
    %v5434 = vunpack.c.l.b16 %v5303
    %v5435 = vunpack.c.l.b16 %v5304
    %v5436 = vunpack.c.l.b16 %v5305
    %v5437 = vunpack.c.l.b16 %v5306
    %v5438 = vunpack.c.l.b16 %v5307
    %v5439 = vunpack.c.l.b16 %v5308
    %v5440 = vunpack.c.l.b16 %v5309
    %v5441 = vunpack.c.l.b16 %v5310
    %v5442 = vunpack.c.l.b16 %v5311
    %v5443 = vunpack.c.l.b16 %v5312
    %v5444 = vunpack.c.l.b16 %v5313
    %v5445 = vunpack.c.l.b16 %v5314
    %v5446 = vunpack.c.l.b16 %v5315
    %v5447 = vunpack.c.l.b16 %v5316
    %v5448 = vunpack.c.l.b16 %v5317
    %v5449 = vunpack.c.l.b16 %v5318
    %v5450 = vunpack.c.l.b16 %v5319
    %v5451 = vunpack.c.l.b16 %v5320
    %v5452 = vunpack.c.l.b16 %v5321
    %v5453 = vunpack.c.l.b16 %v5322
    %v5454 = vunpack.c.l.b16 %v5323
    %v5455 = vunpack.c.l.b16 %v5324
    %v5456 = vunpack.c.l.b16 %v5325
    %v5457 = vunpack.c.l.b16 %v5326
    %v5458 = vunpack.c.l.b16 %v5327
    %v5459 = vunpack.c.l.b16 %v5328
    %v5460 = vunpack.c.l.b16 %v5329
    %v5461 = vunpack.c.l.b16 %v5330
    %v5462 = vunpack.c.l.b16 %v5331
    %v5463 = vunpack.c.l.b16 %v5332
    %v5464 = vunpack.c.l.b16 %v5333
    %v5465 = vpack.c.b16 %v5410, %v5409
    %v5466 = vpack.c.b16 %v5412, %v5411
    %v5467 = vpack.c.b16 %v5414, %v5413
    %v5468 = vpack.c.b16 %v5416, %v5415
    %v5469 = vpack.c.b16 %v5418, %v5417
    %v5470 = vpack.c.b16 %v5420, %v5419
    %v5471 = vpack.c.b16 %v5422, %v5421
    %v5472 = vpack.c.b16 %v5424, %v5423
    %v5473 = vpack.c.b16 %v5426, %v5425
    %v5474 = vpack.c.b16 %v5428, %v5427
    %v5475 = vpack.c.b16 %v5430, %v5429
    %v5476 = vpack.c.b16 %v5432, %v5431
    %v5477 = vpack.c.b16 %v5434, %v5433
    %v5478 = vpack.c.b16 %v5436, %v5435
    %v5479 = vpack.c.b16 %v5438, %v5437
    %v5480 = vpack.c.b16 %v5440, %v5439
    %v5481 = vpack.c.b16 %v5442, %v5441
    %v5482 = vpack.c.b16 %v5444, %v5443
    %v5483 = vpack.c.b16 %v5446, %v5445
    %v5484 = vpack.c.b16 %v5448, %v5447
    %v5485 = vpack.c.b16 %v5450, %v5449
    %v5486 = vpack.c.b16 %v5452, %v5451
    %v5487 = vpack.c.b16 %v5454, %v5453
    %v5488 = vpack.c.b16 %v5456, %v5455
    %v5489 = vpack.c.b16 %v5458, %v5457
    %v5490 = vpack.c.b16 %v5460, %v5459
    %v5491 = vpack.c.b16 %v5462, %v5461
    %v5492 = vpack.c.b16 %v5464, %v5463
    %v5522 = vsel %vm4732, %v5345, 0
    %5524 = vmatprep.subr.bf16.mxu0 0
    %5525 = vmatpush1.bf16.msra.mxu0 %v5465
    %5526 = vmatprep.subr.bf16.mxu0 0
    %5527 = vmatpush1.bf16.msra.mxu0 %v5466
    %5528 = vmatprep.subr.bf16.mxu0 0
    %5529 = vmatpush1.bf16.msra.mxu0 %v5467
    %5530 = vmatprep.subr.bf16.mxu0 0
    %5531 = vmatpush1.bf16.msra.mxu0 %v5468
    %5532 = vmatprep.subr.bf16.mxu0 0
    %5533 = vmatpush1.bf16.msra.mxu0 %v5469
    %5534 = vmatprep.subr.bf16.mxu0 0
    %5535 = vmatpush1.bf16.msra.mxu0 %v5470
    %5536 = vmatprep.subr.bf16.mxu0 0
    %5537 = vmatpush1.bf16.msra.mxu0 %v5471
    %5538 = vmatprep.subr.bf16.mxu0 0
    %5539 = vmatpush1.bf16.msra.mxu0 %v5472
    %5540 = vmatprep.subr.bf16.mxu0 0
    %5541 = vmatpush1.bf16.msra.mxu0 %v5473
    %5542 = vmatprep.subr.bf16.mxu0 0
    %5543 = vmatpush1.bf16.msra.mxu0 %v5474
    %5544 = vmatprep.subr.bf16.mxu0 0
    %5545 = vmatpush1.bf16.msra.mxu0 %v5475
    %5546 = vmatprep.subr.bf16.mxu0 0
    %5547 = vmatpush1.bf16.msra.mxu0 %v5476
    %5548 = vmatprep.subr.bf16.mxu0 0
    %5549 = vmatpush1.bf16.msra.mxu0 %v5477
    %5550 = vmatprep.subr.bf16.mxu0 0
    %5551 = vmatpush1.bf16.msra.mxu0 %v5478
    %5552 = vmatprep.subr.bf16.mxu0 0
    %5553 = vmatpush1.bf16.msra.mxu0 %v5479
    %5554 = vmatprep.subr.bf16.mxu0 0
    %5555 = vmatpush1.bf16.msra.mxu0 %v5480
    %5556 = vmatprep.mubr.bf16.mxu0 %v5348
    %5557 = vmatmul.mubr.bf16.gmra.mrb[0].mxu0 %v5347
    %v5558 = vpop.f32.mrb[0].mxu0
    %v5559 = vadd.f32 0.0, %v5558
    %v5560 = vpop.f32.mrb[0].mxu0
    %v5561 = vpop.f32.mrb[0].mxu0
    %v5562 = vadd.f32 0.0, %v5561
    %v5563 = vpop.f32.mrb[0].mxu0
    %5564 = vdwg.mxu0
    %5565 = vmatprep.subr.bf16.mxu0 0
    %5566 = vmatpush1.bf16.msra.mxu0 %v5481
    %5567 = vmatprep.subr.bf16.mxu0 0
    %5568 = vmatpush1.bf16.msra.mxu0 %v5482
    %5569 = vmatprep.subr.bf16.mxu0 0
    %5570 = vmatpush1.bf16.msra.mxu0 %v5483
    %5571 = vmatprep.subr.bf16.mxu0 0
    %5572 = vmatpush1.bf16.msra.mxu0 %v5484
    %5573 = vmatprep.subr.bf16.mxu0 0
    %5574 = vmatpush1.bf16.msra.mxu0 %v5485
    %5575 = vmatprep.subr.bf16.mxu0 0
    %5576 = vmatpush1.bf16.msra.mxu0 %v5486
    %5577 = vmatprep.subr.bf16.mxu0 0
    %5578 = vmatpush1.bf16.msra.mxu0 %v5487
    %5579 = vmatprep.subr.bf16.mxu0 0
    %5580 = vmatpush1.bf16.msra.mxu0 %v5488
    %5581 = vmatprep.subr.bf16.mxu0 0
    %5582 = vmatpush1.bf16.msra.mxu0 %v5489
    %5583 = vmatprep.subr.bf16.mxu0 0
    %5584 = vmatpush1.bf16.msra.mxu0 %v5490
    %5585 = vmatprep.subr.bf16.mxu0 0
    %5586 = vmatpush1.bf16.msra.mxu0 %v5491
    %5587 = vmatprep.subr.bf16.mxu0 0
    %5588 = vmatpush1.bf16.msra.mxu0 %v5492
    %5589 = vmatprep.subr.bf16.mxu0 0
    %5590 = vmatpush1.bf16.msra.mxu0 0
    %5591 = vmatprep.subr.bf16.mxu0 0
    %5592 = vmatpush1.bf16.msra.mxu0 0
    %5593 = vmatprep.subr.bf16.mxu0 0
    %5594 = vmatpush1.bf16.msra.mxu0 0
    %5595 = vmatprep.subr.bf16.mxu0 0
    %5596 = vmatpush1.bf16.msra.mxu0 0
    %5597 = vmatprep.mubr.bf16.mxu0 %v5522
    %5598 = vmatmul.mubr.bf16.gmra.mrb[0].mxu0 %v5349
    %v5599 = vpop.f32.mrb[0].mxu0
    %v5600 = vadd.f32 %v5559, %v5599
    %v5601 = vpop.f32.mrb[0].mxu0
    %v5602 = vpop.f32.mrb[0].mxu0
    %v5603 = vadd.f32 %v5562, %v5602
    %v5604 = vpop.f32.mrb[0].mxu0
    %5605 = vdwg.mxu0
    %v5662 = vunpack.c.l.b16 %v5219
    %v5663 = vunpack.c.l.b16 %v5220
    %v5664 = vunpack.c.l.b16 %v5221
    %v5665 = vunpack.c.l.b16 %v5222
    %v5666 = vunpack.c.l.b16 %v5223
    %v5667 = vunpack.c.l.b16 %v5224
    %v5668 = vunpack.c.l.b16 %v5225
    %v5669 = vunpack.c.l.b16 %v5226
    %v5670 = vunpack.c.l.b16 %v5227
    %v5671 = vunpack.c.l.b16 %v5228
    %v5672 = vunpack.c.l.b16 %v5229
    %v5673 = vunpack.c.l.b16 %v5230
    %v5674 = vunpack.c.l.b16 %v5231
    %v5675 = vunpack.c.l.b16 %v5232
    %v5676 = vunpack.c.l.b16 %v5233
    %v5677 = vunpack.c.l.b16 %v5234
    %v5678 = vunpack.c.l.b16 %v5235
    %v5679 = vunpack.c.l.b16 %v5236
    %v5680 = vunpack.c.l.b16 %v5237
    %v5681 = vunpack.c.l.b16 %v5238
    %v5682 = vunpack.c.l.b16 %v5239
    %v5683 = vunpack.c.l.b16 %v5240
    %v5684 = vunpack.c.l.b16 %v5241
    %v5685 = vunpack.c.l.b16 %v5242
    %v5686 = vunpack.c.l.b16 %v5243
    %v5687 = vunpack.c.l.b16 %v5244
    %v5688 = vunpack.c.l.b16 %v5245
    %v5689 = vunpack.c.l.b16 %v5246
    %v5690 = vunpack.c.l.b16 %v5247
    %v5691 = vunpack.c.l.b16 %v5248
    %v5692 = vunpack.c.l.b16 %v5249
    %v5693 = vunpack.c.l.b16 %v5250
    %v5694 = vunpack.c.l.b16 %v5251
    %v5695 = vunpack.c.l.b16 %v5252
    %v5696 = vunpack.c.l.b16 %v5253
    %v5697 = vunpack.c.l.b16 %v5254
    %v5698 = vunpack.c.l.b16 %v5255
    %v5699 = vunpack.c.l.b16 %v5256
    %v5700 = vunpack.c.l.b16 %v5257
    %v5701 = vunpack.c.l.b16 %v5258
    %v5702 = vunpack.c.l.b16 %v5259
    %v5703 = vunpack.c.l.b16 %v5260
    %v5704 = vunpack.c.l.b16 %v5261
    %v5705 = vunpack.c.l.b16 %v5262
    %v5706 = vunpack.c.l.b16 %v5263
    %v5707 = vunpack.c.l.b16 %v5264
    %v5708 = vunpack.c.l.b16 %v5265
    %v5709 = vunpack.c.l.b16 %v5266
    %v5710 = vunpack.c.l.b16 %v5267
    %v5711 = vunpack.c.l.b16 %v5268
    %v5712 = vunpack.c.l.b16 %v5269
    %v5713 = vunpack.c.l.b16 %v5270
    %v5714 = vunpack.c.l.b16 %v5271
    %v5715 = vunpack.c.l.b16 %v5272
    %v5716 = vunpack.c.l.b16 %v5273
    %v5717 = vunpack.c.l.b16 %v5274
    %v5718 = vpack.c.b16 %v5663, %v5662
    %v5719 = vpack.c.b16 %v5665, %v5664
    %v5720 = vpack.c.b16 %v5667, %v5666
    %v5721 = vpack.c.b16 %v5669, %v5668
    %v5722 = vpack.c.b16 %v5671, %v5670
    %v5723 = vpack.c.b16 %v5673, %v5672
    %v5724 = vpack.c.b16 %v5675, %v5674
    %v5725 = vpack.c.b16 %v5677, %v5676
    %v5726 = vpack.c.b16 %v5679, %v5678
    %v5727 = vpack.c.b16 %v5681, %v5680
    %v5728 = vpack.c.b16 %v5683, %v5682
    %v5729 = vpack.c.b16 %v5685, %v5684
    %v5730 = vpack.c.b16 %v5687, %v5686
    %v5731 = vpack.c.b16 %v5689, %v5688
    %v5732 = vpack.c.b16 %v5691, %v5690
    %v5733 = vpack.c.b16 %v5693, %v5692
    %v5734 = vpack.c.b16 %v5695, %v5694
    %v5735 = vpack.c.b16 %v5697, %v5696
    %v5736 = vpack.c.b16 %v5699, %v5698
    %v5737 = vpack.c.b16 %v5701, %v5700
    %v5738 = vpack.c.b16 %v5703, %v5702
    %v5739 = vpack.c.b16 %v5705, %v5704
    %v5740 = vpack.c.b16 %v5707, %v5706
    %v5741 = vpack.c.b16 %v5709, %v5708
    %v5742 = vpack.c.b16 %v5711, %v5710
    %v5743 = vpack.c.b16 %v5713, %v5712
    %v5744 = vpack.c.b16 %v5715, %v5714
    %v5745 = vpack.c.b16 %v5717, %v5716
    %v5775 = vsel %vm4732, %v5218, 0
    %5777 = vmatprep.subr.bf16.mxu0 0
    %5778 = vmatpush1.bf16.msra.mxu0 %v5718
    %5779 = vmatprep.subr.bf16.mxu0 0
    %5780 = vmatpush1.bf16.msra.mxu0 %v5719
    %5781 = vmatprep.subr.bf16.mxu0 0
    %5782 = vmatpush1.bf16.msra.mxu0 %v5720
    %5783 = vmatprep.subr.bf16.mxu0 0
    %5784 = vmatpush1.bf16.msra.mxu0 %v5721
    %5785 = vmatprep.subr.bf16.mxu0 0
    %5786 = vmatpush1.bf16.msra.mxu0 %v5722
    %5787 = vmatprep.subr.bf16.mxu0 0
    %5788 = vmatpush1.bf16.msra.mxu0 %v5723
    %5789 = vmatprep.subr.bf16.mxu0 0
    %5790 = vmatpush1.bf16.msra.mxu0 %v5724
    %5791 = vmatprep.subr.bf16.mxu0 0
    %5792 = vmatpush1.bf16.msra.mxu0 %v5725
    %5793 = vmatprep.subr.bf16.mxu0 0
    %5794 = vmatpush1.bf16.msra.mxu0 %v5726
    %5795 = vmatprep.subr.bf16.mxu0 0
    %5796 = vmatpush1.bf16.msra.mxu0 %v5727
    %5797 = vmatprep.subr.bf16.mxu0 0
    %5798 = vmatpush1.bf16.msra.mxu0 %v5728
    %5799 = vmatprep.subr.bf16.mxu0 0
    %5800 = vmatpush1.bf16.msra.mxu0 %v5729
    %5801 = vmatprep.subr.bf16.mxu0 0
    %5802 = vmatpush1.bf16.msra.mxu0 %v5730
    %5803 = vmatprep.subr.bf16.mxu0 0
    %5804 = vmatpush1.bf16.msra.mxu0 %v5731
    %5805 = vmatprep.subr.bf16.mxu0 0
    %5806 = vmatpush1.bf16.msra.mxu0 %v5732
    %5807 = vmatprep.subr.bf16.mxu0 0
    %5808 = vmatpush1.bf16.msra.mxu0 %v5733
    %5809 = vmatprep.mubr.bf16.mxu0 %v5216
    %5810 = vmatmul.mubr.bf16.gmra.mrb[0].mxu0 %v5215
    %v5811 = vpop.f32.mrb[0].mxu0
    %v5812 = vadd.f32 %v5600, %v5811
    %v5813 = vpop.f32.mrb[0].mxu0
    %v5814 = vpop.f32.mrb[0].mxu0
    %v5815 = vadd.f32 %v5603, %v5814
    %v5816 = vpop.f32.mrb[0].mxu0
    %5817 = vdwg.mxu0
    %5818 = vmatprep.subr.bf16.mxu0 0
    %5819 = vmatpush1.bf16.msra.mxu0 %v5734
    %5820 = vmatprep.subr.bf16.mxu0 0
    %5821 = vmatpush1.bf16.msra.mxu0 %v5735
    %5822 = vmatprep.subr.bf16.mxu0 0
    %5823 = vmatpush1.bf16.msra.mxu0 %v5736
    %5824 = vmatprep.subr.bf16.mxu0 0
    %5825 = vmatpush1.bf16.msra.mxu0 %v5737
    %5826 = vmatprep.subr.bf16.mxu0 0
    %5827 = vmatpush1.bf16.msra.mxu0 %v5738
    %5828 = vmatprep.subr.bf16.mxu0 0
    %5829 = vmatpush1.bf16.msra.mxu0 %v5739
    %5830 = vmatprep.subr.bf16.mxu0 0
    %5831 = vmatpush1.bf16.msra.mxu0 %v5740
    %5832 = vmatprep.subr.bf16.mxu0 0
    %5833 = vmatpush1.bf16.msra.mxu0 %v5741
    %5834 = vmatprep.subr.bf16.mxu0 0
    %5835 = vmatpush1.bf16.msra.mxu0 %v5742
    %5836 = vmatprep.subr.bf16.mxu0 0
    %5837 = vmatpush1.bf16.msra.mxu0 %v5743
    %5838 = vmatprep.subr.bf16.mxu0 0
    %5839 = vmatpush1.bf16.msra.mxu0 %v5744
    %5840 = vmatprep.subr.bf16.mxu0 0
    %5841 = vmatpush1.bf16.msra.mxu0 %v5745
    %5842 = vmatprep.subr.bf16.mxu0 0
    %5843 = vmatpush1.bf16.msra.mxu0 0
    %5844 = vmatprep.subr.bf16.mxu0 0
    %5845 = vmatpush1.bf16.msra.mxu0 0
    %5846 = vmatprep.subr.bf16.mxu0 0
    %5847 = vmatpush1.bf16.msra.mxu0 0
    %5848 = vmatprep.subr.bf16.mxu0 0
    %5849 = vmatpush1.bf16.msra.mxu0 0
    %5850 = vmatprep.mubr.bf16.mxu0 %v5775
    %5851 = vmatmul.mubr.bf16.gmra.mrb[0].mxu0 %v5217
    %v5852 = vpop.f32.mrb[0].mxu0
    %v5853 = vadd.f32 %v5812, %v5852
    %v5854 = vpop.f32.mrb[0].mxu0
    %v5855 = vpop.f32.mrb[0].mxu0
    %v5856 = vadd.f32 %v5815, %v5855
    %v5857 = vpop.f32.mrb[0].mxu0
    %5858 = vdwg.mxu0
    %v5859 = vld [vmem:[#allocation8 + $0x38] sm:$0xff]
    %v5860 = vld [vmem:[#allocation8 + $0x40] sm:$0xff]
    %v5861 = vld [vmem:[#allocation8 + $0x48] sm:$0xff]
    %v5862 = vld [vmem:[#allocation8 + $0x50] sm:$0xff]
    %v5863 = vld [vmem:[%s7 + $0x1c0] sm:$0xf]
    %v5864 = vld [vmem:[%s7 + $0x1c4] sm:$0xf]
    %v5865 = vld [vmem:[%s7 + $0x1c8] sm:$0xf]
    %v5866 = vld [vmem:[%s7 + $0x1cc] sm:$0xf]
    %v5867 = vld [vmem:[%s7 + $0x1d0] sm:$0xf]
    %v5868 = vld [vmem:[%s7 + $0x1d4] sm:$0xf]
    %v5869 = vld [vmem:[%s7 + $0x1d8] sm:$0xf]
    %v5870 = vld [vmem:[%s7 + $0x1dc] sm:$0xf]
    %v5871 = vld [vmem:[%s7 + $0x1e0] sm:$0xf]
    %v5872 = vld [vmem:[%s7 + $0x1e4] sm:$0xf]
    %v5873 = vld [vmem:[%s7 + $0x1e8] sm:$0xf]
    %v5874 = vld [vmem:[%s7 + $0x1ec] sm:$0xf]
    %v5875 = vld [vmem:[%s7 + $0x1f0] sm:$0xf]
    %v5876 = vld [vmem:[%s7 + $0x1f4] sm:$0xf]
    %v5877 = vld [vmem:[%s7 + $0x1f8] sm:$0xf]
    %v5878 = vld [vmem:[%s7 + $0x1fc] sm:$0xf]
    %v5879 = vld [vmem:[%s7 + $0x200] sm:$0xf]
    %v5880 = vld [vmem:[%s7 + $0x204] sm:$0xf]
    %v5881 = vld [vmem:[%s7 + $0x208] sm:$0xf]
    %v5882 = vld [vmem:[%s7 + $0x20c] sm:$0xf]
    %v5883 = vld [vmem:[%s7 + $0x210] sm:$0xf]
    %v5884 = vld [vmem:[%s7 + $0x214] sm:$0xf]
    %v5885 = vld [vmem:[%s7 + $0x218] sm:$0xf]
    %v5886 = vld [vmem:[%s7 + $0x21c] sm:$0xf]
    %v5887 = vld [vmem:[%s7 + $0x220] sm:$0xf]
    %v5888 = vld [vmem:[%s7 + $0x224] sm:$0xf]
    %v5889 = vld [vmem:[%s7 + $0x228] sm:$0xf]
    %v5890 = vld [vmem:[%s7 + $0x22c] sm:$0xf]
    %v5891 = vld [vmem:[%s7 + $0x230] sm:$0xf]
    %v5892 = vld [vmem:[%s7 + $0x234] sm:$0xf]
    %v5893 = vld [vmem:[%s7 + $0x238] sm:$0xf]
    %v5894 = vld [vmem:[%s7 + $0x23c] sm:$0xf]
    %v5895 = vld [vmem:[%s7 + $0x240] sm:$0xf]
    %v5896 = vld [vmem:[%s7 + $0x244] sm:$0xf]
    %v5897 = vld [vmem:[%s7 + $0x248] sm:$0xf]
    %v5898 = vld [vmem:[%s7 + $0x24c] sm:$0xf]
    %v5899 = vld [vmem:[%s7 + $0x250] sm:$0xf]
    %v5900 = vld [vmem:[%s7 + $0x254] sm:$0xf]
    %v5901 = vld [vmem:[%s7 + $0x258] sm:$0xf]
    %v5902 = vld [vmem:[%s7 + $0x25c] sm:$0xf]
    %v5903 = vld [vmem:[%s7 + $0x260] sm:$0xf]
    %v5904 = vld [vmem:[%s7 + $0x264] sm:$0xf]
    %v5905 = vld [vmem:[%s7 + $0x268] sm:$0xf]
    %v5906 = vld [vmem:[%s7 + $0x26c] sm:$0xf]
    %v5907 = vld [vmem:[%s7 + $0x270] sm:$0xf]
    %v5908 = vld [vmem:[%s7 + $0x274] sm:$0xf]
    %v5909 = vld [vmem:[%s7 + $0x278] sm:$0xf]
    %v5910 = vld [vmem:[%s7 + $0x27c] sm:$0xf]
    %v5911 = vld [vmem:[%s7 + $0x280] sm:$0xf]
    %v5912 = vld [vmem:[%s7 + $0x284] sm:$0xf]
    %v5913 = vld [vmem:[%s7 + $0x288] sm:$0xf]
    %v5914 = vld [vmem:[%s7 + $0x28c] sm:$0xf]
    %v5915 = vld [vmem:[%s7 + $0x290] sm:$0xf]
    %v5916 = vld [vmem:[%s7 + $0x294] sm:$0xf]
    %v5917 = vld [vmem:[%s7 + $0x298] sm:$0xf]
    %v5918 = vld [vmem:[%s7 + $0x29c] sm:$0xf]
    %v5975 = vunpack.c.l.b16 %v5863
    %v5976 = vunpack.c.l.b16 %v5864
    %v5977 = vunpack.c.l.b16 %v5865
    %v5978 = vunpack.c.l.b16 %v5866
    %v5979 = vunpack.c.l.b16 %v5867
    %v5980 = vunpack.c.l.b16 %v5868
    %v5981 = vunpack.c.l.b16 %v5869
    %v5982 = vunpack.c.l.b16 %v5870
    %v5983 = vunpack.c.l.b16 %v5871
    %v5984 = vunpack.c.l.b16 %v5872
    %v5985 = vunpack.c.l.b16 %v5873
    %v5986 = vunpack.c.l.b16 %v5874
    %v5987 = vunpack.c.l.b16 %v5875
    %v5988 = vunpack.c.l.b16 %v5876
    %v5989 = vunpack.c.l.b16 %v5877
    %v5990 = vunpack.c.l.b16 %v5878
    %v5991 = vunpack.c.l.b16 %v5879
    %v5992 = vunpack.c.l.b16 %v5880
    %v5993 = vunpack.c.l.b16 %v5881
    %v5994 = vunpack.c.l.b16 %v5882
    %v5995 = vunpack.c.l.b16 %v5883
    %v5996 = vunpack.c.l.b16 %v5884
    %v5997 = vunpack.c.l.b16 %v5885
    %v5998 = vunpack.c.l.b16 %v5886
    %v5999 = vunpack.c.l.b16 %v5887
    %v6000 = vunpack.c.l.b16 %v5888
    %v6001 = vunpack.c.l.b16 %v5889
    %v6002 = vunpack.c.l.b16 %v5890
    %v6003 = vunpack.c.l.b16 %v5891
    %v6004 = vunpack.c.l.b16 %v5892
    %v6005 = vunpack.c.l.b16 %v5893
    %v6006 = vunpack.c.l.b16 %v5894
    %v6007 = vunpack.c.l.b16 %v5895
    %v6008 = vunpack.c.l.b16 %v5896
    %v6009 = vunpack.c.l.b16 %v5897
    %v6010 = vunpack.c.l.b16 %v5898
    %v6011 = vunpack.c.l.b16 %v5899
    %v6012 = vunpack.c.l.b16 %v5900
    %v6013 = vunpack.c.l.b16 %v5901
    %v6014 = vunpack.c.l.b16 %v5902
    %v6015 = vunpack.c.l.b16 %v5903
    %v6016 = vunpack.c.l.b16 %v5904
    %v6017 = vunpack.c.l.b16 %v5905
    %v6018 = vunpack.c.l.b16 %v5906
    %v6019 = vunpack.c.l.b16 %v5907
    %v6020 = vunpack.c.l.b16 %v5908
    %v6021 = vunpack.c.l.b16 %v5909
    %v6022 = vunpack.c.l.b16 %v5910
    %v6023 = vunpack.c.l.b16 %v5911
    %v6024 = vunpack.c.l.b16 %v5912
    %v6025 = vunpack.c.l.b16 %v5913
    %v6026 = vunpack.c.l.b16 %v5914
    %v6027 = vunpack.c.l.b16 %v5915
    %v6028 = vunpack.c.l.b16 %v5916
    %v6029 = vunpack.c.l.b16 %v5917
    %v6030 = vunpack.c.l.b16 %v5918
    %v6031 = vpack.c.b16 %v5976, %v5975
    %v6032 = vpack.c.b16 %v5978, %v5977
    %v6033 = vpack.c.b16 %v5980, %v5979
    %v6034 = vpack.c.b16 %v5982, %v5981
    %v6035 = vpack.c.b16 %v5984, %v5983
    %v6036 = vpack.c.b16 %v5986, %v5985
    %v6037 = vpack.c.b16 %v5988, %v5987
    %v6038 = vpack.c.b16 %v5990, %v5989
    %v6039 = vpack.c.b16 %v5992, %v5991
    %v6040 = vpack.c.b16 %v5994, %v5993
    %v6041 = vpack.c.b16 %v5996, %v5995
    %v6042 = vpack.c.b16 %v5998, %v5997
    %v6043 = vpack.c.b16 %v6000, %v5999
    %v6044 = vpack.c.b16 %v6002, %v6001
    %v6045 = vpack.c.b16 %v6004, %v6003
    %v6046 = vpack.c.b16 %v6006, %v6005
    %v6047 = vpack.c.b16 %v6008, %v6007
    %v6048 = vpack.c.b16 %v6010, %v6009
    %v6049 = vpack.c.b16 %v6012, %v6011
    %v6050 = vpack.c.b16 %v6014, %v6013
    %v6051 = vpack.c.b16 %v6016, %v6015
    %v6052 = vpack.c.b16 %v6018, %v6017
    %v6053 = vpack.c.b16 %v6020, %v6019
    %v6054 = vpack.c.b16 %v6022, %v6021
    %v6055 = vpack.c.b16 %v6024, %v6023
    %v6056 = vpack.c.b16 %v6026, %v6025
    %v6057 = vpack.c.b16 %v6028, %v6027
    %v6058 = vpack.c.b16 %v6030, %v6029
    %v6088 = vsel %vm4732, %v5862, 0
    %6090 = vmatprep.subr.bf16.mxu0 0
    %6091 = vmatpush1.bf16.msra.mxu0 %v6031
    %6092 = vmatprep.subr.bf16.mxu0 0
    %6093 = vmatpush1.bf16.msra.mxu0 %v6032
    %6094 = vmatprep.subr.bf16.mxu0 0
    %6095 = vmatpush1.bf16.msra.mxu0 %v6033
    %6096 = vmatprep.subr.bf16.mxu0 0
    %6097 = vmatpush1.bf16.msra.mxu0 %v6034
    %6098 = vmatprep.subr.bf16.mxu0 0
    %6099 = vmatpush1.bf16.msra.mxu0 %v6035
    %6100 = vmatprep.subr.bf16.mxu0 0
    %6101 = vmatpush1.bf16.msra.mxu0 %v6036
    %6102 = vmatprep.subr.bf16.mxu0 0
    %6103 = vmatpush1.bf16.msra.mxu0 %v6037
    %6104 = vmatprep.subr.bf16.mxu0 0
    %6105 = vmatpush1.bf16.msra.mxu0 %v6038
    %6106 = vmatprep.subr.bf16.mxu0 0
    %6107 = vmatpush1.bf16.msra.mxu0 %v6039
    %6108 = vmatprep.subr.bf16.mxu0 0
    %6109 = vmatpush1.bf16.msra.mxu0 %v6040
    %6110 = vmatprep.subr.bf16.mxu0 0
    %6111 = vmatpush1.bf16.msra.mxu0 %v6041
    %6112 = vmatprep.subr.bf16.mxu0 0
    %6113 = vmatpush1.bf16.msra.mxu0 %v6042
    %6114 = vmatprep.subr.bf16.mxu0 0
    %6115 = vmatpush1.bf16.msra.mxu0 %v6043
    %6116 = vmatprep.subr.bf16.mxu0 0
    %6117 = vmatpush1.bf16.msra.mxu0 %v6044
    %6118 = vmatprep.subr.bf16.mxu0 0
    %6119 = vmatpush1.bf16.msra.mxu0 %v6045
    %6120 = vmatprep.subr.bf16.mxu0 0
    %6121 = vmatpush1.bf16.msra.mxu0 %v6046
    %6122 = vmatprep.mubr.bf16.mxu0 %v5860
    %6123 = vmatmul.mubr.bf16.gmra.mrb[0].mxu0 %v5859
    %v6124 = vpop.f32.mrb[0].mxu0
    %v6125 = vadd.f32 0.0, %v6124
    %v6126 = vpop.f32.mrb[0].mxu0
    %v6127 = vpop.f32.mrb[0].mxu0
    %v6128 = vadd.f32 0.0, %v6127
    %v6129 = vpop.f32.mrb[0].mxu0
    %6130 = vdwg.mxu0
    %6131 = vmatprep.subr.bf16.mxu0 0
    %6132 = vmatpush1.bf16.msra.mxu0 %v6047
    %6133 = vmatprep.subr.bf16.mxu0 0
    %6134 = vmatpush1.bf16.msra.mxu0 %v6048
    %6135 = vmatprep.subr.bf16.mxu0 0
    %6136 = vmatpush1.bf16.msra.mxu0 %v6049
    %6137 = vmatprep.subr.bf16.mxu0 0
    %6138 = vmatpush1.bf16.msra.mxu0 %v6050
    %6139 = vmatprep.subr.bf16.mxu0 0
    %6140 = vmatpush1.bf16.msra.mxu0 %v6051
    %6141 = vmatprep.subr.bf16.mxu0 0
    %6142 = vmatpush1.bf16.msra.mxu0 %v6052
    %6143 = vmatprep.subr.bf16.mxu0 0
    %6144 = vmatpush1.bf16.msra.mxu0 %v6053
    %6145 = vmatprep.subr.bf16.mxu0 0
    %6146 = vmatpush1.bf16.msra.mxu0 %v6054
    %6147 = vmatprep.subr.bf16.mxu0 0
    %6148 = vmatpush1.bf16.msra.mxu0 %v6055
    %6149 = vmatprep.subr.bf16.mxu0 0
    %6150 = vmatpush1.bf16.msra.mxu0 %v6056
    %6151 = vmatprep.subr.bf16.mxu0 0
    %6152 = vmatpush1.bf16.msra.mxu0 %v6057
    %6153 = vmatprep.subr.bf16.mxu0 0
    %6154 = vmatpush1.bf16.msra.mxu0 %v6058
    %6155 = vmatprep.subr.bf16.mxu0 0
    %6156 = vmatpush1.bf16.msra.mxu0 0
    %6157 = vmatprep.subr.bf16.mxu0 0
    %6158 = vmatpush1.bf16.msra.mxu0 0
    %6159 = vmatprep.subr.bf16.mxu0 0
    %6160 = vmatpush1.bf16.msra.mxu0 0
    %6161 = vmatprep.subr.bf16.mxu0 0
    %6162 = vmatpush1.bf16.msra.mxu0 0
    %6163 = vmatprep.mubr.bf16.mxu0 %v6088
    %6164 = vmatmul.mubr.bf16.gmra.mrb[0].mxu0 %v5861
    %v6165 = vpop.f32.mrb[0].mxu0
    %v6166 = vadd.f32 %v6125, %v6165
    %v6167 = vpop.f32.mrb[0].mxu0
    %v6168 = vpop.f32.mrb[0].mxu0
    %v6169 = vadd.f32 %v6128, %v6168
    %v6170 = vpop.f32.mrb[0].mxu0
    %6171 = vdwg.mxu0
    %v6172 = vadd.f32 %v5853, %v6166
    %v6173 = vadd.f32 %v5856, %v6169
    %v6174 = vld [vmem:[#allocation8 + $0x50] sm:$0xff]
    %v6175 = vld [vmem:[#allocation8 + $0x58] sm:$0xff]
    %v6176 = vld [vmem:[#allocation8 + $0x60] sm:$0xff]
    %v6177 = vld [vmem:[#allocation8 + $0x68] sm:$0xff]
    %v6178 = vld [vmem:[%s7 + $0x2a0] sm:$0xf]
    %v6179 = vld [vmem:[%s7 + $0x2a4] sm:$0xf]
    %v6180 = vld [vmem:[%s7 + $0x2a8] sm:$0xf]
    %v6181 = vld [vmem:[%s7 + $0x2ac] sm:$0xf]
    %v6182 = vld [vmem:[%s7 + $0x2b0] sm:$0xf]
    %v6183 = vld [vmem:[%s7 + $0x2b4] sm:$0xf]
    %v6184 = vld [vmem:[%s7 + $0x2b8] sm:$0xf]
    %v6185 = vld [vmem:[%s7 + $0x2bc] sm:$0xf]
    %v6186 = vld [vmem:[%s7 + $0x2c0] sm:$0xf]
    %v6187 = vld [vmem:[%s7 + $0x2c4] sm:$0xf]
    %v6188 = vld [vmem:[%s7 + $0x2c8] sm:$0xf]
    %v6189 = vld [vmem:[%s7 + $0x2cc] sm:$0xf]
    %v6190 = vld [vmem:[%s7 + $0x2d0] sm:$0xf]
    %v6191 = vld [vmem:[%s7 + $0x2d4] sm:$0xf]
    %v6192 = vld [vmem:[%s7 + $0x2d8] sm:$0xf]
    %v6193 = vld [vmem:[%s7 + $0x2dc] sm:$0xf]
    %v6194 = vld [vmem:[%s7 + $0x2e0] sm:$0xf]
    %v6195 = vld [vmem:[%s7 + $0x2e4] sm:$0xf]
    %v6196 = vld [vmem:[%s7 + $0x2e8] sm:$0xf]
    %v6197 = vld [vmem:[%s7 + $0x2ec] sm:$0xf]
    %v6198 = vld [vmem:[%s7 + $0x2f0] sm:$0xf]
    %v6199 = vld [vmem:[%s7 + $0x2f4] sm:$0xf]
    %v6200 = vld [vmem:[%s7 + $0x2f8] sm:$0xf]
    %v6201 = vld [vmem:[%s7 + $0x2fc] sm:$0xf]
    %v6202 = vld [vmem:[%s7 + $0x300] sm:$0xf]
    %v6203 = vld [vmem:[%s7 + $0x304] sm:$0xf]
    %v6204 = vld [vmem:[%s7 + $0x308] sm:$0xf]
    %v6205 = vld [vmem:[%s7 + $0x30c] sm:$0xf]
    %v6206 = vld [vmem:[%s7 + $0x310] sm:$0xf]
    %v6207 = vld [vmem:[%s7 + $0x314] sm:$0xf]
    %v6208 = vld [vmem:[%s7 + $0x318] sm:$0xf]
    %v6209 = vld [vmem:[%s7 + $0x31c] sm:$0xf]
    %v6210 = vld [vmem:[%s7 + $0x320] sm:$0xf]
    %v6211 = vld [vmem:[%s7 + $0x324] sm:$0xf]
    %v6212 = vld [vmem:[%s7 + $0x328] sm:$0xf]
    %v6213 = vld [vmem:[%s7 + $0x32c] sm:$0xf]
    %v6214 = vld [vmem:[%s7 + $0x330] sm:$0xf]
    %v6215 = vld [vmem:[%s7 + $0x334] sm:$0xf]
    %v6216 = vld [vmem:[%s7 + $0x338] sm:$0xf]
    %v6217 = vld [vmem:[%s7 + $0x33c] sm:$0xf]
    %v6218 = vld [vmem:[%s7 + $0x340] sm:$0xf]
    %v6219 = vld [vmem:[%s7 + $0x344] sm:$0xf]
    %v6220 = vld [vmem:[%s7 + $0x348] sm:$0xf]
    %v6221 = vld [vmem:[%s7 + $0x34c] sm:$0xf]
    %v6222 = vld [vmem:[%s7 + $0x350] sm:$0xf]
    %v6223 = vld [vmem:[%s7 + $0x354] sm:$0xf]
    %v6224 = vld [vmem:[%s7 + $0x358] sm:$0xf]
    %v6225 = vld [vmem:[%s7 + $0x35c] sm:$0xf]
    %v6226 = vld [vmem:[%s7 + $0x360] sm:$0xf]
    %v6227 = vld [vmem:[%s7 + $0x364] sm:$0xf]
    %v6228 = vld [vmem:[%s7 + $0x368] sm:$0xf]
    %v6229 = vld [vmem:[%s7 + $0x36c] sm:$0xf]
    %v6230 = vld [vmem:[%s7 + $0x370] sm:$0xf]
    %v6231 = vld [vmem:[%s7 + $0x374] sm:$0xf]
    %v6232 = vld [vmem:[%s7 + $0x378] sm:$0xf]
    %v6233 = vld [vmem:[%s7 + $0x37c] sm:$0xf]
    %6238 = vrot.lane.b32.xlu0 %v6174, 64
    %v6239 = vpop.permute.xlu0 %6238
    %6240 = vrot.lane.b32.xlu0 %v6175, 64
    %v6241 = vpop.permute.xlu0 %6240
    %6242 = vrot.lane.b32.xlu0 %v6176, 64
    %v6243 = vpop.permute.xlu0 %6242
    %6244 = vrot.lane.b32.xlu0 %v6177, 64
    %v6245 = vpop.permute.xlu0 %6244
    %v6246 = vsel %vm5346, %v6239, %v6241
    %v6247 = vsel %vm5346, %v6241, %v6243
    %v6248 = vsel %vm5346, %v6243, %v6245
    %v6308 = vunpack.c.l.b16 %v6178
    %v6309 = vunpack.c.l.b16 %v6179
    %v6310 = vunpack.c.l.b16 %v6180
    %v6311 = vunpack.c.l.b16 %v6181
    %v6312 = vunpack.c.l.b16 %v6182
    %v6313 = vunpack.c.l.b16 %v6183
    %v6314 = vunpack.c.l.b16 %v6184
    %v6315 = vunpack.c.l.b16 %v6185
    %v6316 = vunpack.c.l.b16 %v6186
    %v6317 = vunpack.c.l.b16 %v6187
    %v6318 = vunpack.c.l.b16 %v6188
    %v6319 = vunpack.c.l.b16 %v6189
    %v6320 = vunpack.c.l.b16 %v6190
    %v6321 = vunpack.c.l.b16 %v6191
    %v6322 = vunpack.c.l.b16 %v6192
    %v6323 = vunpack.c.l.b16 %v6193
    %v6324 = vunpack.c.l.b16 %v6194
    %v6325 = vunpack.c.l.b16 %v6195
    %v6326 = vunpack.c.l.b16 %v6196
    %v6327 = vunpack.c.l.b16 %v6197
    %v6328 = vunpack.c.l.b16 %v6198
    %v6329 = vunpack.c.l.b16 %v6199
    %v6330 = vunpack.c.l.b16 %v6200
    %v6331 = vunpack.c.l.b16 %v6201
    %v6332 = vunpack.c.l.b16 %v6202
    %v6333 = vunpack.c.l.b16 %v6203
    %v6334 = vunpack.c.l.b16 %v6204
    %v6335 = vunpack.c.l.b16 %v6205
    %v6336 = vunpack.c.l.b16 %v6206
    %v6337 = vunpack.c.l.b16 %v6207
    %v6338 = vunpack.c.l.b16 %v6208
    %v6339 = vunpack.c.l.b16 %v6209
    %v6340 = vunpack.c.l.b16 %v6210
    %v6341 = vunpack.c.l.b16 %v6211
    %v6342 = vunpack.c.l.b16 %v6212
    %v6343 = vunpack.c.l.b16 %v6213
    %v6344 = vunpack.c.l.b16 %v6214
    %v6345 = vunpack.c.l.b16 %v6215
    %v6346 = vunpack.c.l.b16 %v6216
    %v6347 = vunpack.c.l.b16 %v6217
    %v6348 = vunpack.c.l.b16 %v6218
    %v6349 = vunpack.c.l.b16 %v6219
    %v6350 = vunpack.c.l.b16 %v6220
    %v6351 = vunpack.c.l.b16 %v6221
    %v6352 = vunpack.c.l.b16 %v6222
    %v6353 = vunpack.c.l.b16 %v6223
    %v6354 = vunpack.c.l.b16 %v6224
    %v6355 = vunpack.c.l.b16 %v6225
    %v6356 = vunpack.c.l.b16 %v6226
    %v6357 = vunpack.c.l.b16 %v6227
    %v6358 = vunpack.c.l.b16 %v6228
    %v6359 = vunpack.c.l.b16 %v6229
    %v6360 = vunpack.c.l.b16 %v6230
    %v6361 = vunpack.c.l.b16 %v6231
    %v6362 = vunpack.c.l.b16 %v6232
    %v6363 = vunpack.c.l.b16 %v6233
    %v6364 = vpack.c.b16 %v6309, %v6308
    %v6365 = vpack.c.b16 %v6311, %v6310
    %v6366 = vpack.c.b16 %v6313, %v6312
    %v6367 = vpack.c.b16 %v6315, %v6314
    %v6368 = vpack.c.b16 %v6317, %v6316
    %v6369 = vpack.c.b16 %v6319, %v6318
    %v6370 = vpack.c.b16 %v6321, %v6320
    %v6371 = vpack.c.b16 %v6323, %v6322
    %v6372 = vpack.c.b16 %v6325, %v6324
    %v6373 = vpack.c.b16 %v6327, %v6326
    %v6374 = vpack.c.b16 %v6329, %v6328
    %v6375 = vpack.c.b16 %v6331, %v6330
    %v6376 = vpack.c.b16 %v6333, %v6332
    %v6377 = vpack.c.b16 %v6335, %v6334
    %v6378 = vpack.c.b16 %v6337, %v6336
    %v6379 = vpack.c.b16 %v6339, %v6338
    %v6380 = vpack.c.b16 %v6341, %v6340
    %v6381 = vpack.c.b16 %v6343, %v6342
    %v6382 = vpack.c.b16 %v6345, %v6344
    %v6383 = vpack.c.b16 %v6347, %v6346
    %v6384 = vpack.c.b16 %v6349, %v6348
    %v6385 = vpack.c.b16 %v6351, %v6350
    %v6386 = vpack.c.b16 %v6353, %v6352
    %v6387 = vpack.c.b16 %v6355, %v6354
    %v6388 = vpack.c.b16 %v6357, %v6356
    %v6389 = vpack.c.b16 %v6359, %v6358
    %v6390 = vpack.c.b16 %v6361, %v6360
    %v6391 = vpack.c.b16 %v6363, %v6362
    %v6421 = vsel %vm4732, %v6245, 0
    %6423 = vmatprep.subr.bf16.mxu0 0
    %6424 = vmatpush1.bf16.msra.mxu0 %v6364
    %6425 = vmatprep.subr.bf16.mxu0 0
    %6426 = vmatpush1.bf16.msra.mxu0 %v6365
    %6427 = vmatprep.subr.bf16.mxu0 0
    %6428 = vmatpush1.bf16.msra.mxu0 %v6366
    %6429 = vmatprep.subr.bf16.mxu0 0
    %6430 = vmatpush1.bf16.msra.mxu0 %v6367
    %6431 = vmatprep.subr.bf16.mxu0 0
    %6432 = vmatpush1.bf16.msra.mxu0 %v6368
    %6433 = vmatprep.subr.bf16.mxu0 0
    %6434 = vmatpush1.bf16.msra.mxu0 %v6369
    %6435 = vmatprep.subr.bf16.mxu0 0
    %6436 = vmatpush1.bf16.msra.mxu0 %v6370
    %6437 = vmatprep.subr.bf16.mxu0 0
    %6438 = vmatpush1.bf16.msra.mxu0 %v6371
    %6439 = vmatprep.subr.bf16.mxu0 0
    %6440 = vmatpush1.bf16.msra.mxu0 %v6372
    %6441 = vmatprep.subr.bf16.mxu0 0
    %6442 = vmatpush1.bf16.msra.mxu0 %v6373
    %6443 = vmatprep.subr.bf16.mxu0 0
    %6444 = vmatpush1.bf16.msra.mxu0 %v6374
    %6445 = vmatprep.subr.bf16.mxu0 0
    %6446 = vmatpush1.bf16.msra.mxu0 %v6375
    %6447 = vmatprep.subr.bf16.mxu0 0
    %6448 = vmatpush1.bf16.msra.mxu0 %v6376
    %6449 = vmatprep.subr.bf16.mxu0 0
    %6450 = vmatpush1.bf16.msra.mxu0 %v6377
    %6451 = vmatprep.subr.bf16.mxu0 0
    %6452 = vmatpush1.bf16.msra.mxu0 %v6378
    %6453 = vmatprep.subr.bf16.mxu0 0
    %6454 = vmatpush1.bf16.msra.mxu0 %v6379
    %6455 = vmatprep.mubr.bf16.mxu0 %v6247
    %6456 = vmatmul.mubr.bf16.gmra.mrb[0].mxu0 %v6246
    %v6457 = vpop.f32.mrb[0].mxu0
    %v6458 = vadd.f32 0.0, %v6457
    %v6459 = vpop.f32.mrb[0].mxu0
    %v6460 = vpop.f32.mrb[0].mxu0
    %v6461 = vadd.f32 0.0, %v6460
    %v6462 = vpop.f32.mrb[0].mxu0
    %6463 = vdwg.mxu0
    %6464 = vmatprep.subr.bf16.mxu0 0
    %6465 = vmatpush1.bf16.msra.mxu0 %v6380
    %6466 = vmatprep.subr.bf16.mxu0 0
    %6467 = vmatpush1.bf16.msra.mxu0 %v6381
    %6468 = vmatprep.subr.bf16.mxu0 0
    %6469 = vmatpush1.bf16.msra.mxu0 %v6382
    %6470 = vmatprep.subr.bf16.mxu0 0
    %6471 = vmatpush1.bf16.msra.mxu0 %v6383
    %6472 = vmatprep.subr.bf16.mxu0 0
    %6473 = vmatpush1.bf16.msra.mxu0 %v6384
    %6474 = vmatprep.subr.bf16.mxu0 0
    %6475 = vmatpush1.bf16.msra.mxu0 %v6385
    %6476 = vmatprep.subr.bf16.mxu0 0
    %6477 = vmatpush1.bf16.msra.mxu0 %v6386
    %6478 = vmatprep.subr.bf16.mxu0 0
    %6479 = vmatpush1.bf16.msra.mxu0 %v6387
    %6480 = vmatprep.subr.bf16.mxu0 0
    %6481 = vmatpush1.bf16.msra.mxu0 %v6388
    %6482 = vmatprep.subr.bf16.mxu0 0
    %6483 = vmatpush1.bf16.msra.mxu0 %v6389
    %6484 = vmatprep.subr.bf16.mxu0 0
    %6485 = vmatpush1.bf16.msra.mxu0 %v6390
    %6486 = vmatprep.subr.bf16.mxu0 0
    %6487 = vmatpush1.bf16.msra.mxu0 %v6391
    %6488 = vmatprep.subr.bf16.mxu0 0
    %6489 = vmatpush1.bf16.msra.mxu0 0
    %6490 = vmatprep.subr.bf16.mxu0 0
    %6491 = vmatpush1.bf16.msra.mxu0 0
    %6492 = vmatprep.subr.bf16.mxu0 0
    %6493 = vmatpush1.bf16.msra.mxu0 0
    %6494 = vmatprep.subr.bf16.mxu0 0
    %6495 = vmatpush1.bf16.msra.mxu0 0
    %6496 = vmatprep.mubr.bf16.mxu0 %v6421
    %6497 = vmatmul.mubr.bf16.gmra.mrb[0].mxu0 %v6248
    %v6498 = vpop.f32.mrb[0].mxu0
    %v6499 = vadd.f32 %v6458, %v6498
    %v6500 = vpop.f32.mrb[0].mxu0
    %v6501 = vpop.f32.mrb[0].mxu0
    %v6502 = vadd.f32 %v6461, %v6501
    %v6503 = vpop.f32.mrb[0].mxu0
    %6504 = vdwg.mxu0
    %v6505 = vadd.f32 %v6172, %v6499
    %v6506 = vadd.f32 %v6173, %v6502
    %v6507 = vld [vmem:[#allocation8 + $0x70] sm:$0xff]
    %v6508 = vld [vmem:[#allocation8 + $0x78] sm:$0xff]
    %v6509 = vld [vmem:[#allocation8 + $0x80] sm:$0xff]
    %v6510 = vld [vmem:[#allocation8 + $0x88] sm:$0xff]
    %v6511 = vld [vmem:[%s7 + $0x380] sm:$0xf]
    %v6512 = vld [vmem:[%s7 + $0x384] sm:$0xf]
    %v6513 = vld [vmem:[%s7 + $0x388] sm:$0xf]
    %v6514 = vld [vmem:[%s7 + $0x38c] sm:$0xf]
    %v6515 = vld [vmem:[%s7 + $0x390] sm:$0xf]
    %v6516 = vld [vmem:[%s7 + $0x394] sm:$0xf]
    %v6517 = vld [vmem:[%s7 + $0x398] sm:$0xf]
    %v6518 = vld [vmem:[%s7 + $0x39c] sm:$0xf]
    %v6519 = vld [vmem:[%s7 + $0x3a0] sm:$0xf]
    %v6520 = vld [vmem:[%s7 + $0x3a4] sm:$0xf]
    %v6521 = vld [vmem:[%s7 + $0x3a8] sm:$0xf]
    %v6522 = vld [vmem:[%s7 + $0x3ac] sm:$0xf]
    %v6523 = vld [vmem:[%s7 + $0x3b0] sm:$0xf]
    %v6524 = vld [vmem:[%s7 + $0x3b4] sm:$0xf]
    %v6525 = vld [vmem:[%s7 + $0x3b8] sm:$0xf]
    %v6526 = vld [vmem:[%s7 + $0x3bc] sm:$0xf]
    %v6527 = vld [vmem:[%s7 + $0x3c0] sm:$0xf]
    %v6528 = vld [vmem:[%s7 + $0x3c4] sm:$0xf]
    %v6529 = vld [vmem:[%s7 + $0x3c8] sm:$0xf]
    %v6530 = vld [vmem:[%s7 + $0x3cc] sm:$0xf]
    %v6531 = vld [vmem:[%s7 + $0x3d0] sm:$0xf]
    %v6532 = vld [vmem:[%s7 + $0x3d4] sm:$0xf]
    %v6533 = vld [vmem:[%s7 + $0x3d8] sm:$0xf]
    %v6534 = vld [vmem:[%s7 + $0x3dc] sm:$0xf]
    %v6535 = vld [vmem:[%s7 + $0x3e0] sm:$0xf]
    %v6536 = vld [vmem:[%s7 + $0x3e4] sm:$0xf]
    %v6537 = vld [vmem:[%s7 + $0x3e8] sm:$0xf]
    %v6538 = vld [vmem:[%s7 + $0x3ec] sm:$0xf]
    %v6539 = vld [vmem:[%s7 + $0x3f0] sm:$0xf]
    %v6540 = vld [vmem:[%s7 + $0x3f4] sm:$0xf]
    %v6541 = vld [vmem:[%s7 + $0x3f8] sm:$0xf]
    %v6542 = vld [vmem:[%s7 + $0x3fc] sm:$0xf]
    %v6543 = vld [vmem:[%s7 + $0x400] sm:$0xf]
    %v6544 = vld [vmem:[%s7 + $0x404] sm:$0xf]
    %v6545 = vld [vmem:[%s7 + $0x408] sm:$0xf]
    %v6546 = vld [vmem:[%s7 + $0x40c] sm:$0xf]
    %v6547 = vld [vmem:[%s7 + $0x410] sm:$0xf]
    %v6548 = vld [vmem:[%s7 + $0x414] sm:$0xf]
    %v6549 = vld [vmem:[%s7 + $0x418] sm:$0xf]
    %v6550 = vld [vmem:[%s7 + $0x41c] sm:$0xf]
    %v6551 = vld [vmem:[%s7 + $0x420] sm:$0xf]
    %v6552 = vld [vmem:[%s7 + $0x424] sm:$0xf]
    %v6553 = vld [vmem:[%s7 + $0x428] sm:$0xf]
    %v6554 = vld [vmem:[%s7 + $0x42c] sm:$0xf]
    %v6555 = vld [vmem:[%s7 + $0x430] sm:$0xf]
    %v6556 = vld [vmem:[%s7 + $0x434] sm:$0xf]
    %v6557 = vld [vmem:[%s7 + $0x438] sm:$0xf]
    %v6558 = vld [vmem:[%s7 + $0x43c] sm:$0xf]
    %v6559 = vld [vmem:[%s7 + $0x440] sm:$0xf]
    %v6560 = vld [vmem:[%s7 + $0x444] sm:$0xf]
    %v6561 = vld [vmem:[%s7 + $0x448] sm:$0xf]
    %v6562 = vld [vmem:[%s7 + $0x44c] sm:$0xf]
    %v6563 = vld [vmem:[%s7 + $0x450] sm:$0xf]
    %v6564 = vld [vmem:[%s7 + $0x454] sm:$0xf]
    %v6565 = vld [vmem:[%s7 + $0x458] sm:$0xf]
    %v6566 = vld [vmem:[%s7 + $0x45c] sm:$0xf]
    %v6623 = vunpack.c.l.b16 %v6511
    %v6624 = vunpack.c.l.b16 %v6512
    %v6625 = vunpack.c.l.b16 %v6513
    %v6626 = vunpack.c.l.b16 %v6514
    %v6627 = vunpack.c.l.b16 %v6515
    %v6628 = vunpack.c.l.b16 %v6516
    %v6629 = vunpack.c.l.b16 %v6517
    %v6630 = vunpack.c.l.b16 %v6518
    %v6631 = vunpack.c.l.b16 %v6519
    %v6632 = vunpack.c.l.b16 %v6520
    %v6633 = vunpack.c.l.b16 %v6521
    %v6634 = vunpack.c.l.b16 %v6522
    %v6635 = vunpack.c.l.b16 %v6523
    %v6636 = vunpack.c.l.b16 %v6524
    %v6637 = vunpack.c.l.b16 %v6525
    %v6638 = vunpack.c.l.b16 %v6526
    %v6639 = vunpack.c.l.b16 %v6527
    %v6640 = vunpack.c.l.b16 %v6528
    %v6641 = vunpack.c.l.b16 %v6529
    %v6642 = vunpack.c.l.b16 %v6530
    %v6643 = vunpack.c.l.b16 %v6531
    %v6644 = vunpack.c.l.b16 %v6532
    %v6645 = vunpack.c.l.b16 %v6533
    %v6646 = vunpack.c.l.b16 %v6534
    %v6647 = vunpack.c.l.b16 %v6535
    %v6648 = vunpack.c.l.b16 %v6536
    %v6649 = vunpack.c.l.b16 %v6537
    %v6650 = vunpack.c.l.b16 %v6538
    %v6651 = vunpack.c.l.b16 %v6539
    %v6652 = vunpack.c.l.b16 %v6540
    %v6653 = vunpack.c.l.b16 %v6541
    %v6654 = vunpack.c.l.b16 %v6542
    %v6655 = vunpack.c.l.b16 %v6543
    %v6656 = vunpack.c.l.b16 %v6544
    %v6657 = vunpack.c.l.b16 %v6545
    %v6658 = vunpack.c.l.b16 %v6546
    %v6659 = vunpack.c.l.b16 %v6547
    %v6660 = vunpack.c.l.b16 %v6548
    %v6661 = vunpack.c.l.b16 %v6549
    %v6662 = vunpack.c.l.b16 %v6550
    %v6663 = vunpack.c.l.b16 %v6551
    %v6664 = vunpack.c.l.b16 %v6552
    %v6665 = vunpack.c.l.b16 %v6553
    %v6666 = vunpack.c.l.b16 %v6554
    %v6667 = vunpack.c.l.b16 %v6555
    %v6668 = vunpack.c.l.b16 %v6556
    %v6669 = vunpack.c.l.b16 %v6557
    %v6670 = vunpack.c.l.b16 %v6558
    %v6671 = vunpack.c.l.b16 %v6559
    %v6672 = vunpack.c.l.b16 %v6560
    %v6673 = vunpack.c.l.b16 %v6561
    %v6674 = vunpack.c.l.b16 %v6562
    %v6675 = vunpack.c.l.b16 %v6563
    %v6676 = vunpack.c.l.b16 %v6564
    %v6677 = vunpack.c.l.b16 %v6565
    %v6678 = vunpack.c.l.b16 %v6566
    %v6679 = vpack.c.b16 %v6624, %v6623
    %v6680 = vpack.c.b16 %v6626, %v6625
    %v6681 = vpack.c.b16 %v6628, %v6627
    %v6682 = vpack.c.b16 %v6630, %v6629
    %v6683 = vpack.c.b16 %v6632, %v6631
    %v6684 = vpack.c.b16 %v6634, %v6633
    %v6685 = vpack.c.b16 %v6636, %v6635
    %v6686 = vpack.c.b16 %v6638, %v6637
    %v6687 = vpack.c.b16 %v6640, %v6639
    %v6688 = vpack.c.b16 %v6642, %v6641
    %v6689 = vpack.c.b16 %v6644, %v6643
    %v6690 = vpack.c.b16 %v6646, %v6645
    %v6691 = vpack.c.b16 %v6648, %v6647
    %v6692 = vpack.c.b16 %v6650, %v6649
    %v6693 = vpack.c.b16 %v6652, %v6651
    %v6694 = vpack.c.b16 %v6654, %v6653
    %v6695 = vpack.c.b16 %v6656, %v6655
    %v6696 = vpack.c.b16 %v6658, %v6657
    %v6697 = vpack.c.b16 %v6660, %v6659
    %v6698 = vpack.c.b16 %v6662, %v6661
    %v6699 = vpack.c.b16 %v6664, %v6663
    %v6700 = vpack.c.b16 %v6666, %v6665
    %v6701 = vpack.c.b16 %v6668, %v6667
    %v6702 = vpack.c.b16 %v6670, %v6669
    %v6703 = vpack.c.b16 %v6672, %v6671
    %v6704 = vpack.c.b16 %v6674, %v6673
    %v6705 = vpack.c.b16 %v6676, %v6675
    %v6706 = vpack.c.b16 %v6678, %v6677
    %v6736 = vsel %vm4732, %v6510, 0
    %6738 = vmatprep.subr.bf16.mxu0 0
    %6739 = vmatpush1.bf16.msra.mxu0 %v6679
    %6740 = vmatprep.subr.bf16.mxu0 0
    %6741 = vmatpush1.bf16.msra.mxu0 %v6680
    %6742 = vmatprep.subr.bf16.mxu0 0
    %6743 = vmatpush1.bf16.msra.mxu0 %v6681
    %6744 = vmatprep.subr.bf16.mxu0 0
    %6745 = vmatpush1.bf16.msra.mxu0 %v6682
    %6746 = vmatprep.subr.bf16.mxu0 0
    %6747 = vmatpush1.bf16.msra.mxu0 %v6683
    %6748 = vmatprep.subr.bf16.mxu0 0
    %6749 = vmatpush1.bf16.msra.mxu0 %v6684
    %6750 = vmatprep.subr.bf16.mxu0 0
    %6751 = vmatpush1.bf16.msra.mxu0 %v6685
    %6752 = vmatprep.subr.bf16.mxu0 0
    %6753 = vmatpush1.bf16.msra.mxu0 %v6686
    %6754 = vmatprep.subr.bf16.mxu0 0
    %6755 = vmatpush1.bf16.msra.mxu0 %v6687
    %6756 = vmatprep.subr.bf16.mxu0 0
    %6757 = vmatpush1.bf16.msra.mxu0 %v6688
    %6758 = vmatprep.subr.bf16.mxu0 0
    %6759 = vmatpush1.bf16.msra.mxu0 %v6689
    %6760 = vmatprep.subr.bf16.mxu0 0
    %6761 = vmatpush1.bf16.msra.mxu0 %v6690
    %6762 = vmatprep.subr.bf16.mxu0 0
    %6763 = vmatpush1.bf16.msra.mxu0 %v6691
    %6764 = vmatprep.subr.bf16.mxu0 0
    %6765 = vmatpush1.bf16.msra.mxu0 %v6692
    %6766 = vmatprep.subr.bf16.mxu0 0
    %6767 = vmatpush1.bf16.msra.mxu0 %v6693
    %6768 = vmatprep.subr.bf16.mxu0 0
    %6769 = vmatpush1.bf16.msra.mxu0 %v6694
    %6770 = vmatprep.mubr.bf16.mxu0 %v6508
    %6771 = vmatmul.mubr.bf16.gmra.mrb[0].mxu0 %v6507
    %v6772 = vpop.f32.mrb[0].mxu0
    %v6773 = vadd.f32 0.0, %v6772
    %v6774 = vpop.f32.mrb[0].mxu0
    %v6775 = vpop.f32.mrb[0].mxu0
    %v6776 = vadd.f32 0.0, %v6775
    %v6777 = vpop.f32.mrb[0].mxu0
    %6778 = vdwg.mxu0
    %6779 = vmatprep.subr.bf16.mxu0 0
    %6780 = vmatpush1.bf16.msra.mxu0 %v6695
    %6781 = vmatprep.subr.bf16.mxu0 0
    %6782 = vmatpush1.bf16.msra.mxu0 %v6696
    %6783 = vmatprep.subr.bf16.mxu0 0
    %6784 = vmatpush1.bf16.msra.mxu0 %v6697
    %6785 = vmatprep.subr.bf16.mxu0 0
    %6786 = vmatpush1.bf16.msra.mxu0 %v6698
    %6787 = vmatprep.subr.bf16.mxu0 0
    %6788 = vmatpush1.bf16.msra.mxu0 %v6699
    %6789 = vmatprep.subr.bf16.mxu0 0
    %6790 = vmatpush1.bf16.msra.mxu0 %v6700
    %6791 = vmatprep.subr.bf16.mxu0 0
    %6792 = vmatpush1.bf16.msra.mxu0 %v6701
    %6793 = vmatprep.subr.bf16.mxu0 0
    %6794 = vmatpush1.bf16.msra.mxu0 %v6702
    %6795 = vmatprep.subr.bf16.mxu0 0
    %6796 = vmatpush1.bf16.msra.mxu0 %v6703
    %6797 = vmatprep.subr.bf16.mxu0 0
    %6798 = vmatpush1.bf16.msra.mxu0 %v6704
    %6799 = vmatprep.subr.bf16.mxu0 0
    %6800 = vmatpush1.bf16.msra.mxu0 %v6705
    %6801 = vmatprep.subr.bf16.mxu0 0
    %6802 = vmatpush1.bf16.msra.mxu0 %v6706
    %6803 = vmatprep.subr.bf16.mxu0 0
    %6804 = vmatpush1.bf16.msra.mxu0 0
    %6805 = vmatprep.subr.bf16.mxu0 0
    %6806 = vmatpush1.bf16.msra.mxu0 0
    %6807 = vmatprep.subr.bf16.mxu0 0
    %6808 = vmatpush1.bf16.msra.mxu0 0
    %6809 = vmatprep.subr.bf16.mxu0 0
    %6810 = vmatpush1.bf16.msra.mxu0 0
    %6811 = vmatprep.mubr.bf16.mxu0 %v6736
    %6812 = vmatmul.mubr.bf16.gmra.mrb[0].mxu0 %v6509
    %v6813 = vpop.f32.mrb[0].mxu0
    %v6814 = vadd.f32 %v6773, %v6813
    %v6815 = vpop.f32.mrb[0].mxu0
    %v6816 = vpop.f32.mrb[0].mxu0
    %v6817 = vadd.f32 %v6776, %v6816
    %v6818 = vpop.f32.mrb[0].mxu0
    %6819 = vdwg.mxu0
    %v6820 = vadd.f32 %v6505, %v6814
    %v6821 = vadd.f32 %v6506, %v6817
    %v6822 = vld [vmem:[#allocation8 + $0x88] sm:$0xff]
    %v6823 = vld [vmem:[#allocation8 + $0x90] sm:$0xff]
    %v6824 = vld [vmem:[#allocation8 + $0x98] sm:$0xff]
    %v6825 = vld [vmem:[#allocation8 + $0xa0] sm:$0xff]
    %v6826 = vld [vmem:[%s7 + $0x460] sm:$0xf]
    %v6827 = vld [vmem:[%s7 + $0x464] sm:$0xf]
    %v6828 = vld [vmem:[%s7 + $0x468] sm:$0xf]
    %v6829 = vld [vmem:[%s7 + $0x46c] sm:$0xf]
    %v6830 = vld [vmem:[%s7 + $0x470] sm:$0xf]
    %v6831 = vld [vmem:[%s7 + $0x474] sm:$0xf]
    %v6832 = vld [vmem:[%s7 + $0x478] sm:$0xf]
    %v6833 = vld [vmem:[%s7 + $0x47c] sm:$0xf]
    %v6834 = vld [vmem:[%s7 + $0x480] sm:$0xf]
    %v6835 = vld [vmem:[%s7 + $0x484] sm:$0xf]
    %v6836 = vld [vmem:[%s7 + $0x488] sm:$0xf]
    %v6837 = vld [vmem:[%s7 + $0x48c] sm:$0xf]
    %v6838 = vld [vmem:[%s7 + $0x490] sm:$0xf]
    %v6839 = vld [vmem:[%s7 + $0x494] sm:$0xf]
    %v6840 = vld [vmem:[%s7 + $0x498] sm:$0xf]
    %v6841 = vld [vmem:[%s7 + $0x49c] sm:$0xf]
    %v6842 = vld [vmem:[%s7 + $0x4a0] sm:$0xf]
    %v6843 = vld [vmem:[%s7 + $0x4a4] sm:$0xf]
    %v6844 = vld [vmem:[%s7 + $0x4a8] sm:$0xf]
    %v6845 = vld [vmem:[%s7 + $0x4ac] sm:$0xf]
    %v6846 = vld [vmem:[%s7 + $0x4b0] sm:$0xf]
    %v6847 = vld [vmem:[%s7 + $0x4b4] sm:$0xf]
    %v6848 = vld [vmem:[%s7 + $0x4b8] sm:$0xf]
    %v6849 = vld [vmem:[%s7 + $0x4bc] sm:$0xf]
    %v6850 = vld [vmem:[%s7 + $0x4c0] sm:$0xf]
    %v6851 = vld [vmem:[%s7 + $0x4c4] sm:$0xf]
    %v6852 = vld [vmem:[%s7 + $0x4c8] sm:$0xf]
    %v6853 = vld [vmem:[%s7 + $0x4cc] sm:$0xf]
    %v6854 = vld [vmem:[%s7 + $0x4d0] sm:$0xf]
    %v6855 = vld [vmem:[%s7 + $0x4d4] sm:$0xf]
    %v6856 = vld [vmem:[%s7 + $0x4d8] sm:$0xf]
    %v6857 = vld [vmem:[%s7 + $0x4dc] sm:$0xf]
    %v6858 = vld [vmem:[%s7 + $0x4e0] sm:$0xf]
    %v6859 = vld [vmem:[%s7 + $0x4e4] sm:$0xf]
    %v6860 = vld [vmem:[%s7 + $0x4e8] sm:$0xf]
    %v6861 = vld [vmem:[%s7 + $0x4ec] sm:$0xf]
    %v6862 = vld [vmem:[%s7 + $0x4f0] sm:$0xf]
    %v6863 = vld [vmem:[%s7 + $0x4f4] sm:$0xf]
    %v6864 = vld [vmem:[%s7 + $0x4f8] sm:$0xf]
    %v6865 = vld [vmem:[%s7 + $0x4fc] sm:$0xf]
    %v6866 = vld [vmem:[%s7 + $0x500] sm:$0xf]
    %v6867 = vld [vmem:[%s7 + $0x504] sm:$0xf]
    %v6868 = vld [vmem:[%s7 + $0x508] sm:$0xf]
    %v6869 = vld [vmem:[%s7 + $0x50c] sm:$0xf]
    %v6870 = vld [vmem:[%s7 + $0x510] sm:$0xf]
    %v6871 = vld [vmem:[%s7 + $0x514] sm:$0xf]
    %v6872 = vld [vmem:[%s7 + $0x518] sm:$0xf]
    %v6873 = vld [vmem:[%s7 + $0x51c] sm:$0xf]
    %v6874 = vld [vmem:[%s7 + $0x520] sm:$0xf]
    %v6875 = vld [vmem:[%s7 + $0x524] sm:$0xf]
    %v6876 = vld [vmem:[%s7 + $0x528] sm:$0xf]
    %v6877 = vld [vmem:[%s7 + $0x52c] sm:$0xf]
    %v6878 = vld [vmem:[%s7 + $0x530] sm:$0xf]
    %v6879 = vld [vmem:[%s7 + $0x534] sm:$0xf]
    %v6880 = vld [vmem:[%s7 + $0x538] sm:$0xf]
    %v6881 = vld [vmem:[%s7 + $0x53c] sm:$0xf]
    %6886 = vrot.lane.b32.xlu0 %v6822, 64
    %v6887 = vpop.permute.xlu0 %6886
    %6888 = vrot.lane.b32.xlu0 %v6823, 64
    %v6889 = vpop.permute.xlu0 %6888
    %6890 = vrot.lane.b32.xlu0 %v6824, 64
    %v6891 = vpop.permute.xlu0 %6890
    %6892 = vrot.lane.b32.xlu0 %v6825, 64
    %v6893 = vpop.permute.xlu0 %6892
    %v6894 = vsel %vm5346, %v6887, %v6889
    %v6895 = vsel %vm5346, %v6889, %v6891
    %v6896 = vsel %vm5346, %v6891, %v6893
    %v6956 = vunpack.c.l.b16 %v6826
    %v6957 = vunpack.c.l.b16 %v6827
    %v6958 = vunpack.c.l.b16 %v6828
    %v6959 = vunpack.c.l.b16 %v6829
    %v6960 = vunpack.c.l.b16 %v6830
    %v6961 = vunpack.c.l.b16 %v6831
    %v6962 = vunpack.c.l.b16 %v6832
    %v6963 = vunpack.c.l.b16 %v6833
    %v6964 = vunpack.c.l.b16 %v6834
    %v6965 = vunpack.c.l.b16 %v6835
    %v6966 = vunpack.c.l.b16 %v6836
    %v6967 = vunpack.c.l.b16 %v6837
    %v6968 = vunpack.c.l.b16 %v6838
    %v6969 = vunpack.c.l.b16 %v6839
    %v6970 = vunpack.c.l.b16 %v6840
    %v6971 = vunpack.c.l.b16 %v6841
    %v6972 = vunpack.c.l.b16 %v6842
    %v6973 = vunpack.c.l.b16 %v6843
    %v6974 = vunpack.c.l.b16 %v6844
    %v6975 = vunpack.c.l.b16 %v6845
    %v6976 = vunpack.c.l.b16 %v6846
    %v6977 = vunpack.c.l.b16 %v6847
    %v6978 = vunpack.c.l.b16 %v6848
    %v6979 = vunpack.c.l.b16 %v6849
    %v6980 = vunpack.c.l.b16 %v6850
    %v6981 = vunpack.c.l.b16 %v6851
    %v6982 = vunpack.c.l.b16 %v6852
    %v6983 = vunpack.c.l.b16 %v6853
    %v6984 = vunpack.c.l.b16 %v6854
    %v6985 = vunpack.c.l.b16 %v6855
    %v6986 = vunpack.c.l.b16 %v6856
    %v6987 = vunpack.c.l.b16 %v6857
    %v6988 = vunpack.c.l.b16 %v6858
    %v6989 = vunpack.c.l.b16 %v6859
    %v6990 = vunpack.c.l.b16 %v6860
    %v6991 = vunpack.c.l.b16 %v6861
    %v6992 = vunpack.c.l.b16 %v6862
    %v6993 = vunpack.c.l.b16 %v6863
    %v6994 = vunpack.c.l.b16 %v6864
    %v6995 = vunpack.c.l.b16 %v6865
    %v6996 = vunpack.c.l.b16 %v6866
    %v6997 = vunpack.c.l.b16 %v6867
    %v6998 = vunpack.c.l.b16 %v6868
    %v6999 = vunpack.c.l.b16 %v6869
    %v7000 = vunpack.c.l.b16 %v6870
    %v7001 = vunpack.c.l.b16 %v6871
    %v7002 = vunpack.c.l.b16 %v6872
    %v7003 = vunpack.c.l.b16 %v6873
    %v7004 = vunpack.c.l.b16 %v6874
    %v7005 = vunpack.c.l.b16 %v6875
    %v7006 = vunpack.c.l.b16 %v6876
    %v7007 = vunpack.c.l.b16 %v6877
    %v7008 = vunpack.c.l.b16 %v6878
    %v7009 = vunpack.c.l.b16 %v6879
    %v7010 = vunpack.c.l.b16 %v6880
    %v7011 = vunpack.c.l.b16 %v6881
    %v7012 = vpack.c.b16 %v6957, %v6956
    %v7013 = vpack.c.b16 %v6959, %v6958
    %v7014 = vpack.c.b16 %v6961, %v6960
    %v7015 = vpack.c.b16 %v6963, %v6962
    %v7016 = vpack.c.b16 %v6965, %v6964
    %v7017 = vpack.c.b16 %v6967, %v6966
    %v7018 = vpack.c.b16 %v6969, %v6968
    %v7019 = vpack.c.b16 %v6971, %v6970
    %v7020 = vpack.c.b16 %v6973, %v6972
    %v7021 = vpack.c.b16 %v6975, %v6974
    %v7022 = vpack.c.b16 %v6977, %v6976
    %v7023 = vpack.c.b16 %v6979, %v6978
    %v7024 = vpack.c.b16 %v6981, %v6980
    %v7025 = vpack.c.b16 %v6983, %v6982
    %v7026 = vpack.c.b16 %v6985, %v6984
    %v7027 = vpack.c.b16 %v6987, %v6986
    %v7028 = vpack.c.b16 %v6989, %v6988
    %v7029 = vpack.c.b16 %v6991, %v6990
    %v7030 = vpack.c.b16 %v6993, %v6992
    %v7031 = vpack.c.b16 %v6995, %v6994
    %v7032 = vpack.c.b16 %v6997, %v6996
    %v7033 = vpack.c.b16 %v6999, %v6998
    %v7034 = vpack.c.b16 %v7001, %v7000
    %v7035 = vpack.c.b16 %v7003, %v7002
    %v7036 = vpack.c.b16 %v7005, %v7004
    %v7037 = vpack.c.b16 %v7007, %v7006
    %v7038 = vpack.c.b16 %v7009, %v7008
    %v7039 = vpack.c.b16 %v7011, %v7010
    %v7069 = vsel %vm4732, %v6893, 0
    %7071 = vmatprep.subr.bf16.mxu0 0
    %7072 = vmatpush1.bf16.msra.mxu0 %v7012
    %7073 = vmatprep.subr.bf16.mxu0 0
    %7074 = vmatpush1.bf16.msra.mxu0 %v7013
    %7075 = vmatprep.subr.bf16.mxu0 0
    %7076 = vmatpush1.bf16.msra.mxu0 %v7014
    %7077 = vmatprep.subr.bf16.mxu0 0
    %7078 = vmatpush1.bf16.msra.mxu0 %v7015
    %7079 = vmatprep.subr.bf16.mxu0 0
    %7080 = vmatpush1.bf16.msra.mxu0 %v7016
    %7081 = vmatprep.subr.bf16.mxu0 0
    %7082 = vmatpush1.bf16.msra.mxu0 %v7017
    %7083 = vmatprep.subr.bf16.mxu0 0
    %7084 = vmatpush1.bf16.msra.mxu0 %v7018
    %7085 = vmatprep.subr.bf16.mxu0 0
    %7086 = vmatpush1.bf16.msra.mxu0 %v7019
    %7087 = vmatprep.subr.bf16.mxu0 0
    %7088 = vmatpush1.bf16.msra.mxu0 %v7020
    %7089 = vmatprep.subr.bf16.mxu0 0
    %7090 = vmatpush1.bf16.msra.mxu0 %v7021
    %7091 = vmatprep.subr.bf16.mxu0 0
    %7092 = vmatpush1.bf16.msra.mxu0 %v7022
    %7093 = vmatprep.subr.bf16.mxu0 0
    %7094 = vmatpush1.bf16.msra.mxu0 %v7023
    %7095 = vmatprep.subr.bf16.mxu0 0
    %7096 = vmatpush1.bf16.msra.mxu0 %v7024
    %7097 = vmatprep.subr.bf16.mxu0 0
    %7098 = vmatpush1.bf16.msra.mxu0 %v7025
    %7099 = vmatprep.subr.bf16.mxu0 0
    %7100 = vmatpush1.bf16.msra.mxu0 %v7026
    %7101 = vmatprep.subr.bf16.mxu0 0
    %7102 = vmatpush1.bf16.msra.mxu0 %v7027
    %7103 = vmatprep.mubr.bf16.mxu0 %v6895
    %7104 = vmatmul.mubr.bf16.gmra.mrb[0].mxu0 %v6894
    %v7105 = vpop.f32.mrb[0].mxu0
    %v7106 = vadd.f32 0.0, %v7105
    %v7107 = vpop.f32.mrb[0].mxu0
    %v7108 = vpop.f32.mrb[0].mxu0
    %v7109 = vadd.f32 0.0, %v7108
    %v7110 = vpop.f32.mrb[0].mxu0
    %7111 = vdwg.mxu0
    %7112 = vmatprep.subr.bf16.mxu0 0
    %7113 = vmatpush1.bf16.msra.mxu0 %v7028
    %7114 = vmatprep.subr.bf16.mxu0 0
    %7115 = vmatpush1.bf16.msra.mxu0 %v7029
    %7116 = vmatprep.subr.bf16.mxu0 0
    %7117 = vmatpush1.bf16.msra.mxu0 %v7030
    %7118 = vmatprep.subr.bf16.mxu0 0
    %7119 = vmatpush1.bf16.msra.mxu0 %v7031
    %7120 = vmatprep.subr.bf16.mxu0 0
    %7121 = vmatpush1.bf16.msra.mxu0 %v7032
    %7122 = vmatprep.subr.bf16.mxu0 0
    %7123 = vmatpush1.bf16.msra.mxu0 %v7033
    %7124 = vmatprep.subr.bf16.mxu0 0
    %7125 = vmatpush1.bf16.msra.mxu0 %v7034
    %7126 = vmatprep.subr.bf16.mxu0 0
    %7127 = vmatpush1.bf16.msra.mxu0 %v7035
    %7128 = vmatprep.subr.bf16.mxu0 0
    %7129 = vmatpush1.bf16.msra.mxu0 %v7036
    %7130 = vmatprep.subr.bf16.mxu0 0
    %7131 = vmatpush1.bf16.msra.mxu0 %v7037
    %7132 = vmatprep.subr.bf16.mxu0 0
    %7133 = vmatpush1.bf16.msra.mxu0 %v7038
    %7134 = vmatprep.subr.bf16.mxu0 0
    %7135 = vmatpush1.bf16.msra.mxu0 %v7039
    %7136 = vmatprep.subr.bf16.mxu0 0
    %7137 = vmatpush1.bf16.msra.mxu0 0
    %7138 = vmatprep.subr.bf16.mxu0 0
    %7139 = vmatpush1.bf16.msra.mxu0 0
    %7140 = vmatprep.subr.bf16.mxu0 0
    %7141 = vmatpush1.bf16.msra.mxu0 0
    %7142 = vmatprep.subr.bf16.mxu0 0
    %7143 = vmatpush1.bf16.msra.mxu0 0
    %7144 = vmatprep.mubr.bf16.mxu0 %v7069
    %7145 = vmatmul.mubr.bf16.gmra.mrb[0].mxu0 %v6896
    %v7146 = vpop.f32.mrb[0].mxu0
    %v7147 = vadd.f32 %v7106, %v7146
    %v7148 = vpop.f32.mrb[0].mxu0
    %v7149 = vpop.f32.mrb[0].mxu0
    %v7150 = vadd.f32 %v7109, %v7149
    %v7151 = vpop.f32.mrb[0].mxu0
    %7152 = vdwg.mxu0
    %v7153 = vadd.f32 %v6820, %v7147
    %v7154 = vadd.f32 %v6821, %v7150
    %v7155 = vld [vmem:[#allocation8 + $0xa8] sm:$0xff]
    %v7156 = vld [vmem:[#allocation8 + $0xb0] sm:$0xff]
    %v7157 = vld [vmem:[#allocation8 + $0xb8] sm:$0xff]
    %v7158 = vld [vmem:[#allocation8 + $0xc0] sm:$0xff]
    %v7159 = vld [vmem:[%s7 + $0x540] sm:$0xf]
    %v7160 = vld [vmem:[%s7 + $0x544] sm:$0xf]
    %v7161 = vld [vmem:[%s7 + $0x548] sm:$0xf]
    %v7162 = vld [vmem:[%s7 + $0x54c] sm:$0xf]
    %v7163 = vld [vmem:[%s7 + $0x550] sm:$0xf]
    %v7164 = vld [vmem:[%s7 + $0x554] sm:$0xf]
    %v7165 = vld [vmem:[%s7 + $0x558] sm:$0xf]
    %v7166 = vld [vmem:[%s7 + $0x55c] sm:$0xf]
    %v7167 = vld [vmem:[%s7 + $0x560] sm:$0xf]
    %v7168 = vld [vmem:[%s7 + $0x564] sm:$0xf]
    %v7169 = vld [vmem:[%s7 + $0x568] sm:$0xf]
    %v7170 = vld [vmem:[%s7 + $0x56c] sm:$0xf]
    %v7171 = vld [vmem:[%s7 + $0x570] sm:$0xf]
    %v7172 = vld [vmem:[%s7 + $0x574] sm:$0xf]
    %v7173 = vld [vmem:[%s7 + $0x578] sm:$0xf]
    %v7174 = vld [vmem:[%s7 + $0x57c] sm:$0xf]
    %v7175 = vld [vmem:[%s7 + $0x580] sm:$0xf]
    %v7176 = vld [vmem:[%s7 + $0x584] sm:$0xf]
    %v7177 = vld [vmem:[%s7 + $0x588] sm:$0xf]
    %v7178 = vld [vmem:[%s7 + $0x58c] sm:$0xf]
    %v7179 = vld [vmem:[%s7 + $0x590] sm:$0xf]
    %v7180 = vld [vmem:[%s7 + $0x594] sm:$0xf]
    %v7181 = vld [vmem:[%s7 + $0x598] sm:$0xf]
    %v7182 = vld [vmem:[%s7 + $0x59c] sm:$0xf]
    %v7183 = vld [vmem:[%s7 + $0x5a0] sm:$0xf]
    %v7184 = vld [vmem:[%s7 + $0x5a4] sm:$0xf]
    %v7185 = vld [vmem:[%s7 + $0x5a8] sm:$0xf]
    %v7186 = vld [vmem:[%s7 + $0x5ac] sm:$0xf]
    %v7187 = vld [vmem:[%s7 + $0x5b0] sm:$0xf]
    %v7188 = vld [vmem:[%s7 + $0x5b4] sm:$0xf]
    %v7189 = vld [vmem:[%s7 + $0x5b8] sm:$0xf]
    %v7190 = vld [vmem:[%s7 + $0x5bc] sm:$0xf]
    %v7191 = vld [vmem:[%s7 + $0x5c0] sm:$0xf]
    %v7192 = vld [vmem:[%s7 + $0x5c4] sm:$0xf]
    %v7193 = vld [vmem:[%s7 + $0x5c8] sm:$0xf]
    %v7194 = vld [vmem:[%s7 + $0x5cc] sm:$0xf]
    %v7195 = vld [vmem:[%s7 + $0x5d0] sm:$0xf]
    %v7196 = vld [vmem:[%s7 + $0x5d4] sm:$0xf]
    %v7197 = vld [vmem:[%s7 + $0x5d8] sm:$0xf]
    %v7198 = vld [vmem:[%s7 + $0x5dc] sm:$0xf]
    %v7199 = vld [vmem:[%s7 + $0x5e0] sm:$0xf]
    %v7200 = vld [vmem:[%s7 + $0x5e4] sm:$0xf]
    %v7201 = vld [vmem:[%s7 + $0x5e8] sm:$0xf]
    %v7202 = vld [vmem:[%s7 + $0x5ec] sm:$0xf]
    %v7203 = vld [vmem:[%s7 + $0x5f0] sm:$0xf]
    %v7204 = vld [vmem:[%s7 + $0x5f4] sm:$0xf]
    %v7205 = vld [vmem:[%s7 + $0x5f8] sm:$0xf]
    %v7206 = vld [vmem:[%s7 + $0x5fc] sm:$0xf]
    %v7207 = vld [vmem:[%s7 + $0x600] sm:$0xf]
    %v7208 = vld [vmem:[%s7 + $0x604] sm:$0xf]
    %v7209 = vld [vmem:[%s7 + $0x608] sm:$0xf]
    %v7210 = vld [vmem:[%s7 + $0x60c] sm:$0xf]
    %v7211 = vld [vmem:[%s7 + $0x610] sm:$0xf]
    %v7212 = vld [vmem:[%s7 + $0x614] sm:$0xf]
    %v7213 = vld [vmem:[%s7 + $0x618] sm:$0xf]
    %v7214 = vld [vmem:[%s7 + $0x61c] sm:$0xf]
    %v7271 = vunpack.c.l.b16 %v7159
    %v7272 = vunpack.c.l.b16 %v7160
    %v7273 = vunpack.c.l.b16 %v7161
    %v7274 = vunpack.c.l.b16 %v7162
    %v7275 = vunpack.c.l.b16 %v7163
    %v7276 = vunpack.c.l.b16 %v7164
    %v7277 = vunpack.c.l.b16 %v7165
    %v7278 = vunpack.c.l.b16 %v7166
    %v7279 = vunpack.c.l.b16 %v7167
    %v7280 = vunpack.c.l.b16 %v7168
    %v7281 = vunpack.c.l.b16 %v7169
    %v7282 = vunpack.c.l.b16 %v7170
    %v7283 = vunpack.c.l.b16 %v7171
    %v7284 = vunpack.c.l.b16 %v7172
    %v7285 = vunpack.c.l.b16 %v7173
    %v7286 = vunpack.c.l.b16 %v7174
    %v7287 = vunpack.c.l.b16 %v7175
    %v7288 = vunpack.c.l.b16 %v7176
    %v7289 = vunpack.c.l.b16 %v7177
    %v7290 = vunpack.c.l.b16 %v7178
    %v7291 = vunpack.c.l.b16 %v7179
    %v7292 = vunpack.c.l.b16 %v7180
    %v7293 = vunpack.c.l.b16 %v7181
    %v7294 = vunpack.c.l.b16 %v7182
    %v7295 = vunpack.c.l.b16 %v7183
    %v7296 = vunpack.c.l.b16 %v7184
    %v7297 = vunpack.c.l.b16 %v7185
    %v7298 = vunpack.c.l.b16 %v7186
    %v7299 = vunpack.c.l.b16 %v7187
    %v7300 = vunpack.c.l.b16 %v7188
    %v7301 = vunpack.c.l.b16 %v7189
    %v7302 = vunpack.c.l.b16 %v7190
    %v7303 = vunpack.c.l.b16 %v7191
    %v7304 = vunpack.c.l.b16 %v7192
    %v7305 = vunpack.c.l.b16 %v7193
    %v7306 = vunpack.c.l.b16 %v7194
    %v7307 = vunpack.c.l.b16 %v7195
    %v7308 = vunpack.c.l.b16 %v7196
    %v7309 = vunpack.c.l.b16 %v7197
    %v7310 = vunpack.c.l.b16 %v7198
    %v7311 = vunpack.c.l.b16 %v7199
    %v7312 = vunpack.c.l.b16 %v7200
    %v7313 = vunpack.c.l.b16 %v7201
    %v7314 = vunpack.c.l.b16 %v7202
    %v7315 = vunpack.c.l.b16 %v7203
    %v7316 = vunpack.c.l.b16 %v7204
    %v7317 = vunpack.c.l.b16 %v7205
    %v7318 = vunpack.c.l.b16 %v7206
    %v7319 = vunpack.c.l.b16 %v7207
    %v7320 = vunpack.c.l.b16 %v7208
    %v7321 = vunpack.c.l.b16 %v7209
    %v7322 = vunpack.c.l.b16 %v7210
    %v7323 = vunpack.c.l.b16 %v7211
    %v7324 = vunpack.c.l.b16 %v7212
    %v7325 = vunpack.c.l.b16 %v7213
    %v7326 = vunpack.c.l.b16 %v7214
    %v7327 = vpack.c.b16 %v7272, %v7271
    %v7328 = vpack.c.b16 %v7274, %v7273
    %v7329 = vpack.c.b16 %v7276, %v7275
    %v7330 = vpack.c.b16 %v7278, %v7277
    %v7331 = vpack.c.b16 %v7280, %v7279
    %v7332 = vpack.c.b16 %v7282, %v7281
    %v7333 = vpack.c.b16 %v7284, %v7283
    %v7334 = vpack.c.b16 %v7286, %v7285
    %v7335 = vpack.c.b16 %v7288, %v7287
    %v7336 = vpack.c.b16 %v7290, %v7289
    %v7337 = vpack.c.b16 %v7292, %v7291
    %v7338 = vpack.c.b16 %v7294, %v7293
    %v7339 = vpack.c.b16 %v7296, %v7295
    %v7340 = vpack.c.b16 %v7298, %v7297
    %v7341 = vpack.c.b16 %v7300, %v7299
    %v7342 = vpack.c.b16 %v7302, %v7301
    %v7343 = vpack.c.b16 %v7304, %v7303
    %v7344 = vpack.c.b16 %v7306, %v7305
    %v7345 = vpack.c.b16 %v7308, %v7307
    %v7346 = vpack.c.b16 %v7310, %v7309
    %v7347 = vpack.c.b16 %v7312, %v7311
    %v7348 = vpack.c.b16 %v7314, %v7313
    %v7349 = vpack.c.b16 %v7316, %v7315
    %v7350 = vpack.c.b16 %v7318, %v7317
    %v7351 = vpack.c.b16 %v7320, %v7319
    %v7352 = vpack.c.b16 %v7322, %v7321
    %v7353 = vpack.c.b16 %v7324, %v7323
    %v7354 = vpack.c.b16 %v7326, %v7325
    %v7384 = vsel %vm4732, %v7158, 0
    %7386 = vmatprep.subr.bf16.mxu0 0
    %7387 = vmatpush1.bf16.msra.mxu0 %v7327
    %7388 = vmatprep.subr.bf16.mxu0 0
    %7389 = vmatpush1.bf16.msra.mxu0 %v7328
    %7390 = vmatprep.subr.bf16.mxu0 0
    %7391 = vmatpush1.bf16.msra.mxu0 %v7329
    %7392 = vmatprep.subr.bf16.mxu0 0
    %7393 = vmatpush1.bf16.msra.mxu0 %v7330
    %7394 = vmatprep.subr.bf16.mxu0 0
    %7395 = vmatpush1.bf16.msra.mxu0 %v7331
    %7396 = vmatprep.subr.bf16.mxu0 0
    %7397 = vmatpush1.bf16.msra.mxu0 %v7332
    %7398 = vmatprep.subr.bf16.mxu0 0
    %7399 = vmatpush1.bf16.msra.mxu0 %v7333
    %7400 = vmatprep.subr.bf16.mxu0 0
    %7401 = vmatpush1.bf16.msra.mxu0 %v7334
    %7402 = vmatprep.subr.bf16.mxu0 0
    %7403 = vmatpush1.bf16.msra.mxu0 %v7335
    %7404 = vmatprep.subr.bf16.mxu0 0
    %7405 = vmatpush1.bf16.msra.mxu0 %v7336
    %7406 = vmatprep.subr.bf16.mxu0 0
    %7407 = vmatpush1.bf16.msra.mxu0 %v7337
    %7408 = vmatprep.subr.bf16.mxu0 0
    %7409 = vmatpush1.bf16.msra.mxu0 %v7338
    %7410 = vmatprep.subr.bf16.mxu0 0
    %7411 = vmatpush1.bf16.msra.mxu0 %v7339
    %7412 = vmatprep.subr.bf16.mxu0 0
    %7413 = vmatpush1.bf16.msra.mxu0 %v7340
    %7414 = vmatprep.subr.bf16.mxu0 0
    %7415 = vmatpush1.bf16.msra.mxu0 %v7341
    %7416 = vmatprep.subr.bf16.mxu0 0
    %7417 = vmatpush1.bf16.msra.mxu0 %v7342
    %7418 = vmatprep.mubr.bf16.mxu0 %v7156
    %7419 = vmatmul.mubr.bf16.gmra.mrb[0].mxu0 %v7155
    %v7420 = vpop.f32.mrb[0].mxu0
    %v7421 = vadd.f32 0.0, %v7420
    %v7422 = vpop.f32.mrb[0].mxu0
    %v7423 = vpop.f32.mrb[0].mxu0
    %v7424 = vadd.f32 0.0, %v7423
    %v7425 = vpop.f32.mrb[0].mxu0
    %7426 = vdwg.mxu0
    %7427 = vmatprep.subr.bf16.mxu0 0
    %7428 = vmatpush1.bf16.msra.mxu0 %v7343
    %7429 = vmatprep.subr.bf16.mxu0 0
    %7430 = vmatpush1.bf16.msra.mxu0 %v7344
    %7431 = vmatprep.subr.bf16.mxu0 0
    %7432 = vmatpush1.bf16.msra.mxu0 %v7345
    %7433 = vmatprep.subr.bf16.mxu0 0
    %7434 = vmatpush1.bf16.msra.mxu0 %v7346
    %7435 = vmatprep.subr.bf16.mxu0 0
    %7436 = vmatpush1.bf16.msra.mxu0 %v7347
    %7437 = vmatprep.subr.bf16.mxu0 0
    %7438 = vmatpush1.bf16.msra.mxu0 %v7348
    %7439 = vmatprep.subr.bf16.mxu0 0
    %7440 = vmatpush1.bf16.msra.mxu0 %v7349
    %7441 = vmatprep.subr.bf16.mxu0 0
    %7442 = vmatpush1.bf16.msra.mxu0 %v7350
    %7443 = vmatprep.subr.bf16.mxu0 0
    %7444 = vmatpush1.bf16.msra.mxu0 %v7351
    %7445 = vmatprep.subr.bf16.mxu0 0
    %7446 = vmatpush1.bf16.msra.mxu0 %v7352
    %7447 = vmatprep.subr.bf16.mxu0 0
    %7448 = vmatpush1.bf16.msra.mxu0 %v7353
    %7449 = vmatprep.subr.bf16.mxu0 0
    %7450 = vmatpush1.bf16.msra.mxu0 %v7354
    %7451 = vmatprep.subr.bf16.mxu0 0
    %7452 = vmatpush1.bf16.msra.mxu0 0
    %7453 = vmatprep.subr.bf16.mxu0 0
    %7454 = vmatpush1.bf16.msra.mxu0 0
    %7455 = vmatprep.subr.bf16.mxu0 0
    %7456 = vmatpush1.bf16.msra.mxu0 0
    %7457 = vmatprep.subr.bf16.mxu0 0
    %7458 = vmatpush1.bf16.msra.mxu0 0
    %7459 = vmatprep.mubr.bf16.mxu0 %v7384
    %7460 = vmatmul.mubr.bf16.gmra.mrb[0].mxu0 %v7157
    %v7461 = vpop.f32.mrb[0].mxu0
    %v7462 = vadd.f32 %v7421, %v7461
    %v7463 = vpop.f32.mrb[0].mxu0
    %v7464 = vpop.f32.mrb[0].mxu0
    %v7465 = vadd.f32 %v7424, %v7464
    %v7466 = vpop.f32.mrb[0].mxu0
    %7467 = vdwg.mxu0
    %v7468 = vadd.f32 %v7153, %v7462
    %v7469 = vadd.f32 %v7154, %v7465
    %v7470 = vld [vmem:[%s8] sm:$0x1]
    %v7472 = vlaneseq
    %v7473 = vshrl.u32 %v7472, 7
    %v7474 = vsub.s32 0, %v7473
    %v7475 = vrot.slane %v7470, %v7474
    %v7477 = vadd.f32 %v7468, %v7475
    %v7478 = vadd.f32 %v7469, %v7475
    %v7479 = vmax.f32 %v7477, 0.0
    %v7480 = vmax.f32 %v7478, 0.0
    %v7481 = vpack.c.bf16 %v7480, %v7479
    %v7482 = vld [vmem:[%s9] sm:$0xf]
    %v7483 = vld [vmem:[%s9 + $0x4] sm:$0xf]
    %v7484 = vld [vmem:[%s9 + $0x8] sm:$0xf]
    %v7485 = vld [vmem:[%s9 + $0xc] sm:$0xf]
    %v7486 = vld [vmem:[%s9 + $0x10] sm:$0xf]
    %v7487 = vld [vmem:[%s9 + $0x14] sm:$0xf]
    %v7488 = vld [vmem:[%s9 + $0x18] sm:$0xf]
    %v7489 = vld [vmem:[%s9 + $0x1c] sm:$0xf]
    %v7490 = vld [vmem:[%s9 + $0x20] sm:$0xf]
    %v7491 = vld [vmem:[%s9 + $0x24] sm:$0xf]
    %v7492 = vld [vmem:[%s9 + $0x28] sm:$0xf]
    %v7493 = vld [vmem:[%s9 + $0x2c] sm:$0xf]
    %v7494 = vld [vmem:[%s9 + $0x30] sm:$0x3]
    %v7495 = vld [vmem:[%s10] sm:$0x1]
    %v7497 = vlaneseq
    %v7498 = vshrl.u32 %v7497, 7
    %v7499 = vsub.s32 0, %v7498
    %v7500 = vrot.slane %v7495, %v7499
    %v7515 = vunpack.c.l.b16 %v7482
    %v7516 = vunpack.c.l.b16 %v7483
    %v7517 = vunpack.c.l.b16 %v7484
    %v7518 = vunpack.c.l.b16 %v7485
    %v7519 = vunpack.c.l.b16 %v7486
    %v7520 = vunpack.c.l.b16 %v7487
    %v7521 = vunpack.c.l.b16 %v7488
    %v7522 = vunpack.c.l.b16 %v7489
    %v7523 = vunpack.c.l.b16 %v7490
    %v7524 = vunpack.c.l.b16 %v7491
    %v7525 = vunpack.c.l.b16 %v7492
    %v7526 = vunpack.c.l.b16 %v7493
    %v7527 = vunpack.c.l.b16 %v7494
    %v7528 = vpack.c.b16 %v7516, %v7515
    %v7529 = vpack.c.b16 %v7518, %v7517
    %v7530 = vpack.c.b16 %v7520, %v7519
    %v7531 = vpack.c.b16 %v7522, %v7521
    %v7532 = vpack.c.b16 %v7524, %v7523
    %v7533 = vpack.c.b16 %v7526, %v7525
    %v7534 = vpack.c.b16 %v7527, %v7527
    %vm7541 = vcmask 818176
    %v7543 = vsel %vm7541, %v7481, 0
    %vm7545 = vcmask 1041408
    %v7547 = vsel %vm7545, %v7534, 0
    %7549 = vmatprep.subr.bf16.mxu0 0
    %7550 = vmatpush1.bf16.msra.mxu0 %v7528
    %7551 = vmatprep.subr.bf16.mxu0 0
    %7552 = vmatpush1.bf16.msra.mxu0 %v7529
    %7553 = vmatprep.subr.bf16.mxu0 0
    %7554 = vmatpush1.bf16.msra.mxu0 %v7530
    %7555 = vmatprep.subr.bf16.mxu0 0
    %7556 = vmatpush1.bf16.msra.mxu0 %v7531
    %7557 = vmatprep.subr.bf16.mxu0 0
    %7558 = vmatpush1.bf16.msra.mxu0 %v7532
    %7559 = vmatprep.subr.bf16.mxu0 0
    %7560 = vmatpush1.bf16.msra.mxu0 %v7533
    %7561 = vmatprep.subr.bf16.mxu0 0
    %7562 = vmatpush1.bf16.msra.mxu0 %v7547
    %7563 = vmatprep.subr.bf16.mxu0 0
    %7564 = vmatpush1.bf16.msra.mxu0 0
    %7565 = vmatprep.subr.bf16.mxu0 0
    %7566 = vmatpush1.bf16.msra.mxu0 0
    %7567 = vmatprep.subr.bf16.mxu0 0
    %7568 = vmatpush1.bf16.msra.mxu0 0
    %7569 = vmatprep.subr.bf16.mxu0 0
    %7570 = vmatpush1.bf16.msra.mxu0 0
    %7571 = vmatprep.subr.bf16.mxu0 0
    %7572 = vmatpush1.bf16.msra.mxu0 0
    %7573 = vmatprep.subr.bf16.mxu0 0
    %7574 = vmatpush1.bf16.msra.mxu0 0
    %7575 = vmatprep.subr.bf16.mxu0 0
    %7576 = vmatpush1.bf16.msra.mxu0 0
    %7577 = vmatprep.subr.bf16.mxu0 0
    %7578 = vmatpush1.bf16.msra.mxu0 0
    %7579 = vmatprep.subr.bf16.mxu0 0
    %7580 = vmatpush1.bf16.msra.mxu0 0
    %7581 = vmatprep.mubr.bf16.mxu0 0
    %7582 = vmatmul.mubr.bf16.gmra.mrb[0].mxu0 %v7543
    %v7583 = vpop.f32.mrb[0].mxu0
    %v7584 = vadd.f32 %v7500, %v7583
    %v7585 = vpop.f32.mrb[0].mxu0
    %v7586 = vpop.f32.mrb[0].mxu0
    %v7587 = vadd.f32 %v7500, %v7586
    %v7588 = vpop.f32.mrb[0].mxu0
    %7589 = vdwg.mxu0
    %vm7590 = vcmask 80896
    %7591 = vst.msk [vmem:[#allocation9] sm:$0xff] %vm7590, %v7584
    %7592 = vst.msk [vmem:[#allocation9 + $0x8] sm:$0xff] %vm7590, %v7587
    // Predicated region
    $region81: #{cnn_forward.1} parent=1 // pred_check
      _
    $region82: #{cnn_forward.1} parent=1 // pred_check_branch
      %7594 = sbr.rel (0) target = $region84
    $region83: #{cnn_forward.1} parent=1 // pred_region
      %s7596 = ssub.s32 256, 256
      %7597 = vsyncadd [#allocation10], %s7596
      %s7598 = sshll.u32 [#allocation9], 4
      %s7599 = int_to_ptr.vmem [resolvable:$true] %s7598
      %7604 = dma.vmem_to_hbm [thread:$0]  %s7599, 256, %s11, [#allocation10], 128, 128, 8
    $region84: #{cnn_forward.1} parent=1 // pred_fallthru
      _
    // Predicated region
    $region85: #{cnn_forward.1} parent=1 // pred_check
      _
    $region86: #{cnn_forward.1} parent=1 // pred_check_branch
      %7606 = sbr.rel (0) target = $region88
    $region87: #{cnn_forward.1} parent=1 // pred_region
      %7607 = dma.done [#allocation10], 256
    $region88: #{cnn_forward.1} parent=1 // pred_fallthru
      _
    %7608 = vsyncpa [#allocation10], 1

</llo_original>
